<compile_context>
chip_gen: v5e
topology: v5e:2x2
jax: 0.10.0
libtpu: 0.0.40
codegen_flags: <defaults>
</compile_context>

<pallas_src>
import math

import jax
import jax.numpy as jnp
from jax.experimental import pallas as pl
from jax.experimental.pallas import tpu as pltpu

# ---------------- tiny synthetic configuration ----------------
B = 2                    # batch
IMG = 16                 # image height = width
IMG_C = 3                # image channels
PATCH = 8                # patch size -> 2x2 = 4 patches
N_PATCH = (IMG // PATCH) ** 2
V_HID = 32               # CLIP vision hidden size
V_HEADS = 4
V_DH = V_HID // V_HEADS
V_MLP = 64
V_LAYERS = 2
V_SEQ = N_PATCH + 1      # + CLS token
LN_EPS = 1e-5

D_MODEL = 32             # T5 d_model
T5_HEADS = 4
T5_DKV = 8
T5_INNER = T5_HEADS * T5_DKV
T5_FF = 64
T5_LAYERS = 2
VOCAB = 64
SEQ = 8                  # decoder sequence length
REL_BUCKETS = 8
REL_MAXDIST = 16
RMS_EPS = 1e-6
PAD_ID = 0
NEG = -1e9

NC = B * V_SEQ           # batch-folded CLIP rows   (CLS_b0, CLS_b1, patches_b0, patches_b1)
NP = B * N_PATCH         # batch-folded encoder rows for cross attention
NT = B * SEQ             # batch-folded decoder rows

BF16 = jnp.bfloat16
F32 = jnp.float32


# ============================ in-kernel helpers ============================

def _ln(x, g, b):
    mu = jnp.mean(x, axis=-1, keepdims=True)
    var = jnp.mean((x - mu) ** 2, axis=-1, keepdims=True)
    return (x - mu) * jax.lax.rsqrt(var + LN_EPS) * g + b


def _rms(x, g):
    var = jnp.mean(x * x, axis=-1, keepdims=True)
    return x * jax.lax.rsqrt(var + RMS_EPS) * g


def _mm(x, w):
    # bf16 x bf16 matmul on the MXU, f32 accumulation.
    return jnp.dot(x.astype(BF16), w.astype(BF16), preferred_element_type=F32)


def _mha(q, k, v, o_w, bias, heads, dh, scale=1.0):
    """Multi-head attention on batch-folded rows.

    q: (Nq, heads*dh), k/v: (Nk, heads*dh) f32; o_w: (heads*dh, Dout) bf16.
    `bias` is an additive f32 bias of shape (heads, Nq, Nk) or (Nq, Nk) that
    already encodes the block-diagonal batch mask (plus rel-pos / causal /
    padding terms for T5 self-attention).  The static head loop folds every
    head's output straight into the output projection (a sublane slice of
    o_w), so there is no lane-axis concat of head outputs.
    """
    out = None
    for h in range(heads):
        c = slice(h * dh, (h + 1) * dh)
        b_h = bias[h] if bias.ndim == 3 else bias
        qh = q[:, c] if scale == 1.0 else q[:, c] * scale
        s = jax.lax.dot_general(qh.astype(BF16), k[:, c].astype(BF16),
                                (((1,), (1,)), ((), ())),
                                preferred_element_type=F32) + b_h        # (Nq, Nk)
        s = s - jnp.max(s, axis=-1, keepdims=True)
        p = jnp.exp(s)
        p = p / jnp.sum(p, axis=-1, keepdims=True)   # exact divide (review note)
        oh = jnp.dot(p.astype(BF16), v[:, c].astype(BF16),
                     preferred_element_type=F32)                          # (Nq, dh)
        proj = jnp.dot(oh.astype(BF16), o_w[c, :].astype(BF16),
                       preferred_element_type=F32)                        # (Nq, Dout)
        out = proj if out is None else out + proj
    return out


# ============================ fused forward kernel ============================

def _clip_flant5_kernel(
    # ---- data ----
    patches_ref,       # (B*N_PATCH, C*P*P) f32
    base_ref,          # (NC, V_HID) f32   rows [cls+pos0]*B then [pos1..pos4]*B
    clip_mask_ref,     # (NC, NC) f32      block-diagonal batch mask for CLIP attn
    dec_emb_ref,       # (NT, D_MODEL) f32 decoder token embeddings (shift-right applied)
    sa_bias_ref,       # (T5_HEADS, NT, NT) f32 rel-pos + causal + pad + batch mask
    ca_bias_ref,       # (NT, NP) f32      cross-attn batch mask
    onehot_ref,        # (NT, VOCAB) f32   label one-hots (all-zero row for -100)
    # ---- CLIP weights ----
    patch_w_ref, pre_g_ref, pre_b_ref,
    c_ln1g_ref, c_ln1b_ref, c_qw_ref, c_qb_ref, c_kw_ref, c_kb_ref,
    c_vw_ref, c_vb_ref, c_ow_ref, c_ob_ref, c_ln2g_ref, c_ln2b_ref,
    c_f1w_ref, c_f1b_ref, c_f2w_ref, c_f2b_ref,
    # ---- vision projector ----
    proj_w_ref, proj_b_ref,
    # ---- T5 decoder weights ----
    t_lnsa_ref, t_sq_ref, t_sk_ref, t_sv_ref, t_so_ref,
    t_lnca_ref, t_cq_ref, t_ck_ref, t_cv_ref, t_co_ref,
    t_lnff_ref, t_wi0_ref, t_wi1_ref, t_wo_ref,
    # ---- final ----
    final_ln_ref, lm_w_ref,
    # ---- output ----
    loss_ref,          # (1, 1) f32
):
    # ---------------- CLIP vision encoder (frozen) ----------------
    emb = _mm(patches_ref[...], patch_w_ref[...])              # (B*N_PATCH, V_HID)
    base = base_ref[...]
    # folded rows: [CLS_b0, CLS_b1, patches_b0(4), patches_b1(4)]
    hs = jnp.concatenate([base[:B], base[B:] + emb], axis=0)   # (NC, V_HID)
    hs = _ln(hs, pre_g_ref[...], pre_b_ref[...])               # pre_layrnorm

    clip_mask = clip_mask_ref[...]
    for li in range(V_LAYERS):                                 # static unroll
        # --- self attention (scale = head_dim**-0.5, no causal mask) ---
        x = _ln(hs, c_ln1g_ref[li], c_ln1b_ref[li])
        q = _mm(x, c_qw_ref[li]) + c_qb_ref[li]
        k = _mm(x, c_kw_ref[li]) + c_kb_ref[li]
        v = _mm(x, c_vw_ref[li]) + c_vb_ref[li]
        attn = _mha(q, k, v, c_ow_ref[li], clip_mask,
                    heads=V_HEADS, dh=V_DH, scale=V_DH ** -0.5) + c_ob_ref[li]
        hs = hs + attn
        # --- MLP with quick_gelu (f32 epilogue) ---
        x = _ln(hs, c_ln2g_ref[li], c_ln2b_ref[li])
        h1 = _mm(x, c_f1w_ref[li]) + c_f1b_ref[li]
        h1 = h1 * jax.nn.sigmoid(1.702 * h1)
        hs = hs + _mm(h1, c_f2w_ref[li]) + c_f2b_ref[li]

    # NOTE: HF CLIPVisionTransformer applies post_layernorm only to the pooled
    # CLS output; last_hidden_state (what the module consumes) is un-normalized.
    # Drop the CLS rows (first B rows) and project to d_model.
    enc = _mm(hs[B:], proj_w_ref[...]) + proj_b_ref[...]       # (NP, D_MODEL)

    # ---------------- Flan-T5 decoder ----------------
    hs = dec_emb_ref[...]                                      # (NT, D_MODEL)
    sa_bias = sa_bias_ref[...]
    ca_bias = ca_bias_ref[...]
    for li in range(T5_LAYERS):                                # static unroll
        # --- self attention (T5: no 1/sqrt(d) scaling, no dense biases) ---
        x = _rms(hs, t_lnsa_ref[li])
        q = _mm(x, t_sq_ref[li])
        k = _mm(x, t_sk_ref[li])
        v = _mm(x, t_sv_ref[li])
        hs = hs + _mha(q, k, v, t_so_ref[li], sa_bias,
                       heads=T5_HEADS, dh=T5_DKV)

        # --- cross attention over projected visual features ---
        x = _rms(hs, t_lnca_ref[li])
        q = _mm(x, t_cq_ref[li])
        k = _mm(enc, t_ck_ref[li])
        v = _mm(enc, t_cv_ref[li])
        hs = hs + _mha(q, k, v, t_co_ref[li], ca_bias,
                       heads=T5_HEADS, dh=T5_DKV)

        # --- gated-GELU feed forward (wi_0 / wi_1 as separate, lane-0 matmuls) ---
        x = _rms(hs, t_lnff_ref[li])
        hg = jax.nn.gelu(_mm(x, t_wi0_ref[li]), approximate=True)
        hl = _mm(x, t_wi1_ref[li])
        hs = hs + _mm(hg * hl, t_wo_ref[li])

    # ---- final RMSNorm + lm_head + mean cross-entropy; logits stay in VMEM ----
    # (Flan-T5 has untied embeddings -> no d_model**-0.5 rescale before lm_head.)
    x = _rms(hs, final_ln_ref[...])
    logits = _mm(x, lm_w_ref[...])                             # (NT, VOCAB) f32
    onehot = onehot_ref[...]
    m = jnp.max(logits, axis=-1, keepdims=True)
    lse = jnp.log(jnp.sum(jnp.exp(logits - m), axis=-1, keepdims=True)) + m
    picked = jnp.sum(logits * onehot, axis=-1, keepdims=True)  # (NT, 1)
    valid = jnp.sum(onehot, axis=-1, keepdims=True)            # 1.0 valid / 0.0 ignored
    total = jnp.sum((lse - picked) * valid, axis=0, keepdims=True)   # (1, 1)
    cnt = jnp.sum(valid, axis=0, keepdims=True)
    loss_ref[...] = total / jnp.maximum(cnt, 1.0)              # exact divide


# ============================ host-side glue ============================

def compute_rel_bias(table, qlen, klen):
    # T5 relative-position bucketing (decoder self-attention, bidirectional=False).
    ctx = jnp.arange(qlen)[:, None]
    mem = jnp.arange(klen)[None, :]
    rel = mem - ctx
    rel_c = -jnp.minimum(rel, 0)
    max_exact = REL_BUCKETS // 2
    is_small = rel_c < max_exact
    rp_f = jnp.maximum(rel_c, 1).astype(F32)
    large = max_exact + (jnp.log(rp_f / max_exact)
                         / math.log(REL_MAXDIST / max_exact)
                         * (REL_BUCKETS - max_exact)).astype(jnp.int32)
    large = jnp.minimum(large, REL_BUCKETS - 1)
    buckets = jnp.where(is_small, rel_c, large)
    values = jnp.take(table, buckets, axis=0)          # (q, k, H)
    return values.transpose(2, 0, 1)[None]             # (1, H, q, k)


def init_params(key):
    def take(shape, scale=0.02, dtype=F32):
        nonlocal key
        key, sub = jax.random.split(key)
        return (jax.random.normal(sub, shape, F32) * scale).astype(dtype)

    def layer_stack(n, make):
        layers = [make() for _ in range(n)]
        return {k: jnp.stack([l[k] for l in layers]) for k in layers[0]}

    p = {}
    # --- CLIP vision encoder (frozen in the PyTorch module) ---
    p["patch_embed"] = take((IMG_C * PATCH * PATCH, V_HID), dtype=BF16)  # Conv2d weight
    p["class_embedding"] = take((1, V_HID))
    p["pos_embedding"] = take((V_SEQ, V_HID))
    p["pre_ln_g"] = jnp.ones((1, V_HID), F32)
    p["pre_ln_b"] = jnp.zeros((1, V_HID), F32)
    p["clip"] = layer_stack(V_LAYERS, lambda: dict(
        ln1_g=jnp.ones((1, V_HID), F32), ln1_b=jnp.zeros((1, V_HID), F32),
        q_w=take((V_HID, V_HID), dtype=BF16), q_b=take((1, V_HID)),
        k_w=take((V_HID, V_HID), dtype=BF16), k_b=take((1, V_HID)),
        v_w=take((V_HID, V_HID), dtype=BF16), v_b=take((1, V_HID)),
        o_w=take((V_HID, V_HID), dtype=BF16), o_b=take((1, V_HID)),
        ln2_g=jnp.ones((1, V_HID), F32), ln2_b=jnp.zeros((1, V_HID), F32),
        fc1_w=take((V_HID, V_MLP), dtype=BF16), fc1_b=take((1, V_MLP)),
        fc2_w=take((V_MLP, V_HID), dtype=BF16), fc2_b=take((1, V_HID)),
    ))
    # --- vision projector ---
    p["proj_w"] = take((V_HID, D_MODEL), dtype=BF16)
    p["proj_b"] = take((1, D_MODEL))
    # --- Flan-T5 style decoder ---
    p["embed"] = take((VOCAB, D_MODEL), 1.0)
    p["rel_bias"] = take((REL_BUCKETS, T5_HEADS), 0.1)
    p["t5"] = layer_stack(T5_LAYERS, lambda: dict(
        ln_sa=jnp.ones((1, D_MODEL), F32),
        sa_q=take((D_MODEL, T5_INNER), dtype=BF16),
        sa_k=take((D_MODEL, T5_INNER), dtype=BF16),
        sa_v=take((D_MODEL, T5_INNER), dtype=BF16),
        sa_o=take((T5_INNER, D_MODEL), dtype=BF16),
        ln_ca=jnp.ones((1, D_MODEL), F32),
        ca_q=take((D_MODEL, T5_INNER), dtype=BF16),
        ca_k=take((D_MODEL, T5_INNER), dtype=BF16),
        ca_v=take((D_MODEL, T5_INNER), dtype=BF16),
        ca_o=take((T5_INNER, D_MODEL), dtype=BF16),
        ln_ff=jnp.ones((1, D_MODEL), F32),
        wi_0=take((D_MODEL, T5_FF), dtype=BF16),
        wi_1=take((D_MODEL, T5_FF), dtype=BF16),
        wo=take((T5_FF, D_MODEL), dtype=BF16),
    ))
    p["final_ln"] = jnp.ones((1, D_MODEL), F32)
    p["lm_head"] = take((D_MODEL, VOCAB), dtype=BF16)          # Flan-T5: untied lm_head
    return p


def forward(params, input_ids, attention_mask, pixel_values):
    # ---------------- host-side layout / label / mask glue ----------------
    # NCHW -> (B*num_patches, C*ph*pw) patch rows (pure layout).
    x = pixel_values.reshape(B, IMG_C, IMG // PATCH, PATCH, IMG // PATCH, PATCH)
    patches = x.transpose(0, 2, 4, 1, 3, 5).reshape(B * N_PATCH, IMG_C * PATCH * PATCH)

    # class token + position embeddings pre-combined, batch-folded row order:
    # [cls+pos0]*B followed by [pos1..pos_{N_PATCH}]*B.
    cls_tok = params["class_embedding"] + params["pos_embedding"][0:1]
    base = jnp.concatenate([jnp.tile(cls_tok, (B, 1)),
                            jnp.tile(params["pos_embedding"][1:], (B, 1))], axis=0)

    # CLIP attention block-diagonal batch mask (folded row order above).
    bid = jnp.concatenate([jnp.arange(B), jnp.repeat(jnp.arange(B), N_PATCH)])
    clip_mask = jnp.where(bid[:, None] == bid[None, :], 0.0, NEG).astype(F32)

    # input_ids[input_ids == 0] = -100 (in-place mutation in the PyTorch module).
    labels = jnp.where(input_ids == PAD_ID, -100, input_ids)
    # T5 _shift_right: decoder_input_ids from labels (start token = pad = 0).
    dec_in = jnp.zeros_like(labels).at[:, 1:].set(labels[:, :-1])
    dec_in = jnp.where(dec_in == -100, PAD_ID, dec_in)
    dec_emb = jnp.take(params["embed"], dec_in, axis=0).reshape(B * SEQ, D_MODEL)
    # lane-dense label one-hots; label -100 -> all-zero row (ignore_index).
    onehot = jax.nn.one_hot(labels.reshape(-1), VOCAB, dtype=F32)

    # T5 self-attention bias: rel-pos + causal + decoder padding + batch block mask.
    rel = compute_rel_bias(params["rel_bias"], SEQ, SEQ)                 # (1, H, S, S)
    causal = jnp.tril(jnp.ones((SEQ, SEQ), F32))
    keep = causal[None] * attention_mask[:, None, :].astype(F32)         # (B, S, S)
    bias_b = rel + (1.0 - keep)[:, None] * NEG                           # (B, H, S, S)
    sa_bias = jnp.full((T5_HEADS, NT, NT), NEG, F32)
    for b in range(B):
        sa_bias = sa_bias.at[:, b * SEQ:(b + 1) * SEQ,
                             b * SEQ:(b + 1) * SEQ].set(bias_b[b])
    # Cross-attention: only the batch block mask (no key padding / position bias).
    ca_keep = jnp.kron(jnp.eye(B, dtype=F32), jnp.ones((SEQ, N_PATCH), F32))
    ca_bias = (1.0 - ca_keep) * NEG

    c, t = params["clip"], params["t5"]
    args = [
        patches, base, clip_mask, dec_emb, sa_bias, ca_bias, onehot,
        params["patch_embed"], params["pre_ln_g"], params["pre_ln_b"],
        c["ln1_g"], c["ln1_b"], c["q_w"], c["q_b"], c["k_w"], c["k_b"],
        c["v_w"], c["v_b"], c["o_w"], c["o_b"], c["ln2_g"], c["ln2_b"],
        c["fc1_w"], c["fc1_b"], c["fc2_w"], c["fc2_b"],
        params["proj_w"], params["proj_b"],
        t["ln_sa"], t["sa_q"], t["sa_k"], t["sa_v"], t["sa_o"],
        t["ln_ca"], t["ca_q"], t["ca_k"], t["ca_v"], t["ca_o"],
        t["ln_ff"], t["wi_0"], t["wi_1"], t["wo"],
        params["final_ln"], params["lm_head"],
    ]

    out = pl.pallas_call(
        _clip_flant5_kernel,
        out_shape=jax.ShapeDtypeStruct((1, 1), F32),
        in_specs=[pl.BlockSpec(memory_space=pltpu.MemorySpace.VMEM)] * len(args),
        out_specs=pl.BlockSpec(memory_space=pltpu.MemorySpace.VMEM),
    )(*args)
    return out[0, 0]

# TODO(synk): beam-search `generate()` (num_beams=4, repetition/length penalties,
# KV caching) has no clean single-kernel Pallas equivalent and is not implemented.


if __name__ == "__main__":
    root = jax.random.PRNGKey(0)
    kp, ki, kpix = jax.random.split(root, 3)

    params = init_params(kp)
    pixel_values = jax.random.normal(kpix, (B, IMG_C, IMG, IMG), F32)
    input_ids = jax.random.randint(ki, (B, SEQ), 0, VOCAB, dtype=jnp.int32)
    # ensure some tokens equal 0 so the `input_ids[input_ids == 0] = -100` path runs
    input_ids = input_ids.at[0, 5].set(0).at[1, 3].set(0)
    attention_mask = jnp.array([[1, 1, 1, 1, 1, 1, 1, 1],
                                [1, 1, 1, 1, 1, 1, 0, 0]], jnp.int32)

    loss = jax.jit(forward)(params, input_ids, attention_mask, pixel_values)
    jax.block_until_ready(loss)
    assert loss.shape == () and bool(jnp.isfinite(loss))
    print("KERNEL_OK")
</pallas_src>

<mosaic_0001>
module attributes {stable_mosaic.version = 11 : i64} {
  func.func @_clip_flant5_kernel(%arg0: memref<8x192xf32, #tpu.memory_space<vmem>>, %arg1: memref<10x32xf32, #tpu.memory_space<vmem>>, %arg2: memref<10x10xf32, #tpu.memory_space<vmem>>, %arg3: memref<16x32xf32, #tpu.memory_space<vmem>>, %arg4: memref<4x16x16xf32, #tpu.memory_space<vmem>>, %arg5: memref<16x8xf32, #tpu.memory_space<vmem>>, %arg6: memref<16x64xf32, #tpu.memory_space<vmem>>, %arg7: memref<192x32xbf16, #tpu.memory_space<vmem>>, %arg8: memref<1x32xf32, #tpu.memory_space<vmem>>, %arg9: memref<1x32xf32, #tpu.memory_space<vmem>>, %arg10: memref<2x1x32xf32, #tpu.memory_space<vmem>>, %arg11: memref<2x1x32xf32, #tpu.memory_space<vmem>>, %arg12: memref<2x32x32xbf16, #tpu.memory_space<vmem>>, %arg13: memref<2x1x32xf32, #tpu.memory_space<vmem>>, %arg14: memref<2x32x32xbf16, #tpu.memory_space<vmem>>, %arg15: memref<2x1x32xf32, #tpu.memory_space<vmem>>, %arg16: memref<2x32x32xbf16, #tpu.memory_space<vmem>>, %arg17: memref<2x1x32xf32, #tpu.memory_space<vmem>>, %arg18: memref<2x32x32xbf16, #tpu.memory_space<vmem>>, %arg19: memref<2x1x32xf32, #tpu.memory_space<vmem>>, %arg20: memref<2x1x32xf32, #tpu.memory_space<vmem>>, %arg21: memref<2x1x32xf32, #tpu.memory_space<vmem>>, %arg22: memref<2x32x64xbf16, #tpu.memory_space<vmem>>, %arg23: memref<2x1x64xf32, #tpu.memory_space<vmem>>, %arg24: memref<2x64x32xbf16, #tpu.memory_space<vmem>>, %arg25: memref<2x1x32xf32, #tpu.memory_space<vmem>>, %arg26: memref<32x32xbf16, #tpu.memory_space<vmem>>, %arg27: memref<1x32xf32, #tpu.memory_space<vmem>>, %arg28: memref<2x1x32xf32, #tpu.memory_space<vmem>>, %arg29: memref<2x32x32xbf16, #tpu.memory_space<vmem>>, %arg30: memref<2x32x32xbf16, #tpu.memory_space<vmem>>, %arg31: memref<2x32x32xbf16, #tpu.memory_space<vmem>>, %arg32: memref<2x32x32xbf16, #tpu.memory_space<vmem>>, %arg33: memref<2x1x32xf32, #tpu.memory_space<vmem>>, %arg34: memref<2x32x32xbf16, #tpu.memory_space<vmem>>, %arg35: memref<2x32x32xbf16, #tpu.memory_space<vmem>>, %arg36: memref<2x32x32xbf16, #tpu.memory_space<vmem>>, %arg37: memref<2x32x32xbf16, #tpu.memory_space<vmem>>, %arg38: memref<2x1x32xf32, #tpu.memory_space<vmem>>, %arg39: memref<2x32x64xbf16, #tpu.memory_space<vmem>>, %arg40: memref<2x32x64xbf16, #tpu.memory_space<vmem>>, %arg41: memref<2x64x32xbf16, #tpu.memory_space<vmem>>, %arg42: memref<1x32xf32, #tpu.memory_space<vmem>>, %arg43: memref<32x64xbf16, #tpu.memory_space<vmem>>, %arg44: memref<1x1xf32, #tpu.memory_space<vmem>>) attributes {dimension_semantics = [], scalar_prefetch = 0 : i64, scratch_operands = 0 : i64, tpu.core_type = #tpu.core_type<tc>} {
    %c0 = arith.constant 0 : index
    %c0_0 = arith.constant 0 : index
    %0 = vector.load %arg0[%c0, %c0_0] : memref<8x192xf32, #tpu.memory_space<vmem>>, vector<8x192xf32>
    %c0_1 = arith.constant 0 : index
    %c0_2 = arith.constant 0 : index
    %1 = vector.load %arg7[%c0_1, %c0_2] : memref<192x32xbf16, #tpu.memory_space<vmem>>, vector<192x32xbf16>
    %2 = arith.truncf %0 : vector<8x192xf32> to vector<8x192xbf16>
    %cst = arith.constant dense<0.000000e+00> : vector<8x32xf32>
    %3 = tpu.matmul %2, %1, %cst {dimension_numbers = #tpu.dot_dimension_numbers<[1], [0], [0], [1], [0, 0, 1, 1], [], []>} : vector<8x192xbf16>, vector<192x32xbf16>, vector<8x32xf32> -> vector<8x32xf32>
    %c0_3 = arith.constant 0 : index
    %c0_4 = arith.constant 0 : index
    %4 = vector.load %arg1[%c0_3, %c0_4] : memref<10x32xf32, #tpu.memory_space<vmem>>, vector<10x32xf32>
    %5 = vector.extract_strided_slice %4 {offsets = [0, 0], sizes = [2, 32], strides = [1, 1]} : vector<10x32xf32> to vector<2x32xf32>
    %6 = vector.extract_strided_slice %4 {offsets = [2, 0], sizes = [8, 32], strides = [1, 1]} : vector<10x32xf32> to vector<8x32xf32>
    %7 = arith.addf %6, %3 : vector<8x32xf32>
    %8 = tpu.concatenate %5, %7 in 0 : vector<2x32xf32>, vector<8x32xf32> -> vector<10x32xf32>
    %c0_5 = arith.constant 0 : index
    %c0_6 = arith.constant 0 : index
    %9 = vector.load %arg8[%c0_5, %c0_6] : memref<1x32xf32, #tpu.memory_space<vmem>>, vector<1x32xf32>
    %c0_7 = arith.constant 0 : index
    %c0_8 = arith.constant 0 : index
    %10 = vector.load %arg9[%c0_7, %c0_8] : memref<1x32xf32, #tpu.memory_space<vmem>>, vector<1x32xf32>
    %cst_9 = arith.constant dense<0.000000e+00> : vector<10xf32>
    %11 = vector.multi_reduction <add>, %8, %cst_9 [1] : vector<10x32xf32> to vector<10xf32>
    %12 = vector.shape_cast %11 : vector<10xf32> to vector<10x1xf32>
    %cst_10 = arith.constant 3.200000e+01 : f32
    %13 = vector.broadcast %cst_10 : f32 to vector<10x1xf32>
    %14 = arith.divf %12, %13 : vector<10x1xf32>
    %15 = vector.broadcast %14 : vector<10x1xf32> to vector<10x32xf32>
    %16 = arith.subf %8, %15 : vector<10x32xf32>
    %17 = arith.mulf %16, %16 : vector<10x32xf32>
    %cst_11 = arith.constant dense<0.000000e+00> : vector<10xf32>
    %18 = vector.multi_reduction <add>, %17, %cst_11 [1] : vector<10x32xf32> to vector<10xf32>
    %19 = vector.shape_cast %18 : vector<10xf32> to vector<10x1xf32>
    %cst_12 = arith.constant 3.200000e+01 : f32
    %20 = vector.broadcast %cst_12 : f32 to vector<10x1xf32>
    %21 = arith.divf %19, %20 : vector<10x1xf32>
    %22 = vector.broadcast %14 : vector<10x1xf32> to vector<10x32xf32>
    %23 = arith.subf %8, %22 : vector<10x32xf32>
    %cst_13 = arith.constant 9.99999974E-6 : f32
    %24 = vector.broadcast %cst_13 : f32 to vector<10x1xf32>
    %25 = arith.addf %21, %24 : vector<10x1xf32>
    %26 = math.rsqrt %25 : vector<10x1xf32>
    %27 = vector.broadcast %26 : vector<10x1xf32> to vector<10x32xf32>
    %28 = arith.mulf %23, %27 : vector<10x32xf32>
    %29 = vector.broadcast %9 : vector<1x32xf32> to vector<10x32xf32>
    %30 = arith.mulf %28, %29 : vector<10x32xf32>
    %31 = vector.broadcast %10 : vector<1x32xf32> to vector<10x32xf32>
    %32 = arith.addf %30, %31 : vector<10x32xf32>
    %c0_14 = arith.constant 0 : index
    %c0_15 = arith.constant 0 : index
    %33 = vector.load %arg2[%c0_14, %c0_15] : memref<10x10xf32, #tpu.memory_space<vmem>>, vector<10x10xf32>
    %c0_16 = arith.constant 0 : index
    %c0_17 = arith.constant 0 : index
    %c0_18 = arith.constant 0 : index
    %34 = vector.load %arg10[%c0_16, %c0_17, %c0_18] : memref<2x1x32xf32, #tpu.memory_space<vmem>>, vector<1x1x32xf32>
    %35 = vector.shape_cast %34 : vector<1x1x32xf32> to vector<1x32xf32>
    %c0_19 = arith.constant 0 : index
    %c0_20 = arith.constant 0 : index
    %c0_21 = arith.constant 0 : index
    %36 = vector.load %arg11[%c0_19, %c0_20, %c0_21] : memref<2x1x32xf32, #tpu.memory_space<vmem>>, vector<1x1x32xf32>
    %37 = vector.shape_cast %36 : vector<1x1x32xf32> to vector<1x32xf32>
    %cst_22 = arith.constant dense<0.000000e+00> : vector<10xf32>
    %38 = vector.multi_reduction <add>, %32, %cst_22 [1] : vector<10x32xf32> to vector<10xf32>
    %39 = vector.shape_cast %38 : vector<10xf32> to vector<10x1xf32>
    %cst_23 = arith.constant 3.200000e+01 : f32
    %40 = vector.broadcast %cst_23 : f32 to vector<10x1xf32>
    %41 = arith.divf %39, %40 : vector<10x1xf32>
    %42 = vector.broadcast %41 : vector<10x1xf32> to vector<10x32xf32>
    %43 = arith.subf %32, %42 : vector<10x32xf32>
    %44 = arith.mulf %43, %43 : vector<10x32xf32>
    %cst_24 = arith.constant dense<0.000000e+00> : vector<10xf32>
    %45 = vector.multi_reduction <add>, %44, %cst_24 [1] : vector<10x32xf32> to vector<10xf32>
    %46 = vector.shape_cast %45 : vector<10xf32> to vector<10x1xf32>
    %cst_25 = arith.constant 3.200000e+01 : f32
    %47 = vector.broadcast %cst_25 : f32 to vector<10x1xf32>
    %48 = arith.divf %46, %47 : vector<10x1xf32>
    %49 = vector.broadcast %41 : vector<10x1xf32> to vector<10x32xf32>
    %50 = arith.subf %32, %49 : vector<10x32xf32>
    %cst_26 = arith.constant 9.99999974E-6 : f32
    %51 = vector.broadcast %cst_26 : f32 to vector<10x1xf32>
    %52 = arith.addf %48, %51 : vector<10x1xf32>
    %53 = math.rsqrt %52 : vector<10x1xf32>
    %54 = vector.broadcast %53 : vector<10x1xf32> to vector<10x32xf32>
    %55 = arith.mulf %50, %54 : vector<10x32xf32>
    %56 = vector.broadcast %35 : vector<1x32xf32> to vector<10x32xf32>
    %57 = arith.mulf %55, %56 : vector<10x32xf32>
    %58 = vector.broadcast %37 : vector<1x32xf32> to vector<10x32xf32>
    %59 = arith.addf %57, %58 : vector<10x32xf32>
    %c0_27 = arith.constant 0 : index
    %c0_28 = arith.constant 0 : index
    %c0_29 = arith.constant 0 : index
    %60 = vector.load %arg12[%c0_27, %c0_28, %c0_29] : memref<2x32x32xbf16, #tpu.memory_space<vmem>>, vector<1x32x32xbf16>
    %61 = vector.shape_cast %60 : vector<1x32x32xbf16> to vector<32x32xbf16>
    %62 = arith.truncf %59 : vector<10x32xf32> to vector<10x32xbf16>
    %cst_30 = arith.constant dense<0.000000e+00> : vector<10x32xf32>
    %63 = tpu.matmul %62, %61, %cst_30 {dimension_numbers = #tpu.dot_dimension_numbers<[1], [0], [0], [1], [0, 0, 1, 1], [], []>} : vector<10x32xbf16>, vector<32x32xbf16>, vector<10x32xf32> -> vector<10x32xf32>
    %c0_31 = arith.constant 0 : index
    %c0_32 = arith.constant 0 : index
    %c0_33 = arith.constant 0 : index
    %64 = vector.load %arg13[%c0_31, %c0_32, %c0_33] : memref<2x1x32xf32, #tpu.memory_space<vmem>>, vector<1x1x32xf32>
    %65 = vector.shape_cast %64 : vector<1x1x32xf32> to vector<1x32xf32>
    %66 = vector.broadcast %65 : vector<1x32xf32> to vector<10x32xf32>
    %67 = arith.addf %63, %66 : vector<10x32xf32>
    %c0_34 = arith.constant 0 : index
    %c0_35 = arith.constant 0 : index
    %c0_36 = arith.constant 0 : index
    %68 = vector.load %arg14[%c0_34, %c0_35, %c0_36] : memref<2x32x32xbf16, #tpu.memory_space<vmem>>, vector<1x32x32xbf16>
    %69 = vector.shape_cast %68 : vector<1x32x32xbf16> to vector<32x32xbf16>
    %70 = arith.truncf %59 : vector<10x32xf32> to vector<10x32xbf16>
    %cst_37 = arith.constant dense<0.000000e+00> : vector<10x32xf32>
    %71 = tpu.matmul %70, %69, %cst_37 {dimension_numbers = #tpu.dot_dimension_numbers<[1], [0], [0], [1], [0, 0, 1, 1], [], []>} : vector<10x32xbf16>, vector<32x32xbf16>, vector<10x32xf32> -> vector<10x32xf32>
    %c0_38 = arith.constant 0 : index
    %c0_39 = arith.constant 0 : index
    %c0_40 = arith.constant 0 : index
    %72 = vector.load %arg15[%c0_38, %c0_39, %c0_40] : memref<2x1x32xf32, #tpu.memory_space<vmem>>, vector<1x1x32xf32>
    %73 = vector.shape_cast %72 : vector<1x1x32xf32> to vector<1x32xf32>
    %74 = vector.broadcast %73 : vector<1x32xf32> to vector<10x32xf32>
    %75 = arith.addf %71, %74 : vector<10x32xf32>
    %c0_41 = arith.constant 0 : index
    %c0_42 = arith.constant 0 : index
    %c0_43 = arith.constant 0 : index
    %76 = vector.load %arg16[%c0_41, %c0_42, %c0_43] : memref<2x32x32xbf16, #tpu.memory_space<vmem>>, vector<1x32x32xbf16>
    %77 = vector.shape_cast %76 : vector<1x32x32xbf16> to vector<32x32xbf16>
    %78 = arith.truncf %59 : vector<10x32xf32> to vector<10x32xbf16>
    %cst_44 = arith.constant dense<0.000000e+00> : vector<10x32xf32>
    %79 = tpu.matmul %78, %77, %cst_44 {dimension_numbers = #tpu.dot_dimension_numbers<[1], [0], [0], [1], [0, 0, 1, 1], [], []>} : vector<10x32xbf16>, vector<32x32xbf16>, vector<10x32xf32> -> vector<10x32xf32>
    %c0_45 = arith.constant 0 : index
    %c0_46 = arith.constant 0 : index
    %c0_47 = arith.constant 0 : index
    %80 = vector.load %arg17[%c0_45, %c0_46, %c0_47] : memref<2x1x32xf32, #tpu.memory_space<vmem>>, vector<1x1x32xf32>
    %81 = vector.shape_cast %80 : vector<1x1x32xf32> to vector<1x32xf32>
    %82 = vector.broadcast %81 : vector<1x32xf32> to vector<10x32xf32>
    %83 = arith.addf %79, %82 : vector<10x32xf32>
    %c0_48 = arith.constant 0 : index
    %c0_49 = arith.constant 0 : index
    %c0_50 = arith.constant 0 : index
    %84 = vector.load %arg18[%c0_48, %c0_49, %c0_50] : memref<2x32x32xbf16, #tpu.memory_space<vmem>>, vector<1x32x32xbf16>
    %85 = vector.shape_cast %84 : vector<1x32x32xbf16> to vector<32x32xbf16>
    %86 = vector.extract_strided_slice %67 {offsets = [0, 0], sizes = [10, 8], strides = [1, 1]} : vector<10x32xf32> to vector<10x8xf32>
    %cst_51 = arith.constant 0.353553385 : f32
    %87 = vector.broadcast %cst_51 : f32 to vector<10x8xf32>
    %88 = arith.mulf %86, %87 : vector<10x8xf32>
    %89 = arith.truncf %88 : vector<10x8xf32> to vector<10x8xbf16>
    %90 = vector.extract_strided_slice %75 {offsets = [0, 0], sizes = [10, 8], strides = [1, 1]} : vector<10x32xf32> to vector<10x8xf32>
    %91 = arith.truncf %90 : vector<10x8xf32> to vector<10x8xbf16>
    %cst_52 = arith.constant dense<0.000000e+00> : vector<10x10xf32>
    %92 = tpu.matmul %89, %91, %cst_52 {dimension_numbers = #tpu.dot_dimension_numbers<[1], [1], [0], [0], [0, 0, 1, 0], [], []>} : vector<10x8xbf16>, vector<10x8xbf16>, vector<10x10xf32> -> vector<10x10xf32>
    %93 = arith.addf %92, %33 : vector<10x10xf32>
    %cst_53 = arith.constant dense<0xFF800000> : vector<10xf32>
    %94 = vector.multi_reduction <maximumf>, %93, %cst_53 [1] : vector<10x10xf32> to vector<10xf32>
    %95 = vector.shape_cast %94 : vector<10xf32> to vector<10x1xf32>
    %96 = vector.broadcast %95 : vector<10x1xf32> to vector<10x10xf32>
    %97 = arith.subf %93, %96 : vector<10x10xf32>
    %98 = math.exp %97 : vector<10x10xf32>
    %cst_54 = arith.constant dense<0.000000e+00> : vector<10xf32>
    %99 = vector.multi_reduction <add>, %98, %cst_54 [1] : vector<10x10xf32> to vector<10xf32>
    %100 = vector.shape_cast %99 : vector<10xf32> to vector<10x1xf32>
    %101 = vector.broadcast %100 : vector<10x1xf32> to vector<10x10xf32>
    %102 = arith.divf %98, %101 : vector<10x10xf32>
    %103 = arith.truncf %102 : vector<10x10xf32> to vector<10x10xbf16>
    %104 = vector.extract_strided_slice %83 {offsets = [0, 0], sizes = [10, 8], strides = [1, 1]} : vector<10x32xf32> to vector<10x8xf32>
    %105 = arith.truncf %104 : vector<10x8xf32> to vector<10x8xbf16>
    %cst_55 = arith.constant dense<0.000000e+00> : vector<10x8xf32>
    %106 = tpu.matmul %103, %105, %cst_55 {dimension_numbers = #tpu.dot_dimension_numbers<[1], [0], [0], [1], [0, 0, 1, 1], [], []>} : vector<10x10xbf16>, vector<10x8xbf16>, vector<10x8xf32> -> vector<10x8xf32>
    %107 = arith.truncf %106 : vector<10x8xf32> to vector<10x8xbf16>
    %108 = vector.extract_strided_slice %85 {offsets = [0, 0], sizes = [8, 32], strides = [1, 1]} : vector<32x32xbf16> to vector<8x32xbf16>
    %cst_56 = arith.constant dense<0.000000e+00> : vector<10x32xf32>
    %109 = tpu.matmul %107, %108, %cst_56 {dimension_numbers = #tpu.dot_dimension_numbers<[1], [0], [0], [1], [0, 0, 1, 1], [], []>} : vector<10x8xbf16>, vector<8x32xbf16>, vector<10x32xf32> -> vector<10x32xf32>
    %110 = vector.extract_strided_slice %67 {offsets = [0, 8], sizes = [10, 8], strides = [1, 1]} : vector<10x32xf32> to vector<10x8xf32>
    %cst_57 = arith.constant 0.353553385 : f32
    %111 = vector.broadcast %cst_57 : f32 to vector<10x8xf32>
    %112 = arith.mulf %110, %111 : vector<10x8xf32>
    %113 = arith.truncf %112 : vector<10x8xf32> to vector<10x8xbf16>
    %114 = vector.extract_strided_slice %75 {offsets = [0, 8], sizes = [10, 8], strides = [1, 1]} : vector<10x32xf32> to vector<10x8xf32>
    %115 = arith.truncf %114 : vector<10x8xf32> to vector<10x8xbf16>
    %cst_58 = arith.constant dense<0.000000e+00> : vector<10x10xf32>
    %116 = tpu.matmul %113, %115, %cst_58 {dimension_numbers = #tpu.dot_dimension_numbers<[1], [1], [0], [0], [0, 0, 1, 0], [], []>} : vector<10x8xbf16>, vector<10x8xbf16>, vector<10x10xf32> -> vector<10x10xf32>
    %117 = arith.addf %116, %33 : vector<10x10xf32>
    %cst_59 = arith.constant dense<0xFF800000> : vector<10xf32>
    %118 = vector.multi_reduction <maximumf>, %117, %cst_59 [1] : vector<10x10xf32> to vector<10xf32>
    %119 = vector.shape_cast %118 : vector<10xf32> to vector<10x1xf32>
    %120 = vector.broadcast %119 : vector<10x1xf32> to vector<10x10xf32>
    %121 = arith.subf %117, %120 : vector<10x10xf32>
    %122 = math.exp %121 : vector<10x10xf32>
    %cst_60 = arith.constant dense<0.000000e+00> : vector<10xf32>
    %123 = vector.multi_reduction <add>, %122, %cst_60 [1] : vector<10x10xf32> to vector<10xf32>
    %124 = vector.shape_cast %123 : vector<10xf32> to vector<10x1xf32>
    %125 = vector.broadcast %124 : vector<10x1xf32> to vector<10x10xf32>
    %126 = arith.divf %122, %125 : vector<10x10xf32>
    %127 = arith.truncf %126 : vector<10x10xf32> to vector<10x10xbf16>
    %128 = vector.extract_strided_slice %83 {offsets = [0, 8], sizes = [10, 8], strides = [1, 1]} : vector<10x32xf32> to vector<10x8xf32>
    %129 = arith.truncf %128 : vector<10x8xf32> to vector<10x8xbf16>
    %cst_61 = arith.constant dense<0.000000e+00> : vector<10x8xf32>
    %130 = tpu.matmul %127, %129, %cst_61 {dimension_numbers = #tpu.dot_dimension_numbers<[1], [0], [0], [1], [0, 0, 1, 1], [], []>} : vector<10x10xbf16>, vector<10x8xbf16>, vector<10x8xf32> -> vector<10x8xf32>
    %131 = arith.truncf %130 : vector<10x8xf32> to vector<10x8xbf16>
    %132 = vector.extract_strided_slice %85 {offsets = [8, 0], sizes = [8, 32], strides = [1, 1]} : vector<32x32xbf16> to vector<8x32xbf16>
    %cst_62 = arith.constant dense<0.000000e+00> : vector<10x32xf32>
    %133 = tpu.matmul %131, %132, %cst_62 {dimension_numbers = #tpu.dot_dimension_numbers<[1], [0], [0], [1], [0, 0, 1, 1], [], []>} : vector<10x8xbf16>, vector<8x32xbf16>, vector<10x32xf32> -> vector<10x32xf32>
    %134 = arith.addf %109, %133 : vector<10x32xf32>
    %135 = vector.extract_strided_slice %67 {offsets = [0, 16], sizes = [10, 8], strides = [1, 1]} : vector<10x32xf32> to vector<10x8xf32>
    %cst_63 = arith.constant 0.353553385 : f32
    %136 = vector.broadcast %cst_63 : f32 to vector<10x8xf32>
    %137 = arith.mulf %135, %136 : vector<10x8xf32>
    %138 = arith.truncf %137 : vector<10x8xf32> to vector<10x8xbf16>
    %139 = vector.extract_strided_slice %75 {offsets = [0, 16], sizes = [10, 8], strides = [1, 1]} : vector<10x32xf32> to vector<10x8xf32>
    %140 = arith.truncf %139 : vector<10x8xf32> to vector<10x8xbf16>
    %cst_64 = arith.constant dense<0.000000e+00> : vector<10x10xf32>
    %141 = tpu.matmul %138, %140, %cst_64 {dimension_numbers = #tpu.dot_dimension_numbers<[1], [1], [0], [0], [0, 0, 1, 0], [], []>} : vector<10x8xbf16>, vector<10x8xbf16>, vector<10x10xf32> -> vector<10x10xf32>
    %142 = arith.addf %141, %33 : vector<10x10xf32>
    %cst_65 = arith.constant dense<0xFF800000> : vector<10xf32>
    %143 = vector.multi_reduction <maximumf>, %142, %cst_65 [1] : vector<10x10xf32> to vector<10xf32>
    %144 = vector.shape_cast %143 : vector<10xf32> to vector<10x1xf32>
    %145 = vector.broadcast %144 : vector<10x1xf32> to vector<10x10xf32>
    %146 = arith.subf %142, %145 : vector<10x10xf32>
    %147 = math.exp %146 : vector<10x10xf32>
    %cst_66 = arith.constant dense<0.000000e+00> : vector<10xf32>
    %148 = vector.multi_reduction <add>, %147, %cst_66 [1] : vector<10x10xf32> to vector<10xf32>
    %149 = vector.shape_cast %148 : vector<10xf32> to vector<10x1xf32>
    %150 = vector.broadcast %149 : vector<10x1xf32> to vector<10x10xf32>
    %151 = arith.divf %147, %150 : vector<10x10xf32>
    %152 = arith.truncf %151 : vector<10x10xf32> to vector<10x10xbf16>
    %153 = vector.extract_strided_slice %83 {offsets = [0, 16], sizes = [10, 8], strides = [1, 1]} : vector<10x32xf32> to vector<10x8xf32>
    %154 = arith.truncf %153 : vector<10x8xf32> to vector<10x8xbf16>
    %cst_67 = arith.constant dense<0.000000e+00> : vector<10x8xf32>
    %155 = tpu.matmul %152, %154, %cst_67 {dimension_numbers = #tpu.dot_dimension_numbers<[1], [0], [0], [1], [0, 0, 1, 1], [], []>} : vector<10x10xbf16>, vector<10x8xbf16>, vector<10x8xf32> -> vector<10x8xf32>
    %156 = arith.truncf %155 : vector<10x8xf32> to vector<10x8xbf16>
    %157 = vector.extract_strided_slice %85 {offsets = [16, 0], sizes = [8, 32], strides = [1, 1]} : vector<32x32xbf16> to vector<8x32xbf16>
    %cst_68 = arith.constant dense<0.000000e+00> : vector<10x32xf32>
    %158 = tpu.matmul %156, %157, %cst_68 {dimension_numbers = #tpu.dot_dimension_numbers<[1], [0], [0], [1], [0, 0, 1, 1], [], []>} : vector<10x8xbf16>, vector<8x32xbf16>, vector<10x32xf32> -> vector<10x32xf32>
    %159 = arith.addf %134, %158 : vector<10x32xf32>
    %160 = vector.extract_strided_slice %67 {offsets = [0, 24], sizes = [10, 8], strides = [1, 1]} : vector<10x32xf32> to vector<10x8xf32>
    %cst_69 = arith.constant 0.353553385 : f32
    %161 = vector.broadcast %cst_69 : f32 to vector<10x8xf32>
    %162 = arith.mulf %160, %161 : vector<10x8xf32>
    %163 = arith.truncf %162 : vector<10x8xf32> to vector<10x8xbf16>
    %164 = vector.extract_strided_slice %75 {offsets = [0, 24], sizes = [10, 8], strides = [1, 1]} : vector<10x32xf32> to vector<10x8xf32>
    %165 = arith.truncf %164 : vector<10x8xf32> to vector<10x8xbf16>
    %cst_70 = arith.constant dense<0.000000e+00> : vector<10x10xf32>
    %166 = tpu.matmul %163, %165, %cst_70 {dimension_numbers = #tpu.dot_dimension_numbers<[1], [1], [0], [0], [0, 0, 1, 0], [], []>} : vector<10x8xbf16>, vector<10x8xbf16>, vector<10x10xf32> -> vector<10x10xf32>
    %167 = arith.addf %166, %33 : vector<10x10xf32>
    %cst_71 = arith.constant dense<0xFF800000> : vector<10xf32>
    %168 = vector.multi_reduction <maximumf>, %167, %cst_71 [1] : vector<10x10xf32> to vector<10xf32>
    %169 = vector.shape_cast %168 : vector<10xf32> to vector<10x1xf32>
    %170 = vector.broadcast %169 : vector<10x1xf32> to vector<10x10xf32>
    %171 = arith.subf %167, %170 : vector<10x10xf32>
    %172 = math.exp %171 : vector<10x10xf32>
    %cst_72 = arith.constant dense<0.000000e+00> : vector<10xf32>
    %173 = vector.multi_reduction <add>, %172, %cst_72 [1] : vector<10x10xf32> to vector<10xf32>
    %174 = vector.shape_cast %173 : vector<10xf32> to vector<10x1xf32>
    %175 = vector.broadcast %174 : vector<10x1xf32> to vector<10x10xf32>
    %176 = arith.divf %172, %175 : vector<10x10xf32>
    %177 = arith.truncf %176 : vector<10x10xf32> to vector<10x10xbf16>
    %178 = vector.extract_strided_slice %83 {offsets = [0, 24], sizes = [10, 8], strides = [1, 1]} : vector<10x32xf32> to vector<10x8xf32>
    %179 = arith.truncf %178 : vector<10x8xf32> to vector<10x8xbf16>
    %cst_73 = arith.constant dense<0.000000e+00> : vector<10x8xf32>
    %180 = tpu.matmul %177, %179, %cst_73 {dimension_numbers = #tpu.dot_dimension_numbers<[1], [0], [0], [1], [0, 0, 1, 1], [], []>} : vector<10x10xbf16>, vector<10x8xbf16>, vector<10x8xf32> -> vector<10x8xf32>
    %181 = arith.truncf %180 : vector<10x8xf32> to vector<10x8xbf16>
    %182 = vector.extract_strided_slice %85 {offsets = [24, 0], sizes = [8, 32], strides = [1, 1]} : vector<32x32xbf16> to vector<8x32xbf16>
    %cst_74 = arith.constant dense<0.000000e+00> : vector<10x32xf32>
    %183 = tpu.matmul %181, %182, %cst_74 {dimension_numbers = #tpu.dot_dimension_numbers<[1], [0], [0], [1], [0, 0, 1, 1], [], []>} : vector<10x8xbf16>, vector<8x32xbf16>, vector<10x32xf32> -> vector<10x32xf32>
    %184 = arith.addf %159, %183 : vector<10x32xf32>
    %c0_75 = arith.constant 0 : index
    %c0_76 = arith.constant 0 : index
    %c0_77 = arith.constant 0 : index
    %185 = vector.load %arg19[%c0_75, %c0_76, %c0_77] : memref<2x1x32xf32, #tpu.memory_space<vmem>>, vector<1x1x32xf32>
    %186 = vector.shape_cast %185 : vector<1x1x32xf32> to vector<1x32xf32>
    %187 = vector.broadcast %186 : vector<1x32xf32> to vector<10x32xf32>
    %188 = arith.addf %184, %187 : vector<10x32xf32>
    %189 = arith.addf %32, %188 : vector<10x32xf32>
    %c0_78 = arith.constant 0 : index
    %c0_79 = arith.constant 0 : index
    %c0_80 = arith.constant 0 : index
    %190 = vector.load %arg20[%c0_78, %c0_79, %c0_80] : memref<2x1x32xf32, #tpu.memory_space<vmem>>, vector<1x1x32xf32>
    %191 = vector.shape_cast %190 : vector<1x1x32xf32> to vector<1x32xf32>
    %c0_81 = arith.constant 0 : index
    %c0_82 = arith.constant 0 : index
    %c0_83 = arith.constant 0 : index
    %192 = vector.load %arg21[%c0_81, %c0_82, %c0_83] : memref<2x1x32xf32, #tpu.memory_space<vmem>>, vector<1x1x32xf32>
    %193 = vector.shape_cast %192 : vector<1x1x32xf32> to vector<1x32xf32>
    %cst_84 = arith.constant dense<0.000000e+00> : vector<10xf32>
    %194 = vector.multi_reduction <add>, %189, %cst_84 [1] : vector<10x32xf32> to vector<10xf32>
    %195 = vector.shape_cast %194 : vector<10xf32> to vector<10x1xf32>
    %cst_85 = arith.constant 3.200000e+01 : f32
    %196 = vector.broadcast %cst_85 : f32 to vector<10x1xf32>
    %197 = arith.divf %195, %196 : vector<10x1xf32>
    %198 = vector.broadcast %197 : vector<10x1xf32> to vector<10x32xf32>
    %199 = arith.subf %189, %198 : vector<10x32xf32>
    %200 = arith.mulf %199, %199 : vector<10x32xf32>
    %cst_86 = arith.constant dense<0.000000e+00> : vector<10xf32>
    %201 = vector.multi_reduction <add>, %200, %cst_86 [1] : vector<10x32xf32> to vector<10xf32>
    %202 = vector.shape_cast %201 : vector<10xf32> to vector<10x1xf32>
    %cst_87 = arith.constant 3.200000e+01 : f32
    %203 = vector.broadcast %cst_87 : f32 to vector<10x1xf32>
    %204 = arith.divf %202, %203 : vector<10x1xf32>
    %205 = vector.broadcast %197 : vector<10x1xf32> to vector<10x32xf32>
    %206 = arith.subf %189, %205 : vector<10x32xf32>
    %cst_88 = arith.constant 9.99999974E-6 : f32
    %207 = vector.broadcast %cst_88 : f32 to vector<10x1xf32>
    %208 = arith.addf %204, %207 : vector<10x1xf32>
    %209 = math.rsqrt %208 : vector<10x1xf32>
    %210 = vector.broadcast %209 : vector<10x1xf32> to vector<10x32xf32>
    %211 = arith.mulf %206, %210 : vector<10x32xf32>
    %212 = vector.broadcast %191 : vector<1x32xf32> to vector<10x32xf32>
    %213 = arith.mulf %211, %212 : vector<10x32xf32>
    %214 = vector.broadcast %193 : vector<1x32xf32> to vector<10x32xf32>
    %215 = arith.addf %213, %214 : vector<10x32xf32>
    %c0_89 = arith.constant 0 : index
    %c0_90 = arith.constant 0 : index
    %c0_91 = arith.constant 0 : index
    %216 = vector.load %arg22[%c0_89, %c0_90, %c0_91] : memref<2x32x64xbf16, #tpu.memory_space<vmem>>, vector<1x32x64xbf16>
    %217 = vector.shape_cast %216 : vector<1x32x64xbf16> to vector<32x64xbf16>
    %218 = arith.truncf %215 : vector<10x32xf32> to vector<10x32xbf16>
    %cst_92 = arith.constant dense<0.000000e+00> : vector<10x64xf32>
    %219 = tpu.matmul %218, %217, %cst_92 {dimension_numbers = #tpu.dot_dimension_numbers<[1], [0], [0], [1], [0, 0, 1, 1], [], []>} : vector<10x32xbf16>, vector<32x64xbf16>, vector<10x64xf32> -> vector<10x64xf32>
    %c0_93 = arith.constant 0 : index
    %c0_94 = arith.constant 0 : index
    %c0_95 = arith.constant 0 : index
    %220 = vector.load %arg23[%c0_93, %c0_94, %c0_95] : memref<2x1x64xf32, #tpu.memory_space<vmem>>, vector<1x1x64xf32>
    %221 = vector.shape_cast %220 : vector<1x1x64xf32> to vector<1x64xf32>
    %222 = vector.broadcast %221 : vector<1x64xf32> to vector<10x64xf32>
    %223 = arith.addf %219, %222 : vector<10x64xf32>
    %cst_96 = arith.constant 1.702000e+00 : f32
    %224 = vector.broadcast %cst_96 : f32 to vector<10x64xf32>
    %225 = arith.mulf %224, %223 : vector<10x64xf32>
    %226 = arith.negf %225 : vector<10x64xf32>
    %227 = math.exp %226 : vector<10x64xf32>
    %cst_97 = arith.constant 1.000000e+00 : f32
    %228 = vector.broadcast %cst_97 : f32 to vector<10x64xf32>
    %229 = arith.addf %228, %227 : vector<10x64xf32>
    %230 = arith.divf %228, %229 : vector<10x64xf32>
    %231 = arith.mulf %223, %230 : vector<10x64xf32>
    %c0_98 = arith.constant 0 : index
    %c0_99 = arith.constant 0 : index
    %c0_100 = arith.constant 0 : index
    %232 = vector.load %arg24[%c0_98, %c0_99, %c0_100] : memref<2x64x32xbf16, #tpu.memory_space<vmem>>, vector<1x64x32xbf16>
    %233 = vector.shape_cast %232 : vector<1x64x32xbf16> to vector<64x32xbf16>
    %234 = arith.truncf %231 : vector<10x64xf32> to vector<10x64xbf16>
    %cst_101 = arith.constant dense<0.000000e+00> : vector<10x32xf32>
    %235 = tpu.matmul %234, %233, %cst_101 {dimension_numbers = #tpu.dot_dimension_numbers<[1], [0], [0], [1], [0, 0, 1, 1], [], []>} : vector<10x64xbf16>, vector<64x32xbf16>, vector<10x32xf32> -> vector<10x32xf32>
    %236 = arith.addf %189, %235 : vector<10x32xf32>
    %c0_102 = arith.constant 0 : index
    %c0_103 = arith.constant 0 : index
    %c0_104 = arith.constant 0 : index
    %237 = vector.load %arg25[%c0_102, %c0_103, %c0_104] : memref<2x1x32xf32, #tpu.memory_space<vmem>>, vector<1x1x32xf32>
    %238 = vector.shape_cast %237 : vector<1x1x32xf32> to vector<1x32xf32>
    %239 = vector.broadcast %238 : vector<1x32xf32> to vector<10x32xf32>
    %240 = arith.addf %236, %239 : vector<10x32xf32>
    %c1 = arith.constant 1 : index
    %c0_105 = arith.constant 0 : index
    %c0_106 = arith.constant 0 : index
    %241 = vector.load %arg10[%c1, %c0_105, %c0_106] : memref<2x1x32xf32, #tpu.memory_space<vmem>>, vector<1x1x32xf32>
    %242 = vector.shape_cast %241 : vector<1x1x32xf32> to vector<1x32xf32>
    %c1_107 = arith.constant 1 : index
    %c0_108 = arith.constant 0 : index
    %c0_109 = arith.constant 0 : index
    %243 = vector.load %arg11[%c1_107, %c0_108, %c0_109] : memref<2x1x32xf32, #tpu.memory_space<vmem>>, vector<1x1x32xf32>
    %244 = vector.shape_cast %243 : vector<1x1x32xf32> to vector<1x32xf32>
    %cst_110 = arith.constant dense<0.000000e+00> : vector<10xf32>
    %245 = vector.multi_reduction <add>, %240, %cst_110 [1] : vector<10x32xf32> to vector<10xf32>
    %246 = vector.shape_cast %245 : vector<10xf32> to vector<10x1xf32>
    %cst_111 = arith.constant 3.200000e+01 : f32
    %247 = vector.broadcast %cst_111 : f32 to vector<10x1xf32>
    %248 = arith.divf %246, %247 : vector<10x1xf32>
    %249 = vector.broadcast %248 : vector<10x1xf32> to vector<10x32xf32>
    %250 = arith.subf %240, %249 : vector<10x32xf32>
    %251 = arith.mulf %250, %250 : vector<10x32xf32>
    %cst_112 = arith.constant dense<0.000000e+00> : vector<10xf32>
    %252 = vector.multi_reduction <add>, %251, %cst_112 [1] : vector<10x32xf32> to vector<10xf32>
    %253 = vector.shape_cast %252 : vector<10xf32> to vector<10x1xf32>
    %cst_113 = arith.constant 3.200000e+01 : f32
    %254 = vector.broadcast %cst_113 : f32 to vector<10x1xf32>
    %255 = arith.divf %253, %254 : vector<10x1xf32>
    %256 = vector.broadcast %248 : vector<10x1xf32> to vector<10x32xf32>
    %257 = arith.subf %240, %256 : vector<10x32xf32>
    %cst_114 = arith.constant 9.99999974E-6 : f32
    %258 = vector.broadcast %cst_114 : f32 to vector<10x1xf32>
    %259 = arith.addf %255, %258 : vector<10x1xf32>
    %260 = math.rsqrt %259 : vector<10x1xf32>
    %261 = vector.broadcast %260 : vector<10x1xf32> to vector<10x32xf32>
    %262 = arith.mulf %257, %261 : vector<10x32xf32>
    %263 = vector.broadcast %242 : vector<1x32xf32> to vector<10x32xf32>
    %264 = arith.mulf %262, %263 : vector<10x32xf32>
    %265 = vector.broadcast %244 : vector<1x32xf32> to vector<10x32xf32>
    %266 = arith.addf %264, %265 : vector<10x32xf32>
    %c1_115 = arith.constant 1 : index
    %c0_116 = arith.constant 0 : index
    %c0_117 = arith.constant 0 : index
    %267 = vector.load %arg12[%c1_115, %c0_116, %c0_117] : memref<2x32x32xbf16, #tpu.memory_space<vmem>>, vector<1x32x32xbf16>
    %268 = vector.shape_cast %267 : vector<1x32x32xbf16> to vector<32x32xbf16>
    %269 = arith.truncf %266 : vector<10x32xf32> to vector<10x32xbf16>
    %cst_118 = arith.constant dense<0.000000e+00> : vector<10x32xf32>
    %270 = tpu.matmul %269, %268, %cst_118 {dimension_numbers = #tpu.dot_dimension_numbers<[1], [0], [0], [1], [0, 0, 1, 1], [], []>} : vector<10x32xbf16>, vector<32x32xbf16>, vector<10x32xf32> -> vector<10x32xf32>
    %c1_119 = arith.constant 1 : index
    %c0_120 = arith.constant 0 : index
    %c0_121 = arith.constant 0 : index
    %271 = vector.load %arg13[%c1_119, %c0_120, %c0_121] : memref<2x1x32xf32, #tpu.memory_space<vmem>>, vector<1x1x32xf32>
    %272 = vector.shape_cast %271 : vector<1x1x32xf32> to vector<1x32xf32>
    %273 = vector.broadcast %272 : vector<1x32xf32> to vector<10x32xf32>
    %274 = arith.addf %270, %273 : vector<10x32xf32>
    %c1_122 = arith.constant 1 : index
    %c0_123 = arith.constant 0 : index
    %c0_124 = arith.constant 0 : index
    %275 = vector.load %arg14[%c1_122, %c0_123, %c0_124] : memref<2x32x32xbf16, #tpu.memory_space<vmem>>, vector<1x32x32xbf16>
    %276 = vector.shape_cast %275 : vector<1x32x32xbf16> to vector<32x32xbf16>
    %277 = arith.truncf %266 : vector<10x32xf32> to vector<10x32xbf16>
    %cst_125 = arith.constant dense<0.000000e+00> : vector<10x32xf32>
    %278 = tpu.matmul %277, %276, %cst_125 {dimension_numbers = #tpu.dot_dimension_numbers<[1], [0], [0], [1], [0, 0, 1, 1], [], []>} : vector<10x32xbf16>, vector<32x32xbf16>, vector<10x32xf32> -> vector<10x32xf32>
    %c1_126 = arith.constant 1 : index
    %c0_127 = arith.constant 0 : index
    %c0_128 = arith.constant 0 : index
    %279 = vector.load %arg15[%c1_126, %c0_127, %c0_128] : memref<2x1x32xf32, #tpu.memory_space<vmem>>, vector<1x1x32xf32>
    %280 = vector.shape_cast %279 : vector<1x1x32xf32> to vector<1x32xf32>
    %281 = vector.broadcast %280 : vector<1x32xf32> to vector<10x32xf32>
    %282 = arith.addf %278, %281 : vector<10x32xf32>
    %c1_129 = arith.constant 1 : index
    %c0_130 = arith.constant 0 : index
    %c0_131 = arith.constant 0 : index
    %283 = vector.load %arg16[%c1_129, %c0_130, %c0_131] : memref<2x32x32xbf16, #tpu.memory_space<vmem>>, vector<1x32x32xbf16>
    %284 = vector.shape_cast %283 : vector<1x32x32xbf16> to vector<32x32xbf16>
    %285 = arith.truncf %266 : vector<10x32xf32> to vector<10x32xbf16>
    %cst_132 = arith.constant dense<0.000000e+00> : vector<10x32xf32>
    %286 = tpu.matmul %285, %284, %cst_132 {dimension_numbers = #tpu.dot_dimension_numbers<[1], [0], [0], [1], [0, 0, 1, 1], [], []>} : vector<10x32xbf16>, vector<32x32xbf16>, vector<10x32xf32> -> vector<10x32xf32>
    %c1_133 = arith.constant 1 : index
    %c0_134 = arith.constant 0 : index
    %c0_135 = arith.constant 0 : index
    %287 = vector.load %arg17[%c1_133, %c0_134, %c0_135] : memref<2x1x32xf32, #tpu.memory_space<vmem>>, vector<1x1x32xf32>
    %288 = vector.shape_cast %287 : vector<1x1x32xf32> to vector<1x32xf32>
    %289 = vector.broadcast %288 : vector<1x32xf32> to vector<10x32xf32>
    %290 = arith.addf %286, %289 : vector<10x32xf32>
    %c1_136 = arith.constant 1 : index
    %c0_137 = arith.constant 0 : index
    %c0_138 = arith.constant 0 : index
    %291 = vector.load %arg18[%c1_136, %c0_137, %c0_138] : memref<2x32x32xbf16, #tpu.memory_space<vmem>>, vector<1x32x32xbf16>
    %292 = vector.shape_cast %291 : vector<1x32x32xbf16> to vector<32x32xbf16>
    %293 = vector.extract_strided_slice %274 {offsets = [0, 0], sizes = [10, 8], strides = [1, 1]} : vector<10x32xf32> to vector<10x8xf32>
    %cst_139 = arith.constant 0.353553385 : f32
    %294 = vector.broadcast %cst_139 : f32 to vector<10x8xf32>
    %295 = arith.mulf %293, %294 : vector<10x8xf32>
    %296 = arith.truncf %295 : vector<10x8xf32> to vector<10x8xbf16>
    %297 = vector.extract_strided_slice %282 {offsets = [0, 0], sizes = [10, 8], strides = [1, 1]} : vector<10x32xf32> to vector<10x8xf32>
    %298 = arith.truncf %297 : vector<10x8xf32> to vector<10x8xbf16>
    %cst_140 = arith.constant dense<0.000000e+00> : vector<10x10xf32>
    %299 = tpu.matmul %296, %298, %cst_140 {dimension_numbers = #tpu.dot_dimension_numbers<[1], [1], [0], [0], [0, 0, 1, 0], [], []>} : vector<10x8xbf16>, vector<10x8xbf16>, vector<10x10xf32> -> vector<10x10xf32>
    %300 = arith.addf %299, %33 : vector<10x10xf32>
    %cst_141 = arith.constant dense<0xFF800000> : vector<10xf32>
    %301 = vector.multi_reduction <maximumf>, %300, %cst_141 [1] : vector<10x10xf32> to vector<10xf32>
    %302 = vector.shape_cast %301 : vector<10xf32> to vector<10x1xf32>
    %303 = vector.broadcast %302 : vector<10x1xf32> to vector<10x10xf32>
    %304 = arith.subf %300, %303 : vector<10x10xf32>
    %305 = math.exp %304 : vector<10x10xf32>
    %cst_142 = arith.constant dense<0.000000e+00> : vector<10xf32>
    %306 = vector.multi_reduction <add>, %305, %cst_142 [1] : vector<10x10xf32> to vector<10xf32>
    %307 = vector.shape_cast %306 : vector<10xf32> to vector<10x1xf32>
    %308 = vector.broadcast %307 : vector<10x1xf32> to vector<10x10xf32>
    %309 = arith.divf %305, %308 : vector<10x10xf32>
    %310 = arith.truncf %309 : vector<10x10xf32> to vector<10x10xbf16>
    %311 = vector.extract_strided_slice %290 {offsets = [0, 0], sizes = [10, 8], strides = [1, 1]} : vector<10x32xf32> to vector<10x8xf32>
    %312 = arith.truncf %311 : vector<10x8xf32> to vector<10x8xbf16>
    %cst_143 = arith.constant dense<0.000000e+00> : vector<10x8xf32>
    %313 = tpu.matmul %310, %312, %cst_143 {dimension_numbers = #tpu.dot_dimension_numbers<[1], [0], [0], [1], [0, 0, 1, 1], [], []>} : vector<10x10xbf16>, vector<10x8xbf16>, vector<10x8xf32> -> vector<10x8xf32>
    %314 = arith.truncf %313 : vector<10x8xf32> to vector<10x8xbf16>
    %315 = vector.extract_strided_slice %292 {offsets = [0, 0], sizes = [8, 32], strides = [1, 1]} : vector<32x32xbf16> to vector<8x32xbf16>
    %cst_144 = arith.constant dense<0.000000e+00> : vector<10x32xf32>
    %316 = tpu.matmul %314, %315, %cst_144 {dimension_numbers = #tpu.dot_dimension_numbers<[1], [0], [0], [1], [0, 0, 1, 1], [], []>} : vector<10x8xbf16>, vector<8x32xbf16>, vector<10x32xf32> -> vector<10x32xf32>
    %317 = vector.extract_strided_slice %274 {offsets = [0, 8], sizes = [10, 8], strides = [1, 1]} : vector<10x32xf32> to vector<10x8xf32>
    %cst_145 = arith.constant 0.353553385 : f32
    %318 = vector.broadcast %cst_145 : f32 to vector<10x8xf32>
    %319 = arith.mulf %317, %318 : vector<10x8xf32>
    %320 = arith.truncf %319 : vector<10x8xf32> to vector<10x8xbf16>
    %321 = vector.extract_strided_slice %282 {offsets = [0, 8], sizes = [10, 8], strides = [1, 1]} : vector<10x32xf32> to vector<10x8xf32>
    %322 = arith.truncf %321 : vector<10x8xf32> to vector<10x8xbf16>
    %cst_146 = arith.constant dense<0.000000e+00> : vector<10x10xf32>
    %323 = tpu.matmul %320, %322, %cst_146 {dimension_numbers = #tpu.dot_dimension_numbers<[1], [1], [0], [0], [0, 0, 1, 0], [], []>} : vector<10x8xbf16>, vector<10x8xbf16>, vector<10x10xf32> -> vector<10x10xf32>
    %324 = arith.addf %323, %33 : vector<10x10xf32>
    %cst_147 = arith.constant dense<0xFF800000> : vector<10xf32>
    %325 = vector.multi_reduction <maximumf>, %324, %cst_147 [1] : vector<10x10xf32> to vector<10xf32>
    %326 = vector.shape_cast %325 : vector<10xf32> to vector<10x1xf32>
    %327 = vector.broadcast %326 : vector<10x1xf32> to vector<10x10xf32>
    %328 = arith.subf %324, %327 : vector<10x10xf32>
    %329 = math.exp %328 : vector<10x10xf32>
    %cst_148 = arith.constant dense<0.000000e+00> : vector<10xf32>
    %330 = vector.multi_reduction <add>, %329, %cst_148 [1] : vector<10x10xf32> to vector<10xf32>
    %331 = vector.shape_cast %330 : vector<10xf32> to vector<10x1xf32>
    %332 = vector.broadcast %331 : vector<10x1xf32> to vector<10x10xf32>
    %333 = arith.divf %329, %332 : vector<10x10xf32>
    %334 = arith.truncf %333 : vector<10x10xf32> to vector<10x10xbf16>
    %335 = vector.extract_strided_slice %290 {offsets = [0, 8], sizes = [10, 8], strides = [1, 1]} : vector<10x32xf32> to vector<10x8xf32>
    %336 = arith.truncf %335 : vector<10x8xf32> to vector<10x8xbf16>
    %cst_149 = arith.constant dense<0.000000e+00> : vector<10x8xf32>
    %337 = tpu.matmul %334, %336, %cst_149 {dimension_numbers = #tpu.dot_dimension_numbers<[1], [0], [0], [1], [0, 0, 1, 1], [], []>} : vector<10x10xbf16>, vector<10x8xbf16>, vector<10x8xf32> -> vector<10x8xf32>
    %338 = arith.truncf %337 : vector<10x8xf32> to vector<10x8xbf16>
    %339 = vector.extract_strided_slice %292 {offsets = [8, 0], sizes = [8, 32], strides = [1, 1]} : vector<32x32xbf16> to vector<8x32xbf16>
    %cst_150 = arith.constant dense<0.000000e+00> : vector<10x32xf32>
    %340 = tpu.matmul %338, %339, %cst_150 {dimension_numbers = #tpu.dot_dimension_numbers<[1], [0], [0], [1], [0, 0, 1, 1], [], []>} : vector<10x8xbf16>, vector<8x32xbf16>, vector<10x32xf32> -> vector<10x32xf32>
    %341 = arith.addf %316, %340 : vector<10x32xf32>
    %342 = vector.extract_strided_slice %274 {offsets = [0, 16], sizes = [10, 8], strides = [1, 1]} : vector<10x32xf32> to vector<10x8xf32>
    %cst_151 = arith.constant 0.353553385 : f32
    %343 = vector.broadcast %cst_151 : f32 to vector<10x8xf32>
    %344 = arith.mulf %342, %343 : vector<10x8xf32>
    %345 = arith.truncf %344 : vector<10x8xf32> to vector<10x8xbf16>
    %346 = vector.extract_strided_slice %282 {offsets = [0, 16], sizes = [10, 8], strides = [1, 1]} : vector<10x32xf32> to vector<10x8xf32>
    %347 = arith.truncf %346 : vector<10x8xf32> to vector<10x8xbf16>
    %cst_152 = arith.constant dense<0.000000e+00> : vector<10x10xf32>
    %348 = tpu.matmul %345, %347, %cst_152 {dimension_numbers = #tpu.dot_dimension_numbers<[1], [1], [0], [0], [0, 0, 1, 0], [], []>} : vector<10x8xbf16>, vector<10x8xbf16>, vector<10x10xf32> -> vector<10x10xf32>
    %349 = arith.addf %348, %33 : vector<10x10xf32>
    %cst_153 = arith.constant dense<0xFF800000> : vector<10xf32>
    %350 = vector.multi_reduction <maximumf>, %349, %cst_153 [1] : vector<10x10xf32> to vector<10xf32>
    %351 = vector.shape_cast %350 : vector<10xf32> to vector<10x1xf32>
    %352 = vector.broadcast %351 : vector<10x1xf32> to vector<10x10xf32>
    %353 = arith.subf %349, %352 : vector<10x10xf32>
    %354 = math.exp %353 : vector<10x10xf32>
    %cst_154 = arith.constant dense<0.000000e+00> : vector<10xf32>
    %355 = vector.multi_reduction <add>, %354, %cst_154 [1] : vector<10x10xf32> to vector<10xf32>
    %356 = vector.shape_cast %355 : vector<10xf32> to vector<10x1xf32>
    %357 = vector.broadcast %356 : vector<10x1xf32> to vector<10x10xf32>
    %358 = arith.divf %354, %357 : vector<10x10xf32>
    %359 = arith.truncf %358 : vector<10x10xf32> to vector<10x10xbf16>
    %360 = vector.extract_strided_slice %290 {offsets = [0, 16], sizes = [10, 8], strides = [1, 1]} : vector<10x32xf32> to vector<10x8xf32>
    %361 = arith.truncf %360 : vector<10x8xf32> to vector<10x8xbf16>
    %cst_155 = arith.constant dense<0.000000e+00> : vector<10x8xf32>
    %362 = tpu.matmul %359, %361, %cst_155 {dimension_numbers = #tpu.dot_dimension_numbers<[1], [0], [0], [1], [0, 0, 1, 1], [], []>} : vector<10x10xbf16>, vector<10x8xbf16>, vector<10x8xf32> -> vector<10x8xf32>
    %363 = arith.truncf %362 : vector<10x8xf32> to vector<10x8xbf16>
    %364 = vector.extract_strided_slice %292 {offsets = [16, 0], sizes = [8, 32], strides = [1, 1]} : vector<32x32xbf16> to vector<8x32xbf16>
    %cst_156 = arith.constant dense<0.000000e+00> : vector<10x32xf32>
    %365 = tpu.matmul %363, %364, %cst_156 {dimension_numbers = #tpu.dot_dimension_numbers<[1], [0], [0], [1], [0, 0, 1, 1], [], []>} : vector<10x8xbf16>, vector<8x32xbf16>, vector<10x32xf32> -> vector<10x32xf32>
    %366 = arith.addf %341, %365 : vector<10x32xf32>
    %367 = vector.extract_strided_slice %274 {offsets = [0, 24], sizes = [10, 8], strides = [1, 1]} : vector<10x32xf32> to vector<10x8xf32>
    %cst_157 = arith.constant 0.353553385 : f32
    %368 = vector.broadcast %cst_157 : f32 to vector<10x8xf32>
    %369 = arith.mulf %367, %368 : vector<10x8xf32>
    %370 = arith.truncf %369 : vector<10x8xf32> to vector<10x8xbf16>
    %371 = vector.extract_strided_slice %282 {offsets = [0, 24], sizes = [10, 8], strides = [1, 1]} : vector<10x32xf32> to vector<10x8xf32>
    %372 = arith.truncf %371 : vector<10x8xf32> to vector<10x8xbf16>
    %cst_158 = arith.constant dense<0.000000e+00> : vector<10x10xf32>
    %373 = tpu.matmul %370, %372, %cst_158 {dimension_numbers = #tpu.dot_dimension_numbers<[1], [1], [0], [0], [0, 0, 1, 0], [], []>} : vector<10x8xbf16>, vector<10x8xbf16>, vector<10x10xf32> -> vector<10x10xf32>
    %374 = arith.addf %373, %33 : vector<10x10xf32>
    %cst_159 = arith.constant dense<0xFF800000> : vector<10xf32>
    %375 = vector.multi_reduction <maximumf>, %374, %cst_159 [1] : vector<10x10xf32> to vector<10xf32>
    %376 = vector.shape_cast %375 : vector<10xf32> to vector<10x1xf32>
    %377 = vector.broadcast %376 : vector<10x1xf32> to vector<10x10xf32>
    %378 = arith.subf %374, %377 : vector<10x10xf32>
    %379 = math.exp %378 : vector<10x10xf32>
    %cst_160 = arith.constant dense<0.000000e+00> : vector<10xf32>
    %380 = vector.multi_reduction <add>, %379, %cst_160 [1] : vector<10x10xf32> to vector<10xf32>
    %381 = vector.shape_cast %380 : vector<10xf32> to vector<10x1xf32>
    %382 = vector.broadcast %381 : vector<10x1xf32> to vector<10x10xf32>
    %383 = arith.divf %379, %382 : vector<10x10xf32>
    %384 = arith.truncf %383 : vector<10x10xf32> to vector<10x10xbf16>
    %385 = vector.extract_strided_slice %290 {offsets = [0, 24], sizes = [10, 8], strides = [1, 1]} : vector<10x32xf32> to vector<10x8xf32>
    %386 = arith.truncf %385 : vector<10x8xf32> to vector<10x8xbf16>
    %cst_161 = arith.constant dense<0.000000e+00> : vector<10x8xf32>
    %387 = tpu.matmul %384, %386, %cst_161 {dimension_numbers = #tpu.dot_dimension_numbers<[1], [0], [0], [1], [0, 0, 1, 1], [], []>} : vector<10x10xbf16>, vector<10x8xbf16>, vector<10x8xf32> -> vector<10x8xf32>
    %388 = arith.truncf %387 : vector<10x8xf32> to vector<10x8xbf16>
    %389 = vector.extract_strided_slice %292 {offsets = [24, 0], sizes = [8, 32], strides = [1, 1]} : vector<32x32xbf16> to vector<8x32xbf16>
    %cst_162 = arith.constant dense<0.000000e+00> : vector<10x32xf32>
    %390 = tpu.matmul %388, %389, %cst_162 {dimension_numbers = #tpu.dot_dimension_numbers<[1], [0], [0], [1], [0, 0, 1, 1], [], []>} : vector<10x8xbf16>, vector<8x32xbf16>, vector<10x32xf32> -> vector<10x32xf32>
    %391 = arith.addf %366, %390 : vector<10x32xf32>
    %c1_163 = arith.constant 1 : index
    %c0_164 = arith.constant 0 : index
    %c0_165 = arith.constant 0 : index
    %392 = vector.load %arg19[%c1_163, %c0_164, %c0_165] : memref<2x1x32xf32, #tpu.memory_space<vmem>>, vector<1x1x32xf32>
    %393 = vector.shape_cast %392 : vector<1x1x32xf32> to vector<1x32xf32>
    %394 = vector.broadcast %393 : vector<1x32xf32> to vector<10x32xf32>
    %395 = arith.addf %391, %394 : vector<10x32xf32>
    %396 = arith.addf %240, %395 : vector<10x32xf32>
    %c1_166 = arith.constant 1 : index
    %c0_167 = arith.constant 0 : index
    %c0_168 = arith.constant 0 : index
    %397 = vector.load %arg20[%c1_166, %c0_167, %c0_168] : memref<2x1x32xf32, #tpu.memory_space<vmem>>, vector<1x1x32xf32>
    %398 = vector.shape_cast %397 : vector<1x1x32xf32> to vector<1x32xf32>
    %c1_169 = arith.constant 1 : index
    %c0_170 = arith.constant 0 : index
    %c0_171 = arith.constant 0 : index
    %399 = vector.load %arg21[%c1_169, %c0_170, %c0_171] : memref<2x1x32xf32, #tpu.memory_space<vmem>>, vector<1x1x32xf32>
    %400 = vector.shape_cast %399 : vector<1x1x32xf32> to vector<1x32xf32>
    %cst_172 = arith.constant dense<0.000000e+00> : vector<10xf32>
    %401 = vector.multi_reduction <add>, %396, %cst_172 [1] : vector<10x32xf32> to vector<10xf32>
    %402 = vector.shape_cast %401 : vector<10xf32> to vector<10x1xf32>
    %cst_173 = arith.constant 3.200000e+01 : f32
    %403 = vector.broadcast %cst_173 : f32 to vector<10x1xf32>
    %404 = arith.divf %402, %403 : vector<10x1xf32>
    %405 = vector.broadcast %404 : vector<10x1xf32> to vector<10x32xf32>
    %406 = arith.subf %396, %405 : vector<10x32xf32>
    %407 = arith.mulf %406, %406 : vector<10x32xf32>
    %cst_174 = arith.constant dense<0.000000e+00> : vector<10xf32>
    %408 = vector.multi_reduction <add>, %407, %cst_174 [1] : vector<10x32xf32> to vector<10xf32>
    %409 = vector.shape_cast %408 : vector<10xf32> to vector<10x1xf32>
    %cst_175 = arith.constant 3.200000e+01 : f32
    %410 = vector.broadcast %cst_175 : f32 to vector<10x1xf32>
    %411 = arith.divf %409, %410 : vector<10x1xf32>
    %412 = vector.broadcast %404 : vector<10x1xf32> to vector<10x32xf32>
    %413 = arith.subf %396, %412 : vector<10x32xf32>
    %cst_176 = arith.constant 9.99999974E-6 : f32
    %414 = vector.broadcast %cst_176 : f32 to vector<10x1xf32>
    %415 = arith.addf %411, %414 : vector<10x1xf32>
    %416 = math.rsqrt %415 : vector<10x1xf32>
    %417 = vector.broadcast %416 : vector<10x1xf32> to vector<10x32xf32>
    %418 = arith.mulf %413, %417 : vector<10x32xf32>
    %419 = vector.broadcast %398 : vector<1x32xf32> to vector<10x32xf32>
    %420 = arith.mulf %418, %419 : vector<10x32xf32>
    %421 = vector.broadcast %400 : vector<1x32xf32> to vector<10x32xf32>
    %422 = arith.addf %420, %421 : vector<10x32xf32>
    %c1_177 = arith.constant 1 : index
    %c0_178 = arith.constant 0 : index
    %c0_179 = arith.constant 0 : index
    %423 = vector.load %arg22[%c1_177, %c0_178, %c0_179] : memref<2x32x64xbf16, #tpu.memory_space<vmem>>, vector<1x32x64xbf16>
    %424 = vector.shape_cast %423 : vector<1x32x64xbf16> to vector<32x64xbf16>
    %425 = arith.truncf %422 : vector<10x32xf32> to vector<10x32xbf16>
    %cst_180 = arith.constant dense<0.000000e+00> : vector<10x64xf32>
    %426 = tpu.matmul %425, %424, %cst_180 {dimension_numbers = #tpu.dot_dimension_numbers<[1], [0], [0], [1], [0, 0, 1, 1], [], []>} : vector<10x32xbf16>, vector<32x64xbf16>, vector<10x64xf32> -> vector<10x64xf32>
    %c1_181 = arith.constant 1 : index
    %c0_182 = arith.constant 0 : index
    %c0_183 = arith.constant 0 : index
    %427 = vector.load %arg23[%c1_181, %c0_182, %c0_183] : memref<2x1x64xf32, #tpu.memory_space<vmem>>, vector<1x1x64xf32>
    %428 = vector.shape_cast %427 : vector<1x1x64xf32> to vector<1x64xf32>
    %429 = vector.broadcast %428 : vector<1x64xf32> to vector<10x64xf32>
    %430 = arith.addf %426, %429 : vector<10x64xf32>
    %cst_184 = arith.constant 1.702000e+00 : f32
    %431 = vector.broadcast %cst_184 : f32 to vector<10x64xf32>
    %432 = arith.mulf %431, %430 : vector<10x64xf32>
    %433 = arith.negf %432 : vector<10x64xf32>
    %434 = math.exp %433 : vector<10x64xf32>
    %cst_185 = arith.constant 1.000000e+00 : f32
    %435 = vector.broadcast %cst_185 : f32 to vector<10x64xf32>
    %436 = arith.addf %435, %434 : vector<10x64xf32>
    %437 = arith.divf %435, %436 : vector<10x64xf32>
    %438 = arith.mulf %430, %437 : vector<10x64xf32>
    %c1_186 = arith.constant 1 : index
    %c0_187 = arith.constant 0 : index
    %c0_188 = arith.constant 0 : index
    %439 = vector.load %arg24[%c1_186, %c0_187, %c0_188] : memref<2x64x32xbf16, #tpu.memory_space<vmem>>, vector<1x64x32xbf16>
    %440 = vector.shape_cast %439 : vector<1x64x32xbf16> to vector<64x32xbf16>
    %441 = arith.truncf %438 : vector<10x64xf32> to vector<10x64xbf16>
    %cst_189 = arith.constant dense<0.000000e+00> : vector<10x32xf32>
    %442 = tpu.matmul %441, %440, %cst_189 {dimension_numbers = #tpu.dot_dimension_numbers<[1], [0], [0], [1], [0, 0, 1, 1], [], []>} : vector<10x64xbf16>, vector<64x32xbf16>, vector<10x32xf32> -> vector<10x32xf32>
    %443 = arith.addf %396, %442 : vector<10x32xf32>
    %c1_190 = arith.constant 1 : index
    %c0_191 = arith.constant 0 : index
    %c0_192 = arith.constant 0 : index
    %444 = vector.load %arg25[%c1_190, %c0_191, %c0_192] : memref<2x1x32xf32, #tpu.memory_space<vmem>>, vector<1x1x32xf32>
    %445 = vector.shape_cast %444 : vector<1x1x32xf32> to vector<1x32xf32>
    %446 = vector.broadcast %445 : vector<1x32xf32> to vector<10x32xf32>
    %447 = arith.addf %443, %446 : vector<10x32xf32>
    %448 = vector.extract_strided_slice %447 {offsets = [2, 0], sizes = [8, 32], strides = [1, 1]} : vector<10x32xf32> to vector<8x32xf32>
    %c0_193 = arith.constant 0 : index
    %c0_194 = arith.constant 0 : index
    %449 = vector.load %arg26[%c0_193, %c0_194] : memref<32x32xbf16, #tpu.memory_space<vmem>>, vector<32x32xbf16>
    %450 = arith.truncf %448 : vector<8x32xf32> to vector<8x32xbf16>
    %cst_195 = arith.constant dense<0.000000e+00> : vector<8x32xf32>
    %451 = tpu.matmul %450, %449, %cst_195 {dimension_numbers = #tpu.dot_dimension_numbers<[1], [0], [0], [1], [0, 0, 1, 1], [], []>} : vector<8x32xbf16>, vector<32x32xbf16>, vector<8x32xf32> -> vector<8x32xf32>
    %c0_196 = arith.constant 0 : index
    %c0_197 = arith.constant 0 : index
    %452 = vector.load %arg27[%c0_196, %c0_197] : memref<1x32xf32, #tpu.memory_space<vmem>>, vector<1x32xf32>
    %453 = vector.broadcast %452 : vector<1x32xf32> to vector<8x32xf32>
    %454 = arith.addf %451, %453 : vector<8x32xf32>
    %c0_198 = arith.constant 0 : index
    %c0_199 = arith.constant 0 : index
    %455 = vector.load %arg3[%c0_198, %c0_199] : memref<16x32xf32, #tpu.memory_space<vmem>>, vector<16x32xf32>
    %c0_200 = arith.constant 0 : index
    %c0_201 = arith.constant 0 : index
    %c0_202 = arith.constant 0 : index
    %456 = vector.load %arg4[%c0_200, %c0_201, %c0_202] : memref<4x16x16xf32, #tpu.memory_space<vmem>>, vector<4x16x16xf32>
    %c0_203 = arith.constant 0 : index
    %c0_204 = arith.constant 0 : index
    %457 = vector.load %arg5[%c0_203, %c0_204] : memref<16x8xf32, #tpu.memory_space<vmem>>, vector<16x8xf32>
    %c0_205 = arith.constant 0 : index
    %c0_206 = arith.constant 0 : index
    %c0_207 = arith.constant 0 : index
    %458 = vector.load %arg28[%c0_205, %c0_206, %c0_207] : memref<2x1x32xf32, #tpu.memory_space<vmem>>, vector<1x1x32xf32>
    %459 = vector.shape_cast %458 : vector<1x1x32xf32> to vector<1x32xf32>
    %460 = arith.mulf %455, %455 : vector<16x32xf32>
    %cst_208 = arith.constant dense<0.000000e+00> : vector<16xf32>
    %461 = vector.multi_reduction <add>, %460, %cst_208 [1] : vector<16x32xf32> to vector<16xf32>
    %462 = vector.shape_cast %461 : vector<16xf32> to vector<16x1xf32>
    %cst_209 = arith.constant 3.200000e+01 : f32
    %463 = vector.broadcast %cst_209 : f32 to vector<16x1xf32>
    %464 = arith.divf %462, %463 : vector<16x1xf32>
    %cst_210 = arith.constant 9.99999997E-7 : f32
    %465 = vector.broadcast %cst_210 : f32 to vector<16x1xf32>
    %466 = arith.addf %464, %465 : vector<16x1xf32>
    %467 = math.rsqrt %466 : vector<16x1xf32>
    %468 = vector.broadcast %467 : vector<16x1xf32> to vector<16x32xf32>
    %469 = arith.mulf %455, %468 : vector<16x32xf32>
    %470 = vector.broadcast %459 : vector<1x32xf32> to vector<16x32xf32>
    %471 = arith.mulf %469, %470 : vector<16x32xf32>
    %c0_211 = arith.constant 0 : index
    %c0_212 = arith.constant 0 : index
    %c0_213 = arith.constant 0 : index
    %472 = vector.load %arg29[%c0_211, %c0_212, %c0_213] : memref<2x32x32xbf16, #tpu.memory_space<vmem>>, vector<1x32x32xbf16>
    %473 = vector.shape_cast %472 : vector<1x32x32xbf16> to vector<32x32xbf16>
    %474 = arith.truncf %471 : vector<16x32xf32> to vector<16x32xbf16>
    %cst_214 = arith.constant dense<0.000000e+00> : vector<16x32xf32>
    %475 = tpu.matmul %474, %473, %cst_214 {dimension_numbers = #tpu.dot_dimension_numbers<[1], [0], [0], [1], [0, 0, 1, 1], [], []>} : vector<16x32xbf16>, vector<32x32xbf16>, vector<16x32xf32> -> vector<16x32xf32>
    %c0_215 = arith.constant 0 : index
    %c0_216 = arith.constant 0 : index
    %c0_217 = arith.constant 0 : index
    %476 = vector.load %arg30[%c0_215, %c0_216, %c0_217] : memref<2x32x32xbf16, #tpu.memory_space<vmem>>, vector<1x32x32xbf16>
    %477 = vector.shape_cast %476 : vector<1x32x32xbf16> to vector<32x32xbf16>
    %478 = arith.truncf %471 : vector<16x32xf32> to vector<16x32xbf16>
    %cst_218 = arith.constant dense<0.000000e+00> : vector<16x32xf32>
    %479 = tpu.matmul %478, %477, %cst_218 {dimension_numbers = #tpu.dot_dimension_numbers<[1], [0], [0], [1], [0, 0, 1, 1], [], []>} : vector<16x32xbf16>, vector<32x32xbf16>, vector<16x32xf32> -> vector<16x32xf32>
    %c0_219 = arith.constant 0 : index
    %c0_220 = arith.constant 0 : index
    %c0_221 = arith.constant 0 : index
    %480 = vector.load %arg31[%c0_219, %c0_220, %c0_221] : memref<2x32x32xbf16, #tpu.memory_space<vmem>>, vector<1x32x32xbf16>
    %481 = vector.shape_cast %480 : vector<1x32x32xbf16> to vector<32x32xbf16>
    %482 = arith.truncf %471 : vector<16x32xf32> to vector<16x32xbf16>
    %cst_222 = arith.constant dense<0.000000e+00> : vector<16x32xf32>
    %483 = tpu.matmul %482, %481, %cst_222 {dimension_numbers = #tpu.dot_dimension_numbers<[1], [0], [0], [1], [0, 0, 1, 1], [], []>} : vector<16x32xbf16>, vector<32x32xbf16>, vector<16x32xf32> -> vector<16x32xf32>
    %c0_223 = arith.constant 0 : index
    %c0_224 = arith.constant 0 : index
    %c0_225 = arith.constant 0 : index
    %484 = vector.load %arg32[%c0_223, %c0_224, %c0_225] : memref<2x32x32xbf16, #tpu.memory_space<vmem>>, vector<1x32x32xbf16>
    %485 = vector.shape_cast %484 : vector<1x32x32xbf16> to vector<32x32xbf16>
    %486 = vector.extract_strided_slice %456 {offsets = [0, 0, 0], sizes = [1, 16, 16], strides = [1, 1, 1]} : vector<4x16x16xf32> to vector<1x16x16xf32>
    %487 = vector.shape_cast %486 : vector<1x16x16xf32> to vector<16x16xf32>
    %488 = vector.extract_strided_slice %475 {offsets = [0, 0], sizes = [16, 8], strides = [1, 1]} : vector<16x32xf32> to vector<16x8xf32>
    %489 = arith.truncf %488 : vector<16x8xf32> to vector<16x8xbf16>
    %490 = vector.extract_strided_slice %479 {offsets = [0, 0], sizes = [16, 8], strides = [1, 1]} : vector<16x32xf32> to vector<16x8xf32>
    %491 = arith.truncf %490 : vector<16x8xf32> to vector<16x8xbf16>
    %cst_226 = arith.constant dense<0.000000e+00> : vector<16x16xf32>
    %492 = tpu.matmul %489, %491, %cst_226 {dimension_numbers = #tpu.dot_dimension_numbers<[1], [1], [0], [0], [0, 0, 1, 0], [], []>} : vector<16x8xbf16>, vector<16x8xbf16>, vector<16x16xf32> -> vector<16x16xf32>
    %493 = arith.addf %492, %487 : vector<16x16xf32>
    %cst_227 = arith.constant dense<0xFF800000> : vector<16xf32>
    %494 = vector.multi_reduction <maximumf>, %493, %cst_227 [1] : vector<16x16xf32> to vector<16xf32>
    %495 = vector.shape_cast %494 : vector<16xf32> to vector<16x1xf32>
    %496 = vector.broadcast %495 : vector<16x1xf32> to vector<16x16xf32>
    %497 = arith.subf %493, %496 : vector<16x16xf32>
    %498 = math.exp %497 : vector<16x16xf32>
    %cst_228 = arith.constant dense<0.000000e+00> : vector<16xf32>
    %499 = vector.multi_reduction <add>, %498, %cst_228 [1] : vector<16x16xf32> to vector<16xf32>
    %500 = vector.shape_cast %499 : vector<16xf32> to vector<16x1xf32>
    %501 = vector.broadcast %500 : vector<16x1xf32> to vector<16x16xf32>
    %502 = arith.divf %498, %501 : vector<16x16xf32>
    %503 = arith.truncf %502 : vector<16x16xf32> to vector<16x16xbf16>
    %504 = vector.extract_strided_slice %483 {offsets = [0, 0], sizes = [16, 8], strides = [1, 1]} : vector<16x32xf32> to vector<16x8xf32>
    %505 = arith.truncf %504 : vector<16x8xf32> to vector<16x8xbf16>
    %cst_229 = arith.constant dense<0.000000e+00> : vector<16x8xf32>
    %506 = tpu.matmul %503, %505, %cst_229 {dimension_numbers = #tpu.dot_dimension_numbers<[1], [0], [0], [1], [0, 0, 1, 1], [], []>} : vector<16x16xbf16>, vector<16x8xbf16>, vector<16x8xf32> -> vector<16x8xf32>
    %507 = arith.truncf %506 : vector<16x8xf32> to vector<16x8xbf16>
    %508 = vector.extract_strided_slice %485 {offsets = [0, 0], sizes = [8, 32], strides = [1, 1]} : vector<32x32xbf16> to vector<8x32xbf16>
    %cst_230 = arith.constant dense<0.000000e+00> : vector<16x32xf32>
    %509 = tpu.matmul %507, %508, %cst_230 {dimension_numbers = #tpu.dot_dimension_numbers<[1], [0], [0], [1], [0, 0, 1, 1], [], []>} : vector<16x8xbf16>, vector<8x32xbf16>, vector<16x32xf32> -> vector<16x32xf32>
    %510 = vector.extract_strided_slice %456 {offsets = [1, 0, 0], sizes = [1, 16, 16], strides = [1, 1, 1]} : vector<4x16x16xf32> to vector<1x16x16xf32>
    %511 = vector.shape_cast %510 : vector<1x16x16xf32> to vector<16x16xf32>
    %512 = vector.extract_strided_slice %475 {offsets = [0, 8], sizes = [16, 8], strides = [1, 1]} : vector<16x32xf32> to vector<16x8xf32>
    %513 = arith.truncf %512 : vector<16x8xf32> to vector<16x8xbf16>
    %514 = vector.extract_strided_slice %479 {offsets = [0, 8], sizes = [16, 8], strides = [1, 1]} : vector<16x32xf32> to vector<16x8xf32>
    %515 = arith.truncf %514 : vector<16x8xf32> to vector<16x8xbf16>
    %cst_231 = arith.constant dense<0.000000e+00> : vector<16x16xf32>
    %516 = tpu.matmul %513, %515, %cst_231 {dimension_numbers = #tpu.dot_dimension_numbers<[1], [1], [0], [0], [0, 0, 1, 0], [], []>} : vector<16x8xbf16>, vector<16x8xbf16>, vector<16x16xf32> -> vector<16x16xf32>
    %517 = arith.addf %516, %511 : vector<16x16xf32>
    %cst_232 = arith.constant dense<0xFF800000> : vector<16xf32>
    %518 = vector.multi_reduction <maximumf>, %517, %cst_232 [1] : vector<16x16xf32> to vector<16xf32>
    %519 = vector.shape_cast %518 : vector<16xf32> to vector<16x1xf32>
    %520 = vector.broadcast %519 : vector<16x1xf32> to vector<16x16xf32>
    %521 = arith.subf %517, %520 : vector<16x16xf32>
    %522 = math.exp %521 : vector<16x16xf32>
    %cst_233 = arith.constant dense<0.000000e+00> : vector<16xf32>
    %523 = vector.multi_reduction <add>, %522, %cst_233 [1] : vector<16x16xf32> to vector<16xf32>
    %524 = vector.shape_cast %523 : vector<16xf32> to vector<16x1xf32>
    %525 = vector.broadcast %524 : vector<16x1xf32> to vector<16x16xf32>
    %526 = arith.divf %522, %525 : vector<16x16xf32>
    %527 = arith.truncf %526 : vector<16x16xf32> to vector<16x16xbf16>
    %528 = vector.extract_strided_slice %483 {offsets = [0, 8], sizes = [16, 8], strides = [1, 1]} : vector<16x32xf32> to vector<16x8xf32>
    %529 = arith.truncf %528 : vector<16x8xf32> to vector<16x8xbf16>
    %cst_234 = arith.constant dense<0.000000e+00> : vector<16x8xf32>
    %530 = tpu.matmul %527, %529, %cst_234 {dimension_numbers = #tpu.dot_dimension_numbers<[1], [0], [0], [1], [0, 0, 1, 1], [], []>} : vector<16x16xbf16>, vector<16x8xbf16>, vector<16x8xf32> -> vector<16x8xf32>
    %531 = arith.truncf %530 : vector<16x8xf32> to vector<16x8xbf16>
    %532 = vector.extract_strided_slice %485 {offsets = [8, 0], sizes = [8, 32], strides = [1, 1]} : vector<32x32xbf16> to vector<8x32xbf16>
    %cst_235 = arith.constant dense<0.000000e+00> : vector<16x32xf32>
    %533 = tpu.matmul %531, %532, %cst_235 {dimension_numbers = #tpu.dot_dimension_numbers<[1], [0], [0], [1], [0, 0, 1, 1], [], []>} : vector<16x8xbf16>, vector<8x32xbf16>, vector<16x32xf32> -> vector<16x32xf32>
    %534 = arith.addf %509, %533 : vector<16x32xf32>
    %535 = vector.extract_strided_slice %456 {offsets = [2, 0, 0], sizes = [1, 16, 16], strides = [1, 1, 1]} : vector<4x16x16xf32> to vector<1x16x16xf32>
    %536 = vector.shape_cast %535 : vector<1x16x16xf32> to vector<16x16xf32>
    %537 = vector.extract_strided_slice %475 {offsets = [0, 16], sizes = [16, 8], strides = [1, 1]} : vector<16x32xf32> to vector<16x8xf32>
    %538 = arith.truncf %537 : vector<16x8xf32> to vector<16x8xbf16>
    %539 = vector.extract_strided_slice %479 {offsets = [0, 16], sizes = [16, 8], strides = [1, 1]} : vector<16x32xf32> to vector<16x8xf32>
    %540 = arith.truncf %539 : vector<16x8xf32> to vector<16x8xbf16>
    %cst_236 = arith.constant dense<0.000000e+00> : vector<16x16xf32>
    %541 = tpu.matmul %538, %540, %cst_236 {dimension_numbers = #tpu.dot_dimension_numbers<[1], [1], [0], [0], [0, 0, 1, 0], [], []>} : vector<16x8xbf16>, vector<16x8xbf16>, vector<16x16xf32> -> vector<16x16xf32>
    %542 = arith.addf %541, %536 : vector<16x16xf32>
    %cst_237 = arith.constant dense<0xFF800000> : vector<16xf32>
    %543 = vector.multi_reduction <maximumf>, %542, %cst_237 [1] : vector<16x16xf32> to vector<16xf32>
    %544 = vector.shape_cast %543 : vector<16xf32> to vector<16x1xf32>
    %545 = vector.broadcast %544 : vector<16x1xf32> to vector<16x16xf32>
    %546 = arith.subf %542, %545 : vector<16x16xf32>
    %547 = math.exp %546 : vector<16x16xf32>
    %cst_238 = arith.constant dense<0.000000e+00> : vector<16xf32>
    %548 = vector.multi_reduction <add>, %547, %cst_238 [1] : vector<16x16xf32> to vector<16xf32>
    %549 = vector.shape_cast %548 : vector<16xf32> to vector<16x1xf32>
    %550 = vector.broadcast %549 : vector<16x1xf32> to vector<16x16xf32>
    %551 = arith.divf %547, %550 : vector<16x16xf32>
    %552 = arith.truncf %551 : vector<16x16xf32> to vector<16x16xbf16>
    %553 = vector.extract_strided_slice %483 {offsets = [0, 16], sizes = [16, 8], strides = [1, 1]} : vector<16x32xf32> to vector<16x8xf32>
    %554 = arith.truncf %553 : vector<16x8xf32> to vector<16x8xbf16>
    %cst_239 = arith.constant dense<0.000000e+00> : vector<16x8xf32>
    %555 = tpu.matmul %552, %554, %cst_239 {dimension_numbers = #tpu.dot_dimension_numbers<[1], [0], [0], [1], [0, 0, 1, 1], [], []>} : vector<16x16xbf16>, vector<16x8xbf16>, vector<16x8xf32> -> vector<16x8xf32>
    %556 = arith.truncf %555 : vector<16x8xf32> to vector<16x8xbf16>
    %557 = vector.extract_strided_slice %485 {offsets = [16, 0], sizes = [8, 32], strides = [1, 1]} : vector<32x32xbf16> to vector<8x32xbf16>
    %cst_240 = arith.constant dense<0.000000e+00> : vector<16x32xf32>
    %558 = tpu.matmul %556, %557, %cst_240 {dimension_numbers = #tpu.dot_dimension_numbers<[1], [0], [0], [1], [0, 0, 1, 1], [], []>} : vector<16x8xbf16>, vector<8x32xbf16>, vector<16x32xf32> -> vector<16x32xf32>
    %559 = arith.addf %534, %558 : vector<16x32xf32>
    %560 = vector.extract_strided_slice %456 {offsets = [3, 0, 0], sizes = [1, 16, 16], strides = [1, 1, 1]} : vector<4x16x16xf32> to vector<1x16x16xf32>
    %561 = vector.shape_cast %560 : vector<1x16x16xf32> to vector<16x16xf32>
    %562 = vector.extract_strided_slice %475 {offsets = [0, 24], sizes = [16, 8], strides = [1, 1]} : vector<16x32xf32> to vector<16x8xf32>
    %563 = arith.truncf %562 : vector<16x8xf32> to vector<16x8xbf16>
    %564 = vector.extract_strided_slice %479 {offsets = [0, 24], sizes = [16, 8], strides = [1, 1]} : vector<16x32xf32> to vector<16x8xf32>
    %565 = arith.truncf %564 : vector<16x8xf32> to vector<16x8xbf16>
    %cst_241 = arith.constant dense<0.000000e+00> : vector<16x16xf32>
    %566 = tpu.matmul %563, %565, %cst_241 {dimension_numbers = #tpu.dot_dimension_numbers<[1], [1], [0], [0], [0, 0, 1, 0], [], []>} : vector<16x8xbf16>, vector<16x8xbf16>, vector<16x16xf32> -> vector<16x16xf32>
    %567 = arith.addf %566, %561 : vector<16x16xf32>
    %cst_242 = arith.constant dense<0xFF800000> : vector<16xf32>
    %568 = vector.multi_reduction <maximumf>, %567, %cst_242 [1] : vector<16x16xf32> to vector<16xf32>
    %569 = vector.shape_cast %568 : vector<16xf32> to vector<16x1xf32>
    %570 = vector.broadcast %569 : vector<16x1xf32> to vector<16x16xf32>
    %571 = arith.subf %567, %570 : vector<16x16xf32>
    %572 = math.exp %571 : vector<16x16xf32>
    %cst_243 = arith.constant dense<0.000000e+00> : vector<16xf32>
    %573 = vector.multi_reduction <add>, %572, %cst_243 [1] : vector<16x16xf32> to vector<16xf32>
    %574 = vector.shape_cast %573 : vector<16xf32> to vector<16x1xf32>
    %575 = vector.broadcast %574 : vector<16x1xf32> to vector<16x16xf32>
    %576 = arith.divf %572, %575 : vector<16x16xf32>
    %577 = arith.truncf %576 : vector<16x16xf32> to vector<16x16xbf16>
    %578 = vector.extract_strided_slice %483 {offsets = [0, 24], sizes = [16, 8], strides = [1, 1]} : vector<16x32xf32> to vector<16x8xf32>
    %579 = arith.truncf %578 : vector<16x8xf32> to vector<16x8xbf16>
    %cst_244 = arith.constant dense<0.000000e+00> : vector<16x8xf32>
    %580 = tpu.matmul %577, %579, %cst_244 {dimension_numbers = #tpu.dot_dimension_numbers<[1], [0], [0], [1], [0, 0, 1, 1], [], []>} : vector<16x16xbf16>, vector<16x8xbf16>, vector<16x8xf32> -> vector<16x8xf32>
    %581 = arith.truncf %580 : vector<16x8xf32> to vector<16x8xbf16>
    %582 = vector.extract_strided_slice %485 {offsets = [24, 0], sizes = [8, 32], strides = [1, 1]} : vector<32x32xbf16> to vector<8x32xbf16>
    %cst_245 = arith.constant dense<0.000000e+00> : vector<16x32xf32>
    %583 = tpu.matmul %581, %582, %cst_245 {dimension_numbers = #tpu.dot_dimension_numbers<[1], [0], [0], [1], [0, 0, 1, 1], [], []>} : vector<16x8xbf16>, vector<8x32xbf16>, vector<16x32xf32> -> vector<16x32xf32>
    %584 = arith.addf %559, %583 : vector<16x32xf32>
    %585 = arith.addf %455, %584 : vector<16x32xf32>
    %c0_246 = arith.constant 0 : index
    %c0_247 = arith.constant 0 : index
    %c0_248 = arith.constant 0 : index
    %586 = vector.load %arg33[%c0_246, %c0_247, %c0_248] : memref<2x1x32xf32, #tpu.memory_space<vmem>>, vector<1x1x32xf32>
    %587 = vector.shape_cast %586 : vector<1x1x32xf32> to vector<1x32xf32>
    %588 = arith.mulf %585, %585 : vector<16x32xf32>
    %cst_249 = arith.constant dense<0.000000e+00> : vector<16xf32>
    %589 = vector.multi_reduction <add>, %588, %cst_249 [1] : vector<16x32xf32> to vector<16xf32>
    %590 = vector.shape_cast %589 : vector<16xf32> to vector<16x1xf32>
    %cst_250 = arith.constant 3.200000e+01 : f32
    %591 = vector.broadcast %cst_250 : f32 to vector<16x1xf32>
    %592 = arith.divf %590, %591 : vector<16x1xf32>
    %cst_251 = arith.constant 9.99999997E-7 : f32
    %593 = vector.broadcast %cst_251 : f32 to vector<16x1xf32>
    %594 = arith.addf %592, %593 : vector<16x1xf32>
    %595 = math.rsqrt %594 : vector<16x1xf32>
    %596 = vector.broadcast %595 : vector<16x1xf32> to vector<16x32xf32>
    %597 = arith.mulf %585, %596 : vector<16x32xf32>
    %598 = vector.broadcast %587 : vector<1x32xf32> to vector<16x32xf32>
    %599 = arith.mulf %597, %598 : vector<16x32xf32>
    %c0_252 = arith.constant 0 : index
    %c0_253 = arith.constant 0 : index
    %c0_254 = arith.constant 0 : index
    %600 = vector.load %arg34[%c0_252, %c0_253, %c0_254] : memref<2x32x32xbf16, #tpu.memory_space<vmem>>, vector<1x32x32xbf16>
    %601 = vector.shape_cast %600 : vector<1x32x32xbf16> to vector<32x32xbf16>
    %602 = arith.truncf %599 : vector<16x32xf32> to vector<16x32xbf16>
    %cst_255 = arith.constant dense<0.000000e+00> : vector<16x32xf32>
    %603 = tpu.matmul %602, %601, %cst_255 {dimension_numbers = #tpu.dot_dimension_numbers<[1], [0], [0], [1], [0, 0, 1, 1], [], []>} : vector<16x32xbf16>, vector<32x32xbf16>, vector<16x32xf32> -> vector<16x32xf32>
    %c0_256 = arith.constant 0 : index
    %c0_257 = arith.constant 0 : index
    %c0_258 = arith.constant 0 : index
    %604 = vector.load %arg35[%c0_256, %c0_257, %c0_258] : memref<2x32x32xbf16, #tpu.memory_space<vmem>>, vector<1x32x32xbf16>
    %605 = vector.shape_cast %604 : vector<1x32x32xbf16> to vector<32x32xbf16>
    %606 = arith.truncf %454 : vector<8x32xf32> to vector<8x32xbf16>
    %cst_259 = arith.constant dense<0.000000e+00> : vector<8x32xf32>
    %607 = tpu.matmul %606, %605, %cst_259 {dimension_numbers = #tpu.dot_dimension_numbers<[1], [0], [0], [1], [0, 0, 1, 1], [], []>} : vector<8x32xbf16>, vector<32x32xbf16>, vector<8x32xf32> -> vector<8x32xf32>
    %c0_260 = arith.constant 0 : index
    %c0_261 = arith.constant 0 : index
    %c0_262 = arith.constant 0 : index
    %608 = vector.load %arg36[%c0_260, %c0_261, %c0_262] : memref<2x32x32xbf16, #tpu.memory_space<vmem>>, vector<1x32x32xbf16>
    %609 = vector.shape_cast %608 : vector<1x32x32xbf16> to vector<32x32xbf16>
    %610 = arith.truncf %454 : vector<8x32xf32> to vector<8x32xbf16>
    %cst_263 = arith.constant dense<0.000000e+00> : vector<8x32xf32>
    %611 = tpu.matmul %610, %609, %cst_263 {dimension_numbers = #tpu.dot_dimension_numbers<[1], [0], [0], [1], [0, 0, 1, 1], [], []>} : vector<8x32xbf16>, vector<32x32xbf16>, vector<8x32xf32> -> vector<8x32xf32>
    %c0_264 = arith.constant 0 : index
    %c0_265 = arith.constant 0 : index
    %c0_266 = arith.constant 0 : index
    %612 = vector.load %arg37[%c0_264, %c0_265, %c0_266] : memref<2x32x32xbf16, #tpu.memory_space<vmem>>, vector<1x32x32xbf16>
    %613 = vector.shape_cast %612 : vector<1x32x32xbf16> to vector<32x32xbf16>
    %614 = vector.extract_strided_slice %603 {offsets = [0, 0], sizes = [16, 8], strides = [1, 1]} : vector<16x32xf32> to vector<16x8xf32>
    %615 = arith.truncf %614 : vector<16x8xf32> to vector<16x8xbf16>
    %616 = vector.extract_strided_slice %607 {offsets = [0, 0], sizes = [8, 8], strides = [1, 1]} : vector<8x32xf32> to vector<8x8xf32>
    %617 = arith.truncf %616 : vector<8x8xf32> to vector<8x8xbf16>
    %cst_267 = arith.constant dense<0.000000e+00> : vector<16x8xf32>
    %618 = tpu.matmul %615, %617, %cst_267 {dimension_numbers = #tpu.dot_dimension_numbers<[1], [1], [0], [0], [0, 0, 1, 0], [], []>} : vector<16x8xbf16>, vector<8x8xbf16>, vector<16x8xf32> -> vector<16x8xf32>
    %619 = arith.addf %618, %457 : vector<16x8xf32>
    %cst_268 = arith.constant dense<0xFF800000> : vector<16xf32>
    %620 = vector.multi_reduction <maximumf>, %619, %cst_268 [1] : vector<16x8xf32> to vector<16xf32>
    %621 = vector.shape_cast %620 : vector<16xf32> to vector<16x1xf32>
    %622 = vector.broadcast %621 : vector<16x1xf32> to vector<16x8xf32>
    %623 = arith.subf %619, %622 : vector<16x8xf32>
    %624 = math.exp %623 : vector<16x8xf32>
    %cst_269 = arith.constant dense<0.000000e+00> : vector<16xf32>
    %625 = vector.multi_reduction <add>, %624, %cst_269 [1] : vector<16x8xf32> to vector<16xf32>
    %626 = vector.shape_cast %625 : vector<16xf32> to vector<16x1xf32>
    %627 = vector.broadcast %626 : vector<16x1xf32> to vector<16x8xf32>
    %628 = arith.divf %624, %627 : vector<16x8xf32>
    %629 = arith.truncf %628 : vector<16x8xf32> to vector<16x8xbf16>
    %630 = vector.extract_strided_slice %611 {offsets = [0, 0], sizes = [8, 8], strides = [1, 1]} : vector<8x32xf32> to vector<8x8xf32>
    %631 = arith.truncf %630 : vector<8x8xf32> to vector<8x8xbf16>
    %cst_270 = arith.constant dense<0.000000e+00> : vector<16x8xf32>
    %632 = tpu.matmul %629, %631, %cst_270 {dimension_numbers = #tpu.dot_dimension_numbers<[1], [0], [0], [1], [0, 0, 1, 1], [], []>} : vector<16x8xbf16>, vector<8x8xbf16>, vector<16x8xf32> -> vector<16x8xf32>
    %633 = arith.truncf %632 : vector<16x8xf32> to vector<16x8xbf16>
    %634 = vector.extract_strided_slice %613 {offsets = [0, 0], sizes = [8, 32], strides = [1, 1]} : vector<32x32xbf16> to vector<8x32xbf16>
    %cst_271 = arith.constant dense<0.000000e+00> : vector<16x32xf32>
    %635 = tpu.matmul %633, %634, %cst_271 {dimension_numbers = #tpu.dot_dimension_numbers<[1], [0], [0], [1], [0, 0, 1, 1], [], []>} : vector<16x8xbf16>, vector<8x32xbf16>, vector<16x32xf32> -> vector<16x32xf32>
    %636 = vector.extract_strided_slice %603 {offsets = [0, 8], sizes = [16, 8], strides = [1, 1]} : vector<16x32xf32> to vector<16x8xf32>
    %637 = arith.truncf %636 : vector<16x8xf32> to vector<16x8xbf16>
    %638 = vector.extract_strided_slice %607 {offsets = [0, 8], sizes = [8, 8], strides = [1, 1]} : vector<8x32xf32> to vector<8x8xf32>
    %639 = arith.truncf %638 : vector<8x8xf32> to vector<8x8xbf16>
    %cst_272 = arith.constant dense<0.000000e+00> : vector<16x8xf32>
    %640 = tpu.matmul %637, %639, %cst_272 {dimension_numbers = #tpu.dot_dimension_numbers<[1], [1], [0], [0], [0, 0, 1, 0], [], []>} : vector<16x8xbf16>, vector<8x8xbf16>, vector<16x8xf32> -> vector<16x8xf32>
    %641 = arith.addf %640, %457 : vector<16x8xf32>
    %cst_273 = arith.constant dense<0xFF800000> : vector<16xf32>
    %642 = vector.multi_reduction <maximumf>, %641, %cst_273 [1] : vector<16x8xf32> to vector<16xf32>
    %643 = vector.shape_cast %642 : vector<16xf32> to vector<16x1xf32>
    %644 = vector.broadcast %643 : vector<16x1xf32> to vector<16x8xf32>
    %645 = arith.subf %641, %644 : vector<16x8xf32>
    %646 = math.exp %645 : vector<16x8xf32>
    %cst_274 = arith.constant dense<0.000000e+00> : vector<16xf32>
    %647 = vector.multi_reduction <add>, %646, %cst_274 [1] : vector<16x8xf32> to vector<16xf32>
    %648 = vector.shape_cast %647 : vector<16xf32> to vector<16x1xf32>
    %649 = vector.broadcast %648 : vector<16x1xf32> to vector<16x8xf32>
    %650 = arith.divf %646, %649 : vector<16x8xf32>
    %651 = arith.truncf %650 : vector<16x8xf32> to vector<16x8xbf16>
    %652 = vector.extract_strided_slice %611 {offsets = [0, 8], sizes = [8, 8], strides = [1, 1]} : vector<8x32xf32> to vector<8x8xf32>
    %653 = arith.truncf %652 : vector<8x8xf32> to vector<8x8xbf16>
    %cst_275 = arith.constant dense<0.000000e+00> : vector<16x8xf32>
    %654 = tpu.matmul %651, %653, %cst_275 {dimension_numbers = #tpu.dot_dimension_numbers<[1], [0], [0], [1], [0, 0, 1, 1], [], []>} : vector<16x8xbf16>, vector<8x8xbf16>, vector<16x8xf32> -> vector<16x8xf32>
    %655 = arith.truncf %654 : vector<16x8xf32> to vector<16x8xbf16>
    %656 = vector.extract_strided_slice %613 {offsets = [8, 0], sizes = [8, 32], strides = [1, 1]} : vector<32x32xbf16> to vector<8x32xbf16>
    %cst_276 = arith.constant dense<0.000000e+00> : vector<16x32xf32>
    %657 = tpu.matmul %655, %656, %cst_276 {dimension_numbers = #tpu.dot_dimension_numbers<[1], [0], [0], [1], [0, 0, 1, 1], [], []>} : vector<16x8xbf16>, vector<8x32xbf16>, vector<16x32xf32> -> vector<16x32xf32>
    %658 = arith.addf %635, %657 : vector<16x32xf32>
    %659 = vector.extract_strided_slice %603 {offsets = [0, 16], sizes = [16, 8], strides = [1, 1]} : vector<16x32xf32> to vector<16x8xf32>
    %660 = arith.truncf %659 : vector<16x8xf32> to vector<16x8xbf16>
    %661 = vector.extract_strided_slice %607 {offsets = [0, 16], sizes = [8, 8], strides = [1, 1]} : vector<8x32xf32> to vector<8x8xf32>
    %662 = arith.truncf %661 : vector<8x8xf32> to vector<8x8xbf16>
    %cst_277 = arith.constant dense<0.000000e+00> : vector<16x8xf32>
    %663 = tpu.matmul %660, %662, %cst_277 {dimension_numbers = #tpu.dot_dimension_numbers<[1], [1], [0], [0], [0, 0, 1, 0], [], []>} : vector<16x8xbf16>, vector<8x8xbf16>, vector<16x8xf32> -> vector<16x8xf32>
    %664 = arith.addf %663, %457 : vector<16x8xf32>
    %cst_278 = arith.constant dense<0xFF800000> : vector<16xf32>
    %665 = vector.multi_reduction <maximumf>, %664, %cst_278 [1] : vector<16x8xf32> to vector<16xf32>
    %666 = vector.shape_cast %665 : vector<16xf32> to vector<16x1xf32>
    %667 = vector.broadcast %666 : vector<16x1xf32> to vector<16x8xf32>
    %668 = arith.subf %664, %667 : vector<16x8xf32>
    %669 = math.exp %668 : vector<16x8xf32>
    %cst_279 = arith.constant dense<0.000000e+00> : vector<16xf32>
    %670 = vector.multi_reduction <add>, %669, %cst_279 [1] : vector<16x8xf32> to vector<16xf32>
    %671 = vector.shape_cast %670 : vector<16xf32> to vector<16x1xf32>
    %672 = vector.broadcast %671 : vector<16x1xf32> to vector<16x8xf32>
    %673 = arith.divf %669, %672 : vector<16x8xf32>
    %674 = arith.truncf %673 : vector<16x8xf32> to vector<16x8xbf16>
    %675 = vector.extract_strided_slice %611 {offsets = [0, 16], sizes = [8, 8], strides = [1, 1]} : vector<8x32xf32> to vector<8x8xf32>
    %676 = arith.truncf %675 : vector<8x8xf32> to vector<8x8xbf16>
    %cst_280 = arith.constant dense<0.000000e+00> : vector<16x8xf32>
    %677 = tpu.matmul %674, %676, %cst_280 {dimension_numbers = #tpu.dot_dimension_numbers<[1], [0], [0], [1], [0, 0, 1, 1], [], []>} : vector<16x8xbf16>, vector<8x8xbf16>, vector<16x8xf32> -> vector<16x8xf32>
    %678 = arith.truncf %677 : vector<16x8xf32> to vector<16x8xbf16>
    %679 = vector.extract_strided_slice %613 {offsets = [16, 0], sizes = [8, 32], strides = [1, 1]} : vector<32x32xbf16> to vector<8x32xbf16>
    %cst_281 = arith.constant dense<0.000000e+00> : vector<16x32xf32>
    %680 = tpu.matmul %678, %679, %cst_281 {dimension_numbers = #tpu.dot_dimension_numbers<[1], [0], [0], [1], [0, 0, 1, 1], [], []>} : vector<16x8xbf16>, vector<8x32xbf16>, vector<16x32xf32> -> vector<16x32xf32>
    %681 = arith.addf %658, %680 : vector<16x32xf32>
    %682 = vector.extract_strided_slice %603 {offsets = [0, 24], sizes = [16, 8], strides = [1, 1]} : vector<16x32xf32> to vector<16x8xf32>
    %683 = arith.truncf %682 : vector<16x8xf32> to vector<16x8xbf16>
    %684 = vector.extract_strided_slice %607 {offsets = [0, 24], sizes = [8, 8], strides = [1, 1]} : vector<8x32xf32> to vector<8x8xf32>
    %685 = arith.truncf %684 : vector<8x8xf32> to vector<8x8xbf16>
    %cst_282 = arith.constant dense<0.000000e+00> : vector<16x8xf32>
    %686 = tpu.matmul %683, %685, %cst_282 {dimension_numbers = #tpu.dot_dimension_numbers<[1], [1], [0], [0], [0, 0, 1, 0], [], []>} : vector<16x8xbf16>, vector<8x8xbf16>, vector<16x8xf32> -> vector<16x8xf32>
    %687 = arith.addf %686, %457 : vector<16x8xf32>
    %cst_283 = arith.constant dense<0xFF800000> : vector<16xf32>
    %688 = vector.multi_reduction <maximumf>, %687, %cst_283 [1] : vector<16x8xf32> to vector<16xf32>
    %689 = vector.shape_cast %688 : vector<16xf32> to vector<16x1xf32>
    %690 = vector.broadcast %689 : vector<16x1xf32> to vector<16x8xf32>
    %691 = arith.subf %687, %690 : vector<16x8xf32>
    %692 = math.exp %691 : vector<16x8xf32>
    %cst_284 = arith.constant dense<0.000000e+00> : vector<16xf32>
    %693 = vector.multi_reduction <add>, %692, %cst_284 [1] : vector<16x8xf32> to vector<16xf32>
    %694 = vector.shape_cast %693 : vector<16xf32> to vector<16x1xf32>
    %695 = vector.broadcast %694 : vector<16x1xf32> to vector<16x8xf32>
    %696 = arith.divf %692, %695 : vector<16x8xf32>
    %697 = arith.truncf %696 : vector<16x8xf32> to vector<16x8xbf16>
    %698 = vector.extract_strided_slice %611 {offsets = [0, 24], sizes = [8, 8], strides = [1, 1]} : vector<8x32xf32> to vector<8x8xf32>
    %699 = arith.truncf %698 : vector<8x8xf32> to vector<8x8xbf16>
    %cst_285 = arith.constant dense<0.000000e+00> : vector<16x8xf32>
    %700 = tpu.matmul %697, %699, %cst_285 {dimension_numbers = #tpu.dot_dimension_numbers<[1], [0], [0], [1], [0, 0, 1, 1], [], []>} : vector<16x8xbf16>, vector<8x8xbf16>, vector<16x8xf32> -> vector<16x8xf32>
    %701 = arith.truncf %700 : vector<16x8xf32> to vector<16x8xbf16>
    %702 = vector.extract_strided_slice %613 {offsets = [24, 0], sizes = [8, 32], strides = [1, 1]} : vector<32x32xbf16> to vector<8x32xbf16>
    %cst_286 = arith.constant dense<0.000000e+00> : vector<16x32xf32>
    %703 = tpu.matmul %701, %702, %cst_286 {dimension_numbers = #tpu.dot_dimension_numbers<[1], [0], [0], [1], [0, 0, 1, 1], [], []>} : vector<16x8xbf16>, vector<8x32xbf16>, vector<16x32xf32> -> vector<16x32xf32>
    %704 = arith.addf %681, %703 : vector<16x32xf32>
    %705 = arith.addf %585, %704 : vector<16x32xf32>
    %c0_287 = arith.constant 0 : index
    %c0_288 = arith.constant 0 : index
    %c0_289 = arith.constant 0 : index
    %706 = vector.load %arg38[%c0_287, %c0_288, %c0_289] : memref<2x1x32xf32, #tpu.memory_space<vmem>>, vector<1x1x32xf32>
    %707 = vector.shape_cast %706 : vector<1x1x32xf32> to vector<1x32xf32>
    %708 = arith.mulf %705, %705 : vector<16x32xf32>
    %cst_290 = arith.constant dense<0.000000e+00> : vector<16xf32>
    %709 = vector.multi_reduction <add>, %708, %cst_290 [1] : vector<16x32xf32> to vector<16xf32>
    %710 = vector.shape_cast %709 : vector<16xf32> to vector<16x1xf32>
    %cst_291 = arith.constant 3.200000e+01 : f32
    %711 = vector.broadcast %cst_291 : f32 to vector<16x1xf32>
    %712 = arith.divf %710, %711 : vector<16x1xf32>
    %cst_292 = arith.constant 9.99999997E-7 : f32
    %713 = vector.broadcast %cst_292 : f32 to vector<16x1xf32>
    %714 = arith.addf %712, %713 : vector<16x1xf32>
    %715 = math.rsqrt %714 : vector<16x1xf32>
    %716 = vector.broadcast %715 : vector<16x1xf32> to vector<16x32xf32>
    %717 = arith.mulf %705, %716 : vector<16x32xf32>
    %718 = vector.broadcast %707 : vector<1x32xf32> to vector<16x32xf32>
    %719 = arith.mulf %717, %718 : vector<16x32xf32>
    %c0_293 = arith.constant 0 : index
    %c0_294 = arith.constant 0 : index
    %c0_295 = arith.constant 0 : index
    %720 = vector.load %arg39[%c0_293, %c0_294, %c0_295] : memref<2x32x64xbf16, #tpu.memory_space<vmem>>, vector<1x32x64xbf16>
    %721 = vector.shape_cast %720 : vector<1x32x64xbf16> to vector<32x64xbf16>
    %722 = arith.truncf %719 : vector<16x32xf32> to vector<16x32xbf16>
    %cst_296 = arith.constant dense<0.000000e+00> : vector<16x64xf32>
    %723 = tpu.matmul %722, %721, %cst_296 {dimension_numbers = #tpu.dot_dimension_numbers<[1], [0], [0], [1], [0, 0, 1, 1], [], []>} : vector<16x32xbf16>, vector<32x64xbf16>, vector<16x64xf32> -> vector<16x64xf32>
    %724 = arith.mulf %723, %723 : vector<16x64xf32>
    %725 = arith.mulf %723, %724 : vector<16x64xf32>
    %cst_297 = arith.constant 4.471500e-02 : f32
    %726 = vector.broadcast %cst_297 : f32 to vector<16x64xf32>
    %727 = arith.mulf %726, %725 : vector<16x64xf32>
    %728 = arith.addf %723, %727 : vector<16x64xf32>
    %cst_298 = arith.constant 0.797884583 : f32
    %729 = vector.broadcast %cst_298 : f32 to vector<16x64xf32>
    %730 = arith.mulf %729, %728 : vector<16x64xf32>
    %731 = math.tanh %730 : vector<16x64xf32>
    %cst_299 = arith.constant 1.000000e+00 : f32
    %732 = vector.broadcast %cst_299 : f32 to vector<16x64xf32>
    %733 = arith.addf %732, %731 : vector<16x64xf32>
    %cst_300 = arith.constant 5.000000e-01 : f32
    %734 = vector.broadcast %cst_300 : f32 to vector<16x64xf32>
    %735 = arith.mulf %734, %733 : vector<16x64xf32>
    %736 = arith.mulf %723, %735 : vector<16x64xf32>
    %c0_301 = arith.constant 0 : index
    %c0_302 = arith.constant 0 : index
    %c0_303 = arith.constant 0 : index
    %737 = vector.load %arg40[%c0_301, %c0_302, %c0_303] : memref<2x32x64xbf16, #tpu.memory_space<vmem>>, vector<1x32x64xbf16>
    %738 = vector.shape_cast %737 : vector<1x32x64xbf16> to vector<32x64xbf16>
    %739 = arith.truncf %719 : vector<16x32xf32> to vector<16x32xbf16>
    %cst_304 = arith.constant dense<0.000000e+00> : vector<16x64xf32>
    %740 = tpu.matmul %739, %738, %cst_304 {dimension_numbers = #tpu.dot_dimension_numbers<[1], [0], [0], [1], [0, 0, 1, 1], [], []>} : vector<16x32xbf16>, vector<32x64xbf16>, vector<16x64xf32> -> vector<16x64xf32>
    %741 = arith.mulf %736, %740 : vector<16x64xf32>
    %c0_305 = arith.constant 0 : index
    %c0_306 = arith.constant 0 : index
    %c0_307 = arith.constant 0 : index
    %742 = vector.load %arg41[%c0_305, %c0_306, %c0_307] : memref<2x64x32xbf16, #tpu.memory_space<vmem>>, vector<1x64x32xbf16>
    %743 = vector.shape_cast %742 : vector<1x64x32xbf16> to vector<64x32xbf16>
    %744 = arith.truncf %741 : vector<16x64xf32> to vector<16x64xbf16>
    %cst_308 = arith.constant dense<0.000000e+00> : vector<16x32xf32>
    %745 = tpu.matmul %744, %743, %cst_308 {dimension_numbers = #tpu.dot_dimension_numbers<[1], [0], [0], [1], [0, 0, 1, 1], [], []>} : vector<16x64xbf16>, vector<64x32xbf16>, vector<16x32xf32> -> vector<16x32xf32>
    %746 = arith.addf %705, %745 : vector<16x32xf32>
    %c1_309 = arith.constant 1 : index
    %c0_310 = arith.constant 0 : index
    %c0_311 = arith.constant 0 : index
    %747 = vector.load %arg28[%c1_309, %c0_310, %c0_311] : memref<2x1x32xf32, #tpu.memory_space<vmem>>, vector<1x1x32xf32>
    %748 = vector.shape_cast %747 : vector<1x1x32xf32> to vector<1x32xf32>
    %749 = arith.mulf %746, %746 : vector<16x32xf32>
    %cst_312 = arith.constant dense<0.000000e+00> : vector<16xf32>
    %750 = vector.multi_reduction <add>, %749, %cst_312 [1] : vector<16x32xf32> to vector<16xf32>
    %751 = vector.shape_cast %750 : vector<16xf32> to vector<16x1xf32>
    %cst_313 = arith.constant 3.200000e+01 : f32
    %752 = vector.broadcast %cst_313 : f32 to vector<16x1xf32>
    %753 = arith.divf %751, %752 : vector<16x1xf32>
    %cst_314 = arith.constant 9.99999997E-7 : f32
    %754 = vector.broadcast %cst_314 : f32 to vector<16x1xf32>
    %755 = arith.addf %753, %754 : vector<16x1xf32>
    %756 = math.rsqrt %755 : vector<16x1xf32>
    %757 = vector.broadcast %756 : vector<16x1xf32> to vector<16x32xf32>
    %758 = arith.mulf %746, %757 : vector<16x32xf32>
    %759 = vector.broadcast %748 : vector<1x32xf32> to vector<16x32xf32>
    %760 = arith.mulf %758, %759 : vector<16x32xf32>
    %c1_315 = arith.constant 1 : index
    %c0_316 = arith.constant 0 : index
    %c0_317 = arith.constant 0 : index
    %761 = vector.load %arg29[%c1_315, %c0_316, %c0_317] : memref<2x32x32xbf16, #tpu.memory_space<vmem>>, vector<1x32x32xbf16>
    %762 = vector.shape_cast %761 : vector<1x32x32xbf16> to vector<32x32xbf16>
    %763 = arith.truncf %760 : vector<16x32xf32> to vector<16x32xbf16>
    %cst_318 = arith.constant dense<0.000000e+00> : vector<16x32xf32>
    %764 = tpu.matmul %763, %762, %cst_318 {dimension_numbers = #tpu.dot_dimension_numbers<[1], [0], [0], [1], [0, 0, 1, 1], [], []>} : vector<16x32xbf16>, vector<32x32xbf16>, vector<16x32xf32> -> vector<16x32xf32>
    %c1_319 = arith.constant 1 : index
    %c0_320 = arith.constant 0 : index
    %c0_321 = arith.constant 0 : index
    %765 = vector.load %arg30[%c1_319, %c0_320, %c0_321] : memref<2x32x32xbf16, #tpu.memory_space<vmem>>, vector<1x32x32xbf16>
    %766 = vector.shape_cast %765 : vector<1x32x32xbf16> to vector<32x32xbf16>
    %767 = arith.truncf %760 : vector<16x32xf32> to vector<16x32xbf16>
    %cst_322 = arith.constant dense<0.000000e+00> : vector<16x32xf32>
    %768 = tpu.matmul %767, %766, %cst_322 {dimension_numbers = #tpu.dot_dimension_numbers<[1], [0], [0], [1], [0, 0, 1, 1], [], []>} : vector<16x32xbf16>, vector<32x32xbf16>, vector<16x32xf32> -> vector<16x32xf32>
    %c1_323 = arith.constant 1 : index
    %c0_324 = arith.constant 0 : index
    %c0_325 = arith.constant 0 : index
    %769 = vector.load %arg31[%c1_323, %c0_324, %c0_325] : memref<2x32x32xbf16, #tpu.memory_space<vmem>>, vector<1x32x32xbf16>
    %770 = vector.shape_cast %769 : vector<1x32x32xbf16> to vector<32x32xbf16>
    %771 = arith.truncf %760 : vector<16x32xf32> to vector<16x32xbf16>
    %cst_326 = arith.constant dense<0.000000e+00> : vector<16x32xf32>
    %772 = tpu.matmul %771, %770, %cst_326 {dimension_numbers = #tpu.dot_dimension_numbers<[1], [0], [0], [1], [0, 0, 1, 1], [], []>} : vector<16x32xbf16>, vector<32x32xbf16>, vector<16x32xf32> -> vector<16x32xf32>
    %c1_327 = arith.constant 1 : index
    %c0_328 = arith.constant 0 : index
    %c0_329 = arith.constant 0 : index
    %773 = vector.load %arg32[%c1_327, %c0_328, %c0_329] : memref<2x32x32xbf16, #tpu.memory_space<vmem>>, vector<1x32x32xbf16>
    %774 = vector.shape_cast %773 : vector<1x32x32xbf16> to vector<32x32xbf16>
    %775 = vector.extract_strided_slice %456 {offsets = [0, 0, 0], sizes = [1, 16, 16], strides = [1, 1, 1]} : vector<4x16x16xf32> to vector<1x16x16xf32>
    %776 = vector.shape_cast %775 : vector<1x16x16xf32> to vector<16x16xf32>
    %777 = vector.extract_strided_slice %764 {offsets = [0, 0], sizes = [16, 8], strides = [1, 1]} : vector<16x32xf32> to vector<16x8xf32>
    %778 = arith.truncf %777 : vector<16x8xf32> to vector<16x8xbf16>
    %779 = vector.extract_strided_slice %768 {offsets = [0, 0], sizes = [16, 8], strides = [1, 1]} : vector<16x32xf32> to vector<16x8xf32>
    %780 = arith.truncf %779 : vector<16x8xf32> to vector<16x8xbf16>
    %cst_330 = arith.constant dense<0.000000e+00> : vector<16x16xf32>
    %781 = tpu.matmul %778, %780, %cst_330 {dimension_numbers = #tpu.dot_dimension_numbers<[1], [1], [0], [0], [0, 0, 1, 0], [], []>} : vector<16x8xbf16>, vector<16x8xbf16>, vector<16x16xf32> -> vector<16x16xf32>
    %782 = arith.addf %781, %776 : vector<16x16xf32>
    %cst_331 = arith.constant dense<0xFF800000> : vector<16xf32>
    %783 = vector.multi_reduction <maximumf>, %782, %cst_331 [1] : vector<16x16xf32> to vector<16xf32>
    %784 = vector.shape_cast %783 : vector<16xf32> to vector<16x1xf32>
    %785 = vector.broadcast %784 : vector<16x1xf32> to vector<16x16xf32>
    %786 = arith.subf %782, %785 : vector<16x16xf32>
    %787 = math.exp %786 : vector<16x16xf32>
    %cst_332 = arith.constant dense<0.000000e+00> : vector<16xf32>
    %788 = vector.multi_reduction <add>, %787, %cst_332 [1] : vector<16x16xf32> to vector<16xf32>
    %789 = vector.shape_cast %788 : vector<16xf32> to vector<16x1xf32>
    %790 = vector.broadcast %789 : vector<16x1xf32> to vector<16x16xf32>
    %791 = arith.divf %787, %790 : vector<16x16xf32>
    %792 = arith.truncf %791 : vector<16x16xf32> to vector<16x16xbf16>
    %793 = vector.extract_strided_slice %772 {offsets = [0, 0], sizes = [16, 8], strides = [1, 1]} : vector<16x32xf32> to vector<16x8xf32>
    %794 = arith.truncf %793 : vector<16x8xf32> to vector<16x8xbf16>
    %cst_333 = arith.constant dense<0.000000e+00> : vector<16x8xf32>
    %795 = tpu.matmul %792, %794, %cst_333 {dimension_numbers = #tpu.dot_dimension_numbers<[1], [0], [0], [1], [0, 0, 1, 1], [], []>} : vector<16x16xbf16>, vector<16x8xbf16>, vector<16x8xf32> -> vector<16x8xf32>
    %796 = arith.truncf %795 : vector<16x8xf32> to vector<16x8xbf16>
    %797 = vector.extract_strided_slice %774 {offsets = [0, 0], sizes = [8, 32], strides = [1, 1]} : vector<32x32xbf16> to vector<8x32xbf16>
    %cst_334 = arith.constant dense<0.000000e+00> : vector<16x32xf32>
    %798 = tpu.matmul %796, %797, %cst_334 {dimension_numbers = #tpu.dot_dimension_numbers<[1], [0], [0], [1], [0, 0, 1, 1], [], []>} : vector<16x8xbf16>, vector<8x32xbf16>, vector<16x32xf32> -> vector<16x32xf32>
    %799 = vector.extract_strided_slice %456 {offsets = [1, 0, 0], sizes = [1, 16, 16], strides = [1, 1, 1]} : vector<4x16x16xf32> to vector<1x16x16xf32>
    %800 = vector.shape_cast %799 : vector<1x16x16xf32> to vector<16x16xf32>
    %801 = vector.extract_strided_slice %764 {offsets = [0, 8], sizes = [16, 8], strides = [1, 1]} : vector<16x32xf32> to vector<16x8xf32>
    %802 = arith.truncf %801 : vector<16x8xf32> to vector<16x8xbf16>
    %803 = vector.extract_strided_slice %768 {offsets = [0, 8], sizes = [16, 8], strides = [1, 1]} : vector<16x32xf32> to vector<16x8xf32>
    %804 = arith.truncf %803 : vector<16x8xf32> to vector<16x8xbf16>
    %cst_335 = arith.constant dense<0.000000e+00> : vector<16x16xf32>
    %805 = tpu.matmul %802, %804, %cst_335 {dimension_numbers = #tpu.dot_dimension_numbers<[1], [1], [0], [0], [0, 0, 1, 0], [], []>} : vector<16x8xbf16>, vector<16x8xbf16>, vector<16x16xf32> -> vector<16x16xf32>
    %806 = arith.addf %805, %800 : vector<16x16xf32>
    %cst_336 = arith.constant dense<0xFF800000> : vector<16xf32>
    %807 = vector.multi_reduction <maximumf>, %806, %cst_336 [1] : vector<16x16xf32> to vector<16xf32>
    %808 = vector.shape_cast %807 : vector<16xf32> to vector<16x1xf32>
    %809 = vector.broadcast %808 : vector<16x1xf32> to vector<16x16xf32>
    %810 = arith.subf %806, %809 : vector<16x16xf32>
    %811 = math.exp %810 : vector<16x16xf32>
    %cst_337 = arith.constant dense<0.000000e+00> : vector<16xf32>
    %812 = vector.multi_reduction <add>, %811, %cst_337 [1] : vector<16x16xf32> to vector<16xf32>
    %813 = vector.shape_cast %812 : vector<16xf32> to vector<16x1xf32>
    %814 = vector.broadcast %813 : vector<16x1xf32> to vector<16x16xf32>
    %815 = arith.divf %811, %814 : vector<16x16xf32>
    %816 = arith.truncf %815 : vector<16x16xf32> to vector<16x16xbf16>
    %817 = vector.extract_strided_slice %772 {offsets = [0, 8], sizes = [16, 8], strides = [1, 1]} : vector<16x32xf32> to vector<16x8xf32>
    %818 = arith.truncf %817 : vector<16x8xf32> to vector<16x8xbf16>
    %cst_338 = arith.constant dense<0.000000e+00> : vector<16x8xf32>
    %819 = tpu.matmul %816, %818, %cst_338 {dimension_numbers = #tpu.dot_dimension_numbers<[1], [0], [0], [1], [0, 0, 1, 1], [], []>} : vector<16x16xbf16>, vector<16x8xbf16>, vector<16x8xf32> -> vector<16x8xf32>
    %820 = arith.truncf %819 : vector<16x8xf32> to vector<16x8xbf16>
    %821 = vector.extract_strided_slice %774 {offsets = [8, 0], sizes = [8, 32], strides = [1, 1]} : vector<32x32xbf16> to vector<8x32xbf16>
    %cst_339 = arith.constant dense<0.000000e+00> : vector<16x32xf32>
    %822 = tpu.matmul %820, %821, %cst_339 {dimension_numbers = #tpu.dot_dimension_numbers<[1], [0], [0], [1], [0, 0, 1, 1], [], []>} : vector<16x8xbf16>, vector<8x32xbf16>, vector<16x32xf32> -> vector<16x32xf32>
    %823 = arith.addf %798, %822 : vector<16x32xf32>
    %824 = vector.extract_strided_slice %456 {offsets = [2, 0, 0], sizes = [1, 16, 16], strides = [1, 1, 1]} : vector<4x16x16xf32> to vector<1x16x16xf32>
    %825 = vector.shape_cast %824 : vector<1x16x16xf32> to vector<16x16xf32>
    %826 = vector.extract_strided_slice %764 {offsets = [0, 16], sizes = [16, 8], strides = [1, 1]} : vector<16x32xf32> to vector<16x8xf32>
    %827 = arith.truncf %826 : vector<16x8xf32> to vector<16x8xbf16>
    %828 = vector.extract_strided_slice %768 {offsets = [0, 16], sizes = [16, 8], strides = [1, 1]} : vector<16x32xf32> to vector<16x8xf32>
    %829 = arith.truncf %828 : vector<16x8xf32> to vector<16x8xbf16>
    %cst_340 = arith.constant dense<0.000000e+00> : vector<16x16xf32>
    %830 = tpu.matmul %827, %829, %cst_340 {dimension_numbers = #tpu.dot_dimension_numbers<[1], [1], [0], [0], [0, 0, 1, 0], [], []>} : vector<16x8xbf16>, vector<16x8xbf16>, vector<16x16xf32> -> vector<16x16xf32>
    %831 = arith.addf %830, %825 : vector<16x16xf32>
    %cst_341 = arith.constant dense<0xFF800000> : vector<16xf32>
    %832 = vector.multi_reduction <maximumf>, %831, %cst_341 [1] : vector<16x16xf32> to vector<16xf32>
    %833 = vector.shape_cast %832 : vector<16xf32> to vector<16x1xf32>
    %834 = vector.broadcast %833 : vector<16x1xf32> to vector<16x16xf32>
    %835 = arith.subf %831, %834 : vector<16x16xf32>
    %836 = math.exp %835 : vector<16x16xf32>
    %cst_342 = arith.constant dense<0.000000e+00> : vector<16xf32>
    %837 = vector.multi_reduction <add>, %836, %cst_342 [1] : vector<16x16xf32> to vector<16xf32>
    %838 = vector.shape_cast %837 : vector<16xf32> to vector<16x1xf32>
    %839 = vector.broadcast %838 : vector<16x1xf32> to vector<16x16xf32>
    %840 = arith.divf %836, %839 : vector<16x16xf32>
    %841 = arith.truncf %840 : vector<16x16xf32> to vector<16x16xbf16>
    %842 = vector.extract_strided_slice %772 {offsets = [0, 16], sizes = [16, 8], strides = [1, 1]} : vector<16x32xf32> to vector<16x8xf32>
    %843 = arith.truncf %842 : vector<16x8xf32> to vector<16x8xbf16>
    %cst_343 = arith.constant dense<0.000000e+00> : vector<16x8xf32>
    %844 = tpu.matmul %841, %843, %cst_343 {dimension_numbers = #tpu.dot_dimension_numbers<[1], [0], [0], [1], [0, 0, 1, 1], [], []>} : vector<16x16xbf16>, vector<16x8xbf16>, vector<16x8xf32> -> vector<16x8xf32>
    %845 = arith.truncf %844 : vector<16x8xf32> to vector<16x8xbf16>
    %846 = vector.extract_strided_slice %774 {offsets = [16, 0], sizes = [8, 32], strides = [1, 1]} : vector<32x32xbf16> to vector<8x32xbf16>
    %cst_344 = arith.constant dense<0.000000e+00> : vector<16x32xf32>
    %847 = tpu.matmul %845, %846, %cst_344 {dimension_numbers = #tpu.dot_dimension_numbers<[1], [0], [0], [1], [0, 0, 1, 1], [], []>} : vector<16x8xbf16>, vector<8x32xbf16>, vector<16x32xf32> -> vector<16x32xf32>
    %848 = arith.addf %823, %847 : vector<16x32xf32>
    %849 = vector.extract_strided_slice %456 {offsets = [3, 0, 0], sizes = [1, 16, 16], strides = [1, 1, 1]} : vector<4x16x16xf32> to vector<1x16x16xf32>
    %850 = vector.shape_cast %849 : vector<1x16x16xf32> to vector<16x16xf32>
    %851 = vector.extract_strided_slice %764 {offsets = [0, 24], sizes = [16, 8], strides = [1, 1]} : vector<16x32xf32> to vector<16x8xf32>
    %852 = arith.truncf %851 : vector<16x8xf32> to vector<16x8xbf16>
    %853 = vector.extract_strided_slice %768 {offsets = [0, 24], sizes = [16, 8], strides = [1, 1]} : vector<16x32xf32> to vector<16x8xf32>
    %854 = arith.truncf %853 : vector<16x8xf32> to vector<16x8xbf16>
    %cst_345 = arith.constant dense<0.000000e+00> : vector<16x16xf32>
    %855 = tpu.matmul %852, %854, %cst_345 {dimension_numbers = #tpu.dot_dimension_numbers<[1], [1], [0], [0], [0, 0, 1, 0], [], []>} : vector<16x8xbf16>, vector<16x8xbf16>, vector<16x16xf32> -> vector<16x16xf32>
    %856 = arith.addf %855, %850 : vector<16x16xf32>
    %cst_346 = arith.constant dense<0xFF800000> : vector<16xf32>
    %857 = vector.multi_reduction <maximumf>, %856, %cst_346 [1] : vector<16x16xf32> to vector<16xf32>
    %858 = vector.shape_cast %857 : vector<16xf32> to vector<16x1xf32>
    %859 = vector.broadcast %858 : vector<16x1xf32> to vector<16x16xf32>
    %860 = arith.subf %856, %859 : vector<16x16xf32>
    %861 = math.exp %860 : vector<16x16xf32>
    %cst_347 = arith.constant dense<0.000000e+00> : vector<16xf32>
    %862 = vector.multi_reduction <add>, %861, %cst_347 [1] : vector<16x16xf32> to vector<16xf32>
    %863 = vector.shape_cast %862 : vector<16xf32> to vector<16x1xf32>
    %864 = vector.broadcast %863 : vector<16x1xf32> to vector<16x16xf32>
    %865 = arith.divf %861, %864 : vector<16x16xf32>
    %866 = arith.truncf %865 : vector<16x16xf32> to vector<16x16xbf16>
    %867 = vector.extract_strided_slice %772 {offsets = [0, 24], sizes = [16, 8], strides = [1, 1]} : vector<16x32xf32> to vector<16x8xf32>
    %868 = arith.truncf %867 : vector<16x8xf32> to vector<16x8xbf16>
    %cst_348 = arith.constant dense<0.000000e+00> : vector<16x8xf32>
    %869 = tpu.matmul %866, %868, %cst_348 {dimension_numbers = #tpu.dot_dimension_numbers<[1], [0], [0], [1], [0, 0, 1, 1], [], []>} : vector<16x16xbf16>, vector<16x8xbf16>, vector<16x8xf32> -> vector<16x8xf32>
    %870 = arith.truncf %869 : vector<16x8xf32> to vector<16x8xbf16>
    %871 = vector.extract_strided_slice %774 {offsets = [24, 0], sizes = [8, 32], strides = [1, 1]} : vector<32x32xbf16> to vector<8x32xbf16>
    %cst_349 = arith.constant dense<0.000000e+00> : vector<16x32xf32>
    %872 = tpu.matmul %870, %871, %cst_349 {dimension_numbers = #tpu.dot_dimension_numbers<[1], [0], [0], [1], [0, 0, 1, 1], [], []>} : vector<16x8xbf16>, vector<8x32xbf16>, vector<16x32xf32> -> vector<16x32xf32>
    %873 = arith.addf %848, %872 : vector<16x32xf32>
    %874 = arith.addf %746, %873 : vector<16x32xf32>
    %c1_350 = arith.constant 1 : index
    %c0_351 = arith.constant 0 : index
    %c0_352 = arith.constant 0 : index
    %875 = vector.load %arg33[%c1_350, %c0_351, %c0_352] : memref<2x1x32xf32, #tpu.memory_space<vmem>>, vector<1x1x32xf32>
    %876 = vector.shape_cast %875 : vector<1x1x32xf32> to vector<1x32xf32>
    %877 = arith.mulf %874, %874 : vector<16x32xf32>
    %cst_353 = arith.constant dense<0.000000e+00> : vector<16xf32>
    %878 = vector.multi_reduction <add>, %877, %cst_353 [1] : vector<16x32xf32> to vector<16xf32>
    %879 = vector.shape_cast %878 : vector<16xf32> to vector<16x1xf32>
    %cst_354 = arith.constant 3.200000e+01 : f32
    %880 = vector.broadcast %cst_354 : f32 to vector<16x1xf32>
    %881 = arith.divf %879, %880 : vector<16x1xf32>
    %cst_355 = arith.constant 9.99999997E-7 : f32
    %882 = vector.broadcast %cst_355 : f32 to vector<16x1xf32>
    %883 = arith.addf %881, %882 : vector<16x1xf32>
    %884 = math.rsqrt %883 : vector<16x1xf32>
    %885 = vector.broadcast %884 : vector<16x1xf32> to vector<16x32xf32>
    %886 = arith.mulf %874, %885 : vector<16x32xf32>
    %887 = vector.broadcast %876 : vector<1x32xf32> to vector<16x32xf32>
    %888 = arith.mulf %886, %887 : vector<16x32xf32>
    %c1_356 = arith.constant 1 : index
    %c0_357 = arith.constant 0 : index
    %c0_358 = arith.constant 0 : index
    %889 = vector.load %arg34[%c1_356, %c0_357, %c0_358] : memref<2x32x32xbf16, #tpu.memory_space<vmem>>, vector<1x32x32xbf16>
    %890 = vector.shape_cast %889 : vector<1x32x32xbf16> to vector<32x32xbf16>
    %891 = arith.truncf %888 : vector<16x32xf32> to vector<16x32xbf16>
    %cst_359 = arith.constant dense<0.000000e+00> : vector<16x32xf32>
    %892 = tpu.matmul %891, %890, %cst_359 {dimension_numbers = #tpu.dot_dimension_numbers<[1], [0], [0], [1], [0, 0, 1, 1], [], []>} : vector<16x32xbf16>, vector<32x32xbf16>, vector<16x32xf32> -> vector<16x32xf32>
    %c1_360 = arith.constant 1 : index
    %c0_361 = arith.constant 0 : index
    %c0_362 = arith.constant 0 : index
    %893 = vector.load %arg35[%c1_360, %c0_361, %c0_362] : memref<2x32x32xbf16, #tpu.memory_space<vmem>>, vector<1x32x32xbf16>
    %894 = vector.shape_cast %893 : vector<1x32x32xbf16> to vector<32x32xbf16>
    %895 = arith.truncf %454 : vector<8x32xf32> to vector<8x32xbf16>
    %cst_363 = arith.constant dense<0.000000e+00> : vector<8x32xf32>
    %896 = tpu.matmul %895, %894, %cst_363 {dimension_numbers = #tpu.dot_dimension_numbers<[1], [0], [0], [1], [0, 0, 1, 1], [], []>} : vector<8x32xbf16>, vector<32x32xbf16>, vector<8x32xf32> -> vector<8x32xf32>
    %c1_364 = arith.constant 1 : index
    %c0_365 = arith.constant 0 : index
    %c0_366 = arith.constant 0 : index
    %897 = vector.load %arg36[%c1_364, %c0_365, %c0_366] : memref<2x32x32xbf16, #tpu.memory_space<vmem>>, vector<1x32x32xbf16>
    %898 = vector.shape_cast %897 : vector<1x32x32xbf16> to vector<32x32xbf16>
    %899 = arith.truncf %454 : vector<8x32xf32> to vector<8x32xbf16>
    %cst_367 = arith.constant dense<0.000000e+00> : vector<8x32xf32>
    %900 = tpu.matmul %899, %898, %cst_367 {dimension_numbers = #tpu.dot_dimension_numbers<[1], [0], [0], [1], [0, 0, 1, 1], [], []>} : vector<8x32xbf16>, vector<32x32xbf16>, vector<8x32xf32> -> vector<8x32xf32>
    %c1_368 = arith.constant 1 : index
    %c0_369 = arith.constant 0 : index
    %c0_370 = arith.constant 0 : index
    %901 = vector.load %arg37[%c1_368, %c0_369, %c0_370] : memref<2x32x32xbf16, #tpu.memory_space<vmem>>, vector<1x32x32xbf16>
    %902 = vector.shape_cast %901 : vector<1x32x32xbf16> to vector<32x32xbf16>
    %903 = vector.extract_strided_slice %892 {offsets = [0, 0], sizes = [16, 8], strides = [1, 1]} : vector<16x32xf32> to vector<16x8xf32>
    %904 = arith.truncf %903 : vector<16x8xf32> to vector<16x8xbf16>
    %905 = vector.extract_strided_slice %896 {offsets = [0, 0], sizes = [8, 8], strides = [1, 1]} : vector<8x32xf32> to vector<8x8xf32>
    %906 = arith.truncf %905 : vector<8x8xf32> to vector<8x8xbf16>
    %cst_371 = arith.constant dense<0.000000e+00> : vector<16x8xf32>
    %907 = tpu.matmul %904, %906, %cst_371 {dimension_numbers = #tpu.dot_dimension_numbers<[1], [1], [0], [0], [0, 0, 1, 0], [], []>} : vector<16x8xbf16>, vector<8x8xbf16>, vector<16x8xf32> -> vector<16x8xf32>
    %908 = arith.addf %907, %457 : vector<16x8xf32>
    %cst_372 = arith.constant dense<0xFF800000> : vector<16xf32>
    %909 = vector.multi_reduction <maximumf>, %908, %cst_372 [1] : vector<16x8xf32> to vector<16xf32>
    %910 = vector.shape_cast %909 : vector<16xf32> to vector<16x1xf32>
    %911 = vector.broadcast %910 : vector<16x1xf32> to vector<16x8xf32>
    %912 = arith.subf %908, %911 : vector<16x8xf32>
    %913 = math.exp %912 : vector<16x8xf32>
    %cst_373 = arith.constant dense<0.000000e+00> : vector<16xf32>
    %914 = vector.multi_reduction <add>, %913, %cst_373 [1] : vector<16x8xf32> to vector<16xf32>
    %915 = vector.shape_cast %914 : vector<16xf32> to vector<16x1xf32>
    %916 = vector.broadcast %915 : vector<16x1xf32> to vector<16x8xf32>
    %917 = arith.divf %913, %916 : vector<16x8xf32>
    %918 = arith.truncf %917 : vector<16x8xf32> to vector<16x8xbf16>
    %919 = vector.extract_strided_slice %900 {offsets = [0, 0], sizes = [8, 8], strides = [1, 1]} : vector<8x32xf32> to vector<8x8xf32>
    %920 = arith.truncf %919 : vector<8x8xf32> to vector<8x8xbf16>
    %cst_374 = arith.constant dense<0.000000e+00> : vector<16x8xf32>
    %921 = tpu.matmul %918, %920, %cst_374 {dimension_numbers = #tpu.dot_dimension_numbers<[1], [0], [0], [1], [0, 0, 1, 1], [], []>} : vector<16x8xbf16>, vector<8x8xbf16>, vector<16x8xf32> -> vector<16x8xf32>
    %922 = arith.truncf %921 : vector<16x8xf32> to vector<16x8xbf16>
    %923 = vector.extract_strided_slice %902 {offsets = [0, 0], sizes = [8, 32], strides = [1, 1]} : vector<32x32xbf16> to vector<8x32xbf16>
    %cst_375 = arith.constant dense<0.000000e+00> : vector<16x32xf32>
    %924 = tpu.matmul %922, %923, %cst_375 {dimension_numbers = #tpu.dot_dimension_numbers<[1], [0], [0], [1], [0, 0, 1, 1], [], []>} : vector<16x8xbf16>, vector<8x32xbf16>, vector<16x32xf32> -> vector<16x32xf32>
    %925 = vector.extract_strided_slice %892 {offsets = [0, 8], sizes = [16, 8], strides = [1, 1]} : vector<16x32xf32> to vector<16x8xf32>
    %926 = arith.truncf %925 : vector<16x8xf32> to vector<16x8xbf16>
    %927 = vector.extract_strided_slice %896 {offsets = [0, 8], sizes = [8, 8], strides = [1, 1]} : vector<8x32xf32> to vector<8x8xf32>
    %928 = arith.truncf %927 : vector<8x8xf32> to vector<8x8xbf16>
    %cst_376 = arith.constant dense<0.000000e+00> : vector<16x8xf32>
    %929 = tpu.matmul %926, %928, %cst_376 {dimension_numbers = #tpu.dot_dimension_numbers<[1], [1], [0], [0], [0, 0, 1, 0], [], []>} : vector<16x8xbf16>, vector<8x8xbf16>, vector<16x8xf32> -> vector<16x8xf32>
    %930 = arith.addf %929, %457 : vector<16x8xf32>
    %cst_377 = arith.constant dense<0xFF800000> : vector<16xf32>
    %931 = vector.multi_reduction <maximumf>, %930, %cst_377 [1] : vector<16x8xf32> to vector<16xf32>
    %932 = vector.shape_cast %931 : vector<16xf32> to vector<16x1xf32>
    %933 = vector.broadcast %932 : vector<16x1xf32> to vector<16x8xf32>
    %934 = arith.subf %930, %933 : vector<16x8xf32>
    %935 = math.exp %934 : vector<16x8xf32>
    %cst_378 = arith.constant dense<0.000000e+00> : vector<16xf32>
    %936 = vector.multi_reduction <add>, %935, %cst_378 [1] : vector<16x8xf32> to vector<16xf32>
    %937 = vector.shape_cast %936 : vector<16xf32> to vector<16x1xf32>
    %938 = vector.broadcast %937 : vector<16x1xf32> to vector<16x8xf32>
    %939 = arith.divf %935, %938 : vector<16x8xf32>
    %940 = arith.truncf %939 : vector<16x8xf32> to vector<16x8xbf16>
    %941 = vector.extract_strided_slice %900 {offsets = [0, 8], sizes = [8, 8], strides = [1, 1]} : vector<8x32xf32> to vector<8x8xf32>
    %942 = arith.truncf %941 : vector<8x8xf32> to vector<8x8xbf16>
    %cst_379 = arith.constant dense<0.000000e+00> : vector<16x8xf32>
    %943 = tpu.matmul %940, %942, %cst_379 {dimension_numbers = #tpu.dot_dimension_numbers<[1], [0], [0], [1], [0, 0, 1, 1], [], []>} : vector<16x8xbf16>, vector<8x8xbf16>, vector<16x8xf32> -> vector<16x8xf32>
    %944 = arith.truncf %943 : vector<16x8xf32> to vector<16x8xbf16>
    %945 = vector.extract_strided_slice %902 {offsets = [8, 0], sizes = [8, 32], strides = [1, 1]} : vector<32x32xbf16> to vector<8x32xbf16>
    %cst_380 = arith.constant dense<0.000000e+00> : vector<16x32xf32>
    %946 = tpu.matmul %944, %945, %cst_380 {dimension_numbers = #tpu.dot_dimension_numbers<[1], [0], [0], [1], [0, 0, 1, 1], [], []>} : vector<16x8xbf16>, vector<8x32xbf16>, vector<16x32xf32> -> vector<16x32xf32>
    %947 = arith.addf %924, %946 : vector<16x32xf32>
    %948 = vector.extract_strided_slice %892 {offsets = [0, 16], sizes = [16, 8], strides = [1, 1]} : vector<16x32xf32> to vector<16x8xf32>
    %949 = arith.truncf %948 : vector<16x8xf32> to vector<16x8xbf16>
    %950 = vector.extract_strided_slice %896 {offsets = [0, 16], sizes = [8, 8], strides = [1, 1]} : vector<8x32xf32> to vector<8x8xf32>
    %951 = arith.truncf %950 : vector<8x8xf32> to vector<8x8xbf16>
    %cst_381 = arith.constant dense<0.000000e+00> : vector<16x8xf32>
    %952 = tpu.matmul %949, %951, %cst_381 {dimension_numbers = #tpu.dot_dimension_numbers<[1], [1], [0], [0], [0, 0, 1, 0], [], []>} : vector<16x8xbf16>, vector<8x8xbf16>, vector<16x8xf32> -> vector<16x8xf32>
    %953 = arith.addf %952, %457 : vector<16x8xf32>
    %cst_382 = arith.constant dense<0xFF800000> : vector<16xf32>
    %954 = vector.multi_reduction <maximumf>, %953, %cst_382 [1] : vector<16x8xf32> to vector<16xf32>
    %955 = vector.shape_cast %954 : vector<16xf32> to vector<16x1xf32>
    %956 = vector.broadcast %955 : vector<16x1xf32> to vector<16x8xf32>
    %957 = arith.subf %953, %956 : vector<16x8xf32>
    %958 = math.exp %957 : vector<16x8xf32>
    %cst_383 = arith.constant dense<0.000000e+00> : vector<16xf32>
    %959 = vector.multi_reduction <add>, %958, %cst_383 [1] : vector<16x8xf32> to vector<16xf32>
    %960 = vector.shape_cast %959 : vector<16xf32> to vector<16x1xf32>
    %961 = vector.broadcast %960 : vector<16x1xf32> to vector<16x8xf32>
    %962 = arith.divf %958, %961 : vector<16x8xf32>
    %963 = arith.truncf %962 : vector<16x8xf32> to vector<16x8xbf16>
    %964 = vector.extract_strided_slice %900 {offsets = [0, 16], sizes = [8, 8], strides = [1, 1]} : vector<8x32xf32> to vector<8x8xf32>
    %965 = arith.truncf %964 : vector<8x8xf32> to vector<8x8xbf16>
    %cst_384 = arith.constant dense<0.000000e+00> : vector<16x8xf32>
    %966 = tpu.matmul %963, %965, %cst_384 {dimension_numbers = #tpu.dot_dimension_numbers<[1], [0], [0], [1], [0, 0, 1, 1], [], []>} : vector<16x8xbf16>, vector<8x8xbf16>, vector<16x8xf32> -> vector<16x8xf32>
    %967 = arith.truncf %966 : vector<16x8xf32> to vector<16x8xbf16>
    %968 = vector.extract_strided_slice %902 {offsets = [16, 0], sizes = [8, 32], strides = [1, 1]} : vector<32x32xbf16> to vector<8x32xbf16>
    %cst_385 = arith.constant dense<0.000000e+00> : vector<16x32xf32>
    %969 = tpu.matmul %967, %968, %cst_385 {dimension_numbers = #tpu.dot_dimension_numbers<[1], [0], [0], [1], [0, 0, 1, 1], [], []>} : vector<16x8xbf16>, vector<8x32xbf16>, vector<16x32xf32> -> vector<16x32xf32>
    %970 = arith.addf %947, %969 : vector<16x32xf32>
    %971 = vector.extract_strided_slice %892 {offsets = [0, 24], sizes = [16, 8], strides = [1, 1]} : vector<16x32xf32> to vector<16x8xf32>
    %972 = arith.truncf %971 : vector<16x8xf32> to vector<16x8xbf16>
    %973 = vector.extract_strided_slice %896 {offsets = [0, 24], sizes = [8, 8], strides = [1, 1]} : vector<8x32xf32> to vector<8x8xf32>
    %974 = arith.truncf %973 : vector<8x8xf32> to vector<8x8xbf16>
    %cst_386 = arith.constant dense<0.000000e+00> : vector<16x8xf32>
    %975 = tpu.matmul %972, %974, %cst_386 {dimension_numbers = #tpu.dot_dimension_numbers<[1], [1], [0], [0], [0, 0, 1, 0], [], []>} : vector<16x8xbf16>, vector<8x8xbf16>, vector<16x8xf32> -> vector<16x8xf32>
    %976 = arith.addf %975, %457 : vector<16x8xf32>
    %cst_387 = arith.constant dense<0xFF800000> : vector<16xf32>
    %977 = vector.multi_reduction <maximumf>, %976, %cst_387 [1] : vector<16x8xf32> to vector<16xf32>
    %978 = vector.shape_cast %977 : vector<16xf32> to vector<16x1xf32>
    %979 = vector.broadcast %978 : vector<16x1xf32> to vector<16x8xf32>
    %980 = arith.subf %976, %979 : vector<16x8xf32>
    %981 = math.exp %980 : vector<16x8xf32>
    %cst_388 = arith.constant dense<0.000000e+00> : vector<16xf32>
    %982 = vector.multi_reduction <add>, %981, %cst_388 [1] : vector<16x8xf32> to vector<16xf32>
    %983 = vector.shape_cast %982 : vector<16xf32> to vector<16x1xf32>
    %984 = vector.broadcast %983 : vector<16x1xf32> to vector<16x8xf32>
    %985 = arith.divf %981, %984 : vector<16x8xf32>
    %986 = arith.truncf %985 : vector<16x8xf32> to vector<16x8xbf16>
    %987 = vector.extract_strided_slice %900 {offsets = [0, 24], sizes = [8, 8], strides = [1, 1]} : vector<8x32xf32> to vector<8x8xf32>
    %988 = arith.truncf %987 : vector<8x8xf32> to vector<8x8xbf16>
    %cst_389 = arith.constant dense<0.000000e+00> : vector<16x8xf32>
    %989 = tpu.matmul %986, %988, %cst_389 {dimension_numbers = #tpu.dot_dimension_numbers<[1], [0], [0], [1], [0, 0, 1, 1], [], []>} : vector<16x8xbf16>, vector<8x8xbf16>, vector<16x8xf32> -> vector<16x8xf32>
    %990 = arith.truncf %989 : vector<16x8xf32> to vector<16x8xbf16>
    %991 = vector.extract_strided_slice %902 {offsets = [24, 0], sizes = [8, 32], strides = [1, 1]} : vector<32x32xbf16> to vector<8x32xbf16>
    %cst_390 = arith.constant dense<0.000000e+00> : vector<16x32xf32>
    %992 = tpu.matmul %990, %991, %cst_390 {dimension_numbers = #tpu.dot_dimension_numbers<[1], [0], [0], [1], [0, 0, 1, 1], [], []>} : vector<16x8xbf16>, vector<8x32xbf16>, vector<16x32xf32> -> vector<16x32xf32>
    %993 = arith.addf %970, %992 : vector<16x32xf32>
    %994 = arith.addf %874, %993 : vector<16x32xf32>
    %c1_391 = arith.constant 1 : index
    %c0_392 = arith.constant 0 : index
    %c0_393 = arith.constant 0 : index
    %995 = vector.load %arg38[%c1_391, %c0_392, %c0_393] : memref<2x1x32xf32, #tpu.memory_space<vmem>>, vector<1x1x32xf32>
    %996 = vector.shape_cast %995 : vector<1x1x32xf32> to vector<1x32xf32>
    %997 = arith.mulf %994, %994 : vector<16x32xf32>
    %cst_394 = arith.constant dense<0.000000e+00> : vector<16xf32>
    %998 = vector.multi_reduction <add>, %997, %cst_394 [1] : vector<16x32xf32> to vector<16xf32>
    %999 = vector.shape_cast %998 : vector<16xf32> to vector<16x1xf32>
    %cst_395 = arith.constant 3.200000e+01 : f32
    %1000 = vector.broadcast %cst_395 : f32 to vector<16x1xf32>
    %1001 = arith.divf %999, %1000 : vector<16x1xf32>
    %cst_396 = arith.constant 9.99999997E-7 : f32
    %1002 = vector.broadcast %cst_396 : f32 to vector<16x1xf32>
    %1003 = arith.addf %1001, %1002 : vector<16x1xf32>
    %1004 = math.rsqrt %1003 : vector<16x1xf32>
    %1005 = vector.broadcast %1004 : vector<16x1xf32> to vector<16x32xf32>
    %1006 = arith.mulf %994, %1005 : vector<16x32xf32>
    %1007 = vector.broadcast %996 : vector<1x32xf32> to vector<16x32xf32>
    %1008 = arith.mulf %1006, %1007 : vector<16x32xf32>
    %c1_397 = arith.constant 1 : index
    %c0_398 = arith.constant 0 : index
    %c0_399 = arith.constant 0 : index
    %1009 = vector.load %arg39[%c1_397, %c0_398, %c0_399] : memref<2x32x64xbf16, #tpu.memory_space<vmem>>, vector<1x32x64xbf16>
    %1010 = vector.shape_cast %1009 : vector<1x32x64xbf16> to vector<32x64xbf16>
    %1011 = arith.truncf %1008 : vector<16x32xf32> to vector<16x32xbf16>
    %cst_400 = arith.constant dense<0.000000e+00> : vector<16x64xf32>
    %1012 = tpu.matmul %1011, %1010, %cst_400 {dimension_numbers = #tpu.dot_dimension_numbers<[1], [0], [0], [1], [0, 0, 1, 1], [], []>} : vector<16x32xbf16>, vector<32x64xbf16>, vector<16x64xf32> -> vector<16x64xf32>
    %1013 = arith.mulf %1012, %1012 : vector<16x64xf32>
    %1014 = arith.mulf %1012, %1013 : vector<16x64xf32>
    %cst_401 = arith.constant 4.471500e-02 : f32
    %1015 = vector.broadcast %cst_401 : f32 to vector<16x64xf32>
    %1016 = arith.mulf %1015, %1014 : vector<16x64xf32>
    %1017 = arith.addf %1012, %1016 : vector<16x64xf32>
    %cst_402 = arith.constant 0.797884583 : f32
    %1018 = vector.broadcast %cst_402 : f32 to vector<16x64xf32>
    %1019 = arith.mulf %1018, %1017 : vector<16x64xf32>
    %1020 = math.tanh %1019 : vector<16x64xf32>
    %cst_403 = arith.constant 1.000000e+00 : f32
    %1021 = vector.broadcast %cst_403 : f32 to vector<16x64xf32>
    %1022 = arith.addf %1021, %1020 : vector<16x64xf32>
    %cst_404 = arith.constant 5.000000e-01 : f32
    %1023 = vector.broadcast %cst_404 : f32 to vector<16x64xf32>
    %1024 = arith.mulf %1023, %1022 : vector<16x64xf32>
    %1025 = arith.mulf %1012, %1024 : vector<16x64xf32>
    %c1_405 = arith.constant 1 : index
    %c0_406 = arith.constant 0 : index
    %c0_407 = arith.constant 0 : index
    %1026 = vector.load %arg40[%c1_405, %c0_406, %c0_407] : memref<2x32x64xbf16, #tpu.memory_space<vmem>>, vector<1x32x64xbf16>
    %1027 = vector.shape_cast %1026 : vector<1x32x64xbf16> to vector<32x64xbf16>
    %1028 = arith.truncf %1008 : vector<16x32xf32> to vector<16x32xbf16>
    %cst_408 = arith.constant dense<0.000000e+00> : vector<16x64xf32>
    %1029 = tpu.matmul %1028, %1027, %cst_408 {dimension_numbers = #tpu.dot_dimension_numbers<[1], [0], [0], [1], [0, 0, 1, 1], [], []>} : vector<16x32xbf16>, vector<32x64xbf16>, vector<16x64xf32> -> vector<16x64xf32>
    %1030 = arith.mulf %1025, %1029 : vector<16x64xf32>
    %c1_409 = arith.constant 1 : index
    %c0_410 = arith.constant 0 : index
    %c0_411 = arith.constant 0 : index
    %1031 = vector.load %arg41[%c1_409, %c0_410, %c0_411] : memref<2x64x32xbf16, #tpu.memory_space<vmem>>, vector<1x64x32xbf16>
    %1032 = vector.shape_cast %1031 : vector<1x64x32xbf16> to vector<64x32xbf16>
    %1033 = arith.truncf %1030 : vector<16x64xf32> to vector<16x64xbf16>
    %cst_412 = arith.constant dense<0.000000e+00> : vector<16x32xf32>
    %1034 = tpu.matmul %1033, %1032, %cst_412 {dimension_numbers = #tpu.dot_dimension_numbers<[1], [0], [0], [1], [0, 0, 1, 1], [], []>} : vector<16x64xbf16>, vector<64x32xbf16>, vector<16x32xf32> -> vector<16x32xf32>
    %1035 = arith.addf %994, %1034 : vector<16x32xf32>
    %c0_413 = arith.constant 0 : index
    %c0_414 = arith.constant 0 : index
    %1036 = vector.load %arg42[%c0_413, %c0_414] : memref<1x32xf32, #tpu.memory_space<vmem>>, vector<1x32xf32>
    %1037 = arith.mulf %1035, %1035 : vector<16x32xf32>
    %cst_415 = arith.constant dense<0.000000e+00> : vector<16xf32>
    %1038 = vector.multi_reduction <add>, %1037, %cst_415 [1] : vector<16x32xf32> to vector<16xf32>
    %1039 = vector.shape_cast %1038 : vector<16xf32> to vector<16x1xf32>
    %cst_416 = arith.constant 3.200000e+01 : f32
    %1040 = vector.broadcast %cst_416 : f32 to vector<16x1xf32>
    %1041 = arith.divf %1039, %1040 : vector<16x1xf32>
    %cst_417 = arith.constant 9.99999997E-7 : f32
    %1042 = vector.broadcast %cst_417 : f32 to vector<16x1xf32>
    %1043 = arith.addf %1041, %1042 : vector<16x1xf32>
    %1044 = math.rsqrt %1043 : vector<16x1xf32>
    %1045 = vector.broadcast %1044 : vector<16x1xf32> to vector<16x32xf32>
    %1046 = arith.mulf %1035, %1045 : vector<16x32xf32>
    %1047 = vector.broadcast %1036 : vector<1x32xf32> to vector<16x32xf32>
    %1048 = arith.mulf %1046, %1047 : vector<16x32xf32>
    %c0_418 = arith.constant 0 : index
    %c0_419 = arith.constant 0 : index
    %1049 = vector.load %arg43[%c0_418, %c0_419] : memref<32x64xbf16, #tpu.memory_space<vmem>>, vector<32x64xbf16>
    %1050 = arith.truncf %1048 : vector<16x32xf32> to vector<16x32xbf16>
    %cst_420 = arith.constant dense<0.000000e+00> : vector<16x64xf32>
    %1051 = tpu.matmul %1050, %1049, %cst_420 {dimension_numbers = #tpu.dot_dimension_numbers<[1], [0], [0], [1], [0, 0, 1, 1], [], []>} : vector<16x32xbf16>, vector<32x64xbf16>, vector<16x64xf32> -> vector<16x64xf32>
    %c0_421 = arith.constant 0 : index
    %c0_422 = arith.constant 0 : index
    %1052 = vector.load %arg6[%c0_421, %c0_422] : memref<16x64xf32, #tpu.memory_space<vmem>>, vector<16x64xf32>
    %cst_423 = arith.constant dense<0xFF800000> : vector<16xf32>
    %1053 = vector.multi_reduction <maximumf>, %1051, %cst_423 [1] : vector<16x64xf32> to vector<16xf32>
    %1054 = vector.shape_cast %1053 : vector<16xf32> to vector<16x1xf32>
    %1055 = vector.broadcast %1054 : vector<16x1xf32> to vector<16x64xf32>
    %1056 = arith.subf %1051, %1055 : vector<16x64xf32>
    %1057 = math.exp %1056 : vector<16x64xf32>
    %cst_424 = arith.constant dense<0.000000e+00> : vector<16xf32>
    %1058 = vector.multi_reduction <add>, %1057, %cst_424 [1] : vector<16x64xf32> to vector<16xf32>
    %1059 = vector.shape_cast %1058 : vector<16xf32> to vector<16x1xf32>
    %1060 = math.log %1059 : vector<16x1xf32>
    %1061 = arith.addf %1060, %1054 : vector<16x1xf32>
    %1062 = arith.mulf %1051, %1052 : vector<16x64xf32>
    %cst_425 = arith.constant dense<0.000000e+00> : vector<16xf32>
    %1063 = vector.multi_reduction <add>, %1062, %cst_425 [1] : vector<16x64xf32> to vector<16xf32>
    %1064 = vector.shape_cast %1063 : vector<16xf32> to vector<16x1xf32>
    %cst_426 = arith.constant dense<0.000000e+00> : vector<16xf32>
    %1065 = vector.multi_reduction <add>, %1052, %cst_426 [1] : vector<16x64xf32> to vector<16xf32>
    %1066 = vector.shape_cast %1065 : vector<16xf32> to vector<16x1xf32>
    %1067 = arith.subf %1061, %1064 : vector<16x1xf32>
    %1068 = arith.mulf %1067, %1066 : vector<16x1xf32>
    %cst_427 = arith.constant dense<0.000000e+00> : vector<1xf32>
    %1069 = vector.multi_reduction <add>, %1068, %cst_427 [0] : vector<16x1xf32> to vector<1xf32>
    %1070 = vector.shape_cast %1069 : vector<1xf32> to vector<1x1xf32>
    %cst_428 = arith.constant dense<0.000000e+00> : vector<1xf32>
    %1071 = vector.multi_reduction <add>, %1066, %cst_428 [0] : vector<16x1xf32> to vector<1xf32>
    %1072 = vector.shape_cast %1071 : vector<1xf32> to vector<1x1xf32>
    %cst_429 = arith.constant 1.000000e+00 : f32
    %1073 = vector.broadcast %cst_429 : f32 to vector<1x1xf32>
    %1074 = arith.maximumf %1072, %1073 : vector<1x1xf32>
    %1075 = arith.divf %1070, %1074 : vector<1x1xf32>
    %c0_430 = arith.constant 0 : index
    %c0_431 = arith.constant 0 : index
    %1076 = vector.load %arg44[%c0_430, %c0_431] : memref<1x1xf32, #tpu.memory_space<vmem>>, vector<1x1xf32>
    tpu.vector_store %arg44[%c0_430, %c0_431], %1075 {strides = array<i32>} : memref<1x1xf32, #tpu.memory_space<vmem>>, vector<1x1xf32>,
    return
  }
}

</mosaic_0001>

<llo_original>
// kernel: forward.1
$region0: #{forward.1}
  #allocation0 [shape = 'u32[]', space=smem, size = 0x4, offset = 0x4, fixed_abs, tag = 'smem constant byte address 0x4 - core index']
  #allocation1 [shape = 'u32[72,128]{1,0:T(1,128)}', space=vmem, size = 0x9000, scoped, tag = 'internal scratch']
  %s0 = inlined_call_operand.smem [shape: u32[45], index: -1, kind: input, shape index: {}]
  %s1 = sld [smem:[%s0]]
  %s2 = scalar_lea.smem %s0, 1
  %s3 = sld [smem:[%s2]]
  %s4 = scalar_lea.smem %s0, 2
  %s5 = sld [smem:[%s4]]
  %s6 = scalar_lea.smem %s0, 3
  %s7 = sld [smem:[%s6]]
  %s8 = scalar_lea.smem %s0, 4
  %s9 = sld [smem:[%s8]]
  %s10 = scalar_lea.smem %s0, 5
  %s11 = sld [smem:[%s10]]
  %s12 = scalar_lea.smem %s0, 6
  %s13 = sld [smem:[%s12]]
  %s14 = scalar_lea.smem %s0, 7
  %s15 = sld [smem:[%s14]]
  %s16 = scalar_lea.smem %s0, 8
  %s17 = sld [smem:[%s16]]
  %s18 = scalar_lea.smem %s0, 9
  %s19 = sld [smem:[%s18]]
  %s20 = scalar_lea.smem %s0, 10
  %s21 = sld [smem:[%s20]]
  %s22 = scalar_lea.smem %s0, 11
  %s23 = sld [smem:[%s22]]
  %s24 = scalar_lea.smem %s0, 12
  %s25 = sld [smem:[%s24]]
  %s26 = scalar_lea.smem %s0, 13
  %s27 = sld [smem:[%s26]]
  %s28 = scalar_lea.smem %s0, 14
  %s29 = sld [smem:[%s28]]
  %s30 = scalar_lea.smem %s0, 15
  %s31 = sld [smem:[%s30]]
  %s32 = scalar_lea.smem %s0, 16
  %s33 = sld [smem:[%s32]]
  %s34 = scalar_lea.smem %s0, 17
  %s35 = sld [smem:[%s34]]
  %s36 = scalar_lea.smem %s0, 18
  %s37 = sld [smem:[%s36]]
  %s38 = scalar_lea.smem %s0, 19
  %s39 = sld [smem:[%s38]]
  %s40 = scalar_lea.smem %s0, 20
  %s41 = sld [smem:[%s40]]
  %s42 = scalar_lea.smem %s0, 21
  %s43 = sld [smem:[%s42]]
  %s44 = scalar_lea.smem %s0, 22
  %s45 = sld [smem:[%s44]]
  %s46 = scalar_lea.smem %s0, 23
  %s47 = sld [smem:[%s46]]
  %s48 = scalar_lea.smem %s0, 24
  %s49 = sld [smem:[%s48]]
  %s50 = scalar_lea.smem %s0, 25
  %s51 = sld [smem:[%s50]]
  %s52 = scalar_lea.smem %s0, 26
  %s53 = sld [smem:[%s52]]
  %s54 = scalar_lea.smem %s0, 27
  %s55 = sld [smem:[%s54]]
  %s56 = scalar_lea.smem %s0, 28
  %s57 = sld [smem:[%s56]]
  %s58 = scalar_lea.smem %s0, 29
  %s59 = sld [smem:[%s58]]
  %s60 = scalar_lea.smem %s0, 30
  %s61 = sld [smem:[%s60]]
  %s62 = scalar_lea.smem %s0, 31
  %s63 = sld [smem:[%s62]]
  %s64 = scalar_lea.smem %s0, 32
  %s65 = sld [smem:[%s64]]
  %s66 = scalar_lea.smem %s0, 33
  %s67 = sld [smem:[%s66]]
  %s68 = scalar_lea.smem %s0, 34
  %s69 = sld [smem:[%s68]]
  %s70 = scalar_lea.smem %s0, 35
  %s71 = sld [smem:[%s70]]
  %s72 = scalar_lea.smem %s0, 36
  %s73 = sld [smem:[%s72]]
  %s74 = scalar_lea.smem %s0, 37
  %s75 = sld [smem:[%s74]]
  %s76 = scalar_lea.smem %s0, 38
  %s77 = sld [smem:[%s76]]
  %s78 = scalar_lea.smem %s0, 39
  %s79 = sld [smem:[%s78]]
  %s80 = scalar_lea.smem %s0, 40
  %s81 = sld [smem:[%s80]]
  %s82 = scalar_lea.smem %s0, 41
  %s83 = sld [smem:[%s82]]
  %s84 = scalar_lea.smem %s0, 42
  %s85 = sld [smem:[%s84]]
  %s86 = scalar_lea.smem %s0, 43
  %s87 = sld [smem:[%s86]]
  %s88 = scalar_lea.smem %s0, 44
  %s89 = sld [smem:[%s88]]
  %s90 = sld [smem:[#allocation0]]
  $region186: #{forward.1} parent=0
    _
  %s92 = ssub.s32 1, %s90
  %s93 = scalar_select 0, %s92, %s90
  $region1: #{forward.1} parent=0
    #allocation2 [shape = 'u8[512]{0}', space=vmem, size = 0x400, scoped, tag = 'output window, operand 0, single buffered']
    #allocation3 [shape = 's32[1]{0}', space=sflag, size = 0x4, scoped, tag = 'scoped memory for forward.1']
    %94 = vsyncpa [#allocation3], 0
    // Predicated region
    $region2: #{forward.1} parent=1 // pred_check
      _
    $region3: #{forward.1} parent=1 // pred_check_branch
      %96 = sbr.rel (0) target = $region5
    $region4: #{forward.1} parent=1 // pred_region
      _
    $region5: #{forward.1} parent=1 // pred_fallthru
      _
    // Predicated region
    $region6: #{forward.1} parent=1 // pred_check
      _
    $region7: #{forward.1} parent=1 // pred_check_branch
      %98 = sbr.rel (0) target = $region9
    $region8: #{forward.1} parent=1 // pred_region
      _
    $region9: #{forward.1} parent=1 // pred_fallthru
      _
    // Predicated region
    $region10: #{forward.1} parent=1 // pred_check
      _
    $region11: #{forward.1} parent=1 // pred_check_branch
      %100 = sbr.rel (0) target = $region13
    $region12: #{forward.1} parent=1 // pred_region
      _
    $region13: #{forward.1} parent=1 // pred_fallthru
      _
    // Predicated region
    $region14: #{forward.1} parent=1 // pred_check
      _
    $region15: #{forward.1} parent=1 // pred_check_branch
      %102 = sbr.rel (0) target = $region17
    $region16: #{forward.1} parent=1 // pred_region
      _
    $region17: #{forward.1} parent=1 // pred_fallthru
      _
    // Predicated region
    $region18: #{forward.1} parent=1 // pred_check
      _
    $region19: #{forward.1} parent=1 // pred_check_branch
      %104 = sbr.rel (0) target = $region21
    $region20: #{forward.1} parent=1 // pred_region
      _
    $region21: #{forward.1} parent=1 // pred_fallthru
      _
    // Predicated region
    $region22: #{forward.1} parent=1 // pred_check
      _
    $region23: #{forward.1} parent=1 // pred_check_branch
      %106 = sbr.rel (0) target = $region25
    $region24: #{forward.1} parent=1 // pred_region
      _
    $region25: #{forward.1} parent=1 // pred_fallthru
      _
    // Predicated region
    $region26: #{forward.1} parent=1 // pred_check
      _
    $region27: #{forward.1} parent=1 // pred_check_branch
      %108 = sbr.rel (0) target = $region29
    $region28: #{forward.1} parent=1 // pred_region
      _
    $region29: #{forward.1} parent=1 // pred_fallthru
      _
    // Predicated region
    $region30: #{forward.1} parent=1 // pred_check
      _
    $region31: #{forward.1} parent=1 // pred_check_branch
      %110 = sbr.rel (0) target = $region33
    $region32: #{forward.1} parent=1 // pred_region
      _
    $region33: #{forward.1} parent=1 // pred_fallthru
      _
    // Predicated region
    $region34: #{forward.1} parent=1 // pred_check
      _
    $region35: #{forward.1} parent=1 // pred_check_branch
      %112 = sbr.rel (0) target = $region37
    $region36: #{forward.1} parent=1 // pred_region
      _
    $region37: #{forward.1} parent=1 // pred_fallthru
      _
    // Predicated region
    $region38: #{forward.1} parent=1 // pred_check
      _
    $region39: #{forward.1} parent=1 // pred_check_branch
      %114 = sbr.rel (0) target = $region41
    $region40: #{forward.1} parent=1 // pred_region
      _
    $region41: #{forward.1} parent=1 // pred_fallthru
      _
    // Predicated region
    $region42: #{forward.1} parent=1 // pred_check
      _
    $region43: #{forward.1} parent=1 // pred_check_branch
      %116 = sbr.rel (0) target = $region45
    $region44: #{forward.1} parent=1 // pred_region
      _
    $region45: #{forward.1} parent=1 // pred_fallthru
      _
    // Predicated region
    $region46: #{forward.1} parent=1 // pred_check
      _
    $region47: #{forward.1} parent=1 // pred_check_branch
      %118 = sbr.rel (0) target = $region49
    $region48: #{forward.1} parent=1 // pred_region
      _
    $region49: #{forward.1} parent=1 // pred_fallthru
      _
    // Predicated region
    $region50: #{forward.1} parent=1 // pred_check
      _
    $region51: #{forward.1} parent=1 // pred_check_branch
      %120 = sbr.rel (0) target = $region53
    $region52: #{forward.1} parent=1 // pred_region
      _
    $region53: #{forward.1} parent=1 // pred_fallthru
      _
    // Predicated region
    $region54: #{forward.1} parent=1 // pred_check
      _
    $region55: #{forward.1} parent=1 // pred_check_branch
      %122 = sbr.rel (0) target = $region57
    $region56: #{forward.1} parent=1 // pred_region
      _
    $region57: #{forward.1} parent=1 // pred_fallthru
      _
    // Predicated region
    $region58: #{forward.1} parent=1 // pred_check
      _
    $region59: #{forward.1} parent=1 // pred_check_branch
      %124 = sbr.rel (0) target = $region61
    $region60: #{forward.1} parent=1 // pred_region
      _
    $region61: #{forward.1} parent=1 // pred_fallthru
      _
    // Predicated region
    $region62: #{forward.1} parent=1 // pred_check
      _
    $region63: #{forward.1} parent=1 // pred_check_branch
      %126 = sbr.rel (0) target = $region65
    $region64: #{forward.1} parent=1 // pred_region
      _
    $region65: #{forward.1} parent=1 // pred_fallthru
      _
    // Predicated region
    $region66: #{forward.1} parent=1 // pred_check
      _
    $region67: #{forward.1} parent=1 // pred_check_branch
      %128 = sbr.rel (0) target = $region69
    $region68: #{forward.1} parent=1 // pred_region
      _
    $region69: #{forward.1} parent=1 // pred_fallthru
      _
    // Predicated region
    $region70: #{forward.1} parent=1 // pred_check
      _
    $region71: #{forward.1} parent=1 // pred_check_branch
      %130 = sbr.rel (0) target = $region73
    $region72: #{forward.1} parent=1 // pred_region
      _
    $region73: #{forward.1} parent=1 // pred_fallthru
      _
    // Predicated region
    $region74: #{forward.1} parent=1 // pred_check
      _
    $region75: #{forward.1} parent=1 // pred_check_branch
      %132 = sbr.rel (0) target = $region77
    $region76: #{forward.1} parent=1 // pred_region
      _
    $region77: #{forward.1} parent=1 // pred_fallthru
      _
    // Predicated region
    $region78: #{forward.1} parent=1 // pred_check
      _
    $region79: #{forward.1} parent=1 // pred_check_branch
      %134 = sbr.rel (0) target = $region81
    $region80: #{forward.1} parent=1 // pred_region
      _
    $region81: #{forward.1} parent=1 // pred_fallthru
      _
    // Predicated region
    $region82: #{forward.1} parent=1 // pred_check
      _
    $region83: #{forward.1} parent=1 // pred_check_branch
      %136 = sbr.rel (0) target = $region85
    $region84: #{forward.1} parent=1 // pred_region
      _
    $region85: #{forward.1} parent=1 // pred_fallthru
      _
    // Predicated region
    $region86: #{forward.1} parent=1 // pred_check
      _
    $region87: #{forward.1} parent=1 // pred_check_branch
      %138 = sbr.rel (0) target = $region89
    $region88: #{forward.1} parent=1 // pred_region
      _
    $region89: #{forward.1} parent=1 // pred_fallthru
      _
    // Predicated region
    $region90: #{forward.1} parent=1 // pred_check
      _
    $region91: #{forward.1} parent=1 // pred_check_branch
      %140 = sbr.rel (0) target = $region93
    $region92: #{forward.1} parent=1 // pred_region
      _
    $region93: #{forward.1} parent=1 // pred_fallthru
      _
    // Predicated region
    $region94: #{forward.1} parent=1 // pred_check
      _
    $region95: #{forward.1} parent=1 // pred_check_branch
      %142 = sbr.rel (0) target = $region97
    $region96: #{forward.1} parent=1 // pred_region
      _
    $region97: #{forward.1} parent=1 // pred_fallthru
      _
    // Predicated region
    $region98: #{forward.1} parent=1 // pred_check
      _
    $region99: #{forward.1} parent=1 // pred_check_branch
      %144 = sbr.rel (0) target = $region101
    $region100: #{forward.1} parent=1 // pred_region
      _
    $region101: #{forward.1} parent=1 // pred_fallthru
      _
    // Predicated region
    $region102: #{forward.1} parent=1 // pred_check
      _
    $region103: #{forward.1} parent=1 // pred_check_branch
      %146 = sbr.rel (0) target = $region105
    $region104: #{forward.1} parent=1 // pred_region
      _
    $region105: #{forward.1} parent=1 // pred_fallthru
      _
    // Predicated region
    $region106: #{forward.1} parent=1 // pred_check
      _
    $region107: #{forward.1} parent=1 // pred_check_branch
      %148 = sbr.rel (0) target = $region109
    $region108: #{forward.1} parent=1 // pred_region
      _
    $region109: #{forward.1} parent=1 // pred_fallthru
      _
    // Predicated region
    $region110: #{forward.1} parent=1 // pred_check
      _
    $region111: #{forward.1} parent=1 // pred_check_branch
      %150 = sbr.rel (0) target = $region113
    $region112: #{forward.1} parent=1 // pred_region
      _
    $region113: #{forward.1} parent=1 // pred_fallthru
      _
    // Predicated region
    $region114: #{forward.1} parent=1 // pred_check
      _
    $region115: #{forward.1} parent=1 // pred_check_branch
      %152 = sbr.rel (0) target = $region117
    $region116: #{forward.1} parent=1 // pred_region
      _
    $region117: #{forward.1} parent=1 // pred_fallthru
      _
    // Predicated region
    $region118: #{forward.1} parent=1 // pred_check
      _
    $region119: #{forward.1} parent=1 // pred_check_branch
      %154 = sbr.rel (0) target = $region121
    $region120: #{forward.1} parent=1 // pred_region
      _
    $region121: #{forward.1} parent=1 // pred_fallthru
      _
    // Predicated region
    $region122: #{forward.1} parent=1 // pred_check
      _
    $region123: #{forward.1} parent=1 // pred_check_branch
      %156 = sbr.rel (0) target = $region125
    $region124: #{forward.1} parent=1 // pred_region
      _
    $region125: #{forward.1} parent=1 // pred_fallthru
      _
    // Predicated region
    $region126: #{forward.1} parent=1 // pred_check
      _
    $region127: #{forward.1} parent=1 // pred_check_branch
      %158 = sbr.rel (0) target = $region129
    $region128: #{forward.1} parent=1 // pred_region
      _
    $region129: #{forward.1} parent=1 // pred_fallthru
      _
    // Predicated region
    $region130: #{forward.1} parent=1 // pred_check
      _
    $region131: #{forward.1} parent=1 // pred_check_branch
      %160 = sbr.rel (0) target = $region133
    $region132: #{forward.1} parent=1 // pred_region
      _
    $region133: #{forward.1} parent=1 // pred_fallthru
      _
    // Predicated region
    $region134: #{forward.1} parent=1 // pred_check
      _
    $region135: #{forward.1} parent=1 // pred_check_branch
      %162 = sbr.rel (0) target = $region137
    $region136: #{forward.1} parent=1 // pred_region
      _
    $region137: #{forward.1} parent=1 // pred_fallthru
      _
    // Predicated region
    $region138: #{forward.1} parent=1 // pred_check
      _
    $region139: #{forward.1} parent=1 // pred_check_branch
      %164 = sbr.rel (0) target = $region141
    $region140: #{forward.1} parent=1 // pred_region
      _
    $region141: #{forward.1} parent=1 // pred_fallthru
      _
    // Predicated region
    $region142: #{forward.1} parent=1 // pred_check
      _
    $region143: #{forward.1} parent=1 // pred_check_branch
      %166 = sbr.rel (0) target = $region145
    $region144: #{forward.1} parent=1 // pred_region
      _
    $region145: #{forward.1} parent=1 // pred_fallthru
      _
    // Predicated region
    $region146: #{forward.1} parent=1 // pred_check
      _
    $region147: #{forward.1} parent=1 // pred_check_branch
      %168 = sbr.rel (0) target = $region149
    $region148: #{forward.1} parent=1 // pred_region
      _
    $region149: #{forward.1} parent=1 // pred_fallthru
      _
    // Predicated region
    $region150: #{forward.1} parent=1 // pred_check
      _
    $region151: #{forward.1} parent=1 // pred_check_branch
      %170 = sbr.rel (0) target = $region153
    $region152: #{forward.1} parent=1 // pred_region
      _
    $region153: #{forward.1} parent=1 // pred_fallthru
      _
    // Predicated region
    $region154: #{forward.1} parent=1 // pred_check
      _
    $region155: #{forward.1} parent=1 // pred_check_branch
      %172 = sbr.rel (0) target = $region157
    $region156: #{forward.1} parent=1 // pred_region
      _
    $region157: #{forward.1} parent=1 // pred_fallthru
      _
    // Predicated region
    $region158: #{forward.1} parent=1 // pred_check
      _
    $region159: #{forward.1} parent=1 // pred_check_branch
      %174 = sbr.rel (0) target = $region161
    $region160: #{forward.1} parent=1 // pred_region
      _
    $region161: #{forward.1} parent=1 // pred_fallthru
      _
    // Predicated region
    $region162: #{forward.1} parent=1 // pred_check
      _
    $region163: #{forward.1} parent=1 // pred_check_branch
      %176 = sbr.rel (0) target = $region165
    $region164: #{forward.1} parent=1 // pred_region
      _
    $region165: #{forward.1} parent=1 // pred_fallthru
      _
    // Predicated region
    $region166: #{forward.1} parent=1 // pred_check
      _
    $region167: #{forward.1} parent=1 // pred_check_branch
      %178 = sbr.rel (0) target = $region169
    $region168: #{forward.1} parent=1 // pred_region
      _
    $region169: #{forward.1} parent=1 // pred_fallthru
      _
    // Predicated region
    $region170: #{forward.1} parent=1 // pred_check
      _
    $region171: #{forward.1} parent=1 // pred_check_branch
      %180 = sbr.rel (0) target = $region173
    $region172: #{forward.1} parent=1 // pred_region
      _
    $region173: #{forward.1} parent=1 // pred_fallthru
      _
    // Predicated region
    $region174: #{forward.1} parent=1 // pred_check
      _
    $region175: #{forward.1} parent=1 // pred_check_branch
      %182 = sbr.rel (0) target = $region177
    $region176: #{forward.1} parent=1 // pred_region
      _
    $region177: #{forward.1} parent=1 // pred_fallthru
      _
    %v184 = vld [vmem:[%s1] sm:$0xff]
    %v185 = vld [vmem:[%s1 + $0x8] sm:$0xff]
    %v186 = vld [vmem:[%s15] sm:$0xf]
    %v187 = vld [vmem:[%s15 + $0x4] sm:$0xf]
    %v188 = vld [vmem:[%s15 + $0x8] sm:$0xf]
    %v189 = vld [vmem:[%s15 + $0xc] sm:$0xf]
    %v190 = vld [vmem:[%s15 + $0x10] sm:$0xf]
    %v191 = vld [vmem:[%s15 + $0x14] sm:$0xf]
    %v192 = vld [vmem:[%s15 + $0x18] sm:$0xf]
    %v193 = vld [vmem:[%s15 + $0x1c] sm:$0xf]
    %v194 = vld [vmem:[%s15 + $0x20] sm:$0xf]
    %v195 = vld [vmem:[%s15 + $0x24] sm:$0xf]
    %v196 = vld [vmem:[%s15 + $0x28] sm:$0xf]
    %v197 = vld [vmem:[%s15 + $0x2c] sm:$0xf]
    %v198 = vld [vmem:[%s15 + $0x30] sm:$0xf]
    %v199 = vld [vmem:[%s15 + $0x34] sm:$0xf]
    %v200 = vld [vmem:[%s15 + $0x38] sm:$0xf]
    %v201 = vld [vmem:[%s15 + $0x3c] sm:$0xf]
    %v202 = vld [vmem:[%s15 + $0x40] sm:$0xf]
    %v203 = vld [vmem:[%s15 + $0x44] sm:$0xf]
    %v204 = vld [vmem:[%s15 + $0x48] sm:$0xf]
    %v205 = vld [vmem:[%s15 + $0x4c] sm:$0xf]
    %v206 = vld [vmem:[%s15 + $0x50] sm:$0xf]
    %v207 = vld [vmem:[%s15 + $0x54] sm:$0xf]
    %v208 = vld [vmem:[%s15 + $0x58] sm:$0xf]
    %v209 = vld [vmem:[%s15 + $0x5c] sm:$0xf]
    %v210 = vpack.c.bf16 %v184, %v184
    %v211 = vpack.c.bf16 %v185, %v185
    %v236 = vunpack.c.l.b16 %v186
    %v237 = vunpack.c.l.b16 %v187
    %v238 = vunpack.c.l.b16 %v188
    %v239 = vunpack.c.l.b16 %v189
    %v240 = vunpack.c.l.b16 %v190
    %v241 = vunpack.c.l.b16 %v191
    %v242 = vunpack.c.l.b16 %v192
    %v243 = vunpack.c.l.b16 %v193
    %v244 = vunpack.c.l.b16 %v194
    %v245 = vunpack.c.l.b16 %v195
    %v246 = vunpack.c.l.b16 %v196
    %v247 = vunpack.c.l.b16 %v197
    %v248 = vunpack.c.l.b16 %v198
    %v249 = vunpack.c.l.b16 %v199
    %v250 = vunpack.c.l.b16 %v200
    %v251 = vunpack.c.l.b16 %v201
    %v252 = vunpack.c.l.b16 %v202
    %v253 = vunpack.c.l.b16 %v203
    %v254 = vunpack.c.l.b16 %v204
    %v255 = vunpack.c.l.b16 %v205
    %v256 = vunpack.c.l.b16 %v206
    %v257 = vunpack.c.l.b16 %v207
    %v258 = vunpack.c.l.b16 %v208
    %v259 = vunpack.c.l.b16 %v209
    %v260 = vpack.c.b16 %v237, %v236
    %v261 = vpack.c.b16 %v239, %v238
    %v262 = vpack.c.b16 %v241, %v240
    %v263 = vpack.c.b16 %v243, %v242
    %v264 = vpack.c.b16 %v245, %v244
    %v265 = vpack.c.b16 %v247, %v246
    %v266 = vpack.c.b16 %v249, %v248
    %v267 = vpack.c.b16 %v251, %v250
    %v268 = vpack.c.b16 %v253, %v252
    %v269 = vpack.c.b16 %v255, %v254
    %v270 = vpack.c.b16 %v257, %v256
    %v271 = vpack.c.b16 %v259, %v258
    %vm284 = vcmask 523264
    %v286 = vsel %vm284, %v211, 0
    %288 = vmatpush.bf16.msra.mxu0 %v267
    %289 = vmatpush.bf16.msra.mxu0 %v266
    %290 = vmatpush.bf16.msra.mxu0 %v265
    %291 = vmatpush.bf16.msra.mxu0 %v264
    %292 = vmatpush.bf16.msra.mxu0 %v263
    %293 = vmatpush.bf16.msra.mxu0 %v262
    %294 = vmatpush.bf16.msra.mxu0 %v261
    %295 = vmatpush.bf16.msra.mxu0 %v260
    %296 = vmatmul.bf16.gmra.mxu0 %v210
    %v297 = vpop.f32.mrf.mxu0
    %v298 = vadd.f32 0.0, %v297
    %v299 = vpop.f32.mrf.mxu0
    %300 = vdwg.mxu0
    %301 = vmatpush.bf16.msra.mxu0 0
    %302 = vmatpush.bf16.msra.mxu0 0
    %303 = vmatpush.bf16.msra.mxu0 0
    %304 = vmatpush.bf16.msra.mxu0 0
    %305 = vmatpush.bf16.msra.mxu0 %v271
    %306 = vmatpush.bf16.msra.mxu0 %v270
    %307 = vmatpush.bf16.msra.mxu0 %v269
    %308 = vmatpush.bf16.msra.mxu0 %v268
    %309 = vmatmul.bf16.gmra.mxu0 %v286
    %v310 = vpop.f32.mrf.mxu0
    %v311 = vadd.f32 %v298, %v310
    %v312 = vpop.f32.mrf.mxu0
    %313 = vdwg.mxu0
    %v314 = vld [vmem:[%s3] sm:$0xff]
    %v315 = vld [vmem:[%s3 + $0x8] sm:$0x3]
    %v317 = vrot.slane %v311, 6
    %v319 = vadd.f32 %v314, %v317
    %v320 = vadd.f32 %v315, %v317
    %vm321 = vcmask 1041408
    %v322 = vsel %vm321, %v314, %v319
    %v323 = vld [vmem:[%s17] sm:$0x1]
    %v324 = vld [vmem:[%s19] sm:$0x1]
    %vm325 = vcmask 261120
    %v326 = vsel %vm325, %v322, 0.0
    %327 = vadd.xlane.f32.xlu0 %v326
    %v328 = vpop.xlane.xlu0 %327
    %vm329 = vcmask 254976
    %v330 = vsel %vm329, %v320, 0.0
    %331 = vadd.xlane.f32.xlu0 %v330
    %v332 = vpop.xlane.xlu0 %331
    %v333 = vrcp.pop 32.0
    %v334 = vmul.f32 32.0, %v333
    %v335 = vsub.f32 1.0, %v334
    %v336 = vmul.f32 %v333, %v335
    %v337 = vadd.f32 %v333, %v336
    %vm338 = vweird.f32 %v333
    %v339 = vsel %vm338, %v333, %v337
    %v340 = vmul.f32 %v328, %v339
    %v341 = vmul.f32 %v332, %v339
    %v342 = vsub.f32 %v322, %v340
    %v343 = vsub.f32 %v320, %v341
    %v344 = vmul.f32 %v342, %v342
    %v345 = vmul.f32 %v343, %v343
    %v346 = vsel %vm325, %v344, 0.0
    %347 = vadd.xlane.f32.xlu0 %v346
    %v348 = vpop.xlane.xlu0 %347
    %v349 = vsel %vm329, %v345, 0.0
    %350 = vadd.xlane.f32.xlu0 %v349
    %v351 = vpop.xlane.xlu0 %350
    %v352 = vmul.f32 %v348, %v339
    %v353 = vmul.f32 %v351, %v339
    %v354 = vadd.f32 %v352, 1e-05
    %v355 = vadd.f32 %v353, 1e-05
    %v356 = vrsqrt.pop %v354
    %v357 = vmul.f32 %v356, %v354
    %v358 = vmul.f32 %v357, %v356
    %v359 = vmul.f32 0.5, %v358
    %v360 = vsub.f32 1.5, %v359
    %v361 = vmul.f32 %v356, %v360
    %vm362 = vweird.f32 %v354
    %vm363 = vweird.f32 %v356
    %vm364 = vmor %vm362, %vm363
    %v365 = vsel %vm364, %v356, %v361
    %v366 = vrsqrt.pop %v355
    %v367 = vmul.f32 %v366, %v355
    %v368 = vmul.f32 %v367, %v366
    %v369 = vmul.f32 0.5, %v368
    %v370 = vsub.f32 1.5, %v369
    %v371 = vmul.f32 %v366, %v370
    %vm372 = vweird.f32 %v355
    %vm373 = vweird.f32 %v366
    %vm374 = vmor %vm372, %vm373
    %v375 = vsel %vm374, %v366, %v371
    %v376 = vmul.f32 %v342, %v365
    %v377 = vmul.f32 %v343, %v375
    %v379 = vperm.slane %v323, 0
    %v381 = vmul.f32 %v376, %v379
    %v382 = vmul.f32 %v377, %v379
    %v384 = vperm.slane %v324, 0
    %v386 = vadd.f32 %v381, %v384
    %v387 = vadd.f32 %v382, %v384
    %v388 = vld [vmem:[%s5] sm:$0xff]
    %v389 = vld [vmem:[%s5 + $0x8] sm:$0x3]
    %v390 = vld [vmem:[%s21] sm:$0x1]
    %v391 = vld [vmem:[%s23] sm:$0x1]
    %v392 = vsel %vm325, %v386, 0.0
    %393 = vadd.xlane.f32.xlu0 %v392
    %v394 = vpop.xlane.xlu0 %393
    %v395 = vsel %vm329, %v387, 0.0
    %396 = vadd.xlane.f32.xlu0 %v395
    %v397 = vpop.xlane.xlu0 %396
    %v398 = vmul.f32 %v394, %v339
    %v399 = vmul.f32 %v397, %v339
    %v400 = vsub.f32 %v386, %v398
    %v401 = vsub.f32 %v387, %v399
    %v402 = vmul.f32 %v400, %v400
    %v403 = vmul.f32 %v401, %v401
    %v404 = vsel %vm325, %v402, 0.0
    %405 = vadd.xlane.f32.xlu0 %v404
    %v406 = vpop.xlane.xlu0 %405
    %v407 = vsel %vm329, %v403, 0.0
    %408 = vadd.xlane.f32.xlu0 %v407
    %v409 = vpop.xlane.xlu0 %408
    %v410 = vmul.f32 %v406, %v339
    %v411 = vmul.f32 %v409, %v339
    %v412 = vadd.f32 %v410, 1e-05
    %v413 = vadd.f32 %v411, 1e-05
    %v414 = vrsqrt.pop %v412
    %v415 = vmul.f32 %v414, %v412
    %v416 = vmul.f32 %v415, %v414
    %v417 = vmul.f32 0.5, %v416
    %v418 = vsub.f32 1.5, %v417
    %v419 = vmul.f32 %v414, %v418
    %vm420 = vweird.f32 %v412
    %vm421 = vweird.f32 %v414
    %vm422 = vmor %vm420, %vm421
    %v423 = vsel %vm422, %v414, %v419
    %v424 = vrsqrt.pop %v413
    %v425 = vmul.f32 %v424, %v413
    %v426 = vmul.f32 %v425, %v424
    %v427 = vmul.f32 0.5, %v426
    %v428 = vsub.f32 1.5, %v427
    %v429 = vmul.f32 %v424, %v428
    %vm430 = vweird.f32 %v413
    %vm431 = vweird.f32 %v424
    %vm432 = vmor %vm430, %vm431
    %v433 = vsel %vm432, %v424, %v429
    %v434 = vmul.f32 %v400, %v423
    %v435 = vmul.f32 %v401, %v433
    %v437 = vperm.slane %v390, 0
    %v439 = vmul.f32 %v434, %v437
    %v440 = vmul.f32 %v435, %v437
    %v442 = vperm.slane %v391, 0
    %v444 = vadd.f32 %v439, %v442
    %v445 = vadd.f32 %v440, %v442
    %v446 = vld [vmem:[%s25] sm:$0xf]
    %v447 = vld [vmem:[%s25 + $0x4] sm:$0xf]
    %v448 = vld [vmem:[%s25 + $0x8] sm:$0xf]
    %v449 = vld [vmem:[%s25 + $0xc] sm:$0xf]
    %v450 = vpack.c.bf16 %v445, %v444
    %v451 = vld [vmem:[%s27] sm:$0x1]
    %v453 = vperm.slane %v451, 0
    %v459 = vunpack.c.l.b16 %v446
    %v460 = vunpack.c.l.b16 %v447
    %v461 = vunpack.c.l.b16 %v448
    %v462 = vunpack.c.l.b16 %v449
    %v463 = vpack.c.b16 %v460, %v459
    %v464 = vpack.c.b16 %v462, %v461
    %v468 = vsel %vm325, %v450, 0
    %470 = vmatpush.bf16.msra.mxu0 0
    %471 = vmatpush.bf16.msra.mxu0 0
    %472 = vmatpush.bf16.msra.mxu0 0
    %473 = vmatpush.bf16.msra.mxu0 0
    %474 = vmatpush.bf16.msra.mxu0 0
    %475 = vmatpush.bf16.msra.mxu0 0
    %476 = vmatpush.bf16.msra.mxu0 %v464
    %477 = vmatpush.bf16.msra.mxu0 %v463
    %478 = vmatmul.bf16.gmra.mxu0 %v468
    %v479 = vpop.f32.mrf.mxu0
    %v480 = vadd.f32 %v453, %v479
    %v481 = vpop.f32.mrf.mxu0
    %v482 = vadd.f32 %v453, %v481
    %483 = vdwg.mxu0
    %v484 = vld [vmem:[%s29] sm:$0xf]
    %v485 = vld [vmem:[%s29 + $0x4] sm:$0xf]
    %v486 = vld [vmem:[%s29 + $0x8] sm:$0xf]
    %v487 = vld [vmem:[%s29 + $0xc] sm:$0xf]
    %v488 = vld [vmem:[%s31] sm:$0x1]
    %v490 = vperm.slane %v488, 0
    %v496 = vunpack.c.l.b16 %v484
    %v497 = vunpack.c.l.b16 %v485
    %v498 = vunpack.c.l.b16 %v486
    %v499 = vunpack.c.l.b16 %v487
    %v500 = vpack.c.b16 %v497, %v496
    %v501 = vpack.c.b16 %v499, %v498
    %504 = vmatpush.bf16.msra.mxu0 0
    %505 = vmatpush.bf16.msra.mxu0 0
    %506 = vmatpush.bf16.msra.mxu0 0
    %507 = vmatpush.bf16.msra.mxu0 0
    %508 = vmatpush.bf16.msra.mxu0 0
    %509 = vmatpush.bf16.msra.mxu0 0
    %510 = vmatpush.bf16.msra.mxu0 %v501
    %511 = vmatpush.bf16.msra.mxu0 %v500
    %512 = vmatmul.bf16.gmra.mxu0 %v468
    %v513 = vpop.f32.mrf.mxu0
    %v514 = vadd.f32 %v490, %v513
    %v515 = vpop.f32.mrf.mxu0
    %v516 = vadd.f32 %v490, %v515
    %517 = vdwg.mxu0
    %v518 = vld [vmem:[%s33] sm:$0xf]
    %v519 = vld [vmem:[%s33 + $0x4] sm:$0xf]
    %v520 = vld [vmem:[%s33 + $0x8] sm:$0xf]
    %v521 = vld [vmem:[%s33 + $0xc] sm:$0xf]
    %v522 = vld [vmem:[%s35] sm:$0x1]
    %v524 = vperm.slane %v522, 0
    %v530 = vunpack.c.l.b16 %v518
    %v531 = vunpack.c.l.b16 %v519
    %v532 = vunpack.c.l.b16 %v520
    %v533 = vunpack.c.l.b16 %v521
    %v534 = vpack.c.b16 %v531, %v530
    %v535 = vpack.c.b16 %v533, %v532
    %538 = vmatpush.bf16.msra.mxu0 0
    %539 = vmatpush.bf16.msra.mxu0 0
    %540 = vmatpush.bf16.msra.mxu0 0
    %541 = vmatpush.bf16.msra.mxu0 0
    %542 = vmatpush.bf16.msra.mxu0 0
    %543 = vmatpush.bf16.msra.mxu0 0
    %544 = vmatpush.bf16.msra.mxu0 %v535
    %545 = vmatpush.bf16.msra.mxu0 %v534
    %546 = vmatmul.bf16.gmra.mxu0 %v468
    %v547 = vpop.f32.mrf.mxu0
    %v548 = vadd.f32 %v524, %v547
    %v549 = vpop.f32.mrf.mxu0
    %v550 = vadd.f32 %v524, %v549
    %551 = vdwg.mxu0
    %v552 = vld [vmem:[%s37] sm:$0xf]
    %v553 = vld [vmem:[%s37 + $0x4] sm:$0xf]
    %v554 = vld [vmem:[%s37 + $0x8] sm:$0xf]
    %v555 = vld [vmem:[%s37 + $0xc] sm:$0xf]
    %v556 = vmul.f32 %v480, 0.35355338
    %v557 = vmul.f32 %v482, 0.35355338
    %v558 = vpack.c.bf16 %v557, %v556
    %v559 = vpack.c.bf16 %v516, %v514
    %vm560 = vcmask 64512
    %v562 = vsel %vm560, %v558, 0
    %v565 = vsel %vm560, %v559, 0
    %567 = vmatpush.bf16.xpose.msra.mxu0 0
    %568 = vmatpush.bf16.xpose.msra.mxu0 0
    %569 = vmatpush.bf16.xpose.msra.mxu0 0
    %570 = vmatpush.bf16.xpose.msra.mxu0 0
    %571 = vmatpush.bf16.xpose.msra.mxu0 0
    %572 = vmatpush.bf16.xpose.msra.mxu0 0
    %573 = vmatpush.bf16.xpose.msra.mxu0 0
    %574 = vmatpush.bf16.xpose.msra.mxu0 %v565
    %575 = vmatmul.bf16.gmra.mxu0 %v562
    %v576 = vpop.f32.mrf.mxu0
    %v577 = vadd.f32 %v388, %v576
    %v578 = vpop.f32.mrf.mxu0
    %v579 = vadd.f32 %v389, %v578
    %580 = vdwg.mxu0
    %vm581 = vcmask 80896
    %v582 = vsel %vm581, %v577, -inf
    %583 = vmax.xlane.f32.xlu0 %v582
    %v584 = vpop.xlane.xlu0 %583
    %vm585 = vcmask 74752
    %v586 = vsel %vm585, %v579, -inf
    %587 = vmax.xlane.f32.xlu0 %v586
    %v588 = vpop.xlane.xlu0 %587
    %v589 = vsub.f32 %v577, %v584
    %v590 = vsub.f32 %v579, %v588
    %v591 = vmul.f32 %v589, 1.442695
    %v592 = vpow.pop %v591
    %v593 = vmul.f32 %v590, 1.442695
    %v594 = vpow.pop %v593
    %v595 = vsel %vm581, %v592, 0.0
    %596 = vadd.xlane.f32.xlu0 %v595
    %v597 = vpop.xlane.xlu0 %596
    %v598 = vsel %vm585, %v594, 0.0
    %599 = vadd.xlane.f32.xlu0 %v598
    %v600 = vpop.xlane.xlu0 %599
    %v601 = vrcp.pop %v597
    %v602 = vmul.f32 %v597, %v601
    %v603 = vsub.f32 1.0, %v602
    %v604 = vmul.f32 %v601, %v603
    %v605 = vadd.f32 %v601, %v604
    %vm606 = vweird.f32 %v597
    %vm607 = vweird.f32 %v601
    %vm608 = vmor %vm606, %vm607
    %v609 = vsel %vm608, %v601, %v605
    %v610 = vand.u32 2147483647, %v597
    %vm611 = vcmp.eq.f32.partialorder %v610, 8.507059e+37
    %v612 = vand.u32 %v597, 2147483648
    %v613 = vor.u32 1.1754944e-38, %v612
    %v614 = vsel %vm611, %v613, %v609
    %v615 = vmul.f32 %v592, %v614
    %v616 = vrcp.pop %v600
    %v617 = vmul.f32 %v600, %v616
    %v618 = vsub.f32 1.0, %v617
    %v619 = vmul.f32 %v616, %v618
    %v620 = vadd.f32 %v616, %v619
    %vm621 = vweird.f32 %v600
    %vm622 = vweird.f32 %v616
    %vm623 = vmor %vm621, %vm622
    %v624 = vsel %vm623, %v616, %v620
    %v625 = vand.u32 2147483647, %v600
    %vm626 = vcmp.eq.f32.partialorder %v625, 8.507059e+37
    %v627 = vand.u32 %v600, 2147483648
    %v628 = vor.u32 1.1754944e-38, %v627
    %v629 = vsel %vm626, %v628, %v624
    %v630 = vmul.f32 %v594, %v629
    %v631 = vpack.c.bf16 %v630, %v615
    %v632 = vpack.c.bf16 %v550, %v548
    %v634 = vsel %vm581, %v631, 0
    %vm636 = vcmask 1044480
    %v638 = vsel %vm636, %v632, 0
    %640 = vmatpush.bf16.msra.mxu0 0
    %641 = vmatpush.bf16.msra.mxu0 0
    %642 = vmatpush.bf16.msra.mxu0 0
    %643 = vmatpush.bf16.msra.mxu0 0
    %644 = vmatpush.bf16.msra.mxu0 0
    %645 = vmatpush.bf16.msra.mxu0 0
    %646 = vmatpush.bf16.msra.mxu0 0
    %647 = vmatpush.bf16.msra.mxu0 %v638
    %648 = vmatmul.bf16.gmra.mxu0 %v634
    %v649 = vpop.f32.mrf.mxu0
    %v650 = vadd.f32 0.0, %v649
    %v651 = vpop.f32.mrf.mxu0
    %v652 = vadd.f32 0.0, %v651
    %653 = vdwg.mxu0
    %v654 = vpack.c.bf16 %v652, %v650
    %656 = vrot.lane.b32.xlu0 %v558, 120
    %v657 = vpop.permute.xlu0 %656
    %659 = vrot.lane.b32.xlu0 %v559, 120
    %v660 = vpop.permute.xlu0 %659
    %v662 = vsel %vm560, %v657, 0
    %v665 = vsel %vm560, %v660, 0
    %667 = vmatpush.bf16.xpose.msra.mxu0 0
    %668 = vmatpush.bf16.xpose.msra.mxu0 0
    %669 = vmatpush.bf16.xpose.msra.mxu0 0
    %670 = vmatpush.bf16.xpose.msra.mxu0 0
    %671 = vmatpush.bf16.xpose.msra.mxu0 0
    %672 = vmatpush.bf16.xpose.msra.mxu0 0
    %673 = vmatpush.bf16.xpose.msra.mxu0 0
    %674 = vmatpush.bf16.xpose.msra.mxu0 %v665
    %675 = vmatmul.bf16.gmra.mxu0 %v662
    %v676 = vpop.f32.mrf.mxu0
    %v677 = vadd.f32 %v388, %v676
    %v678 = vpop.f32.mrf.mxu0
    %v679 = vadd.f32 %v389, %v678
    %680 = vdwg.mxu0
    %v681 = vsel %vm581, %v677, -inf
    %682 = vmax.xlane.f32.xlu0 %v681
    %v683 = vpop.xlane.xlu0 %682
    %v684 = vsel %vm585, %v679, -inf
    %685 = vmax.xlane.f32.xlu0 %v684
    %v686 = vpop.xlane.xlu0 %685
    %v687 = vsub.f32 %v677, %v683
    %v688 = vsub.f32 %v679, %v686
    %v689 = vmul.f32 %v687, 1.442695
    %v690 = vpow.pop %v689
    %v691 = vmul.f32 %v688, 1.442695
    %v692 = vpow.pop %v691
    %v693 = vsel %vm581, %v690, 0.0
    %694 = vadd.xlane.f32.xlu0 %v693
    %v695 = vpop.xlane.xlu0 %694
    %v696 = vsel %vm585, %v692, 0.0
    %697 = vadd.xlane.f32.xlu0 %v696
    %v698 = vpop.xlane.xlu0 %697
    %v699 = vrcp.pop %v695
    %v700 = vmul.f32 %v695, %v699
    %v701 = vsub.f32 1.0, %v700
    %v702 = vmul.f32 %v699, %v701
    %v703 = vadd.f32 %v699, %v702
    %vm704 = vweird.f32 %v695
    %vm705 = vweird.f32 %v699
    %vm706 = vmor %vm704, %vm705
    %v707 = vsel %vm706, %v699, %v703
    %v708 = vand.u32 2147483647, %v695
    %vm709 = vcmp.eq.f32.partialorder %v708, 8.507059e+37
    %v710 = vand.u32 %v695, 2147483648
    %v711 = vor.u32 1.1754944e-38, %v710
    %v712 = vsel %vm709, %v711, %v707
    %v713 = vmul.f32 %v690, %v712
    %v714 = vrcp.pop %v698
    %v715 = vmul.f32 %v698, %v714
    %v716 = vsub.f32 1.0, %v715
    %v717 = vmul.f32 %v714, %v716
    %v718 = vadd.f32 %v714, %v717
    %vm719 = vweird.f32 %v698
    %vm720 = vweird.f32 %v714
    %vm721 = vmor %vm719, %vm720
    %v722 = vsel %vm721, %v714, %v718
    %v723 = vand.u32 2147483647, %v698
    %vm724 = vcmp.eq.f32.partialorder %v723, 8.507059e+37
    %v725 = vand.u32 %v698, 2147483648
    %v726 = vor.u32 1.1754944e-38, %v725
    %v727 = vsel %vm724, %v726, %v722
    %v728 = vmul.f32 %v692, %v727
    %v729 = vpack.c.bf16 %v728, %v713
    %731 = vrot.lane.b32.xlu0 %v632, 120
    %v732 = vpop.permute.xlu0 %731
    %v734 = vsel %vm581, %v729, 0
    %v737 = vsel %vm636, %v732, 0
    %739 = vmatpush.bf16.msra.mxu0 0
    %740 = vmatpush.bf16.msra.mxu0 0
    %741 = vmatpush.bf16.msra.mxu0 0
    %742 = vmatpush.bf16.msra.mxu0 0
    %743 = vmatpush.bf16.msra.mxu0 0
    %744 = vmatpush.bf16.msra.mxu0 0
    %745 = vmatpush.bf16.msra.mxu0 0
    %746 = vmatpush.bf16.msra.mxu0 %v737
    %747 = vmatmul.bf16.gmra.mxu0 %v734
    %v748 = vpop.f32.mrf.mxu0
    %v749 = vadd.f32 0.0, %v748
    %v750 = vpop.f32.mrf.mxu0
    %v751 = vadd.f32 0.0, %v750
    %752 = vdwg.mxu0
    %v753 = vpack.c.bf16 %v751, %v749
    %v755 = vsel %vm560, %v753, 0
    %vm757 = vcmask 1043456
    %v759 = vsel %vm757, %v553, 0
    %761 = vmatpush.bf16.msra.mxu0 0
    %762 = vmatpush.bf16.msra.mxu0 0
    %763 = vmatpush.bf16.msra.mxu0 0
    %764 = vmatpush.bf16.msra.mxu0 0
    %765 = vmatpush.bf16.msra.mxu0 0
    %766 = vmatpush.bf16.msra.mxu0 0
    %767 = vmatpush.bf16.msra.mxu0 0
    %768 = vmatpush.bf16.msra.mxu0 %v759
    %769 = vmatmul.bf16.gmra.mxu0 %v755
    %v770 = vpop.f32.mrf.mxu0
    %v771 = vadd.f32 0.0, %v770
    %v772 = vpop.f32.mrf.mxu0
    %v773 = vadd.f32 0.0, %v772
    %774 = vdwg.mxu0
    %v776 = vsel %vm560, %v654, 0
    %v779 = vsel %vm757, %v552, 0
    %781 = vmatpush.bf16.msra.mxu0 0
    %782 = vmatpush.bf16.msra.mxu0 0
    %783 = vmatpush.bf16.msra.mxu0 0
    %784 = vmatpush.bf16.msra.mxu0 0
    %785 = vmatpush.bf16.msra.mxu0 0
    %786 = vmatpush.bf16.msra.mxu0 0
    %787 = vmatpush.bf16.msra.mxu0 0
    %788 = vmatpush.bf16.msra.mxu0 %v779
    %789 = vmatmul.bf16.gmra.mxu0 %v776
    %v790 = vpop.f32.mrf.mxu0
    %v791 = vadd.f32 %v771, %v790
    %v792 = vpop.f32.mrf.mxu0
    %v793 = vadd.f32 %v773, %v792
    %794 = vdwg.mxu0
    %795 = vrot.lane.b32.xlu0 %v558, 112
    %v796 = vpop.permute.xlu0 %795
    %797 = vrot.lane.b32.xlu0 %v559, 112
    %v798 = vpop.permute.xlu0 %797
    %v800 = vsel %vm560, %v796, 0
    %v803 = vsel %vm560, %v798, 0
    %805 = vmatpush.bf16.xpose.msra.mxu0 0
    %806 = vmatpush.bf16.xpose.msra.mxu0 0
    %807 = vmatpush.bf16.xpose.msra.mxu0 0
    %808 = vmatpush.bf16.xpose.msra.mxu0 0
    %809 = vmatpush.bf16.xpose.msra.mxu0 0
    %810 = vmatpush.bf16.xpose.msra.mxu0 0
    %811 = vmatpush.bf16.xpose.msra.mxu0 0
    %812 = vmatpush.bf16.xpose.msra.mxu0 %v803
    %813 = vmatmul.bf16.gmra.mxu0 %v800
    %v814 = vpop.f32.mrf.mxu0
    %v815 = vadd.f32 %v388, %v814
    %v816 = vpop.f32.mrf.mxu0
    %v817 = vadd.f32 %v389, %v816
    %818 = vdwg.mxu0
    %v819 = vsel %vm581, %v815, -inf
    %820 = vmax.xlane.f32.xlu0 %v819
    %v821 = vpop.xlane.xlu0 %820
    %v822 = vsel %vm585, %v817, -inf
    %823 = vmax.xlane.f32.xlu0 %v822
    %v824 = vpop.xlane.xlu0 %823
    %v825 = vsub.f32 %v815, %v821
    %v826 = vsub.f32 %v817, %v824
    %v827 = vmul.f32 %v825, 1.442695
    %v828 = vpow.pop %v827
    %v829 = vmul.f32 %v826, 1.442695
    %v830 = vpow.pop %v829
    %v831 = vsel %vm581, %v828, 0.0
    %832 = vadd.xlane.f32.xlu0 %v831
    %v833 = vpop.xlane.xlu0 %832
    %v834 = vsel %vm585, %v830, 0.0
    %835 = vadd.xlane.f32.xlu0 %v834
    %v836 = vpop.xlane.xlu0 %835
    %v837 = vrcp.pop %v833
    %v838 = vmul.f32 %v833, %v837
    %v839 = vsub.f32 1.0, %v838
    %v840 = vmul.f32 %v837, %v839
    %v841 = vadd.f32 %v837, %v840
    %vm842 = vweird.f32 %v833
    %vm843 = vweird.f32 %v837
    %vm844 = vmor %vm842, %vm843
    %v845 = vsel %vm844, %v837, %v841
    %v846 = vand.u32 2147483647, %v833
    %vm847 = vcmp.eq.f32.partialorder %v846, 8.507059e+37
    %v848 = vand.u32 %v833, 2147483648
    %v849 = vor.u32 1.1754944e-38, %v848
    %v850 = vsel %vm847, %v849, %v845
    %v851 = vmul.f32 %v828, %v850
    %v852 = vrcp.pop %v836
    %v853 = vmul.f32 %v836, %v852
    %v854 = vsub.f32 1.0, %v853
    %v855 = vmul.f32 %v852, %v854
    %v856 = vadd.f32 %v852, %v855
    %vm857 = vweird.f32 %v836
    %vm858 = vweird.f32 %v852
    %vm859 = vmor %vm857, %vm858
    %v860 = vsel %vm859, %v852, %v856
    %v861 = vand.u32 2147483647, %v836
    %vm862 = vcmp.eq.f32.partialorder %v861, 8.507059e+37
    %v863 = vand.u32 %v836, 2147483648
    %v864 = vor.u32 1.1754944e-38, %v863
    %v865 = vsel %vm862, %v864, %v860
    %v866 = vmul.f32 %v830, %v865
    %v867 = vpack.c.bf16 %v866, %v851
    %868 = vrot.lane.b32.xlu0 %v632, 112
    %v869 = vpop.permute.xlu0 %868
    %v871 = vsel %vm581, %v867, 0
    %v874 = vsel %vm636, %v869, 0
    %876 = vmatpush.bf16.msra.mxu0 0
    %877 = vmatpush.bf16.msra.mxu0 0
    %878 = vmatpush.bf16.msra.mxu0 0
    %879 = vmatpush.bf16.msra.mxu0 0
    %880 = vmatpush.bf16.msra.mxu0 0
    %881 = vmatpush.bf16.msra.mxu0 0
    %882 = vmatpush.bf16.msra.mxu0 0
    %883 = vmatpush.bf16.msra.mxu0 %v874
    %884 = vmatmul.bf16.gmra.mxu0 %v871
    %v885 = vpop.f32.mrf.mxu0
    %v886 = vadd.f32 0.0, %v885
    %v887 = vpop.f32.mrf.mxu0
    %v888 = vadd.f32 0.0, %v887
    %889 = vdwg.mxu0
    %v890 = vpack.c.bf16 %v888, %v886
    %v892 = vsel %vm560, %v890, 0
    %v895 = vsel %vm757, %v554, 0
    %897 = vmatpush.bf16.msra.mxu0 0
    %898 = vmatpush.bf16.msra.mxu0 0
    %899 = vmatpush.bf16.msra.mxu0 0
    %900 = vmatpush.bf16.msra.mxu0 0
    %901 = vmatpush.bf16.msra.mxu0 0
    %902 = vmatpush.bf16.msra.mxu0 0
    %903 = vmatpush.bf16.msra.mxu0 0
    %904 = vmatpush.bf16.msra.mxu0 %v895
    %905 = vmatmul.bf16.gmra.mxu0 %v892
    %v906 = vpop.f32.mrf.mxu0
    %v907 = vadd.f32 0.0, %v906
    %v908 = vpop.f32.mrf.mxu0
    %v909 = vadd.f32 0.0, %v908
    %910 = vdwg.mxu0
    %v911 = vadd.f32 %v791, %v907
    %v912 = vadd.f32 %v793, %v909
    %913 = vrot.lane.b32.xlu0 %v558, 104
    %v914 = vpop.permute.xlu0 %913
    %915 = vrot.lane.b32.xlu0 %v559, 104
    %v916 = vpop.permute.xlu0 %915
    %v918 = vsel %vm560, %v914, 0
    %v921 = vsel %vm560, %v916, 0
    %923 = vmatpush.bf16.xpose.msra.mxu0 0
    %924 = vmatpush.bf16.xpose.msra.mxu0 0
    %925 = vmatpush.bf16.xpose.msra.mxu0 0
    %926 = vmatpush.bf16.xpose.msra.mxu0 0
    %927 = vmatpush.bf16.xpose.msra.mxu0 0
    %928 = vmatpush.bf16.xpose.msra.mxu0 0
    %929 = vmatpush.bf16.xpose.msra.mxu0 0
    %930 = vmatpush.bf16.xpose.msra.mxu0 %v921
    %931 = vmatmul.bf16.gmra.mxu0 %v918
    %v932 = vpop.f32.mrf.mxu0
    %v933 = vadd.f32 %v388, %v932
    %v934 = vpop.f32.mrf.mxu0
    %v935 = vadd.f32 %v389, %v934
    %936 = vdwg.mxu0
    %v937 = vsel %vm581, %v933, -inf
    %938 = vmax.xlane.f32.xlu0 %v937
    %v939 = vpop.xlane.xlu0 %938
    %v940 = vsel %vm585, %v935, -inf
    %941 = vmax.xlane.f32.xlu0 %v940
    %v942 = vpop.xlane.xlu0 %941
    %v943 = vsub.f32 %v933, %v939
    %v944 = vsub.f32 %v935, %v942
    %v945 = vmul.f32 %v943, 1.442695
    %v946 = vpow.pop %v945
    %v947 = vmul.f32 %v944, 1.442695
    %v948 = vpow.pop %v947
    %v949 = vsel %vm581, %v946, 0.0
    %950 = vadd.xlane.f32.xlu0 %v949
    %v951 = vpop.xlane.xlu0 %950
    %v952 = vsel %vm585, %v948, 0.0
    %953 = vadd.xlane.f32.xlu0 %v952
    %v954 = vpop.xlane.xlu0 %953
    %v955 = vrcp.pop %v951
    %v956 = vmul.f32 %v951, %v955
    %v957 = vsub.f32 1.0, %v956
    %v958 = vmul.f32 %v955, %v957
    %v959 = vadd.f32 %v955, %v958
    %vm960 = vweird.f32 %v951
    %vm961 = vweird.f32 %v955
    %vm962 = vmor %vm960, %vm961
    %v963 = vsel %vm962, %v955, %v959
    %v964 = vand.u32 2147483647, %v951
    %vm965 = vcmp.eq.f32.partialorder %v964, 8.507059e+37
    %v966 = vand.u32 %v951, 2147483648
    %v967 = vor.u32 1.1754944e-38, %v966
    %v968 = vsel %vm965, %v967, %v963
    %v969 = vmul.f32 %v946, %v968
    %v970 = vrcp.pop %v954
    %v971 = vmul.f32 %v954, %v970
    %v972 = vsub.f32 1.0, %v971
    %v973 = vmul.f32 %v970, %v972
    %v974 = vadd.f32 %v970, %v973
    %vm975 = vweird.f32 %v954
    %vm976 = vweird.f32 %v970
    %vm977 = vmor %vm975, %vm976
    %v978 = vsel %vm977, %v970, %v974
    %v979 = vand.u32 2147483647, %v954
    %vm980 = vcmp.eq.f32.partialorder %v979, 8.507059e+37
    %v981 = vand.u32 %v954, 2147483648
    %v982 = vor.u32 1.1754944e-38, %v981
    %v983 = vsel %vm980, %v982, %v978
    %v984 = vmul.f32 %v948, %v983
    %v985 = vpack.c.bf16 %v984, %v969
    %986 = vrot.lane.b32.xlu0 %v632, 104
    %v987 = vpop.permute.xlu0 %986
    %v989 = vsel %vm581, %v985, 0
    %v992 = vsel %vm636, %v987, 0
    %994 = vmatpush.bf16.msra.mxu0 0
    %995 = vmatpush.bf16.msra.mxu0 0
    %996 = vmatpush.bf16.msra.mxu0 0
    %997 = vmatpush.bf16.msra.mxu0 0
    %998 = vmatpush.bf16.msra.mxu0 0
    %999 = vmatpush.bf16.msra.mxu0 0
    %1000 = vmatpush.bf16.msra.mxu0 0
    %1001 = vmatpush.bf16.msra.mxu0 %v992
    %1002 = vmatmul.bf16.gmra.mxu0 %v989
    %v1003 = vpop.f32.mrf.mxu0
    %v1004 = vadd.f32 0.0, %v1003
    %v1005 = vpop.f32.mrf.mxu0
    %v1006 = vadd.f32 0.0, %v1005
    %1007 = vdwg.mxu0
    %v1008 = vpack.c.bf16 %v1006, %v1004
    %v1010 = vsel %vm560, %v1008, 0
    %v1013 = vsel %vm757, %v555, 0
    %1015 = vmatpush.bf16.msra.mxu0 0
    %1016 = vmatpush.bf16.msra.mxu0 0
    %1017 = vmatpush.bf16.msra.mxu0 0
    %1018 = vmatpush.bf16.msra.mxu0 0
    %1019 = vmatpush.bf16.msra.mxu0 0
    %1020 = vmatpush.bf16.msra.mxu0 0
    %1021 = vmatpush.bf16.msra.mxu0 0
    %1022 = vmatpush.bf16.msra.mxu0 %v1013
    %1023 = vmatmul.bf16.gmra.mxu0 %v1010
    %v1024 = vpop.f32.mrf.mxu0
    %v1025 = vadd.f32 0.0, %v1024
    %v1026 = vpop.f32.mrf.mxu0
    %v1027 = vadd.f32 0.0, %v1026
    %1028 = vdwg.mxu0
    %v1029 = vadd.f32 %v911, %v1025
    %v1030 = vadd.f32 %v912, %v1027
    %v1031 = vld [vmem:[%s39] sm:$0x1]
    %v1033 = vperm.slane %v1031, 0
    %v1035 = vadd.f32 %v1029, %v1033
    %v1036 = vadd.f32 %v1030, %v1033
    %v1037 = vadd.f32 %v386, %v1035
    %v1038 = vadd.f32 %v387, %v1036
    %v1039 = vld [vmem:[%s41] sm:$0x1]
    %v1040 = vld [vmem:[%s43] sm:$0x1]
    %v1041 = vsel %vm325, %v1037, 0.0
    %1042 = vadd.xlane.f32.xlu0 %v1041
    %v1043 = vpop.xlane.xlu0 %1042
    %v1044 = vsel %vm329, %v1038, 0.0
    %1045 = vadd.xlane.f32.xlu0 %v1044
    %v1046 = vpop.xlane.xlu0 %1045
    %v1047 = vmul.f32 %v1043, %v339
    %v1048 = vmul.f32 %v1046, %v339
    %v1049 = vsub.f32 %v1037, %v1047
    %v1050 = vsub.f32 %v1038, %v1048
    %v1051 = vmul.f32 %v1049, %v1049
    %v1052 = vmul.f32 %v1050, %v1050
    %v1053 = vsel %vm325, %v1051, 0.0
    %1054 = vadd.xlane.f32.xlu0 %v1053
    %v1055 = vpop.xlane.xlu0 %1054
    %v1056 = vsel %vm329, %v1052, 0.0
    %1057 = vadd.xlane.f32.xlu0 %v1056
    %v1058 = vpop.xlane.xlu0 %1057
    %v1059 = vmul.f32 %v1055, %v339
    %v1060 = vmul.f32 %v1058, %v339
    %v1061 = vadd.f32 %v1059, 1e-05
    %v1062 = vadd.f32 %v1060, 1e-05
    %v1063 = vrsqrt.pop %v1061
    %v1064 = vmul.f32 %v1063, %v1061
    %v1065 = vmul.f32 %v1064, %v1063
    %v1066 = vmul.f32 0.5, %v1065
    %v1067 = vsub.f32 1.5, %v1066
    %v1068 = vmul.f32 %v1063, %v1067
    %vm1069 = vweird.f32 %v1061
    %vm1070 = vweird.f32 %v1063
    %vm1071 = vmor %vm1069, %vm1070
    %v1072 = vsel %vm1071, %v1063, %v1068
    %v1073 = vrsqrt.pop %v1062
    %v1074 = vmul.f32 %v1073, %v1062
    %v1075 = vmul.f32 %v1074, %v1073
    %v1076 = vmul.f32 0.5, %v1075
    %v1077 = vsub.f32 1.5, %v1076
    %v1078 = vmul.f32 %v1073, %v1077
    %vm1079 = vweird.f32 %v1062
    %vm1080 = vweird.f32 %v1073
    %vm1081 = vmor %vm1079, %vm1080
    %v1082 = vsel %vm1081, %v1073, %v1078
    %v1083 = vmul.f32 %v1049, %v1072
    %v1084 = vmul.f32 %v1050, %v1082
    %v1086 = vperm.slane %v1039, 0
    %v1088 = vmul.f32 %v1083, %v1086
    %v1089 = vmul.f32 %v1084, %v1086
    %v1091 = vperm.slane %v1040, 0
    %v1093 = vadd.f32 %v1088, %v1091
    %v1094 = vadd.f32 %v1089, %v1091
    %v1095 = vld [vmem:[%s45] sm:$0xf]
    %v1096 = vld [vmem:[%s45 + $0x4] sm:$0xf]
    %v1097 = vld [vmem:[%s45 + $0x8] sm:$0xf]
    %v1098 = vld [vmem:[%s45 + $0xc] sm:$0xf]
    %v1099 = vpack.c.bf16 %v1094, %v1093
    %v1100 = vld [vmem:[%s47] sm:$0x1]
    %v1102 = vperm.slane %v1100, 0
    %v1108 = vunpack.c.l.b16 %v1095
    %v1109 = vunpack.c.l.b16 %v1096
    %v1110 = vunpack.c.l.b16 %v1097
    %v1111 = vunpack.c.l.b16 %v1098
    %v1112 = vpack.c.b16 %v1109, %v1108
    %v1113 = vpack.c.b16 %v1111, %v1110
    %v1117 = vsel %vm325, %v1099, 0
    %1119 = vmatpush.bf16.msra.mxu0 0
    %1120 = vmatpush.bf16.msra.mxu0 0
    %1121 = vmatpush.bf16.msra.mxu0 0
    %1122 = vmatpush.bf16.msra.mxu0 0
    %1123 = vmatpush.bf16.msra.mxu0 0
    %1124 = vmatpush.bf16.msra.mxu0 0
    %1125 = vmatpush.bf16.msra.mxu0 %v1113
    %1126 = vmatpush.bf16.msra.mxu0 %v1112
    %1127 = vmatmul.bf16.gmra.mxu0 %v1117
    %v1128 = vpop.f32.mrf.mxu0
    %v1129 = vadd.f32 %v1102, %v1128
    %v1130 = vpop.f32.mrf.mxu0
    %v1131 = vadd.f32 %v1102, %v1130
    %1132 = vdwg.mxu0
    %v1133 = vmul.f32 %v1129, 1.702
    %v1134 = vmul.f32 %v1131, 1.702
    %v1135 = vxor.u32 %v1133, 2147483648
    %v1136 = vxor.u32 %v1134, 2147483648
    %v1137 = vmul.f32 %v1135, 1.442695
    %v1138 = vpow.pop %v1137
    %v1139 = vmul.f32 %v1136, 1.442695
    %v1140 = vpow.pop %v1139
    %v1141 = vadd.f32 %v1138, 1.0
    %v1142 = vadd.f32 %v1140, 1.0
    %v1143 = vrcp.pop %v1141
    %v1144 = vmul.f32 %v1141, %v1143
    %v1145 = vsub.f32 1.0, %v1144
    %v1146 = vmul.f32 %v1143, %v1145
    %v1147 = vadd.f32 %v1143, %v1146
    %vm1148 = vweird.f32 %v1141
    %vm1149 = vweird.f32 %v1143
    %vm1150 = vmor %vm1148, %vm1149
    %v1151 = vsel %vm1150, %v1143, %v1147
    %v1152 = vand.u32 2147483647, %v1141
    %vm1153 = vcmp.eq.f32.partialorder %v1152, 8.507059e+37
    %v1154 = vand.u32 %v1141, 2147483648
    %v1155 = vor.u32 1.1754944e-38, %v1154
    %v1156 = vsel %vm1153, %v1155, %v1151
    %v1157 = vmul.f32 1.0, %v1156
    %v1158 = vrcp.pop %v1142
    %v1159 = vmul.f32 %v1142, %v1158
    %v1160 = vsub.f32 1.0, %v1159
    %v1161 = vmul.f32 %v1158, %v1160
    %v1162 = vadd.f32 %v1158, %v1161
    %vm1163 = vweird.f32 %v1142
    %vm1164 = vweird.f32 %v1158
    %vm1165 = vmor %vm1163, %vm1164
    %v1166 = vsel %vm1165, %v1158, %v1162
    %v1167 = vand.u32 2147483647, %v1142
    %vm1168 = vcmp.eq.f32.partialorder %v1167, 8.507059e+37
    %v1169 = vand.u32 %v1142, 2147483648
    %v1170 = vor.u32 1.1754944e-38, %v1169
    %v1171 = vsel %vm1168, %v1170, %v1166
    %v1172 = vmul.f32 1.0, %v1171
    %v1173 = vmul.f32 %v1129, %v1157
    %v1174 = vmul.f32 %v1131, %v1172
    %v1175 = vld [vmem:[%s49] sm:$0xf]
    %v1176 = vld [vmem:[%s49 + $0x4] sm:$0xf]
    %v1177 = vld [vmem:[%s49 + $0x8] sm:$0xf]
    %v1178 = vld [vmem:[%s49 + $0xc] sm:$0xf]
    %v1179 = vld [vmem:[%s49 + $0x10] sm:$0xf]
    %v1180 = vld [vmem:[%s49 + $0x14] sm:$0xf]
    %v1181 = vld [vmem:[%s49 + $0x18] sm:$0xf]
    %v1182 = vld [vmem:[%s49 + $0x1c] sm:$0xf]
    %v1183 = vpack.c.bf16 %v1174, %v1173
    %v1192 = vunpack.c.l.b16 %v1175
    %v1193 = vunpack.c.l.b16 %v1176
    %v1194 = vunpack.c.l.b16 %v1177
    %v1195 = vunpack.c.l.b16 %v1178
    %v1196 = vunpack.c.l.b16 %v1179
    %v1197 = vunpack.c.l.b16 %v1180
    %v1198 = vunpack.c.l.b16 %v1181
    %v1199 = vunpack.c.l.b16 %v1182
    %v1200 = vpack.c.b16 %v1193, %v1192
    %v1201 = vpack.c.b16 %v1195, %v1194
    %v1202 = vpack.c.b16 %v1197, %v1196
    %v1203 = vpack.c.b16 %v1199, %v1198
    %v1209 = vsel %vm284, %v1183, 0
    %1211 = vmatpush.bf16.msra.mxu0 0
    %1212 = vmatpush.bf16.msra.mxu0 0
    %1213 = vmatpush.bf16.msra.mxu0 0
    %1214 = vmatpush.bf16.msra.mxu0 0
    %1215 = vmatpush.bf16.msra.mxu0 %v1203
    %1216 = vmatpush.bf16.msra.mxu0 %v1202
    %1217 = vmatpush.bf16.msra.mxu0 %v1201
    %1218 = vmatpush.bf16.msra.mxu0 %v1200
    %1219 = vmatmul.bf16.gmra.mxu0 %v1209
    %v1220 = vpop.f32.mrf.mxu0
    %v1221 = vadd.f32 0.0, %v1220
    %v1222 = vpop.f32.mrf.mxu0
    %v1223 = vadd.f32 0.0, %v1222
    %1224 = vdwg.mxu0
    %v1225 = vadd.f32 %v1037, %v1221
    %v1226 = vadd.f32 %v1038, %v1223
    %v1227 = vld [vmem:[%s51] sm:$0x1]
    %v1229 = vperm.slane %v1227, 0
    %v1231 = vadd.f32 %v1225, %v1229
    %v1232 = vadd.f32 %v1226, %v1229
    %s1233 = scalar_lea.vmem %s21, 1
    %v1234 = vld [vmem:[%s1233] sm:$0x1]
    %s1235 = scalar_lea.vmem %s23, 1
    %v1236 = vld [vmem:[%s1235] sm:$0x1]
    %v1237 = vsel %vm325, %v1231, 0.0
    %1238 = vadd.xlane.f32.xlu0 %v1237
    %v1239 = vpop.xlane.xlu0 %1238
    %v1240 = vsel %vm329, %v1232, 0.0
    %1241 = vadd.xlane.f32.xlu0 %v1240
    %v1242 = vpop.xlane.xlu0 %1241
    %v1243 = vmul.f32 %v1239, %v339
    %v1244 = vmul.f32 %v1242, %v339
    %v1245 = vsub.f32 %v1231, %v1243
    %v1246 = vsub.f32 %v1232, %v1244
    %v1247 = vmul.f32 %v1245, %v1245
    %v1248 = vmul.f32 %v1246, %v1246
    %v1249 = vsel %vm325, %v1247, 0.0
    %1250 = vadd.xlane.f32.xlu0 %v1249
    %v1251 = vpop.xlane.xlu0 %1250
    %v1252 = vsel %vm329, %v1248, 0.0
    %1253 = vadd.xlane.f32.xlu0 %v1252
    %v1254 = vpop.xlane.xlu0 %1253
    %v1255 = vmul.f32 %v1251, %v339
    %v1256 = vmul.f32 %v1254, %v339
    %v1257 = vadd.f32 %v1255, 1e-05
    %v1258 = vadd.f32 %v1256, 1e-05
    %v1259 = vrsqrt.pop %v1257
    %v1260 = vmul.f32 %v1259, %v1257
    %v1261 = vmul.f32 %v1260, %v1259
    %v1262 = vmul.f32 0.5, %v1261
    %v1263 = vsub.f32 1.5, %v1262
    %v1264 = vmul.f32 %v1259, %v1263
    %vm1265 = vweird.f32 %v1257
    %vm1266 = vweird.f32 %v1259
    %vm1267 = vmor %vm1265, %vm1266
    %v1268 = vsel %vm1267, %v1259, %v1264
    %v1269 = vrsqrt.pop %v1258
    %v1270 = vmul.f32 %v1269, %v1258
    %v1271 = vmul.f32 %v1270, %v1269
    %v1272 = vmul.f32 0.5, %v1271
    %v1273 = vsub.f32 1.5, %v1272
    %v1274 = vmul.f32 %v1269, %v1273
    %vm1275 = vweird.f32 %v1258
    %vm1276 = vweird.f32 %v1269
    %vm1277 = vmor %vm1275, %vm1276
    %v1278 = vsel %vm1277, %v1269, %v1274
    %v1279 = vmul.f32 %v1245, %v1268
    %v1280 = vmul.f32 %v1246, %v1278
    %v1282 = vperm.slane %v1234, 0
    %v1284 = vmul.f32 %v1279, %v1282
    %v1285 = vmul.f32 %v1280, %v1282
    %v1287 = vperm.slane %v1236, 0
    %v1289 = vadd.f32 %v1284, %v1287
    %v1290 = vadd.f32 %v1285, %v1287
    %s1291 = scalar_lea.vmem %s25, 16
    %v1292 = vld [vmem:[%s1291] sm:$0xf]
    %v1293 = vld [vmem:[%s1291 + $0x4] sm:$0xf]
    %v1294 = vld [vmem:[%s1291 + $0x8] sm:$0xf]
    %v1295 = vld [vmem:[%s1291 + $0xc] sm:$0xf]
    %v1296 = vpack.c.bf16 %v1290, %v1289
    %s1297 = scalar_lea.vmem %s27, 1
    %v1298 = vld [vmem:[%s1297] sm:$0x1]
    %v1300 = vperm.slane %v1298, 0
    %v1306 = vunpack.c.l.b16 %v1292
    %v1307 = vunpack.c.l.b16 %v1293
    %v1308 = vunpack.c.l.b16 %v1294
    %v1309 = vunpack.c.l.b16 %v1295
    %v1310 = vpack.c.b16 %v1307, %v1306
    %v1311 = vpack.c.b16 %v1309, %v1308
    %v1315 = vsel %vm325, %v1296, 0
    %1317 = vmatpush.bf16.msra.mxu0 0
    %1318 = vmatpush.bf16.msra.mxu0 0
    %1319 = vmatpush.bf16.msra.mxu0 0
    %1320 = vmatpush.bf16.msra.mxu0 0
    %1321 = vmatpush.bf16.msra.mxu0 0
    %1322 = vmatpush.bf16.msra.mxu0 0
    %1323 = vmatpush.bf16.msra.mxu0 %v1311
    %1324 = vmatpush.bf16.msra.mxu0 %v1310
    %1325 = vmatmul.bf16.gmra.mxu0 %v1315
    %v1326 = vpop.f32.mrf.mxu0
    %v1327 = vadd.f32 %v1300, %v1326
    %v1328 = vpop.f32.mrf.mxu0
    %v1329 = vadd.f32 %v1300, %v1328
    %1330 = vdwg.mxu0
    %s1331 = scalar_lea.vmem %s29, 16
    %v1332 = vld [vmem:[%s1331] sm:$0xf]
    %v1333 = vld [vmem:[%s1331 + $0x4] sm:$0xf]
    %v1334 = vld [vmem:[%s1331 + $0x8] sm:$0xf]
    %v1335 = vld [vmem:[%s1331 + $0xc] sm:$0xf]
    %s1336 = scalar_lea.vmem %s31, 1
    %v1337 = vld [vmem:[%s1336] sm:$0x1]
    %v1339 = vperm.slane %v1337, 0
    %v1345 = vunpack.c.l.b16 %v1332
    %v1346 = vunpack.c.l.b16 %v1333
    %v1347 = vunpack.c.l.b16 %v1334
    %v1348 = vunpack.c.l.b16 %v1335
    %v1349 = vpack.c.b16 %v1346, %v1345
    %v1350 = vpack.c.b16 %v1348, %v1347
    %1353 = vmatpush.bf16.msra.mxu0 0
    %1354 = vmatpush.bf16.msra.mxu0 0
    %1355 = vmatpush.bf16.msra.mxu0 0
    %1356 = vmatpush.bf16.msra.mxu0 0
    %1357 = vmatpush.bf16.msra.mxu0 0
    %1358 = vmatpush.bf16.msra.mxu0 0
    %1359 = vmatpush.bf16.msra.mxu0 %v1350
    %1360 = vmatpush.bf16.msra.mxu0 %v1349
    %1361 = vmatmul.bf16.gmra.mxu0 %v1315
    %v1362 = vpop.f32.mrf.mxu0
    %v1363 = vadd.f32 %v1339, %v1362
    %v1364 = vpop.f32.mrf.mxu0
    %v1365 = vadd.f32 %v1339, %v1364
    %1366 = vdwg.mxu0
    %s1367 = scalar_lea.vmem %s33, 16
    %v1368 = vld [vmem:[%s1367] sm:$0xf]
    %v1369 = vld [vmem:[%s1367 + $0x4] sm:$0xf]
    %v1370 = vld [vmem:[%s1367 + $0x8] sm:$0xf]
    %v1371 = vld [vmem:[%s1367 + $0xc] sm:$0xf]
    %s1372 = scalar_lea.vmem %s35, 1
    %v1373 = vld [vmem:[%s1372] sm:$0x1]
    %v1375 = vperm.slane %v1373, 0
    %v1381 = vunpack.c.l.b16 %v1368
    %v1382 = vunpack.c.l.b16 %v1369
    %v1383 = vunpack.c.l.b16 %v1370
    %v1384 = vunpack.c.l.b16 %v1371
    %v1385 = vpack.c.b16 %v1382, %v1381
    %v1386 = vpack.c.b16 %v1384, %v1383
    %1389 = vmatpush.bf16.msra.mxu0 0
    %1390 = vmatpush.bf16.msra.mxu0 0
    %1391 = vmatpush.bf16.msra.mxu0 0
    %1392 = vmatpush.bf16.msra.mxu0 0
    %1393 = vmatpush.bf16.msra.mxu0 0
    %1394 = vmatpush.bf16.msra.mxu0 0
    %1395 = vmatpush.bf16.msra.mxu0 %v1386
    %1396 = vmatpush.bf16.msra.mxu0 %v1385
    %1397 = vmatmul.bf16.gmra.mxu0 %v1315
    %v1398 = vpop.f32.mrf.mxu0
    %v1399 = vadd.f32 %v1375, %v1398
    %v1400 = vpop.f32.mrf.mxu0
    %v1401 = vadd.f32 %v1375, %v1400
    %1402 = vdwg.mxu0
    %s1403 = scalar_lea.vmem %s37, 16
    %v1404 = vld [vmem:[%s1403] sm:$0xf]
    %v1405 = vld [vmem:[%s1403 + $0x4] sm:$0xf]
    %v1406 = vld [vmem:[%s1403 + $0x8] sm:$0xf]
    %v1407 = vld [vmem:[%s1403 + $0xc] sm:$0xf]
    %v1408 = vmul.f32 %v1327, 0.35355338
    %v1409 = vmul.f32 %v1329, 0.35355338
    %v1410 = vpack.c.bf16 %v1409, %v1408
    %v1411 = vpack.c.bf16 %v1365, %v1363
    %v1413 = vsel %vm560, %v1410, 0
    %v1416 = vsel %vm560, %v1411, 0
    %1418 = vmatpush.bf16.xpose.msra.mxu0 0
    %1419 = vmatpush.bf16.xpose.msra.mxu0 0
    %1420 = vmatpush.bf16.xpose.msra.mxu0 0
    %1421 = vmatpush.bf16.xpose.msra.mxu0 0
    %1422 = vmatpush.bf16.xpose.msra.mxu0 0
    %1423 = vmatpush.bf16.xpose.msra.mxu0 0
    %1424 = vmatpush.bf16.xpose.msra.mxu0 0
    %1425 = vmatpush.bf16.xpose.msra.mxu0 %v1416
    %1426 = vmatmul.bf16.gmra.mxu0 %v1413
    %v1427 = vpop.f32.mrf.mxu0
    %v1428 = vadd.f32 %v388, %v1427
    %v1429 = vpop.f32.mrf.mxu0
    %v1430 = vadd.f32 %v389, %v1429
    %1431 = vdwg.mxu0
    %v1432 = vsel %vm581, %v1428, -inf
    %1433 = vmax.xlane.f32.xlu0 %v1432
    %v1434 = vpop.xlane.xlu0 %1433
    %v1435 = vsel %vm585, %v1430, -inf
    %1436 = vmax.xlane.f32.xlu0 %v1435
    %v1437 = vpop.xlane.xlu0 %1436
    %v1438 = vsub.f32 %v1428, %v1434
    %v1439 = vsub.f32 %v1430, %v1437
    %v1440 = vmul.f32 %v1438, 1.442695
    %v1441 = vpow.pop %v1440
    %v1442 = vmul.f32 %v1439, 1.442695
    %v1443 = vpow.pop %v1442
    %v1444 = vsel %vm581, %v1441, 0.0
    %1445 = vadd.xlane.f32.xlu0 %v1444
    %v1446 = vpop.xlane.xlu0 %1445
    %v1447 = vsel %vm585, %v1443, 0.0
    %1448 = vadd.xlane.f32.xlu0 %v1447
    %v1449 = vpop.xlane.xlu0 %1448
    %v1450 = vrcp.pop %v1446
    %v1451 = vmul.f32 %v1446, %v1450
    %v1452 = vsub.f32 1.0, %v1451
    %v1453 = vmul.f32 %v1450, %v1452
    %v1454 = vadd.f32 %v1450, %v1453
    %vm1455 = vweird.f32 %v1446
    %vm1456 = vweird.f32 %v1450
    %vm1457 = vmor %vm1455, %vm1456
    %v1458 = vsel %vm1457, %v1450, %v1454
    %v1459 = vand.u32 2147483647, %v1446
    %vm1460 = vcmp.eq.f32.partialorder %v1459, 8.507059e+37
    %v1461 = vand.u32 %v1446, 2147483648
    %v1462 = vor.u32 1.1754944e-38, %v1461
    %v1463 = vsel %vm1460, %v1462, %v1458
    %v1464 = vmul.f32 %v1441, %v1463
    %v1465 = vrcp.pop %v1449
    %v1466 = vmul.f32 %v1449, %v1465
    %v1467 = vsub.f32 1.0, %v1466
    %v1468 = vmul.f32 %v1465, %v1467
    %v1469 = vadd.f32 %v1465, %v1468
    %vm1470 = vweird.f32 %v1449
    %vm1471 = vweird.f32 %v1465
    %vm1472 = vmor %vm1470, %vm1471
    %v1473 = vsel %vm1472, %v1465, %v1469
    %v1474 = vand.u32 2147483647, %v1449
    %vm1475 = vcmp.eq.f32.partialorder %v1474, 8.507059e+37
    %v1476 = vand.u32 %v1449, 2147483648
    %v1477 = vor.u32 1.1754944e-38, %v1476
    %v1478 = vsel %vm1475, %v1477, %v1473
    %v1479 = vmul.f32 %v1443, %v1478
    %v1480 = vpack.c.bf16 %v1479, %v1464
    %v1481 = vpack.c.bf16 %v1401, %v1399
    %v1483 = vsel %vm581, %v1480, 0
    %v1486 = vsel %vm636, %v1481, 0
    %1488 = vmatpush.bf16.msra.mxu0 0
    %1489 = vmatpush.bf16.msra.mxu0 0
    %1490 = vmatpush.bf16.msra.mxu0 0
    %1491 = vmatpush.bf16.msra.mxu0 0
    %1492 = vmatpush.bf16.msra.mxu0 0
    %1493 = vmatpush.bf16.msra.mxu0 0
    %1494 = vmatpush.bf16.msra.mxu0 0
    %1495 = vmatpush.bf16.msra.mxu0 %v1486
    %1496 = vmatmul.bf16.gmra.mxu0 %v1483
    %v1497 = vpop.f32.mrf.mxu0
    %v1498 = vadd.f32 0.0, %v1497
    %v1499 = vpop.f32.mrf.mxu0
    %v1500 = vadd.f32 0.0, %v1499
    %1501 = vdwg.mxu0
    %v1502 = vpack.c.bf16 %v1500, %v1498
    %1504 = vrot.lane.b32.xlu0 %v1410, 120
    %v1505 = vpop.permute.xlu0 %1504
    %1507 = vrot.lane.b32.xlu0 %v1411, 120
    %v1508 = vpop.permute.xlu0 %1507
    %v1510 = vsel %vm560, %v1505, 0
    %v1513 = vsel %vm560, %v1508, 0
    %1515 = vmatpush.bf16.xpose.msra.mxu0 0
    %1516 = vmatpush.bf16.xpose.msra.mxu0 0
    %1517 = vmatpush.bf16.xpose.msra.mxu0 0
    %1518 = vmatpush.bf16.xpose.msra.mxu0 0
    %1519 = vmatpush.bf16.xpose.msra.mxu0 0
    %1520 = vmatpush.bf16.xpose.msra.mxu0 0
    %1521 = vmatpush.bf16.xpose.msra.mxu0 0
    %1522 = vmatpush.bf16.xpose.msra.mxu0 %v1513
    %1523 = vmatmul.bf16.gmra.mxu0 %v1510
    %v1524 = vpop.f32.mrf.mxu0
    %v1525 = vadd.f32 %v388, %v1524
    %v1526 = vpop.f32.mrf.mxu0
    %v1527 = vadd.f32 %v389, %v1526
    %1528 = vdwg.mxu0
    %v1529 = vsel %vm581, %v1525, -inf
    %1530 = vmax.xlane.f32.xlu0 %v1529
    %v1531 = vpop.xlane.xlu0 %1530
    %v1532 = vsel %vm585, %v1527, -inf
    %1533 = vmax.xlane.f32.xlu0 %v1532
    %v1534 = vpop.xlane.xlu0 %1533
    %v1535 = vsub.f32 %v1525, %v1531
    %v1536 = vsub.f32 %v1527, %v1534
    %v1537 = vmul.f32 %v1535, 1.442695
    %v1538 = vpow.pop %v1537
    %v1539 = vmul.f32 %v1536, 1.442695
    %v1540 = vpow.pop %v1539
    %v1541 = vsel %vm581, %v1538, 0.0
    %1542 = vadd.xlane.f32.xlu0 %v1541
    %v1543 = vpop.xlane.xlu0 %1542
    %v1544 = vsel %vm585, %v1540, 0.0
    %1545 = vadd.xlane.f32.xlu0 %v1544
    %v1546 = vpop.xlane.xlu0 %1545
    %v1547 = vrcp.pop %v1543
    %v1548 = vmul.f32 %v1543, %v1547
    %v1549 = vsub.f32 1.0, %v1548
    %v1550 = vmul.f32 %v1547, %v1549
    %v1551 = vadd.f32 %v1547, %v1550
    %vm1552 = vweird.f32 %v1543
    %vm1553 = vweird.f32 %v1547
    %vm1554 = vmor %vm1552, %vm1553
    %v1555 = vsel %vm1554, %v1547, %v1551
    %v1556 = vand.u32 2147483647, %v1543
    %vm1557 = vcmp.eq.f32.partialorder %v1556, 8.507059e+37
    %v1558 = vand.u32 %v1543, 2147483648
    %v1559 = vor.u32 1.1754944e-38, %v1558
    %v1560 = vsel %vm1557, %v1559, %v1555
    %v1561 = vmul.f32 %v1538, %v1560
    %v1562 = vrcp.pop %v1546
    %v1563 = vmul.f32 %v1546, %v1562
    %v1564 = vsub.f32 1.0, %v1563
    %v1565 = vmul.f32 %v1562, %v1564
    %v1566 = vadd.f32 %v1562, %v1565
    %vm1567 = vweird.f32 %v1546
    %vm1568 = vweird.f32 %v1562
    %vm1569 = vmor %vm1567, %vm1568
    %v1570 = vsel %vm1569, %v1562, %v1566
    %v1571 = vand.u32 2147483647, %v1546
    %vm1572 = vcmp.eq.f32.partialorder %v1571, 8.507059e+37
    %v1573 = vand.u32 %v1546, 2147483648
    %v1574 = vor.u32 1.1754944e-38, %v1573
    %v1575 = vsel %vm1572, %v1574, %v1570
    %v1576 = vmul.f32 %v1540, %v1575
    %v1577 = vpack.c.bf16 %v1576, %v1561
    %1579 = vrot.lane.b32.xlu0 %v1481, 120
    %v1580 = vpop.permute.xlu0 %1579
    %v1582 = vsel %vm581, %v1577, 0
    %v1585 = vsel %vm636, %v1580, 0
    %1587 = vmatpush.bf16.msra.mxu0 0
    %1588 = vmatpush.bf16.msra.mxu0 0
    %1589 = vmatpush.bf16.msra.mxu0 0
    %1590 = vmatpush.bf16.msra.mxu0 0
    %1591 = vmatpush.bf16.msra.mxu0 0
    %1592 = vmatpush.bf16.msra.mxu0 0
    %1593 = vmatpush.bf16.msra.mxu0 0
    %1594 = vmatpush.bf16.msra.mxu0 %v1585
    %1595 = vmatmul.bf16.gmra.mxu0 %v1582
    %v1596 = vpop.f32.mrf.mxu0
    %v1597 = vadd.f32 0.0, %v1596
    %v1598 = vpop.f32.mrf.mxu0
    %v1599 = vadd.f32 0.0, %v1598
    %1600 = vdwg.mxu0
    %v1601 = vpack.c.bf16 %v1599, %v1597
    %v1603 = vsel %vm560, %v1601, 0
    %v1606 = vsel %vm757, %v1405, 0
    %1608 = vmatpush.bf16.msra.mxu0 0
    %1609 = vmatpush.bf16.msra.mxu0 0
    %1610 = vmatpush.bf16.msra.mxu0 0
    %1611 = vmatpush.bf16.msra.mxu0 0
    %1612 = vmatpush.bf16.msra.mxu0 0
    %1613 = vmatpush.bf16.msra.mxu0 0
    %1614 = vmatpush.bf16.msra.mxu0 0
    %1615 = vmatpush.bf16.msra.mxu0 %v1606
    %1616 = vmatmul.bf16.gmra.mxu0 %v1603
    %v1617 = vpop.f32.mrf.mxu0
    %v1618 = vadd.f32 0.0, %v1617
    %v1619 = vpop.f32.mrf.mxu0
    %v1620 = vadd.f32 0.0, %v1619
    %1621 = vdwg.mxu0
    %v1623 = vsel %vm560, %v1502, 0
    %v1626 = vsel %vm757, %v1404, 0
    %1628 = vmatpush.bf16.msra.mxu0 0
    %1629 = vmatpush.bf16.msra.mxu0 0
    %1630 = vmatpush.bf16.msra.mxu0 0
    %1631 = vmatpush.bf16.msra.mxu0 0
    %1632 = vmatpush.bf16.msra.mxu0 0
    %1633 = vmatpush.bf16.msra.mxu0 0
    %1634 = vmatpush.bf16.msra.mxu0 0
    %1635 = vmatpush.bf16.msra.mxu0 %v1626
    %1636 = vmatmul.bf16.gmra.mxu0 %v1623
    %v1637 = vpop.f32.mrf.mxu0
    %v1638 = vadd.f32 %v1618, %v1637
    %v1639 = vpop.f32.mrf.mxu0
    %v1640 = vadd.f32 %v1620, %v1639
    %1641 = vdwg.mxu0
    %1642 = vrot.lane.b32.xlu0 %v1410, 112
    %v1643 = vpop.permute.xlu0 %1642
    %1644 = vrot.lane.b32.xlu0 %v1411, 112
    %v1645 = vpop.permute.xlu0 %1644
    %v1647 = vsel %vm560, %v1643, 0
    %v1650 = vsel %vm560, %v1645, 0
    %1652 = vmatpush.bf16.xpose.msra.mxu0 0
    %1653 = vmatpush.bf16.xpose.msra.mxu0 0
    %1654 = vmatpush.bf16.xpose.msra.mxu0 0
    %1655 = vmatpush.bf16.xpose.msra.mxu0 0
    %1656 = vmatpush.bf16.xpose.msra.mxu0 0
    %1657 = vmatpush.bf16.xpose.msra.mxu0 0
    %1658 = vmatpush.bf16.xpose.msra.mxu0 0
    %1659 = vmatpush.bf16.xpose.msra.mxu0 %v1650
    %1660 = vmatmul.bf16.gmra.mxu0 %v1647
    %v1661 = vpop.f32.mrf.mxu0
    %v1662 = vadd.f32 %v388, %v1661
    %v1663 = vpop.f32.mrf.mxu0
    %v1664 = vadd.f32 %v389, %v1663
    %1665 = vdwg.mxu0
    %v1666 = vsel %vm581, %v1662, -inf
    %1667 = vmax.xlane.f32.xlu0 %v1666
    %v1668 = vpop.xlane.xlu0 %1667
    %v1669 = vsel %vm585, %v1664, -inf
    %1670 = vmax.xlane.f32.xlu0 %v1669
    %v1671 = vpop.xlane.xlu0 %1670
    %v1672 = vsub.f32 %v1662, %v1668
    %v1673 = vsub.f32 %v1664, %v1671
    %v1674 = vmul.f32 %v1672, 1.442695
    %v1675 = vpow.pop %v1674
    %v1676 = vmul.f32 %v1673, 1.442695
    %v1677 = vpow.pop %v1676
    %v1678 = vsel %vm581, %v1675, 0.0
    %1679 = vadd.xlane.f32.xlu0 %v1678
    %v1680 = vpop.xlane.xlu0 %1679
    %v1681 = vsel %vm585, %v1677, 0.0
    %1682 = vadd.xlane.f32.xlu0 %v1681
    %v1683 = vpop.xlane.xlu0 %1682
    %v1684 = vrcp.pop %v1680
    %v1685 = vmul.f32 %v1680, %v1684
    %v1686 = vsub.f32 1.0, %v1685
    %v1687 = vmul.f32 %v1684, %v1686
    %v1688 = vadd.f32 %v1684, %v1687
    %vm1689 = vweird.f32 %v1680
    %vm1690 = vweird.f32 %v1684
    %vm1691 = vmor %vm1689, %vm1690
    %v1692 = vsel %vm1691, %v1684, %v1688
    %v1693 = vand.u32 2147483647, %v1680
    %vm1694 = vcmp.eq.f32.partialorder %v1693, 8.507059e+37
    %v1695 = vand.u32 %v1680, 2147483648
    %v1696 = vor.u32 1.1754944e-38, %v1695
    %v1697 = vsel %vm1694, %v1696, %v1692
    %v1698 = vmul.f32 %v1675, %v1697
    %v1699 = vrcp.pop %v1683
    %v1700 = vmul.f32 %v1683, %v1699
    %v1701 = vsub.f32 1.0, %v1700
    %v1702 = vmul.f32 %v1699, %v1701
    %v1703 = vadd.f32 %v1699, %v1702
    %vm1704 = vweird.f32 %v1683
    %vm1705 = vweird.f32 %v1699
    %vm1706 = vmor %vm1704, %vm1705
    %v1707 = vsel %vm1706, %v1699, %v1703
    %v1708 = vand.u32 2147483647, %v1683
    %vm1709 = vcmp.eq.f32.partialorder %v1708, 8.507059e+37
    %v1710 = vand.u32 %v1683, 2147483648
    %v1711 = vor.u32 1.1754944e-38, %v1710
    %v1712 = vsel %vm1709, %v1711, %v1707
    %v1713 = vmul.f32 %v1677, %v1712
    %v1714 = vpack.c.bf16 %v1713, %v1698
    %1715 = vrot.lane.b32.xlu0 %v1481, 112
    %v1716 = vpop.permute.xlu0 %1715
    %v1718 = vsel %vm581, %v1714, 0
    %v1721 = vsel %vm636, %v1716, 0
    %1723 = vmatpush.bf16.msra.mxu0 0
    %1724 = vmatpush.bf16.msra.mxu0 0
    %1725 = vmatpush.bf16.msra.mxu0 0
    %1726 = vmatpush.bf16.msra.mxu0 0
    %1727 = vmatpush.bf16.msra.mxu0 0
    %1728 = vmatpush.bf16.msra.mxu0 0
    %1729 = vmatpush.bf16.msra.mxu0 0
    %1730 = vmatpush.bf16.msra.mxu0 %v1721
    %1731 = vmatmul.bf16.gmra.mxu0 %v1718
    %v1732 = vpop.f32.mrf.mxu0
    %v1733 = vadd.f32 0.0, %v1732
    %v1734 = vpop.f32.mrf.mxu0
    %v1735 = vadd.f32 0.0, %v1734
    %1736 = vdwg.mxu0
    %v1737 = vpack.c.bf16 %v1735, %v1733
    %v1739 = vsel %vm560, %v1737, 0
    %v1742 = vsel %vm757, %v1406, 0
    %1744 = vmatpush.bf16.msra.mxu0 0
    %1745 = vmatpush.bf16.msra.mxu0 0
    %1746 = vmatpush.bf16.msra.mxu0 0
    %1747 = vmatpush.bf16.msra.mxu0 0
    %1748 = vmatpush.bf16.msra.mxu0 0
    %1749 = vmatpush.bf16.msra.mxu0 0
    %1750 = vmatpush.bf16.msra.mxu0 0
    %1751 = vmatpush.bf16.msra.mxu0 %v1742
    %1752 = vmatmul.bf16.gmra.mxu0 %v1739
    %v1753 = vpop.f32.mrf.mxu0
    %v1754 = vadd.f32 0.0, %v1753
    %v1755 = vpop.f32.mrf.mxu0
    %v1756 = vadd.f32 0.0, %v1755
    %1757 = vdwg.mxu0
    %v1758 = vadd.f32 %v1638, %v1754
    %v1759 = vadd.f32 %v1640, %v1756
    %1760 = vrot.lane.b32.xlu0 %v1410, 104
    %v1761 = vpop.permute.xlu0 %1760
    %1762 = vrot.lane.b32.xlu0 %v1411, 104
    %v1763 = vpop.permute.xlu0 %1762
    %v1765 = vsel %vm560, %v1761, 0
    %v1768 = vsel %vm560, %v1763, 0
    %1770 = vmatpush.bf16.xpose.msra.mxu0 0
    %1771 = vmatpush.bf16.xpose.msra.mxu0 0
    %1772 = vmatpush.bf16.xpose.msra.mxu0 0
    %1773 = vmatpush.bf16.xpose.msra.mxu0 0
    %1774 = vmatpush.bf16.xpose.msra.mxu0 0
    %1775 = vmatpush.bf16.xpose.msra.mxu0 0
    %1776 = vmatpush.bf16.xpose.msra.mxu0 0
    %1777 = vmatpush.bf16.xpose.msra.mxu0 %v1768
    %1778 = vmatmul.bf16.gmra.mxu0 %v1765
    %v1779 = vpop.f32.mrf.mxu0
    %v1780 = vadd.f32 %v388, %v1779
    %v1781 = vpop.f32.mrf.mxu0
    %v1782 = vadd.f32 %v389, %v1781
    %1783 = vdwg.mxu0
    %v1784 = vsel %vm581, %v1780, -inf
    %1785 = vmax.xlane.f32.xlu0 %v1784
    %v1786 = vpop.xlane.xlu0 %1785
    %v1787 = vsel %vm585, %v1782, -inf
    %1788 = vmax.xlane.f32.xlu0 %v1787
    %v1789 = vpop.xlane.xlu0 %1788
    %v1790 = vsub.f32 %v1780, %v1786
    %v1791 = vsub.f32 %v1782, %v1789
    %v1792 = vmul.f32 %v1790, 1.442695
    %v1793 = vpow.pop %v1792
    %v1794 = vmul.f32 %v1791, 1.442695
    %v1795 = vpow.pop %v1794
    %v1796 = vsel %vm581, %v1793, 0.0
    %1797 = vadd.xlane.f32.xlu0 %v1796
    %v1798 = vpop.xlane.xlu0 %1797
    %v1799 = vsel %vm585, %v1795, 0.0
    %1800 = vadd.xlane.f32.xlu0 %v1799
    %v1801 = vpop.xlane.xlu0 %1800
    %v1802 = vrcp.pop %v1798
    %v1803 = vmul.f32 %v1798, %v1802
    %v1804 = vsub.f32 1.0, %v1803
    %v1805 = vmul.f32 %v1802, %v1804
    %v1806 = vadd.f32 %v1802, %v1805
    %vm1807 = vweird.f32 %v1798
    %vm1808 = vweird.f32 %v1802
    %vm1809 = vmor %vm1807, %vm1808
    %v1810 = vsel %vm1809, %v1802, %v1806
    %v1811 = vand.u32 2147483647, %v1798
    %vm1812 = vcmp.eq.f32.partialorder %v1811, 8.507059e+37
    %v1813 = vand.u32 %v1798, 2147483648
    %v1814 = vor.u32 1.1754944e-38, %v1813
    %v1815 = vsel %vm1812, %v1814, %v1810
    %v1816 = vmul.f32 %v1793, %v1815
    %v1817 = vrcp.pop %v1801
    %v1818 = vmul.f32 %v1801, %v1817
    %v1819 = vsub.f32 1.0, %v1818
    %v1820 = vmul.f32 %v1817, %v1819
    %v1821 = vadd.f32 %v1817, %v1820
    %vm1822 = vweird.f32 %v1801
    %vm1823 = vweird.f32 %v1817
    %vm1824 = vmor %vm1822, %vm1823
    %v1825 = vsel %vm1824, %v1817, %v1821
    %v1826 = vand.u32 2147483647, %v1801
    %vm1827 = vcmp.eq.f32.partialorder %v1826, 8.507059e+37
    %v1828 = vand.u32 %v1801, 2147483648
    %v1829 = vor.u32 1.1754944e-38, %v1828
    %v1830 = vsel %vm1827, %v1829, %v1825
    %v1831 = vmul.f32 %v1795, %v1830
    %v1832 = vpack.c.bf16 %v1831, %v1816
    %1833 = vrot.lane.b32.xlu0 %v1481, 104
    %v1834 = vpop.permute.xlu0 %1833
    %v1836 = vsel %vm581, %v1832, 0
    %v1839 = vsel %vm636, %v1834, 0
    %1841 = vmatpush.bf16.msra.mxu0 0
    %1842 = vmatpush.bf16.msra.mxu0 0
    %1843 = vmatpush.bf16.msra.mxu0 0
    %1844 = vmatpush.bf16.msra.mxu0 0
    %1845 = vmatpush.bf16.msra.mxu0 0
    %1846 = vmatpush.bf16.msra.mxu0 0
    %1847 = vmatpush.bf16.msra.mxu0 0
    %1848 = vmatpush.bf16.msra.mxu0 %v1839
    %1849 = vmatmul.bf16.gmra.mxu0 %v1836
    %v1850 = vpop.f32.mrf.mxu0
    %v1851 = vadd.f32 0.0, %v1850
    %v1852 = vpop.f32.mrf.mxu0
    %v1853 = vadd.f32 0.0, %v1852
    %1854 = vdwg.mxu0
    %v1855 = vpack.c.bf16 %v1853, %v1851
    %v1857 = vsel %vm560, %v1855, 0
    %v1860 = vsel %vm757, %v1407, 0
    %1862 = vmatpush.bf16.msra.mxu0 0
    %1863 = vmatpush.bf16.msra.mxu0 0
    %1864 = vmatpush.bf16.msra.mxu0 0
    %1865 = vmatpush.bf16.msra.mxu0 0
    %1866 = vmatpush.bf16.msra.mxu0 0
    %1867 = vmatpush.bf16.msra.mxu0 0
    %1868 = vmatpush.bf16.msra.mxu0 0
    %1869 = vmatpush.bf16.msra.mxu0 %v1860
    %1870 = vmatmul.bf16.gmra.mxu0 %v1857
    %v1871 = vpop.f32.mrf.mxu0
    %v1872 = vadd.f32 0.0, %v1871
    %v1873 = vpop.f32.mrf.mxu0
    %v1874 = vadd.f32 0.0, %v1873
    %1875 = vdwg.mxu0
    %v1876 = vadd.f32 %v1758, %v1872
    %v1877 = vadd.f32 %v1759, %v1874
    %s1878 = scalar_lea.vmem %s39, 1
    %v1879 = vld [vmem:[%s1878] sm:$0x1]
    %v1881 = vperm.slane %v1879, 0
    %v1883 = vadd.f32 %v1876, %v1881
    %v1884 = vadd.f32 %v1877, %v1881
    %v1885 = vadd.f32 %v1231, %v1883
    %v1886 = vadd.f32 %v1232, %v1884
    %s1887 = scalar_lea.vmem %s41, 1
    %v1888 = vld [vmem:[%s1887] sm:$0x1]
    %s1889 = scalar_lea.vmem %s43, 1
    %v1890 = vld [vmem:[%s1889] sm:$0x1]
    %v1891 = vsel %vm325, %v1885, 0.0
    %1892 = vadd.xlane.f32.xlu0 %v1891
    %v1893 = vpop.xlane.xlu0 %1892
    %v1894 = vsel %vm329, %v1886, 0.0
    %1895 = vadd.xlane.f32.xlu0 %v1894
    %v1896 = vpop.xlane.xlu0 %1895
    %v1897 = vmul.f32 %v1893, %v339
    %v1898 = vmul.f32 %v1896, %v339
    %v1899 = vsub.f32 %v1885, %v1897
    %v1900 = vsub.f32 %v1886, %v1898
    %v1901 = vmul.f32 %v1899, %v1899
    %v1902 = vmul.f32 %v1900, %v1900
    %v1903 = vsel %vm325, %v1901, 0.0
    %1904 = vadd.xlane.f32.xlu0 %v1903
    %v1905 = vpop.xlane.xlu0 %1904
    %v1906 = vsel %vm329, %v1902, 0.0
    %1907 = vadd.xlane.f32.xlu0 %v1906
    %v1908 = vpop.xlane.xlu0 %1907
    %v1909 = vmul.f32 %v1905, %v339
    %v1910 = vmul.f32 %v1908, %v339
    %v1911 = vadd.f32 %v1909, 1e-05
    %v1912 = vadd.f32 %v1910, 1e-05
    %v1913 = vrsqrt.pop %v1911
    %v1914 = vmul.f32 %v1913, %v1911
    %v1915 = vmul.f32 %v1914, %v1913
    %v1916 = vmul.f32 0.5, %v1915
    %v1917 = vsub.f32 1.5, %v1916
    %v1918 = vmul.f32 %v1913, %v1917
    %vm1919 = vweird.f32 %v1911
    %vm1920 = vweird.f32 %v1913
    %vm1921 = vmor %vm1919, %vm1920
    %v1922 = vsel %vm1921, %v1913, %v1918
    %v1923 = vrsqrt.pop %v1912
    %v1924 = vmul.f32 %v1923, %v1912
    %v1925 = vmul.f32 %v1924, %v1923
    %v1926 = vmul.f32 0.5, %v1925
    %v1927 = vsub.f32 1.5, %v1926
    %v1928 = vmul.f32 %v1923, %v1927
    %vm1929 = vweird.f32 %v1912
    %vm1930 = vweird.f32 %v1923
    %vm1931 = vmor %vm1929, %vm1930
    %v1932 = vsel %vm1931, %v1923, %v1928
    %v1933 = vmul.f32 %v1899, %v1922
    %v1934 = vmul.f32 %v1900, %v1932
    %v1936 = vperm.slane %v1888, 0
    %v1938 = vmul.f32 %v1933, %v1936
    %v1939 = vmul.f32 %v1934, %v1936
    %v1941 = vperm.slane %v1890, 0
    %v1943 = vadd.f32 %v1938, %v1941
    %v1944 = vadd.f32 %v1939, %v1941
    %s1945 = scalar_lea.vmem %s45, 16
    %v1946 = vld [vmem:[%s1945] sm:$0xf]
    %v1947 = vld [vmem:[%s1945 + $0x4] sm:$0xf]
    %v1948 = vld [vmem:[%s1945 + $0x8] sm:$0xf]
    %v1949 = vld [vmem:[%s1945 + $0xc] sm:$0xf]
    %v1950 = vpack.c.bf16 %v1944, %v1943
    %s1951 = scalar_lea.vmem %s47, 1
    %v1952 = vld [vmem:[%s1951] sm:$0x1]
    %v1954 = vperm.slane %v1952, 0
    %v1960 = vunpack.c.l.b16 %v1946
    %v1961 = vunpack.c.l.b16 %v1947
    %v1962 = vunpack.c.l.b16 %v1948
    %v1963 = vunpack.c.l.b16 %v1949
    %v1964 = vpack.c.b16 %v1961, %v1960
    %v1965 = vpack.c.b16 %v1963, %v1962
    %v1969 = vsel %vm325, %v1950, 0
    %1971 = vmatpush.bf16.msra.mxu0 0
    %1972 = vmatpush.bf16.msra.mxu0 0
    %1973 = vmatpush.bf16.msra.mxu0 0
    %1974 = vmatpush.bf16.msra.mxu0 0
    %1975 = vmatpush.bf16.msra.mxu0 0
    %1976 = vmatpush.bf16.msra.mxu0 0
    %1977 = vmatpush.bf16.msra.mxu0 %v1965
    %1978 = vmatpush.bf16.msra.mxu0 %v1964
    %1979 = vmatmul.bf16.gmra.mxu0 %v1969
    %v1980 = vpop.f32.mrf.mxu0
    %v1981 = vadd.f32 %v1954, %v1980
    %v1982 = vpop.f32.mrf.mxu0
    %v1983 = vadd.f32 %v1954, %v1982
    %1984 = vdwg.mxu0
    %v1985 = vmul.f32 %v1981, 1.702
    %v1986 = vmul.f32 %v1983, 1.702
    %v1987 = vxor.u32 %v1985, 2147483648
    %v1988 = vxor.u32 %v1986, 2147483648
    %v1989 = vmul.f32 %v1987, 1.442695
    %v1990 = vpow.pop %v1989
    %v1991 = vmul.f32 %v1988, 1.442695
    %v1992 = vpow.pop %v1991
    %v1993 = vadd.f32 %v1990, 1.0
    %v1994 = vadd.f32 %v1992, 1.0
    %v1995 = vrcp.pop %v1993
    %v1996 = vmul.f32 %v1993, %v1995
    %v1997 = vsub.f32 1.0, %v1996
    %v1998 = vmul.f32 %v1995, %v1997
    %v1999 = vadd.f32 %v1995, %v1998
    %vm2000 = vweird.f32 %v1993
    %vm2001 = vweird.f32 %v1995
    %vm2002 = vmor %vm2000, %vm2001
    %v2003 = vsel %vm2002, %v1995, %v1999
    %v2004 = vand.u32 2147483647, %v1993
    %vm2005 = vcmp.eq.f32.partialorder %v2004, 8.507059e+37
    %v2006 = vand.u32 %v1993, 2147483648
    %v2007 = vor.u32 1.1754944e-38, %v2006
    %v2008 = vsel %vm2005, %v2007, %v2003
    %v2009 = vmul.f32 1.0, %v2008
    %v2010 = vrcp.pop %v1994
    %v2011 = vmul.f32 %v1994, %v2010
    %v2012 = vsub.f32 1.0, %v2011
    %v2013 = vmul.f32 %v2010, %v2012
    %v2014 = vadd.f32 %v2010, %v2013
    %vm2015 = vweird.f32 %v1994
    %vm2016 = vweird.f32 %v2010
    %vm2017 = vmor %vm2015, %vm2016
    %v2018 = vsel %vm2017, %v2010, %v2014
    %v2019 = vand.u32 2147483647, %v1994
    %vm2020 = vcmp.eq.f32.partialorder %v2019, 8.507059e+37
    %v2021 = vand.u32 %v1994, 2147483648
    %v2022 = vor.u32 1.1754944e-38, %v2021
    %v2023 = vsel %vm2020, %v2022, %v2018
    %v2024 = vmul.f32 1.0, %v2023
    %v2025 = vmul.f32 %v1981, %v2009
    %v2026 = vmul.f32 %v1983, %v2024
    %s2027 = scalar_lea.vmem %s49, 32
    %v2028 = vld [vmem:[%s2027] sm:$0xf]
    %v2029 = vld [vmem:[%s2027 + $0x4] sm:$0xf]
    %v2030 = vld [vmem:[%s2027 + $0x8] sm:$0xf]
    %v2031 = vld [vmem:[%s2027 + $0xc] sm:$0xf]
    %v2032 = vld [vmem:[%s2027 + $0x10] sm:$0xf]
    %v2033 = vld [vmem:[%s2027 + $0x14] sm:$0xf]
    %v2034 = vld [vmem:[%s2027 + $0x18] sm:$0xf]
    %v2035 = vld [vmem:[%s2027 + $0x1c] sm:$0xf]
    %v2036 = vpack.c.bf16 %v2026, %v2025
    %v2045 = vunpack.c.l.b16 %v2028
    %v2046 = vunpack.c.l.b16 %v2029
    %v2047 = vunpack.c.l.b16 %v2030
    %v2048 = vunpack.c.l.b16 %v2031
    %v2049 = vunpack.c.l.b16 %v2032
    %v2050 = vunpack.c.l.b16 %v2033
    %v2051 = vunpack.c.l.b16 %v2034
    %v2052 = vunpack.c.l.b16 %v2035
    %v2053 = vpack.c.b16 %v2046, %v2045
    %v2054 = vpack.c.b16 %v2048, %v2047
    %v2055 = vpack.c.b16 %v2050, %v2049
    %v2056 = vpack.c.b16 %v2052, %v2051
    %v2062 = vsel %vm284, %v2036, 0
    %2064 = vmatpush.bf16.msra.mxu0 0
    %2065 = vmatpush.bf16.msra.mxu0 0
    %2066 = vmatpush.bf16.msra.mxu0 0
    %2067 = vmatpush.bf16.msra.mxu0 0
    %2068 = vmatpush.bf16.msra.mxu0 %v2056
    %2069 = vmatpush.bf16.msra.mxu0 %v2055
    %2070 = vmatpush.bf16.msra.mxu0 %v2054
    %2071 = vmatpush.bf16.msra.mxu0 %v2053
    %2072 = vmatmul.bf16.gmra.mxu0 %v2062
    %v2073 = vpop.f32.mrf.mxu0
    %v2074 = vadd.f32 0.0, %v2073
    %v2075 = vpop.f32.mrf.mxu0
    %v2076 = vadd.f32 0.0, %v2075
    %2077 = vdwg.mxu0
    %v2078 = vadd.f32 %v1885, %v2074
    %v2079 = vadd.f32 %v1886, %v2076
    %s2080 = scalar_lea.vmem %s51, 1
    %v2081 = vld [vmem:[%s2080] sm:$0x1]
    %v2083 = vperm.slane %v2081, 0
    %v2085 = vadd.f32 %v2078, %v2083
    %v2086 = vadd.f32 %v2079, %v2083
    %v2087 = vld [vmem:[%s53] sm:$0xf]
    %v2088 = vld [vmem:[%s53 + $0x4] sm:$0xf]
    %v2089 = vld [vmem:[%s53 + $0x8] sm:$0xf]
    %v2090 = vld [vmem:[%s53 + $0xc] sm:$0xf]
    %v2091 = vpack.c.bf16 %v2086, %v2085
    %v2092 = vld [vmem:[%s55] sm:$0x1]
    %v2094 = vperm.slane %v2092, 0
    %v2097 = vrot.slane %v2091, 1
    %v2102 = vunpack.c.l.b16 %v2087
    %v2103 = vunpack.c.l.b16 %v2088
    %v2104 = vunpack.c.l.b16 %v2089
    %v2105 = vunpack.c.l.b16 %v2090
    %v2106 = vpack.c.b16 %v2103, %v2102
    %v2107 = vpack.c.b16 %v2105, %v2104
    %v2111 = vsel %vm325, %v2097, 0
    %2113 = vmatpush.bf16.msra.mxu0 0
    %2114 = vmatpush.bf16.msra.mxu0 0
    %2115 = vmatpush.bf16.msra.mxu0 0
    %2116 = vmatpush.bf16.msra.mxu0 0
    %2117 = vmatpush.bf16.msra.mxu0 0
    %2118 = vmatpush.bf16.msra.mxu0 0
    %2119 = vmatpush.bf16.msra.mxu0 %v2107
    %2120 = vmatpush.bf16.msra.mxu0 %v2106
    %2121 = vmatmul.bf16.gmra.mxu0 %v2111
    %v2122 = vpop.f32.mrf.mxu0
    %v2123 = vadd.f32 %v2094, %v2122
    %v2124 = vpop.f32.mrf.mxu0
    %2125 = vdwg.mxu0
    %v2126 = vld [vmem:[%s7] sm:$0xff]
    %v2127 = vld [vmem:[%s7 + $0x8] sm:$0xff]
    %v2128 = vld [vmem:[%s9] sm:$0xff]
    %v2129 = vld [vmem:[%s9 + $0x8] sm:$0xff]
    %v2130 = vld [vmem:[%s9 + $0x10] sm:$0xff]
    %v2131 = vld [vmem:[%s9 + $0x18] sm:$0xff]
    %v2132 = vld [vmem:[%s9 + $0x20] sm:$0xff]
    %v2133 = vld [vmem:[%s9 + $0x28] sm:$0xff]
    %v2134 = vld [vmem:[%s9 + $0x30] sm:$0xff]
    %v2135 = vld [vmem:[%s9 + $0x38] sm:$0xff]
    %v2136 = vld [vmem:[%s11] sm:$0xff]
    %v2137 = vld [vmem:[%s11 + $0x8] sm:$0xff]
    %v2138 = vld [vmem:[%s57] sm:$0x1]
    %v2139 = vmul.f32 %v2126, %v2126
    %v2140 = vmul.f32 %v2127, %v2127
    %v2141 = vsel %vm325, %v2139, 0.0
    %2142 = vadd.xlane.f32.xlu0 %v2141
    %v2143 = vpop.xlane.xlu0 %2142
    %v2144 = vsel %vm325, %v2140, 0.0
    %2145 = vadd.xlane.f32.xlu0 %v2144
    %v2146 = vpop.xlane.xlu0 %2145
    %v2147 = vmul.f32 %v2143, %v339
    %v2148 = vmul.f32 %v2146, %v339
    %v2149 = vadd.f32 %v2147, 1e-06
    %v2150 = vadd.f32 %v2148, 1e-06
    %v2151 = vrsqrt.pop %v2149
    %v2152 = vmul.f32 %v2151, %v2149
    %v2153 = vmul.f32 %v2152, %v2151
    %v2154 = vmul.f32 0.5, %v2153
    %v2155 = vsub.f32 1.5, %v2154
    %v2156 = vmul.f32 %v2151, %v2155
    %vm2157 = vweird.f32 %v2149
    %vm2158 = vweird.f32 %v2151
    %vm2159 = vmor %vm2157, %vm2158
    %v2160 = vsel %vm2159, %v2151, %v2156
    %v2161 = vrsqrt.pop %v2150
    %v2162 = vmul.f32 %v2161, %v2150
    %v2163 = vmul.f32 %v2162, %v2161
    %v2164 = vmul.f32 0.5, %v2163
    %v2165 = vsub.f32 1.5, %v2164
    %v2166 = vmul.f32 %v2161, %v2165
    %vm2167 = vweird.f32 %v2150
    %vm2168 = vweird.f32 %v2161
    %vm2169 = vmor %vm2167, %vm2168
    %v2170 = vsel %vm2169, %v2161, %v2166
    %v2171 = vmul.f32 %v2126, %v2160
    %v2172 = vmul.f32 %v2127, %v2170
    %v2174 = vperm.slane %v2138, 0
    %v2176 = vmul.f32 %v2171, %v2174
    %v2177 = vmul.f32 %v2172, %v2174
    %v2178 = vld [vmem:[%s59] sm:$0xf]
    %v2179 = vld [vmem:[%s59 + $0x4] sm:$0xf]
    %v2180 = vld [vmem:[%s59 + $0x8] sm:$0xf]
    %v2181 = vld [vmem:[%s59 + $0xc] sm:$0xf]
    %v2182 = vpack.c.bf16 %v2177, %v2176
    %v2187 = vunpack.c.l.b16 %v2178
    %v2188 = vunpack.c.l.b16 %v2179
    %v2189 = vunpack.c.l.b16 %v2180
    %v2190 = vunpack.c.l.b16 %v2181
    %v2191 = vpack.c.b16 %v2188, %v2187
    %v2192 = vpack.c.b16 %v2190, %v2189
    %v2196 = vsel %vm325, %v2182, 0
    %2198 = vmatpush.bf16.msra.mxu0 0
    %2199 = vmatpush.bf16.msra.mxu0 0
    %2200 = vmatpush.bf16.msra.mxu0 0
    %2201 = vmatpush.bf16.msra.mxu0 0
    %2202 = vmatpush.bf16.msra.mxu0 0
    %2203 = vmatpush.bf16.msra.mxu0 0
    %2204 = vmatpush.bf16.msra.mxu0 %v2192
    %2205 = vmatpush.bf16.msra.mxu0 %v2191
    %2206 = vmatmul.bf16.gmra.mxu0 %v2196
    %v2207 = vpop.f32.mrf.mxu0
    %v2208 = vadd.f32 0.0, %v2207
    %v2209 = vpop.f32.mrf.mxu0
    %v2210 = vadd.f32 0.0, %v2209
    %2211 = vdwg.mxu0
    %v2212 = vld [vmem:[%s61] sm:$0xf]
    %v2213 = vld [vmem:[%s61 + $0x4] sm:$0xf]
    %v2214 = vld [vmem:[%s61 + $0x8] sm:$0xf]
    %v2215 = vld [vmem:[%s61 + $0xc] sm:$0xf]
    %v2220 = vunpack.c.l.b16 %v2212
    %v2221 = vunpack.c.l.b16 %v2213
    %v2222 = vunpack.c.l.b16 %v2214
    %v2223 = vunpack.c.l.b16 %v2215
    %v2224 = vpack.c.b16 %v2221, %v2220
    %v2225 = vpack.c.b16 %v2223, %v2222
    %2228 = vmatpush.bf16.msra.mxu0 0
    %2229 = vmatpush.bf16.msra.mxu0 0
    %2230 = vmatpush.bf16.msra.mxu0 0
    %2231 = vmatpush.bf16.msra.mxu0 0
    %2232 = vmatpush.bf16.msra.mxu0 0
    %2233 = vmatpush.bf16.msra.mxu0 0
    %2234 = vmatpush.bf16.msra.mxu0 %v2225
    %2235 = vmatpush.bf16.msra.mxu0 %v2224
    %2236 = vmatmul.bf16.gmra.mxu0 %v2196
    %v2237 = vpop.f32.mrf.mxu0
    %v2238 = vadd.f32 0.0, %v2237
    %v2239 = vpop.f32.mrf.mxu0
    %v2240 = vadd.f32 0.0, %v2239
    %2241 = vdwg.mxu0
    %v2242 = vld [vmem:[%s63] sm:$0xf]
    %v2243 = vld [vmem:[%s63 + $0x4] sm:$0xf]
    %v2244 = vld [vmem:[%s63 + $0x8] sm:$0xf]
    %v2245 = vld [vmem:[%s63 + $0xc] sm:$0xf]
    %v2250 = vunpack.c.l.b16 %v2242
    %v2251 = vunpack.c.l.b16 %v2243
    %v2252 = vunpack.c.l.b16 %v2244
    %v2253 = vunpack.c.l.b16 %v2245
    %v2254 = vpack.c.b16 %v2251, %v2250
    %v2255 = vpack.c.b16 %v2253, %v2252
    %2258 = vmatpush.bf16.msra.mxu0 0
    %2259 = vmatpush.bf16.msra.mxu0 0
    %2260 = vmatpush.bf16.msra.mxu0 0
    %2261 = vmatpush.bf16.msra.mxu0 0
    %2262 = vmatpush.bf16.msra.mxu0 0
    %2263 = vmatpush.bf16.msra.mxu0 0
    %2264 = vmatpush.bf16.msra.mxu0 %v2255
    %2265 = vmatpush.bf16.msra.mxu0 %v2254
    %2266 = vmatmul.bf16.gmra.mxu0 %v2196
    %v2267 = vpop.f32.mrf.mxu0
    %v2268 = vadd.f32 0.0, %v2267
    %v2269 = vpop.f32.mrf.mxu0
    %v2270 = vadd.f32 0.0, %v2269
    %2271 = vdwg.mxu0
    %v2272 = vld [vmem:[%s65] sm:$0xf]
    %v2273 = vld [vmem:[%s65 + $0x4] sm:$0xf]
    %v2274 = vld [vmem:[%s65 + $0x8] sm:$0xf]
    %v2275 = vld [vmem:[%s65 + $0xc] sm:$0xf]
    %v2276 = vpack.c.bf16 %v2210, %v2208
    %v2277 = vpack.c.bf16 %v2240, %v2238
    %v2279 = vsel %vm560, %v2276, 0
    %v2282 = vsel %vm560, %v2277, 0
    %2284 = vmatpush.bf16.xpose.msra.mxu0 0
    %2285 = vmatpush.bf16.xpose.msra.mxu0 0
    %2286 = vmatpush.bf16.xpose.msra.mxu0 0
    %2287 = vmatpush.bf16.xpose.msra.mxu0 0
    %2288 = vmatpush.bf16.xpose.msra.mxu0 0
    %2289 = vmatpush.bf16.xpose.msra.mxu0 0
    %2290 = vmatpush.bf16.xpose.msra.mxu0 0
    %2291 = vmatpush.bf16.xpose.msra.mxu0 %v2282
    %2292 = vmatmul.bf16.gmra.mxu0 %v2279
    %v2293 = vpop.f32.mrf.mxu0
    %v2294 = vadd.f32 %v2128, %v2293
    %v2295 = vpop.f32.mrf.mxu0
    %v2296 = vadd.f32 %v2129, %v2295
    %2297 = vdwg.mxu0
    %vm2298 = vcmask 130048
    %v2299 = vsel %vm2298, %v2294, -inf
    %2300 = vmax.xlane.f32.xlu0 %v2299
    %v2301 = vpop.xlane.xlu0 %2300
    %v2302 = vsel %vm2298, %v2296, -inf
    %2303 = vmax.xlane.f32.xlu0 %v2302
    %v2304 = vpop.xlane.xlu0 %2303
    %v2305 = vsub.f32 %v2294, %v2301
    %v2306 = vsub.f32 %v2296, %v2304
    %v2307 = vmul.f32 %v2305, 1.442695
    %v2308 = vpow.pop %v2307
    %v2309 = vmul.f32 %v2306, 1.442695
    %v2310 = vpow.pop %v2309
    %v2311 = vsel %vm2298, %v2308, 0.0
    %2312 = vadd.xlane.f32.xlu0 %v2311
    %v2313 = vpop.xlane.xlu0 %2312
    %v2314 = vsel %vm2298, %v2310, 0.0
    %2315 = vadd.xlane.f32.xlu0 %v2314
    %v2316 = vpop.xlane.xlu0 %2315
    %v2317 = vrcp.pop %v2313
    %v2318 = vmul.f32 %v2313, %v2317
    %v2319 = vsub.f32 1.0, %v2318
    %v2320 = vmul.f32 %v2317, %v2319
    %v2321 = vadd.f32 %v2317, %v2320
    %vm2322 = vweird.f32 %v2313
    %vm2323 = vweird.f32 %v2317
    %vm2324 = vmor %vm2322, %vm2323
    %v2325 = vsel %vm2324, %v2317, %v2321
    %v2326 = vand.u32 2147483647, %v2313
    %vm2327 = vcmp.eq.f32.partialorder %v2326, 8.507059e+37
    %v2328 = vand.u32 %v2313, 2147483648
    %v2329 = vor.u32 1.1754944e-38, %v2328
    %v2330 = vsel %vm2327, %v2329, %v2325
    %v2331 = vmul.f32 %v2308, %v2330
    %v2332 = vrcp.pop %v2316
    %v2333 = vmul.f32 %v2316, %v2332
    %v2334 = vsub.f32 1.0, %v2333
    %v2335 = vmul.f32 %v2332, %v2334
    %v2336 = vadd.f32 %v2332, %v2335
    %vm2337 = vweird.f32 %v2316
    %vm2338 = vweird.f32 %v2332
    %vm2339 = vmor %vm2337, %vm2338
    %v2340 = vsel %vm2339, %v2332, %v2336
    %v2341 = vand.u32 2147483647, %v2316
    %vm2342 = vcmp.eq.f32.partialorder %v2341, 8.507059e+37
    %v2343 = vand.u32 %v2316, 2147483648
    %v2344 = vor.u32 1.1754944e-38, %v2343
    %v2345 = vsel %vm2342, %v2344, %v2340
    %v2346 = vmul.f32 %v2310, %v2345
    %v2347 = vpack.c.bf16 %v2346, %v2331
    %v2348 = vpack.c.bf16 %v2270, %v2268
    %v2350 = vsel %vm2298, %v2347, 0
    %2352 = vmatpush.bf16.msra.mxu0 0
    %2353 = vmatpush.bf16.msra.mxu0 0
    %2354 = vmatpush.bf16.msra.mxu0 0
    %2355 = vmatpush.bf16.msra.mxu0 0
    %2356 = vmatpush.bf16.msra.mxu0 0
    %2357 = vmatpush.bf16.msra.mxu0 0
    %2358 = vmatpush.bf16.msra.mxu0 0
    %2359 = vmatpush.bf16.msra.mxu0 %v2348
    %2360 = vmatmul.bf16.gmra.mxu0 %v2350
    %v2361 = vpop.f32.mrf.mxu0
    %v2362 = vadd.f32 0.0, %v2361
    %v2363 = vpop.f32.mrf.mxu0
    %v2364 = vadd.f32 0.0, %v2363
    %2365 = vdwg.mxu0
    %v2366 = vpack.c.bf16 %v2364, %v2362
    %2368 = vrot.lane.b32.xlu0 %v2276, 120
    %v2369 = vpop.permute.xlu0 %2368
    %2371 = vrot.lane.b32.xlu0 %v2277, 120
    %v2372 = vpop.permute.xlu0 %2371
    %v2374 = vsel %vm560, %v2369, 0
    %v2377 = vsel %vm560, %v2372, 0
    %2379 = vmatpush.bf16.xpose.msra.mxu0 0
    %2380 = vmatpush.bf16.xpose.msra.mxu0 0
    %2381 = vmatpush.bf16.xpose.msra.mxu0 0
    %2382 = vmatpush.bf16.xpose.msra.mxu0 0
    %2383 = vmatpush.bf16.xpose.msra.mxu0 0
    %2384 = vmatpush.bf16.xpose.msra.mxu0 0
    %2385 = vmatpush.bf16.xpose.msra.mxu0 0
    %2386 = vmatpush.bf16.xpose.msra.mxu0 %v2377
    %2387 = vmatmul.bf16.gmra.mxu0 %v2374
    %v2388 = vpop.f32.mrf.mxu0
    %v2389 = vadd.f32 %v2130, %v2388
    %v2390 = vpop.f32.mrf.mxu0
    %v2391 = vadd.f32 %v2131, %v2390
    %2392 = vdwg.mxu0
    %v2393 = vsel %vm2298, %v2389, -inf
    %2394 = vmax.xlane.f32.xlu0 %v2393
    %v2395 = vpop.xlane.xlu0 %2394
    %v2396 = vsel %vm2298, %v2391, -inf
    %2397 = vmax.xlane.f32.xlu0 %v2396
    %v2398 = vpop.xlane.xlu0 %2397
    %v2399 = vsub.f32 %v2389, %v2395
    %v2400 = vsub.f32 %v2391, %v2398
    %v2401 = vmul.f32 %v2399, 1.442695
    %v2402 = vpow.pop %v2401
    %v2403 = vmul.f32 %v2400, 1.442695
    %v2404 = vpow.pop %v2403
    %v2405 = vsel %vm2298, %v2402, 0.0
    %2406 = vadd.xlane.f32.xlu0 %v2405
    %v2407 = vpop.xlane.xlu0 %2406
    %v2408 = vsel %vm2298, %v2404, 0.0
    %2409 = vadd.xlane.f32.xlu0 %v2408
    %v2410 = vpop.xlane.xlu0 %2409
    %v2411 = vrcp.pop %v2407
    %v2412 = vmul.f32 %v2407, %v2411
    %v2413 = vsub.f32 1.0, %v2412
    %v2414 = vmul.f32 %v2411, %v2413
    %v2415 = vadd.f32 %v2411, %v2414
    %vm2416 = vweird.f32 %v2407
    %vm2417 = vweird.f32 %v2411
    %vm2418 = vmor %vm2416, %vm2417
    %v2419 = vsel %vm2418, %v2411, %v2415
    %v2420 = vand.u32 2147483647, %v2407
    %vm2421 = vcmp.eq.f32.partialorder %v2420, 8.507059e+37
    %v2422 = vand.u32 %v2407, 2147483648
    %v2423 = vor.u32 1.1754944e-38, %v2422
    %v2424 = vsel %vm2421, %v2423, %v2419
    %v2425 = vmul.f32 %v2402, %v2424
    %v2426 = vrcp.pop %v2410
    %v2427 = vmul.f32 %v2410, %v2426
    %v2428 = vsub.f32 1.0, %v2427
    %v2429 = vmul.f32 %v2426, %v2428
    %v2430 = vadd.f32 %v2426, %v2429
    %vm2431 = vweird.f32 %v2410
    %vm2432 = vweird.f32 %v2426
    %vm2433 = vmor %vm2431, %vm2432
    %v2434 = vsel %vm2433, %v2426, %v2430
    %v2435 = vand.u32 2147483647, %v2410
    %vm2436 = vcmp.eq.f32.partialorder %v2435, 8.507059e+37
    %v2437 = vand.u32 %v2410, 2147483648
    %v2438 = vor.u32 1.1754944e-38, %v2437
    %v2439 = vsel %vm2436, %v2438, %v2434
    %v2440 = vmul.f32 %v2404, %v2439
    %v2441 = vpack.c.bf16 %v2440, %v2425
    %2443 = vrot.lane.b32.xlu0 %v2348, 120
    %v2444 = vpop.permute.xlu0 %2443
    %v2447 = vsel %vm2298, %v2441, 0
    %2449 = vmatpush.bf16.msra.mxu0 0
    %2450 = vmatpush.bf16.msra.mxu0 0
    %2451 = vmatpush.bf16.msra.mxu0 0
    %2452 = vmatpush.bf16.msra.mxu0 0
    %2453 = vmatpush.bf16.msra.mxu0 0
    %2454 = vmatpush.bf16.msra.mxu0 0
    %2455 = vmatpush.bf16.msra.mxu0 0
    %2456 = vmatpush.bf16.msra.mxu0 %v2444
    %2457 = vmatmul.bf16.gmra.mxu0 %v2447
    %v2458 = vpop.f32.mrf.mxu0
    %v2459 = vadd.f32 0.0, %v2458
    %v2460 = vpop.f32.mrf.mxu0
    %v2461 = vadd.f32 0.0, %v2460
    %2462 = vdwg.mxu0
    %v2463 = vpack.c.bf16 %v2461, %v2459
    %v2465 = vsel %vm560, %v2463, 0
    %v2468 = vsel %vm757, %v2273, 0
    %2470 = vmatpush.bf16.msra.mxu0 0
    %2471 = vmatpush.bf16.msra.mxu0 0
    %2472 = vmatpush.bf16.msra.mxu0 0
    %2473 = vmatpush.bf16.msra.mxu0 0
    %2474 = vmatpush.bf16.msra.mxu0 0
    %2475 = vmatpush.bf16.msra.mxu0 0
    %2476 = vmatpush.bf16.msra.mxu0 0
    %2477 = vmatpush.bf16.msra.mxu0 %v2468
    %2478 = vmatmul.bf16.gmra.mxu0 %v2465
    %v2479 = vpop.f32.mrf.mxu0
    %v2480 = vadd.f32 0.0, %v2479
    %v2481 = vpop.f32.mrf.mxu0
    %v2482 = vadd.f32 0.0, %v2481
    %2483 = vdwg.mxu0
    %v2485 = vsel %vm560, %v2366, 0
    %v2488 = vsel %vm757, %v2272, 0
    %2490 = vmatpush.bf16.msra.mxu0 0
    %2491 = vmatpush.bf16.msra.mxu0 0
    %2492 = vmatpush.bf16.msra.mxu0 0
    %2493 = vmatpush.bf16.msra.mxu0 0
    %2494 = vmatpush.bf16.msra.mxu0 0
    %2495 = vmatpush.bf16.msra.mxu0 0
    %2496 = vmatpush.bf16.msra.mxu0 0
    %2497 = vmatpush.bf16.msra.mxu0 %v2488
    %2498 = vmatmul.bf16.gmra.mxu0 %v2485
    %v2499 = vpop.f32.mrf.mxu0
    %v2500 = vadd.f32 %v2480, %v2499
    %v2501 = vpop.f32.mrf.mxu0
    %v2502 = vadd.f32 %v2482, %v2501
    %2503 = vdwg.mxu0
    %2504 = vrot.lane.b32.xlu0 %v2276, 112
    %v2505 = vpop.permute.xlu0 %2504
    %2506 = vrot.lane.b32.xlu0 %v2277, 112
    %v2507 = vpop.permute.xlu0 %2506
    %v2509 = vsel %vm560, %v2505, 0
    %v2512 = vsel %vm560, %v2507, 0
    %2514 = vmatpush.bf16.xpose.msra.mxu0 0
    %2515 = vmatpush.bf16.xpose.msra.mxu0 0
    %2516 = vmatpush.bf16.xpose.msra.mxu0 0
    %2517 = vmatpush.bf16.xpose.msra.mxu0 0
    %2518 = vmatpush.bf16.xpose.msra.mxu0 0
    %2519 = vmatpush.bf16.xpose.msra.mxu0 0
    %2520 = vmatpush.bf16.xpose.msra.mxu0 0
    %2521 = vmatpush.bf16.xpose.msra.mxu0 %v2512
    %2522 = vmatmul.bf16.gmra.mxu0 %v2509
    %v2523 = vpop.f32.mrf.mxu0
    %v2524 = vadd.f32 %v2132, %v2523
    %v2525 = vpop.f32.mrf.mxu0
    %v2526 = vadd.f32 %v2133, %v2525
    %2527 = vdwg.mxu0
    %v2528 = vsel %vm2298, %v2524, -inf
    %2529 = vmax.xlane.f32.xlu0 %v2528
    %v2530 = vpop.xlane.xlu0 %2529
    %v2531 = vsel %vm2298, %v2526, -inf
    %2532 = vmax.xlane.f32.xlu0 %v2531
    %v2533 = vpop.xlane.xlu0 %2532
    %v2534 = vsub.f32 %v2524, %v2530
    %v2535 = vsub.f32 %v2526, %v2533
    %v2536 = vmul.f32 %v2534, 1.442695
    %v2537 = vpow.pop %v2536
    %v2538 = vmul.f32 %v2535, 1.442695
    %v2539 = vpow.pop %v2538
    %v2540 = vsel %vm2298, %v2537, 0.0
    %2541 = vadd.xlane.f32.xlu0 %v2540
    %v2542 = vpop.xlane.xlu0 %2541
    %v2543 = vsel %vm2298, %v2539, 0.0
    %2544 = vadd.xlane.f32.xlu0 %v2543
    %v2545 = vpop.xlane.xlu0 %2544
    %v2546 = vrcp.pop %v2542
    %v2547 = vmul.f32 %v2542, %v2546
    %v2548 = vsub.f32 1.0, %v2547
    %v2549 = vmul.f32 %v2546, %v2548
    %v2550 = vadd.f32 %v2546, %v2549
    %vm2551 = vweird.f32 %v2542
    %vm2552 = vweird.f32 %v2546
    %vm2553 = vmor %vm2551, %vm2552
    %v2554 = vsel %vm2553, %v2546, %v2550
    %v2555 = vand.u32 2147483647, %v2542
    %vm2556 = vcmp.eq.f32.partialorder %v2555, 8.507059e+37
    %v2557 = vand.u32 %v2542, 2147483648
    %v2558 = vor.u32 1.1754944e-38, %v2557
    %v2559 = vsel %vm2556, %v2558, %v2554
    %v2560 = vmul.f32 %v2537, %v2559
    %v2561 = vrcp.pop %v2545
    %v2562 = vmul.f32 %v2545, %v2561
    %v2563 = vsub.f32 1.0, %v2562
    %v2564 = vmul.f32 %v2561, %v2563
    %v2565 = vadd.f32 %v2561, %v2564
    %vm2566 = vweird.f32 %v2545
    %vm2567 = vweird.f32 %v2561
    %vm2568 = vmor %vm2566, %vm2567
    %v2569 = vsel %vm2568, %v2561, %v2565
    %v2570 = vand.u32 2147483647, %v2545
    %vm2571 = vcmp.eq.f32.partialorder %v2570, 8.507059e+37
    %v2572 = vand.u32 %v2545, 2147483648
    %v2573 = vor.u32 1.1754944e-38, %v2572
    %v2574 = vsel %vm2571, %v2573, %v2569
    %v2575 = vmul.f32 %v2539, %v2574
    %v2576 = vpack.c.bf16 %v2575, %v2560
    %2577 = vrot.lane.b32.xlu0 %v2348, 112
    %v2578 = vpop.permute.xlu0 %2577
    %v2581 = vsel %vm2298, %v2576, 0
    %2583 = vmatpush.bf16.msra.mxu0 0
    %2584 = vmatpush.bf16.msra.mxu0 0
    %2585 = vmatpush.bf16.msra.mxu0 0
    %2586 = vmatpush.bf16.msra.mxu0 0
    %2587 = vmatpush.bf16.msra.mxu0 0
    %2588 = vmatpush.bf16.msra.mxu0 0
    %2589 = vmatpush.bf16.msra.mxu0 0
    %2590 = vmatpush.bf16.msra.mxu0 %v2578
    %2591 = vmatmul.bf16.gmra.mxu0 %v2581
    %v2592 = vpop.f32.mrf.mxu0
    %v2593 = vadd.f32 0.0, %v2592
    %v2594 = vpop.f32.mrf.mxu0
    %v2595 = vadd.f32 0.0, %v2594
    %2596 = vdwg.mxu0
    %v2597 = vpack.c.bf16 %v2595, %v2593
    %v2599 = vsel %vm560, %v2597, 0
    %v2602 = vsel %vm757, %v2274, 0
    %2604 = vmatpush.bf16.msra.mxu0 0
    %2605 = vmatpush.bf16.msra.mxu0 0
    %2606 = vmatpush.bf16.msra.mxu0 0
    %2607 = vmatpush.bf16.msra.mxu0 0
    %2608 = vmatpush.bf16.msra.mxu0 0
    %2609 = vmatpush.bf16.msra.mxu0 0
    %2610 = vmatpush.bf16.msra.mxu0 0
    %2611 = vmatpush.bf16.msra.mxu0 %v2602
    %2612 = vmatmul.bf16.gmra.mxu0 %v2599
    %v2613 = vpop.f32.mrf.mxu0
    %v2614 = vadd.f32 0.0, %v2613
    %v2615 = vpop.f32.mrf.mxu0
    %v2616 = vadd.f32 0.0, %v2615
    %2617 = vdwg.mxu0
    %v2618 = vadd.f32 %v2500, %v2614
    %v2619 = vadd.f32 %v2502, %v2616
    %2620 = vrot.lane.b32.xlu0 %v2276, 104
    %v2621 = vpop.permute.xlu0 %2620
    %2622 = vrot.lane.b32.xlu0 %v2277, 104
    %v2623 = vpop.permute.xlu0 %2622
    %v2625 = vsel %vm560, %v2621, 0
    %v2628 = vsel %vm560, %v2623, 0
    %2630 = vmatpush.bf16.xpose.msra.mxu0 0
    %2631 = vmatpush.bf16.xpose.msra.mxu0 0
    %2632 = vmatpush.bf16.xpose.msra.mxu0 0
    %2633 = vmatpush.bf16.xpose.msra.mxu0 0
    %2634 = vmatpush.bf16.xpose.msra.mxu0 0
    %2635 = vmatpush.bf16.xpose.msra.mxu0 0
    %2636 = vmatpush.bf16.xpose.msra.mxu0 0
    %2637 = vmatpush.bf16.xpose.msra.mxu0 %v2628
    %2638 = vmatmul.bf16.gmra.mxu0 %v2625
    %v2639 = vpop.f32.mrf.mxu0
    %v2640 = vadd.f32 %v2134, %v2639
    %v2641 = vpop.f32.mrf.mxu0
    %v2642 = vadd.f32 %v2135, %v2641
    %2643 = vdwg.mxu0
    %v2644 = vsel %vm2298, %v2640, -inf
    %2645 = vmax.xlane.f32.xlu0 %v2644
    %v2646 = vpop.xlane.xlu0 %2645
    %v2647 = vsel %vm2298, %v2642, -inf
    %2648 = vmax.xlane.f32.xlu0 %v2647
    %v2649 = vpop.xlane.xlu0 %2648
    %v2650 = vsub.f32 %v2640, %v2646
    %v2651 = vsub.f32 %v2642, %v2649
    %v2652 = vmul.f32 %v2650, 1.442695
    %v2653 = vpow.pop %v2652
    %v2654 = vmul.f32 %v2651, 1.442695
    %v2655 = vpow.pop %v2654
    %v2656 = vsel %vm2298, %v2653, 0.0
    %2657 = vadd.xlane.f32.xlu0 %v2656
    %v2658 = vpop.xlane.xlu0 %2657
    %v2659 = vsel %vm2298, %v2655, 0.0
    %2660 = vadd.xlane.f32.xlu0 %v2659
    %v2661 = vpop.xlane.xlu0 %2660
    %v2662 = vrcp.pop %v2658
    %v2663 = vmul.f32 %v2658, %v2662
    %v2664 = vsub.f32 1.0, %v2663
    %v2665 = vmul.f32 %v2662, %v2664
    %v2666 = vadd.f32 %v2662, %v2665
    %vm2667 = vweird.f32 %v2658
    %vm2668 = vweird.f32 %v2662
    %vm2669 = vmor %vm2667, %vm2668
    %v2670 = vsel %vm2669, %v2662, %v2666
    %v2671 = vand.u32 2147483647, %v2658
    %vm2672 = vcmp.eq.f32.partialorder %v2671, 8.507059e+37
    %v2673 = vand.u32 %v2658, 2147483648
    %v2674 = vor.u32 1.1754944e-38, %v2673
    %v2675 = vsel %vm2672, %v2674, %v2670
    %v2676 = vmul.f32 %v2653, %v2675
    %v2677 = vrcp.pop %v2661
    %v2678 = vmul.f32 %v2661, %v2677
    %v2679 = vsub.f32 1.0, %v2678
    %v2680 = vmul.f32 %v2677, %v2679
    %v2681 = vadd.f32 %v2677, %v2680
    %vm2682 = vweird.f32 %v2661
    %vm2683 = vweird.f32 %v2677
    %vm2684 = vmor %vm2682, %vm2683
    %v2685 = vsel %vm2684, %v2677, %v2681
    %v2686 = vand.u32 2147483647, %v2661
    %vm2687 = vcmp.eq.f32.partialorder %v2686, 8.507059e+37
    %v2688 = vand.u32 %v2661, 2147483648
    %v2689 = vor.u32 1.1754944e-38, %v2688
    %v2690 = vsel %vm2687, %v2689, %v2685
    %v2691 = vmul.f32 %v2655, %v2690
    %v2692 = vpack.c.bf16 %v2691, %v2676
    %2693 = vrot.lane.b32.xlu0 %v2348, 104
    %v2694 = vpop.permute.xlu0 %2693
    %v2697 = vsel %vm2298, %v2692, 0
    %2699 = vmatpush.bf16.msra.mxu0 0
    %2700 = vmatpush.bf16.msra.mxu0 0
    %2701 = vmatpush.bf16.msra.mxu0 0
    %2702 = vmatpush.bf16.msra.mxu0 0
    %2703 = vmatpush.bf16.msra.mxu0 0
    %2704 = vmatpush.bf16.msra.mxu0 0
    %2705 = vmatpush.bf16.msra.mxu0 0
    %2706 = vmatpush.bf16.msra.mxu0 %v2694
    %2707 = vmatmul.bf16.gmra.mxu0 %v2697
    %v2708 = vpop.f32.mrf.mxu0
    %v2709 = vadd.f32 0.0, %v2708
    %v2710 = vpop.f32.mrf.mxu0
    %v2711 = vadd.f32 0.0, %v2710
    %2712 = vdwg.mxu0
    %v2713 = vpack.c.bf16 %v2711, %v2709
    %v2715 = vsel %vm560, %v2713, 0
    %v2718 = vsel %vm757, %v2275, 0
    %2720 = vmatpush.bf16.msra.mxu0 0
    %2721 = vmatpush.bf16.msra.mxu0 0
    %2722 = vmatpush.bf16.msra.mxu0 0
    %2723 = vmatpush.bf16.msra.mxu0 0
    %2724 = vmatpush.bf16.msra.mxu0 0
    %2725 = vmatpush.bf16.msra.mxu0 0
    %2726 = vmatpush.bf16.msra.mxu0 0
    %2727 = vmatpush.bf16.msra.mxu0 %v2718
    %2728 = vmatmul.bf16.gmra.mxu0 %v2715
    %v2729 = vpop.f32.mrf.mxu0
    %v2730 = vadd.f32 0.0, %v2729
    %v2731 = vpop.f32.mrf.mxu0
    %v2732 = vadd.f32 0.0, %v2731
    %2733 = vdwg.mxu0
    %v2734 = vadd.f32 %v2618, %v2730
    %v2735 = vadd.f32 %v2619, %v2732
    %v2736 = vadd.f32 %v2126, %v2734
    %v2737 = vadd.f32 %v2127, %v2735
    %v2738 = vld [vmem:[%s67] sm:$0x1]
    %v2739 = vmul.f32 %v2736, %v2736
    %v2740 = vmul.f32 %v2737, %v2737
    %v2741 = vsel %vm325, %v2739, 0.0
    %2742 = vadd.xlane.f32.xlu0 %v2741
    %v2743 = vpop.xlane.xlu0 %2742
    %v2744 = vsel %vm325, %v2740, 0.0
    %2745 = vadd.xlane.f32.xlu0 %v2744
    %v2746 = vpop.xlane.xlu0 %2745
    %v2747 = vmul.f32 %v2743, %v339
    %v2748 = vmul.f32 %v2746, %v339
    %v2749 = vadd.f32 %v2747, 1e-06
    %v2750 = vadd.f32 %v2748, 1e-06
    %v2751 = vrsqrt.pop %v2749
    %v2752 = vmul.f32 %v2751, %v2749
    %v2753 = vmul.f32 %v2752, %v2751
    %v2754 = vmul.f32 0.5, %v2753
    %v2755 = vsub.f32 1.5, %v2754
    %v2756 = vmul.f32 %v2751, %v2755
    %vm2757 = vweird.f32 %v2749
    %vm2758 = vweird.f32 %v2751
    %vm2759 = vmor %vm2757, %vm2758
    %v2760 = vsel %vm2759, %v2751, %v2756
    %v2761 = vrsqrt.pop %v2750
    %v2762 = vmul.f32 %v2761, %v2750
    %v2763 = vmul.f32 %v2762, %v2761
    %v2764 = vmul.f32 0.5, %v2763
    %v2765 = vsub.f32 1.5, %v2764
    %v2766 = vmul.f32 %v2761, %v2765
    %vm2767 = vweird.f32 %v2750
    %vm2768 = vweird.f32 %v2761
    %vm2769 = vmor %vm2767, %vm2768
    %v2770 = vsel %vm2769, %v2761, %v2766
    %v2771 = vmul.f32 %v2736, %v2760
    %v2772 = vmul.f32 %v2737, %v2770
    %v2774 = vperm.slane %v2738, 0
    %v2776 = vmul.f32 %v2771, %v2774
    %v2777 = vmul.f32 %v2772, %v2774
    %v2778 = vld [vmem:[%s69] sm:$0xf]
    %v2779 = vld [vmem:[%s69 + $0x4] sm:$0xf]
    %v2780 = vld [vmem:[%s69 + $0x8] sm:$0xf]
    %v2781 = vld [vmem:[%s69 + $0xc] sm:$0xf]
    %v2782 = vpack.c.bf16 %v2777, %v2776
    %v2787 = vunpack.c.l.b16 %v2778
    %v2788 = vunpack.c.l.b16 %v2779
    %v2789 = vunpack.c.l.b16 %v2780
    %v2790 = vunpack.c.l.b16 %v2781
    %v2791 = vpack.c.b16 %v2788, %v2787
    %v2792 = vpack.c.b16 %v2790, %v2789
    %v2796 = vsel %vm325, %v2782, 0
    %2798 = vmatpush.bf16.msra.mxu0 0
    %2799 = vmatpush.bf16.msra.mxu0 0
    %2800 = vmatpush.bf16.msra.mxu0 0
    %2801 = vmatpush.bf16.msra.mxu0 0
    %2802 = vmatpush.bf16.msra.mxu0 0
    %2803 = vmatpush.bf16.msra.mxu0 0
    %2804 = vmatpush.bf16.msra.mxu0 %v2792
    %2805 = vmatpush.bf16.msra.mxu0 %v2791
    %2806 = vmatmul.bf16.gmra.mxu0 %v2796
    %v2807 = vpop.f32.mrf.mxu0
    %v2808 = vadd.f32 0.0, %v2807
    %v2809 = vpop.f32.mrf.mxu0
    %v2810 = vadd.f32 0.0, %v2809
    %2811 = vdwg.mxu0
    %v2812 = vld [vmem:[%s71] sm:$0xf]
    %v2813 = vld [vmem:[%s71 + $0x4] sm:$0xf]
    %v2814 = vld [vmem:[%s71 + $0x8] sm:$0xf]
    %v2815 = vld [vmem:[%s71 + $0xc] sm:$0xf]
    %v2816 = vpack.c.bf16 %v2123, %v2123
    %v2821 = vunpack.c.l.b16 %v2812
    %v2822 = vunpack.c.l.b16 %v2813
    %v2823 = vunpack.c.l.b16 %v2814
    %v2824 = vunpack.c.l.b16 %v2815
    %v2825 = vpack.c.b16 %v2822, %v2821
    %v2826 = vpack.c.b16 %v2824, %v2823
    %v2830 = vsel %vm325, %v2816, 0
    %2832 = vmatpush.bf16.msra.mxu0 0
    %2833 = vmatpush.bf16.msra.mxu0 0
    %2834 = vmatpush.bf16.msra.mxu0 0
    %2835 = vmatpush.bf16.msra.mxu0 0
    %2836 = vmatpush.bf16.msra.mxu0 0
    %2837 = vmatpush.bf16.msra.mxu0 0
    %2838 = vmatpush.bf16.msra.mxu0 %v2826
    %2839 = vmatpush.bf16.msra.mxu0 %v2825
    %2840 = vmatmul.bf16.gmra.mxu0 %v2830
    %v2841 = vpop.f32.mrf.mxu0
    %v2842 = vadd.f32 0.0, %v2841
    %v2843 = vpop.f32.mrf.mxu0
    %2844 = vdwg.mxu0
    %v2845 = vld [vmem:[%s73] sm:$0xf]
    %v2846 = vld [vmem:[%s73 + $0x4] sm:$0xf]
    %v2847 = vld [vmem:[%s73 + $0x8] sm:$0xf]
    %v2848 = vld [vmem:[%s73 + $0xc] sm:$0xf]
    %v2853 = vunpack.c.l.b16 %v2845
    %v2854 = vunpack.c.l.b16 %v2846
    %v2855 = vunpack.c.l.b16 %v2847
    %v2856 = vunpack.c.l.b16 %v2848
    %v2857 = vpack.c.b16 %v2854, %v2853
    %v2858 = vpack.c.b16 %v2856, %v2855
    %2861 = vmatpush.bf16.msra.mxu0 0
    %2862 = vmatpush.bf16.msra.mxu0 0
    %2863 = vmatpush.bf16.msra.mxu0 0
    %2864 = vmatpush.bf16.msra.mxu0 0
    %2865 = vmatpush.bf16.msra.mxu0 0
    %2866 = vmatpush.bf16.msra.mxu0 0
    %2867 = vmatpush.bf16.msra.mxu0 %v2858
    %2868 = vmatpush.bf16.msra.mxu0 %v2857
    %2869 = vmatmul.bf16.gmra.mxu0 %v2830
    %v2870 = vpop.f32.mrf.mxu0
    %v2871 = vadd.f32 0.0, %v2870
    %v2872 = vpop.f32.mrf.mxu0
    %2873 = vdwg.mxu0
    %v2874 = vld [vmem:[%s75] sm:$0xf]
    %v2875 = vld [vmem:[%s75 + $0x4] sm:$0xf]
    %v2876 = vld [vmem:[%s75 + $0x8] sm:$0xf]
    %v2877 = vld [vmem:[%s75 + $0xc] sm:$0xf]
    %v2878 = vpack.c.bf16 %v2810, %v2808
    %v2879 = vpack.c.bf16 %v2842, %v2842
    %v2881 = vsel %vm560, %v2878, 0
    %v2884 = vsel %vm560, %v2879, 0
    %2886 = vmatpush.bf16.xpose.msra.mxu0 0
    %2887 = vmatpush.bf16.xpose.msra.mxu0 0
    %2888 = vmatpush.bf16.xpose.msra.mxu0 0
    %2889 = vmatpush.bf16.xpose.msra.mxu0 0
    %2890 = vmatpush.bf16.xpose.msra.mxu0 0
    %2891 = vmatpush.bf16.xpose.msra.mxu0 0
    %2892 = vmatpush.bf16.xpose.msra.mxu0 0
    %2893 = vmatpush.bf16.xpose.msra.mxu0 %v2884
    %2894 = vmatmul.bf16.gmra.mxu0 %v2881
    %v2895 = vpop.f32.mrf.mxu0
    %v2896 = vadd.f32 %v2136, %v2895
    %v2897 = vpop.f32.mrf.mxu0
    %v2898 = vadd.f32 %v2137, %v2897
    %2899 = vdwg.mxu0
    %v2900 = vsel %vm560, %v2896, -inf
    %2901 = vmax.xlane.f32.xlu0 %v2900
    %v2902 = vpop.xlane.xlu0 %2901
    %v2903 = vsel %vm560, %v2898, -inf
    %2904 = vmax.xlane.f32.xlu0 %v2903
    %v2905 = vpop.xlane.xlu0 %2904
    %v2906 = vsub.f32 %v2896, %v2902
    %v2907 = vsub.f32 %v2898, %v2905
    %v2908 = vmul.f32 %v2906, 1.442695
    %v2909 = vpow.pop %v2908
    %v2910 = vmul.f32 %v2907, 1.442695
    %v2911 = vpow.pop %v2910
    %v2912 = vsel %vm560, %v2909, 0.0
    %2913 = vadd.xlane.f32.xlu0 %v2912
    %v2914 = vpop.xlane.xlu0 %2913
    %v2915 = vsel %vm560, %v2911, 0.0
    %2916 = vadd.xlane.f32.xlu0 %v2915
    %v2917 = vpop.xlane.xlu0 %2916
    %v2918 = vrcp.pop %v2914
    %v2919 = vmul.f32 %v2914, %v2918
    %v2920 = vsub.f32 1.0, %v2919
    %v2921 = vmul.f32 %v2918, %v2920
    %v2922 = vadd.f32 %v2918, %v2921
    %vm2923 = vweird.f32 %v2914
    %vm2924 = vweird.f32 %v2918
    %vm2925 = vmor %vm2923, %vm2924
    %v2926 = vsel %vm2925, %v2918, %v2922
    %v2927 = vand.u32 2147483647, %v2914
    %vm2928 = vcmp.eq.f32.partialorder %v2927, 8.507059e+37
    %v2929 = vand.u32 %v2914, 2147483648
    %v2930 = vor.u32 1.1754944e-38, %v2929
    %v2931 = vsel %vm2928, %v2930, %v2926
    %v2932 = vmul.f32 %v2909, %v2931
    %v2933 = vrcp.pop %v2917
    %v2934 = vmul.f32 %v2917, %v2933
    %v2935 = vsub.f32 1.0, %v2934
    %v2936 = vmul.f32 %v2933, %v2935
    %v2937 = vadd.f32 %v2933, %v2936
    %vm2938 = vweird.f32 %v2917
    %vm2939 = vweird.f32 %v2933
    %vm2940 = vmor %vm2938, %vm2939
    %v2941 = vsel %vm2940, %v2933, %v2937
    %v2942 = vand.u32 2147483647, %v2917
    %vm2943 = vcmp.eq.f32.partialorder %v2942, 8.507059e+37
    %v2944 = vand.u32 %v2917, 2147483648
    %v2945 = vor.u32 1.1754944e-38, %v2944
    %v2946 = vsel %vm2943, %v2945, %v2941
    %v2947 = vmul.f32 %v2911, %v2946
    %v2948 = vpack.c.bf16 %v2947, %v2932
    %v2949 = vpack.c.bf16 %v2871, %v2871
    %v2951 = vsel %vm560, %v2948, 0
    %v2954 = vsel %vm757, %v2949, 0
    %2956 = vmatpush.bf16.msra.mxu0 0
    %2957 = vmatpush.bf16.msra.mxu0 0
    %2958 = vmatpush.bf16.msra.mxu0 0
    %2959 = vmatpush.bf16.msra.mxu0 0
    %2960 = vmatpush.bf16.msra.mxu0 0
    %2961 = vmatpush.bf16.msra.mxu0 0
    %2962 = vmatpush.bf16.msra.mxu0 0
    %2963 = vmatpush.bf16.msra.mxu0 %v2954
    %2964 = vmatmul.bf16.gmra.mxu0 %v2951
    %v2965 = vpop.f32.mrf.mxu0
    %v2966 = vadd.f32 0.0, %v2965
    %v2967 = vpop.f32.mrf.mxu0
    %v2968 = vadd.f32 0.0, %v2967
    %2969 = vdwg.mxu0
    %v2970 = vpack.c.bf16 %v2968, %v2966
    %2972 = vrot.lane.b32.xlu0 %v2878, 120
    %v2973 = vpop.permute.xlu0 %2972
    %2975 = vrot.lane.b32.xlu0 %v2879, 120
    %v2976 = vpop.permute.xlu0 %2975
    %v2978 = vsel %vm560, %v2973, 0
    %v2981 = vsel %vm560, %v2976, 0
    %2983 = vmatpush.bf16.xpose.msra.mxu0 0
    %2984 = vmatpush.bf16.xpose.msra.mxu0 0
    %2985 = vmatpush.bf16.xpose.msra.mxu0 0
    %2986 = vmatpush.bf16.xpose.msra.mxu0 0
    %2987 = vmatpush.bf16.xpose.msra.mxu0 0
    %2988 = vmatpush.bf16.xpose.msra.mxu0 0
    %2989 = vmatpush.bf16.xpose.msra.mxu0 0
    %2990 = vmatpush.bf16.xpose.msra.mxu0 %v2981
    %2991 = vmatmul.bf16.gmra.mxu0 %v2978
    %v2992 = vpop.f32.mrf.mxu0
    %v2993 = vadd.f32 %v2136, %v2992
    %v2994 = vpop.f32.mrf.mxu0
    %v2995 = vadd.f32 %v2137, %v2994
    %2996 = vdwg.mxu0
    %v2997 = vsel %vm560, %v2993, -inf
    %2998 = vmax.xlane.f32.xlu0 %v2997
    %v2999 = vpop.xlane.xlu0 %2998
    %v3000 = vsel %vm560, %v2995, -inf
    %3001 = vmax.xlane.f32.xlu0 %v3000
    %v3002 = vpop.xlane.xlu0 %3001
    %v3003 = vsub.f32 %v2993, %v2999
    %v3004 = vsub.f32 %v2995, %v3002
    %v3005 = vmul.f32 %v3003, 1.442695
    %v3006 = vpow.pop %v3005
    %v3007 = vmul.f32 %v3004, 1.442695
    %v3008 = vpow.pop %v3007
    %v3009 = vsel %vm560, %v3006, 0.0
    %3010 = vadd.xlane.f32.xlu0 %v3009
    %v3011 = vpop.xlane.xlu0 %3010
    %v3012 = vsel %vm560, %v3008, 0.0
    %3013 = vadd.xlane.f32.xlu0 %v3012
    %v3014 = vpop.xlane.xlu0 %3013
    %v3015 = vrcp.pop %v3011
    %v3016 = vmul.f32 %v3011, %v3015
    %v3017 = vsub.f32 1.0, %v3016
    %v3018 = vmul.f32 %v3015, %v3017
    %v3019 = vadd.f32 %v3015, %v3018
    %vm3020 = vweird.f32 %v3011
    %vm3021 = vweird.f32 %v3015
    %vm3022 = vmor %vm3020, %vm3021
    %v3023 = vsel %vm3022, %v3015, %v3019
    %v3024 = vand.u32 2147483647, %v3011
    %vm3025 = vcmp.eq.f32.partialorder %v3024, 8.507059e+37
    %v3026 = vand.u32 %v3011, 2147483648
    %v3027 = vor.u32 1.1754944e-38, %v3026
    %v3028 = vsel %vm3025, %v3027, %v3023
    %v3029 = vmul.f32 %v3006, %v3028
    %v3030 = vrcp.pop %v3014
    %v3031 = vmul.f32 %v3014, %v3030
    %v3032 = vsub.f32 1.0, %v3031
    %v3033 = vmul.f32 %v3030, %v3032
    %v3034 = vadd.f32 %v3030, %v3033
    %vm3035 = vweird.f32 %v3014
    %vm3036 = vweird.f32 %v3030
    %vm3037 = vmor %vm3035, %vm3036
    %v3038 = vsel %vm3037, %v3030, %v3034
    %v3039 = vand.u32 2147483647, %v3014
    %vm3040 = vcmp.eq.f32.partialorder %v3039, 8.507059e+37
    %v3041 = vand.u32 %v3014, 2147483648
    %v3042 = vor.u32 1.1754944e-38, %v3041
    %v3043 = vsel %vm3040, %v3042, %v3038
    %v3044 = vmul.f32 %v3008, %v3043
    %v3045 = vpack.c.bf16 %v3044, %v3029
    %3047 = vrot.lane.b32.xlu0 %v2949, 120
    %v3048 = vpop.permute.xlu0 %3047
    %v3050 = vsel %vm560, %v3045, 0
    %v3053 = vsel %vm757, %v3048, 0
    %3055 = vmatpush.bf16.msra.mxu0 0
    %3056 = vmatpush.bf16.msra.mxu0 0
    %3057 = vmatpush.bf16.msra.mxu0 0
    %3058 = vmatpush.bf16.msra.mxu0 0
    %3059 = vmatpush.bf16.msra.mxu0 0
    %3060 = vmatpush.bf16.msra.mxu0 0
    %3061 = vmatpush.bf16.msra.mxu0 0
    %3062 = vmatpush.bf16.msra.mxu0 %v3053
    %3063 = vmatmul.bf16.gmra.mxu0 %v3050
    %v3064 = vpop.f32.mrf.mxu0
    %v3065 = vadd.f32 0.0, %v3064
    %v3066 = vpop.f32.mrf.mxu0
    %v3067 = vadd.f32 0.0, %v3066
    %3068 = vdwg.mxu0
    %v3069 = vpack.c.bf16 %v3067, %v3065
    %v3071 = vsel %vm560, %v3069, 0
    %v3074 = vsel %vm757, %v2875, 0
    %3076 = vmatpush.bf16.msra.mxu0 0
    %3077 = vmatpush.bf16.msra.mxu0 0
    %3078 = vmatpush.bf16.msra.mxu0 0
    %3079 = vmatpush.bf16.msra.mxu0 0
    %3080 = vmatpush.bf16.msra.mxu0 0
    %3081 = vmatpush.bf16.msra.mxu0 0
    %3082 = vmatpush.bf16.msra.mxu0 0
    %3083 = vmatpush.bf16.msra.mxu0 %v3074
    %3084 = vmatmul.bf16.gmra.mxu0 %v3071
    %v3085 = vpop.f32.mrf.mxu0
    %v3086 = vadd.f32 0.0, %v3085
    %v3087 = vpop.f32.mrf.mxu0
    %v3088 = vadd.f32 0.0, %v3087
    %3089 = vdwg.mxu0
    %v3091 = vsel %vm560, %v2970, 0
    %v3094 = vsel %vm757, %v2874, 0
    %3096 = vmatpush.bf16.msra.mxu0 0
    %3097 = vmatpush.bf16.msra.mxu0 0
    %3098 = vmatpush.bf16.msra.mxu0 0
    %3099 = vmatpush.bf16.msra.mxu0 0
    %3100 = vmatpush.bf16.msra.mxu0 0
    %3101 = vmatpush.bf16.msra.mxu0 0
    %3102 = vmatpush.bf16.msra.mxu0 0
    %3103 = vmatpush.bf16.msra.mxu0 %v3094
    %3104 = vmatmul.bf16.gmra.mxu0 %v3091
    %v3105 = vpop.f32.mrf.mxu0
    %v3106 = vadd.f32 %v3086, %v3105
    %v3107 = vpop.f32.mrf.mxu0
    %v3108 = vadd.f32 %v3088, %v3107
    %3109 = vdwg.mxu0
    %3110 = vrot.lane.b32.xlu0 %v2878, 112
    %v3111 = vpop.permute.xlu0 %3110
    %3112 = vrot.lane.b32.xlu0 %v2879, 112
    %v3113 = vpop.permute.xlu0 %3112
    %v3115 = vsel %vm560, %v3111, 0
    %v3118 = vsel %vm560, %v3113, 0
    %3120 = vmatpush.bf16.xpose.msra.mxu0 0
    %3121 = vmatpush.bf16.xpose.msra.mxu0 0
    %3122 = vmatpush.bf16.xpose.msra.mxu0 0
    %3123 = vmatpush.bf16.xpose.msra.mxu0 0
    %3124 = vmatpush.bf16.xpose.msra.mxu0 0
    %3125 = vmatpush.bf16.xpose.msra.mxu0 0
    %3126 = vmatpush.bf16.xpose.msra.mxu0 0
    %3127 = vmatpush.bf16.xpose.msra.mxu0 %v3118
    %3128 = vmatmul.bf16.gmra.mxu0 %v3115
    %v3129 = vpop.f32.mrf.mxu0
    %v3130 = vadd.f32 %v2136, %v3129
    %v3131 = vpop.f32.mrf.mxu0
    %v3132 = vadd.f32 %v2137, %v3131
    %3133 = vdwg.mxu0
    %v3134 = vsel %vm560, %v3130, -inf
    %3135 = vmax.xlane.f32.xlu0 %v3134
    %v3136 = vpop.xlane.xlu0 %3135
    %v3137 = vsel %vm560, %v3132, -inf
    %3138 = vmax.xlane.f32.xlu0 %v3137
    %v3139 = vpop.xlane.xlu0 %3138
    %v3140 = vsub.f32 %v3130, %v3136
    %v3141 = vsub.f32 %v3132, %v3139
    %v3142 = vmul.f32 %v3140, 1.442695
    %v3143 = vpow.pop %v3142
    %v3144 = vmul.f32 %v3141, 1.442695
    %v3145 = vpow.pop %v3144
    %v3146 = vsel %vm560, %v3143, 0.0
    %3147 = vadd.xlane.f32.xlu0 %v3146
    %v3148 = vpop.xlane.xlu0 %3147
    %v3149 = vsel %vm560, %v3145, 0.0
    %3150 = vadd.xlane.f32.xlu0 %v3149
    %v3151 = vpop.xlane.xlu0 %3150
    %v3152 = vrcp.pop %v3148
    %v3153 = vmul.f32 %v3148, %v3152
    %v3154 = vsub.f32 1.0, %v3153
    %v3155 = vmul.f32 %v3152, %v3154
    %v3156 = vadd.f32 %v3152, %v3155
    %vm3157 = vweird.f32 %v3148
    %vm3158 = vweird.f32 %v3152
    %vm3159 = vmor %vm3157, %vm3158
    %v3160 = vsel %vm3159, %v3152, %v3156
    %v3161 = vand.u32 2147483647, %v3148
    %vm3162 = vcmp.eq.f32.partialorder %v3161, 8.507059e+37
    %v3163 = vand.u32 %v3148, 2147483648
    %v3164 = vor.u32 1.1754944e-38, %v3163
    %v3165 = vsel %vm3162, %v3164, %v3160
    %v3166 = vmul.f32 %v3143, %v3165
    %v3167 = vrcp.pop %v3151
    %v3168 = vmul.f32 %v3151, %v3167
    %v3169 = vsub.f32 1.0, %v3168
    %v3170 = vmul.f32 %v3167, %v3169
    %v3171 = vadd.f32 %v3167, %v3170
    %vm3172 = vweird.f32 %v3151
    %vm3173 = vweird.f32 %v3167
    %vm3174 = vmor %vm3172, %vm3173
    %v3175 = vsel %vm3174, %v3167, %v3171
    %v3176 = vand.u32 2147483647, %v3151
    %vm3177 = vcmp.eq.f32.partialorder %v3176, 8.507059e+37
    %v3178 = vand.u32 %v3151, 2147483648
    %v3179 = vor.u32 1.1754944e-38, %v3178
    %v3180 = vsel %vm3177, %v3179, %v3175
    %v3181 = vmul.f32 %v3145, %v3180
    %v3182 = vpack.c.bf16 %v3181, %v3166
    %3183 = vrot.lane.b32.xlu0 %v2949, 112
    %v3184 = vpop.permute.xlu0 %3183
    %v3186 = vsel %vm560, %v3182, 0
    %v3189 = vsel %vm757, %v3184, 0
    %3191 = vmatpush.bf16.msra.mxu0 0
    %3192 = vmatpush.bf16.msra.mxu0 0
    %3193 = vmatpush.bf16.msra.mxu0 0
    %3194 = vmatpush.bf16.msra.mxu0 0
    %3195 = vmatpush.bf16.msra.mxu0 0
    %3196 = vmatpush.bf16.msra.mxu0 0
    %3197 = vmatpush.bf16.msra.mxu0 0
    %3198 = vmatpush.bf16.msra.mxu0 %v3189
    %3199 = vmatmul.bf16.gmra.mxu0 %v3186
    %v3200 = vpop.f32.mrf.mxu0
    %v3201 = vadd.f32 0.0, %v3200
    %v3202 = vpop.f32.mrf.mxu0
    %v3203 = vadd.f32 0.0, %v3202
    %3204 = vdwg.mxu0
    %v3205 = vpack.c.bf16 %v3203, %v3201
    %v3207 = vsel %vm560, %v3205, 0
    %v3210 = vsel %vm757, %v2876, 0
    %3212 = vmatpush.bf16.msra.mxu0 0
    %3213 = vmatpush.bf16.msra.mxu0 0
    %3214 = vmatpush.bf16.msra.mxu0 0
    %3215 = vmatpush.bf16.msra.mxu0 0
    %3216 = vmatpush.bf16.msra.mxu0 0
    %3217 = vmatpush.bf16.msra.mxu0 0
    %3218 = vmatpush.bf16.msra.mxu0 0
    %3219 = vmatpush.bf16.msra.mxu0 %v3210
    %3220 = vmatmul.bf16.gmra.mxu0 %v3207
    %v3221 = vpop.f32.mrf.mxu0
    %v3222 = vadd.f32 0.0, %v3221
    %v3223 = vpop.f32.mrf.mxu0
    %v3224 = vadd.f32 0.0, %v3223
    %3225 = vdwg.mxu0
    %v3226 = vadd.f32 %v3106, %v3222
    %v3227 = vadd.f32 %v3108, %v3224
    %3228 = vrot.lane.b32.xlu0 %v2878, 104
    %v3229 = vpop.permute.xlu0 %3228
    %3230 = vrot.lane.b32.xlu0 %v2879, 104
    %v3231 = vpop.permute.xlu0 %3230
    %v3233 = vsel %vm560, %v3229, 0
    %v3236 = vsel %vm560, %v3231, 0
    %3238 = vmatpush.bf16.xpose.msra.mxu0 0
    %3239 = vmatpush.bf16.xpose.msra.mxu0 0
    %3240 = vmatpush.bf16.xpose.msra.mxu0 0
    %3241 = vmatpush.bf16.xpose.msra.mxu0 0
    %3242 = vmatpush.bf16.xpose.msra.mxu0 0
    %3243 = vmatpush.bf16.xpose.msra.mxu0 0
    %3244 = vmatpush.bf16.xpose.msra.mxu0 0
    %3245 = vmatpush.bf16.xpose.msra.mxu0 %v3236
    %3246 = vmatmul.bf16.gmra.mxu0 %v3233
    %v3247 = vpop.f32.mrf.mxu0
    %v3248 = vadd.f32 %v2136, %v3247
    %v3249 = vpop.f32.mrf.mxu0
    %v3250 = vadd.f32 %v2137, %v3249
    %3251 = vdwg.mxu0
    %v3252 = vsel %vm560, %v3248, -inf
    %3253 = vmax.xlane.f32.xlu0 %v3252
    %v3254 = vpop.xlane.xlu0 %3253
    %v3255 = vsel %vm560, %v3250, -inf
    %3256 = vmax.xlane.f32.xlu0 %v3255
    %v3257 = vpop.xlane.xlu0 %3256
    %v3258 = vsub.f32 %v3248, %v3254
    %v3259 = vsub.f32 %v3250, %v3257
    %v3260 = vmul.f32 %v3258, 1.442695
    %v3261 = vpow.pop %v3260
    %v3262 = vmul.f32 %v3259, 1.442695
    %v3263 = vpow.pop %v3262
    %v3264 = vsel %vm560, %v3261, 0.0
    %3265 = vadd.xlane.f32.xlu0 %v3264
    %v3266 = vpop.xlane.xlu0 %3265
    %v3267 = vsel %vm560, %v3263, 0.0
    %3268 = vadd.xlane.f32.xlu0 %v3267
    %v3269 = vpop.xlane.xlu0 %3268
    %v3270 = vrcp.pop %v3266
    %v3271 = vmul.f32 %v3266, %v3270
    %v3272 = vsub.f32 1.0, %v3271
    %v3273 = vmul.f32 %v3270, %v3272
    %v3274 = vadd.f32 %v3270, %v3273
    %vm3275 = vweird.f32 %v3266
    %vm3276 = vweird.f32 %v3270
    %vm3277 = vmor %vm3275, %vm3276
    %v3278 = vsel %vm3277, %v3270, %v3274
    %v3279 = vand.u32 2147483647, %v3266
    %vm3280 = vcmp.eq.f32.partialorder %v3279, 8.507059e+37
    %v3281 = vand.u32 %v3266, 2147483648
    %v3282 = vor.u32 1.1754944e-38, %v3281
    %v3283 = vsel %vm3280, %v3282, %v3278
    %v3284 = vmul.f32 %v3261, %v3283
    %v3285 = vrcp.pop %v3269
    %v3286 = vmul.f32 %v3269, %v3285
    %v3287 = vsub.f32 1.0, %v3286
    %v3288 = vmul.f32 %v3285, %v3287
    %v3289 = vadd.f32 %v3285, %v3288
    %vm3290 = vweird.f32 %v3269
    %vm3291 = vweird.f32 %v3285
    %vm3292 = vmor %vm3290, %vm3291
    %v3293 = vsel %vm3292, %v3285, %v3289
    %v3294 = vand.u32 2147483647, %v3269
    %vm3295 = vcmp.eq.f32.partialorder %v3294, 8.507059e+37
    %v3296 = vand.u32 %v3269, 2147483648
    %v3297 = vor.u32 1.1754944e-38, %v3296
    %v3298 = vsel %vm3295, %v3297, %v3293
    %v3299 = vmul.f32 %v3263, %v3298
    %v3300 = vpack.c.bf16 %v3299, %v3284
    %3301 = vrot.lane.b32.xlu0 %v2949, 104
    %v3302 = vpop.permute.xlu0 %3301
    %v3304 = vsel %vm560, %v3300, 0
    %v3307 = vsel %vm757, %v3302, 0
    %3309 = vmatpush.bf16.msra.mxu0 0
    %3310 = vmatpush.bf16.msra.mxu0 0
    %3311 = vmatpush.bf16.msra.mxu0 0
    %3312 = vmatpush.bf16.msra.mxu0 0
    %3313 = vmatpush.bf16.msra.mxu0 0
    %3314 = vmatpush.bf16.msra.mxu0 0
    %3315 = vmatpush.bf16.msra.mxu0 0
    %3316 = vmatpush.bf16.msra.mxu0 %v3307
    %3317 = vmatmul.bf16.gmra.mxu0 %v3304
    %v3318 = vpop.f32.mrf.mxu0
    %v3319 = vadd.f32 0.0, %v3318
    %v3320 = vpop.f32.mrf.mxu0
    %v3321 = vadd.f32 0.0, %v3320
    %3322 = vdwg.mxu0
    %v3323 = vpack.c.bf16 %v3321, %v3319
    %v3325 = vsel %vm560, %v3323, 0
    %v3328 = vsel %vm757, %v2877, 0
    %3330 = vmatpush.bf16.msra.mxu0 0
    %3331 = vmatpush.bf16.msra.mxu0 0
    %3332 = vmatpush.bf16.msra.mxu0 0
    %3333 = vmatpush.bf16.msra.mxu0 0
    %3334 = vmatpush.bf16.msra.mxu0 0
    %3335 = vmatpush.bf16.msra.mxu0 0
    %3336 = vmatpush.bf16.msra.mxu0 0
    %3337 = vmatpush.bf16.msra.mxu0 %v3328
    %3338 = vmatmul.bf16.gmra.mxu0 %v3325
    %v3339 = vpop.f32.mrf.mxu0
    %v3340 = vadd.f32 0.0, %v3339
    %v3341 = vpop.f32.mrf.mxu0
    %v3342 = vadd.f32 0.0, %v3341
    %3343 = vdwg.mxu0
    %v3344 = vadd.f32 %v3226, %v3340
    %v3345 = vadd.f32 %v3227, %v3342
    %v3346 = vadd.f32 %v2736, %v3344
    %v3347 = vadd.f32 %v2737, %v3345
    %v3348 = vld [vmem:[%s77] sm:$0x1]
    %v3349 = vmul.f32 %v3346, %v3346
    %v3350 = vmul.f32 %v3347, %v3347
    %v3351 = vsel %vm325, %v3349, 0.0
    %3352 = vadd.xlane.f32.xlu0 %v3351
    %v3353 = vpop.xlane.xlu0 %3352
    %v3354 = vsel %vm325, %v3350, 0.0
    %3355 = vadd.xlane.f32.xlu0 %v3354
    %v3356 = vpop.xlane.xlu0 %3355
    %v3357 = vmul.f32 %v3353, %v339
    %v3358 = vmul.f32 %v3356, %v339
    %v3359 = vadd.f32 %v3357, 1e-06
    %v3360 = vadd.f32 %v3358, 1e-06
    %v3361 = vrsqrt.pop %v3359
    %v3362 = vmul.f32 %v3361, %v3359
    %v3363 = vmul.f32 %v3362, %v3361
    %v3364 = vmul.f32 0.5, %v3363
    %v3365 = vsub.f32 1.5, %v3364
    %v3366 = vmul.f32 %v3361, %v3365
    %vm3367 = vweird.f32 %v3359
    %vm3368 = vweird.f32 %v3361
    %vm3369 = vmor %vm3367, %vm3368
    %v3370 = vsel %vm3369, %v3361, %v3366
    %v3371 = vrsqrt.pop %v3360
    %v3372 = vmul.f32 %v3371, %v3360
    %v3373 = vmul.f32 %v3372, %v3371
    %v3374 = vmul.f32 0.5, %v3373
    %v3375 = vsub.f32 1.5, %v3374
    %v3376 = vmul.f32 %v3371, %v3375
    %vm3377 = vweird.f32 %v3360
    %vm3378 = vweird.f32 %v3371
    %vm3379 = vmor %vm3377, %vm3378
    %v3380 = vsel %vm3379, %v3371, %v3376
    %v3381 = vmul.f32 %v3346, %v3370
    %v3382 = vmul.f32 %v3347, %v3380
    %v3384 = vperm.slane %v3348, 0
    %v3386 = vmul.f32 %v3381, %v3384
    %v3387 = vmul.f32 %v3382, %v3384
    %v3388 = vld [vmem:[%s79] sm:$0xf]
    %v3389 = vld [vmem:[%s79 + $0x4] sm:$0xf]
    %v3390 = vld [vmem:[%s79 + $0x8] sm:$0xf]
    %v3391 = vld [vmem:[%s79 + $0xc] sm:$0xf]
    %v3392 = vpack.c.bf16 %v3387, %v3386
    %v3397 = vunpack.c.l.b16 %v3388
    %v3398 = vunpack.c.l.b16 %v3389
    %v3399 = vunpack.c.l.b16 %v3390
    %v3400 = vunpack.c.l.b16 %v3391
    %v3401 = vpack.c.b16 %v3398, %v3397
    %v3402 = vpack.c.b16 %v3400, %v3399
    %v3406 = vsel %vm325, %v3392, 0
    %3408 = vmatpush.bf16.msra.mxu0 0
    %3409 = vmatpush.bf16.msra.mxu0 0
    %3410 = vmatpush.bf16.msra.mxu0 0
    %3411 = vmatpush.bf16.msra.mxu0 0
    %3412 = vmatpush.bf16.msra.mxu0 0
    %3413 = vmatpush.bf16.msra.mxu0 0
    %3414 = vmatpush.bf16.msra.mxu0 %v3402
    %3415 = vmatpush.bf16.msra.mxu0 %v3401
    %3416 = vmatmul.bf16.gmra.mxu0 %v3406
    %v3417 = vpop.f32.mrf.mxu0
    %v3418 = vadd.f32 0.0, %v3417
    %v3419 = vpop.f32.mrf.mxu0
    %v3420 = vadd.f32 0.0, %v3419
    %3421 = vdwg.mxu0
    %v3422 = vmul.f32 %v3418, %v3418
    %v3423 = vmul.f32 %v3420, %v3420
    %v3424 = vmul.f32 %v3418, %v3422
    %v3425 = vmul.f32 %v3420, %v3423
    %v3426 = vmul.f32 %v3424, 0.044715
    %v3427 = vmul.f32 %v3425, 0.044715
    %v3428 = vadd.f32 %v3418, %v3426
    %v3429 = vadd.f32 %v3420, %v3427
    %v3430 = vmul.f32 %v3428, 0.7978846
    %v3431 = vmul.f32 %v3429, 0.7978846
    %v3432 = vtanh.pop %v3430
    %v3433 = vtanh.pop %v3431
    %v3434 = vadd.f32 %v3432, 1.0
    %v3435 = vadd.f32 %v3433, 1.0
    %v3436 = vmul.f32 %v3434, 0.5
    %v3437 = vmul.f32 %v3435, 0.5
    %v3438 = vmul.f32 %v3418, %v3436
    %v3439 = vmul.f32 %v3420, %v3437
    %v3440 = vld [vmem:[%s81] sm:$0xf]
    %v3441 = vld [vmem:[%s81 + $0x4] sm:$0xf]
    %v3442 = vld [vmem:[%s81 + $0x8] sm:$0xf]
    %v3443 = vld [vmem:[%s81 + $0xc] sm:$0xf]
    %v3448 = vunpack.c.l.b16 %v3440
    %v3449 = vunpack.c.l.b16 %v3441
    %v3450 = vunpack.c.l.b16 %v3442
    %v3451 = vunpack.c.l.b16 %v3443
    %v3452 = vpack.c.b16 %v3449, %v3448
    %v3453 = vpack.c.b16 %v3451, %v3450
    %3456 = vmatpush.bf16.msra.mxu0 0
    %3457 = vmatpush.bf16.msra.mxu0 0
    %3458 = vmatpush.bf16.msra.mxu0 0
    %3459 = vmatpush.bf16.msra.mxu0 0
    %3460 = vmatpush.bf16.msra.mxu0 0
    %3461 = vmatpush.bf16.msra.mxu0 0
    %3462 = vmatpush.bf16.msra.mxu0 %v3453
    %3463 = vmatpush.bf16.msra.mxu0 %v3452
    %3464 = vmatmul.bf16.gmra.mxu0 %v3406
    %v3465 = vpop.f32.mrf.mxu0
    %v3466 = vadd.f32 0.0, %v3465
    %v3467 = vpop.f32.mrf.mxu0
    %v3468 = vadd.f32 0.0, %v3467
    %3469 = vdwg.mxu0
    %v3470 = vmul.f32 %v3438, %v3466
    %v3471 = vmul.f32 %v3439, %v3468
    %v3472 = vld [vmem:[%s83] sm:$0xf]
    %v3473 = vld [vmem:[%s83 + $0x4] sm:$0xf]
    %v3474 = vld [vmem:[%s83 + $0x8] sm:$0xf]
    %v3475 = vld [vmem:[%s83 + $0xc] sm:$0xf]
    %v3476 = vld [vmem:[%s83 + $0x10] sm:$0xf]
    %v3477 = vld [vmem:[%s83 + $0x14] sm:$0xf]
    %v3478 = vld [vmem:[%s83 + $0x18] sm:$0xf]
    %v3479 = vld [vmem:[%s83 + $0x1c] sm:$0xf]
    %v3480 = vpack.c.bf16 %v3471, %v3470
    %v3489 = vunpack.c.l.b16 %v3472
    %v3490 = vunpack.c.l.b16 %v3473
    %v3491 = vunpack.c.l.b16 %v3474
    %v3492 = vunpack.c.l.b16 %v3475
    %v3493 = vunpack.c.l.b16 %v3476
    %v3494 = vunpack.c.l.b16 %v3477
    %v3495 = vunpack.c.l.b16 %v3478
    %v3496 = vunpack.c.l.b16 %v3479
    %v3497 = vpack.c.b16 %v3490, %v3489
    %v3498 = vpack.c.b16 %v3492, %v3491
    %v3499 = vpack.c.b16 %v3494, %v3493
    %v3500 = vpack.c.b16 %v3496, %v3495
    %v3506 = vsel %vm284, %v3480, 0
    %3508 = vmatpush.bf16.msra.mxu0 0
    %3509 = vmatpush.bf16.msra.mxu0 0
    %3510 = vmatpush.bf16.msra.mxu0 0
    %3511 = vmatpush.bf16.msra.mxu0 0
    %3512 = vmatpush.bf16.msra.mxu0 %v3500
    %3513 = vmatpush.bf16.msra.mxu0 %v3499
    %3514 = vmatpush.bf16.msra.mxu0 %v3498
    %3515 = vmatpush.bf16.msra.mxu0 %v3497
    %3516 = vmatmul.bf16.gmra.mxu0 %v3506
    %v3517 = vpop.f32.mrf.mxu0
    %v3518 = vadd.f32 0.0, %v3517
    %v3519 = vpop.f32.mrf.mxu0
    %v3520 = vadd.f32 0.0, %v3519
    %3521 = vdwg.mxu0
    %v3522 = vadd.f32 %v3346, %v3518
    %v3523 = vadd.f32 %v3347, %v3520
    %s3524 = scalar_lea.vmem %s57, 1
    %v3525 = vld [vmem:[%s3524] sm:$0x1]
    %v3526 = vmul.f32 %v3522, %v3522
    %v3527 = vmul.f32 %v3523, %v3523
    %v3528 = vsel %vm325, %v3526, 0.0
    %3529 = vadd.xlane.f32.xlu0 %v3528
    %v3530 = vpop.xlane.xlu0 %3529
    %v3531 = vsel %vm325, %v3527, 0.0
    %3532 = vadd.xlane.f32.xlu0 %v3531
    %v3533 = vpop.xlane.xlu0 %3532
    %v3534 = vmul.f32 %v3530, %v339
    %v3535 = vmul.f32 %v3533, %v339
    %v3536 = vadd.f32 %v3534, 1e-06
    %v3537 = vadd.f32 %v3535, 1e-06
    %v3538 = vrsqrt.pop %v3536
    %v3539 = vmul.f32 %v3538, %v3536
    %v3540 = vmul.f32 %v3539, %v3538
    %v3541 = vmul.f32 0.5, %v3540
    %v3542 = vsub.f32 1.5, %v3541
    %v3543 = vmul.f32 %v3538, %v3542
    %vm3544 = vweird.f32 %v3536
    %vm3545 = vweird.f32 %v3538
    %vm3546 = vmor %vm3544, %vm3545
    %v3547 = vsel %vm3546, %v3538, %v3543
    %v3548 = vrsqrt.pop %v3537
    %v3549 = vmul.f32 %v3548, %v3537
    %v3550 = vmul.f32 %v3549, %v3548
    %v3551 = vmul.f32 0.5, %v3550
    %v3552 = vsub.f32 1.5, %v3551
    %v3553 = vmul.f32 %v3548, %v3552
    %vm3554 = vweird.f32 %v3537
    %vm3555 = vweird.f32 %v3548
    %vm3556 = vmor %vm3554, %vm3555
    %v3557 = vsel %vm3556, %v3548, %v3553
    %v3558 = vmul.f32 %v3522, %v3547
    %v3559 = vmul.f32 %v3523, %v3557
    %v3561 = vperm.slane %v3525, 0
    %v3563 = vmul.f32 %v3558, %v3561
    %v3564 = vmul.f32 %v3559, %v3561
    %s3565 = scalar_lea.vmem %s59, 16
    %v3566 = vld [vmem:[%s3565] sm:$0xf]
    %v3567 = vld [vmem:[%s3565 + $0x4] sm:$0xf]
    %v3568 = vld [vmem:[%s3565 + $0x8] sm:$0xf]
    %v3569 = vld [vmem:[%s3565 + $0xc] sm:$0xf]
    %v3570 = vpack.c.bf16 %v3564, %v3563
    %v3575 = vunpack.c.l.b16 %v3566
    %v3576 = vunpack.c.l.b16 %v3567
    %v3577 = vunpack.c.l.b16 %v3568
    %v3578 = vunpack.c.l.b16 %v3569
    %v3579 = vpack.c.b16 %v3576, %v3575
    %v3580 = vpack.c.b16 %v3578, %v3577
    %v3584 = vsel %vm325, %v3570, 0
    %3586 = vmatpush.bf16.msra.mxu0 0
    %3587 = vmatpush.bf16.msra.mxu0 0
    %3588 = vmatpush.bf16.msra.mxu0 0
    %3589 = vmatpush.bf16.msra.mxu0 0
    %3590 = vmatpush.bf16.msra.mxu0 0
    %3591 = vmatpush.bf16.msra.mxu0 0
    %3592 = vmatpush.bf16.msra.mxu0 %v3580
    %3593 = vmatpush.bf16.msra.mxu0 %v3579
    %3594 = vmatmul.bf16.gmra.mxu0 %v3584
    %v3595 = vpop.f32.mrf.mxu0
    %v3596 = vadd.f32 0.0, %v3595
    %v3597 = vpop.f32.mrf.mxu0
    %v3598 = vadd.f32 0.0, %v3597
    %3599 = vdwg.mxu0
    %s3600 = scalar_lea.vmem %s61, 16
    %v3601 = vld [vmem:[%s3600] sm:$0xf]
    %v3602 = vld [vmem:[%s3600 + $0x4] sm:$0xf]
    %v3603 = vld [vmem:[%s3600 + $0x8] sm:$0xf]
    %v3604 = vld [vmem:[%s3600 + $0xc] sm:$0xf]
    %v3609 = vunpack.c.l.b16 %v3601
    %v3610 = vunpack.c.l.b16 %v3602
    %v3611 = vunpack.c.l.b16 %v3603
    %v3612 = vunpack.c.l.b16 %v3604
    %v3613 = vpack.c.b16 %v3610, %v3609
    %v3614 = vpack.c.b16 %v3612, %v3611
    %3617 = vmatpush.bf16.msra.mxu0 0
    %3618 = vmatpush.bf16.msra.mxu0 0
    %3619 = vmatpush.bf16.msra.mxu0 0
    %3620 = vmatpush.bf16.msra.mxu0 0
    %3621 = vmatpush.bf16.msra.mxu0 0
    %3622 = vmatpush.bf16.msra.mxu0 0
    %3623 = vmatpush.bf16.msra.mxu0 %v3614
    %3624 = vmatpush.bf16.msra.mxu0 %v3613
    %3625 = vmatmul.bf16.gmra.mxu0 %v3584
    %v3626 = vpop.f32.mrf.mxu0
    %v3627 = vadd.f32 0.0, %v3626
    %v3628 = vpop.f32.mrf.mxu0
    %v3629 = vadd.f32 0.0, %v3628
    %3630 = vdwg.mxu0
    %s3631 = scalar_lea.vmem %s63, 16
    %v3632 = vld [vmem:[%s3631] sm:$0xf]
    %v3633 = vld [vmem:[%s3631 + $0x4] sm:$0xf]
    %v3634 = vld [vmem:[%s3631 + $0x8] sm:$0xf]
    %v3635 = vld [vmem:[%s3631 + $0xc] sm:$0xf]
    %v3640 = vunpack.c.l.b16 %v3632
    %v3641 = vunpack.c.l.b16 %v3633
    %v3642 = vunpack.c.l.b16 %v3634
    %v3643 = vunpack.c.l.b16 %v3635
    %v3644 = vpack.c.b16 %v3641, %v3640
    %v3645 = vpack.c.b16 %v3643, %v3642
    %3648 = vmatpush.bf16.msra.mxu0 0
    %3649 = vmatpush.bf16.msra.mxu0 0
    %3650 = vmatpush.bf16.msra.mxu0 0
    %3651 = vmatpush.bf16.msra.mxu0 0
    %3652 = vmatpush.bf16.msra.mxu0 0
    %3653 = vmatpush.bf16.msra.mxu0 0
    %3654 = vmatpush.bf16.msra.mxu0 %v3645
    %3655 = vmatpush.bf16.msra.mxu0 %v3644
    %3656 = vmatmul.bf16.gmra.mxu0 %v3584
    %v3657 = vpop.f32.mrf.mxu0
    %v3658 = vadd.f32 0.0, %v3657
    %v3659 = vpop.f32.mrf.mxu0
    %v3660 = vadd.f32 0.0, %v3659
    %3661 = vdwg.mxu0
    %s3662 = scalar_lea.vmem %s65, 16
    %v3663 = vld [vmem:[%s3662] sm:$0xf]
    %v3664 = vld [vmem:[%s3662 + $0x4] sm:$0xf]
    %v3665 = vld [vmem:[%s3662 + $0x8] sm:$0xf]
    %v3666 = vld [vmem:[%s3662 + $0xc] sm:$0xf]
    %v3667 = vpack.c.bf16 %v3598, %v3596
    %v3668 = vpack.c.bf16 %v3629, %v3627
    %v3670 = vsel %vm560, %v3667, 0
    %v3673 = vsel %vm560, %v3668, 0
    %3675 = vmatpush.bf16.xpose.msra.mxu0 0
    %3676 = vmatpush.bf16.xpose.msra.mxu0 0
    %3677 = vmatpush.bf16.xpose.msra.mxu0 0
    %3678 = vmatpush.bf16.xpose.msra.mxu0 0
    %3679 = vmatpush.bf16.xpose.msra.mxu0 0
    %3680 = vmatpush.bf16.xpose.msra.mxu0 0
    %3681 = vmatpush.bf16.xpose.msra.mxu0 0
    %3682 = vmatpush.bf16.xpose.msra.mxu0 %v3673
    %3683 = vmatmul.bf16.gmra.mxu0 %v3670
    %v3684 = vpop.f32.mrf.mxu0
    %v3685 = vadd.f32 %v2128, %v3684
    %v3686 = vpop.f32.mrf.mxu0
    %v3687 = vadd.f32 %v2129, %v3686
    %3688 = vdwg.mxu0
    %v3689 = vsel %vm2298, %v3685, -inf
    %3690 = vmax.xlane.f32.xlu0 %v3689
    %v3691 = vpop.xlane.xlu0 %3690
    %v3692 = vsel %vm2298, %v3687, -inf
    %3693 = vmax.xlane.f32.xlu0 %v3692
    %v3694 = vpop.xlane.xlu0 %3693
    %v3695 = vsub.f32 %v3685, %v3691
    %v3696 = vsub.f32 %v3687, %v3694
    %v3697 = vmul.f32 %v3695, 1.442695
    %v3698 = vpow.pop %v3697
    %v3699 = vmul.f32 %v3696, 1.442695
    %v3700 = vpow.pop %v3699
    %v3701 = vsel %vm2298, %v3698, 0.0
    %3702 = vadd.xlane.f32.xlu0 %v3701
    %v3703 = vpop.xlane.xlu0 %3702
    %v3704 = vsel %vm2298, %v3700, 0.0
    %3705 = vadd.xlane.f32.xlu0 %v3704
    %v3706 = vpop.xlane.xlu0 %3705
    %v3707 = vrcp.pop %v3703
    %v3708 = vmul.f32 %v3703, %v3707
    %v3709 = vsub.f32 1.0, %v3708
    %v3710 = vmul.f32 %v3707, %v3709
    %v3711 = vadd.f32 %v3707, %v3710
    %vm3712 = vweird.f32 %v3703
    %vm3713 = vweird.f32 %v3707
    %vm3714 = vmor %vm3712, %vm3713
    %v3715 = vsel %vm3714, %v3707, %v3711
    %v3716 = vand.u32 2147483647, %v3703
    %vm3717 = vcmp.eq.f32.partialorder %v3716, 8.507059e+37
    %v3718 = vand.u32 %v3703, 2147483648
    %v3719 = vor.u32 1.1754944e-38, %v3718
    %v3720 = vsel %vm3717, %v3719, %v3715
    %v3721 = vmul.f32 %v3698, %v3720
    %v3722 = vrcp.pop %v3706
    %v3723 = vmul.f32 %v3706, %v3722
    %v3724 = vsub.f32 1.0, %v3723
    %v3725 = vmul.f32 %v3722, %v3724
    %v3726 = vadd.f32 %v3722, %v3725
    %vm3727 = vweird.f32 %v3706
    %vm3728 = vweird.f32 %v3722
    %vm3729 = vmor %vm3727, %vm3728
    %v3730 = vsel %vm3729, %v3722, %v3726
    %v3731 = vand.u32 2147483647, %v3706
    %vm3732 = vcmp.eq.f32.partialorder %v3731, 8.507059e+37
    %v3733 = vand.u32 %v3706, 2147483648
    %v3734 = vor.u32 1.1754944e-38, %v3733
    %v3735 = vsel %vm3732, %v3734, %v3730
    %v3736 = vmul.f32 %v3700, %v3735
    %v3737 = vpack.c.bf16 %v3736, %v3721
    %v3738 = vpack.c.bf16 %v3660, %v3658
    %v3740 = vsel %vm2298, %v3737, 0
    %3742 = vmatpush.bf16.msra.mxu0 0
    %3743 = vmatpush.bf16.msra.mxu0 0
    %3744 = vmatpush.bf16.msra.mxu0 0
    %3745 = vmatpush.bf16.msra.mxu0 0
    %3746 = vmatpush.bf16.msra.mxu0 0
    %3747 = vmatpush.bf16.msra.mxu0 0
    %3748 = vmatpush.bf16.msra.mxu0 0
    %3749 = vmatpush.bf16.msra.mxu0 %v3738
    %3750 = vmatmul.bf16.gmra.mxu0 %v3740
    %v3751 = vpop.f32.mrf.mxu0
    %v3752 = vadd.f32 0.0, %v3751
    %v3753 = vpop.f32.mrf.mxu0
    %v3754 = vadd.f32 0.0, %v3753
    %3755 = vdwg.mxu0
    %v3756 = vpack.c.bf16 %v3754, %v3752
    %3758 = vrot.lane.b32.xlu0 %v3667, 120
    %v3759 = vpop.permute.xlu0 %3758
    %3761 = vrot.lane.b32.xlu0 %v3668, 120
    %v3762 = vpop.permute.xlu0 %3761
    %v3764 = vsel %vm560, %v3759, 0
    %v3767 = vsel %vm560, %v3762, 0
    %3769 = vmatpush.bf16.xpose.msra.mxu0 0
    %3770 = vmatpush.bf16.xpose.msra.mxu0 0
    %3771 = vmatpush.bf16.xpose.msra.mxu0 0
    %3772 = vmatpush.bf16.xpose.msra.mxu0 0
    %3773 = vmatpush.bf16.xpose.msra.mxu0 0
    %3774 = vmatpush.bf16.xpose.msra.mxu0 0
    %3775 = vmatpush.bf16.xpose.msra.mxu0 0
    %3776 = vmatpush.bf16.xpose.msra.mxu0 %v3767
    %3777 = vmatmul.bf16.gmra.mxu0 %v3764
    %v3778 = vpop.f32.mrf.mxu0
    %v3779 = vadd.f32 %v2130, %v3778
    %v3780 = vpop.f32.mrf.mxu0
    %v3781 = vadd.f32 %v2131, %v3780
    %3782 = vdwg.mxu0
    %v3783 = vsel %vm2298, %v3779, -inf
    %3784 = vmax.xlane.f32.xlu0 %v3783
    %v3785 = vpop.xlane.xlu0 %3784
    %v3786 = vsel %vm2298, %v3781, -inf
    %3787 = vmax.xlane.f32.xlu0 %v3786
    %v3788 = vpop.xlane.xlu0 %3787
    %v3789 = vsub.f32 %v3779, %v3785
    %v3790 = vsub.f32 %v3781, %v3788
    %v3791 = vmul.f32 %v3789, 1.442695
    %v3792 = vpow.pop %v3791
    %v3793 = vmul.f32 %v3790, 1.442695
    %v3794 = vpow.pop %v3793
    %v3795 = vsel %vm2298, %v3792, 0.0
    %3796 = vadd.xlane.f32.xlu0 %v3795
    %v3797 = vpop.xlane.xlu0 %3796
    %v3798 = vsel %vm2298, %v3794, 0.0
    %3799 = vadd.xlane.f32.xlu0 %v3798
    %v3800 = vpop.xlane.xlu0 %3799
    %v3801 = vrcp.pop %v3797
    %v3802 = vmul.f32 %v3797, %v3801
    %v3803 = vsub.f32 1.0, %v3802
    %v3804 = vmul.f32 %v3801, %v3803
    %v3805 = vadd.f32 %v3801, %v3804
    %vm3806 = vweird.f32 %v3797
    %vm3807 = vweird.f32 %v3801
    %vm3808 = vmor %vm3806, %vm3807
    %v3809 = vsel %vm3808, %v3801, %v3805
    %v3810 = vand.u32 2147483647, %v3797
    %vm3811 = vcmp.eq.f32.partialorder %v3810, 8.507059e+37
    %v3812 = vand.u32 %v3797, 2147483648
    %v3813 = vor.u32 1.1754944e-38, %v3812
    %v3814 = vsel %vm3811, %v3813, %v3809
    %v3815 = vmul.f32 %v3792, %v3814
    %v3816 = vrcp.pop %v3800
    %v3817 = vmul.f32 %v3800, %v3816
    %v3818 = vsub.f32 1.0, %v3817
    %v3819 = vmul.f32 %v3816, %v3818
    %v3820 = vadd.f32 %v3816, %v3819
    %vm3821 = vweird.f32 %v3800
    %vm3822 = vweird.f32 %v3816
    %vm3823 = vmor %vm3821, %vm3822
    %v3824 = vsel %vm3823, %v3816, %v3820
    %v3825 = vand.u32 2147483647, %v3800
    %vm3826 = vcmp.eq.f32.partialorder %v3825, 8.507059e+37
    %v3827 = vand.u32 %v3800, 2147483648
    %v3828 = vor.u32 1.1754944e-38, %v3827
    %v3829 = vsel %vm3826, %v3828, %v3824
    %v3830 = vmul.f32 %v3794, %v3829
    %v3831 = vpack.c.bf16 %v3830, %v3815
    %3833 = vrot.lane.b32.xlu0 %v3738, 120
    %v3834 = vpop.permute.xlu0 %3833
    %v3837 = vsel %vm2298, %v3831, 0
    %3839 = vmatpush.bf16.msra.mxu0 0
    %3840 = vmatpush.bf16.msra.mxu0 0
    %3841 = vmatpush.bf16.msra.mxu0 0
    %3842 = vmatpush.bf16.msra.mxu0 0
    %3843 = vmatpush.bf16.msra.mxu0 0
    %3844 = vmatpush.bf16.msra.mxu0 0
    %3845 = vmatpush.bf16.msra.mxu0 0
    %3846 = vmatpush.bf16.msra.mxu0 %v3834
    %3847 = vmatmul.bf16.gmra.mxu0 %v3837
    %v3848 = vpop.f32.mrf.mxu0
    %v3849 = vadd.f32 0.0, %v3848
    %v3850 = vpop.f32.mrf.mxu0
    %v3851 = vadd.f32 0.0, %v3850
    %3852 = vdwg.mxu0
    %v3853 = vpack.c.bf16 %v3851, %v3849
    %v3855 = vsel %vm560, %v3853, 0
    %v3858 = vsel %vm757, %v3664, 0
    %3860 = vmatpush.bf16.msra.mxu0 0
    %3861 = vmatpush.bf16.msra.mxu0 0
    %3862 = vmatpush.bf16.msra.mxu0 0
    %3863 = vmatpush.bf16.msra.mxu0 0
    %3864 = vmatpush.bf16.msra.mxu0 0
    %3865 = vmatpush.bf16.msra.mxu0 0
    %3866 = vmatpush.bf16.msra.mxu0 0
    %3867 = vmatpush.bf16.msra.mxu0 %v3858
    %3868 = vmatmul.bf16.gmra.mxu0 %v3855
    %v3869 = vpop.f32.mrf.mxu0
    %v3870 = vadd.f32 0.0, %v3869
    %v3871 = vpop.f32.mrf.mxu0
    %v3872 = vadd.f32 0.0, %v3871
    %3873 = vdwg.mxu0
    %v3875 = vsel %vm560, %v3756, 0
    %v3878 = vsel %vm757, %v3663, 0
    %3880 = vmatpush.bf16.msra.mxu0 0
    %3881 = vmatpush.bf16.msra.mxu0 0
    %3882 = vmatpush.bf16.msra.mxu0 0
    %3883 = vmatpush.bf16.msra.mxu0 0
    %3884 = vmatpush.bf16.msra.mxu0 0
    %3885 = vmatpush.bf16.msra.mxu0 0
    %3886 = vmatpush.bf16.msra.mxu0 0
    %3887 = vmatpush.bf16.msra.mxu0 %v3878
    %3888 = vmatmul.bf16.gmra.mxu0 %v3875
    %v3889 = vpop.f32.mrf.mxu0
    %v3890 = vadd.f32 %v3870, %v3889
    %v3891 = vpop.f32.mrf.mxu0
    %v3892 = vadd.f32 %v3872, %v3891
    %3893 = vdwg.mxu0
    %3894 = vrot.lane.b32.xlu0 %v3667, 112
    %v3895 = vpop.permute.xlu0 %3894
    %3896 = vrot.lane.b32.xlu0 %v3668, 112
    %v3897 = vpop.permute.xlu0 %3896
    %v3899 = vsel %vm560, %v3895, 0
    %v3902 = vsel %vm560, %v3897, 0
    %3904 = vmatpush.bf16.xpose.msra.mxu0 0
    %3905 = vmatpush.bf16.xpose.msra.mxu0 0
    %3906 = vmatpush.bf16.xpose.msra.mxu0 0
    %3907 = vmatpush.bf16.xpose.msra.mxu0 0
    %3908 = vmatpush.bf16.xpose.msra.mxu0 0
    %3909 = vmatpush.bf16.xpose.msra.mxu0 0
    %3910 = vmatpush.bf16.xpose.msra.mxu0 0
    %3911 = vmatpush.bf16.xpose.msra.mxu0 %v3902
    %3912 = vmatmul.bf16.gmra.mxu0 %v3899
    %v3913 = vpop.f32.mrf.mxu0
    %v3914 = vadd.f32 %v2132, %v3913
    %v3915 = vpop.f32.mrf.mxu0
    %v3916 = vadd.f32 %v2133, %v3915
    %3917 = vdwg.mxu0
    %v3918 = vsel %vm2298, %v3914, -inf
    %3919 = vmax.xlane.f32.xlu0 %v3918
    %v3920 = vpop.xlane.xlu0 %3919
    %v3921 = vsel %vm2298, %v3916, -inf
    %3922 = vmax.xlane.f32.xlu0 %v3921
    %v3923 = vpop.xlane.xlu0 %3922
    %v3924 = vsub.f32 %v3914, %v3920
    %v3925 = vsub.f32 %v3916, %v3923
    %v3926 = vmul.f32 %v3924, 1.442695
    %v3927 = vpow.pop %v3926
    %v3928 = vmul.f32 %v3925, 1.442695
    %v3929 = vpow.pop %v3928
    %v3930 = vsel %vm2298, %v3927, 0.0
    %3931 = vadd.xlane.f32.xlu0 %v3930
    %v3932 = vpop.xlane.xlu0 %3931
    %v3933 = vsel %vm2298, %v3929, 0.0
    %3934 = vadd.xlane.f32.xlu0 %v3933
    %v3935 = vpop.xlane.xlu0 %3934
    %v3936 = vrcp.pop %v3932
    %v3937 = vmul.f32 %v3932, %v3936
    %v3938 = vsub.f32 1.0, %v3937
    %v3939 = vmul.f32 %v3936, %v3938
    %v3940 = vadd.f32 %v3936, %v3939
    %vm3941 = vweird.f32 %v3932
    %vm3942 = vweird.f32 %v3936
    %vm3943 = vmor %vm3941, %vm3942
    %v3944 = vsel %vm3943, %v3936, %v3940
    %v3945 = vand.u32 2147483647, %v3932
    %vm3946 = vcmp.eq.f32.partialorder %v3945, 8.507059e+37
    %v3947 = vand.u32 %v3932, 2147483648
    %v3948 = vor.u32 1.1754944e-38, %v3947
    %v3949 = vsel %vm3946, %v3948, %v3944
    %v3950 = vmul.f32 %v3927, %v3949
    %v3951 = vrcp.pop %v3935
    %v3952 = vmul.f32 %v3935, %v3951
    %v3953 = vsub.f32 1.0, %v3952
    %v3954 = vmul.f32 %v3951, %v3953
    %v3955 = vadd.f32 %v3951, %v3954
    %vm3956 = vweird.f32 %v3935
    %vm3957 = vweird.f32 %v3951
    %vm3958 = vmor %vm3956, %vm3957
    %v3959 = vsel %vm3958, %v3951, %v3955
    %v3960 = vand.u32 2147483647, %v3935
    %vm3961 = vcmp.eq.f32.partialorder %v3960, 8.507059e+37
    %v3962 = vand.u32 %v3935, 2147483648
    %v3963 = vor.u32 1.1754944e-38, %v3962
    %v3964 = vsel %vm3961, %v3963, %v3959
    %v3965 = vmul.f32 %v3929, %v3964
    %v3966 = vpack.c.bf16 %v3965, %v3950
    %3967 = vrot.lane.b32.xlu0 %v3738, 112
    %v3968 = vpop.permute.xlu0 %3967
    %v3971 = vsel %vm2298, %v3966, 0
    %3973 = vmatpush.bf16.msra.mxu0 0
    %3974 = vmatpush.bf16.msra.mxu0 0
    %3975 = vmatpush.bf16.msra.mxu0 0
    %3976 = vmatpush.bf16.msra.mxu0 0
    %3977 = vmatpush.bf16.msra.mxu0 0
    %3978 = vmatpush.bf16.msra.mxu0 0
    %3979 = vmatpush.bf16.msra.mxu0 0
    %3980 = vmatpush.bf16.msra.mxu0 %v3968
    %3981 = vmatmul.bf16.gmra.mxu0 %v3971
    %v3982 = vpop.f32.mrf.mxu0
    %v3983 = vadd.f32 0.0, %v3982
    %v3984 = vpop.f32.mrf.mxu0
    %v3985 = vadd.f32 0.0, %v3984
    %3986 = vdwg.mxu0
    %v3987 = vpack.c.bf16 %v3985, %v3983
    %v3989 = vsel %vm560, %v3987, 0
    %v3992 = vsel %vm757, %v3665, 0
    %3994 = vmatpush.bf16.msra.mxu0 0
    %3995 = vmatpush.bf16.msra.mxu0 0
    %3996 = vmatpush.bf16.msra.mxu0 0
    %3997 = vmatpush.bf16.msra.mxu0 0
    %3998 = vmatpush.bf16.msra.mxu0 0
    %3999 = vmatpush.bf16.msra.mxu0 0
    %4000 = vmatpush.bf16.msra.mxu0 0
    %4001 = vmatpush.bf16.msra.mxu0 %v3992
    %4002 = vmatmul.bf16.gmra.mxu0 %v3989
    %v4003 = vpop.f32.mrf.mxu0
    %v4004 = vadd.f32 0.0, %v4003
    %v4005 = vpop.f32.mrf.mxu0
    %v4006 = vadd.f32 0.0, %v4005
    %4007 = vdwg.mxu0
    %v4008 = vadd.f32 %v3890, %v4004
    %v4009 = vadd.f32 %v3892, %v4006
    %4010 = vrot.lane.b32.xlu0 %v3667, 104
    %v4011 = vpop.permute.xlu0 %4010
    %4012 = vrot.lane.b32.xlu0 %v3668, 104
    %v4013 = vpop.permute.xlu0 %4012
    %v4015 = vsel %vm560, %v4011, 0
    %v4018 = vsel %vm560, %v4013, 0
    %4020 = vmatpush.bf16.xpose.msra.mxu0 0
    %4021 = vmatpush.bf16.xpose.msra.mxu0 0
    %4022 = vmatpush.bf16.xpose.msra.mxu0 0
    %4023 = vmatpush.bf16.xpose.msra.mxu0 0
    %4024 = vmatpush.bf16.xpose.msra.mxu0 0
    %4025 = vmatpush.bf16.xpose.msra.mxu0 0
    %4026 = vmatpush.bf16.xpose.msra.mxu0 0
    %4027 = vmatpush.bf16.xpose.msra.mxu0 %v4018
    %4028 = vmatmul.bf16.gmra.mxu0 %v4015
    %v4029 = vpop.f32.mrf.mxu0
    %v4030 = vadd.f32 %v2134, %v4029
    %v4031 = vpop.f32.mrf.mxu0
    %v4032 = vadd.f32 %v2135, %v4031
    %4033 = vdwg.mxu0
    %v4034 = vsel %vm2298, %v4030, -inf
    %4035 = vmax.xlane.f32.xlu0 %v4034
    %v4036 = vpop.xlane.xlu0 %4035
    %v4037 = vsel %vm2298, %v4032, -inf
    %4038 = vmax.xlane.f32.xlu0 %v4037
    %v4039 = vpop.xlane.xlu0 %4038
    %v4040 = vsub.f32 %v4030, %v4036
    %v4041 = vsub.f32 %v4032, %v4039
    %v4042 = vmul.f32 %v4040, 1.442695
    %v4043 = vpow.pop %v4042
    %v4044 = vmul.f32 %v4041, 1.442695
    %v4045 = vpow.pop %v4044
    %v4046 = vsel %vm2298, %v4043, 0.0
    %4047 = vadd.xlane.f32.xlu0 %v4046
    %v4048 = vpop.xlane.xlu0 %4047
    %v4049 = vsel %vm2298, %v4045, 0.0
    %4050 = vadd.xlane.f32.xlu0 %v4049
    %v4051 = vpop.xlane.xlu0 %4050
    %v4052 = vrcp.pop %v4048
    %v4053 = vmul.f32 %v4048, %v4052
    %v4054 = vsub.f32 1.0, %v4053
    %v4055 = vmul.f32 %v4052, %v4054
    %v4056 = vadd.f32 %v4052, %v4055
    %vm4057 = vweird.f32 %v4048
    %vm4058 = vweird.f32 %v4052
    %vm4059 = vmor %vm4057, %vm4058
    %v4060 = vsel %vm4059, %v4052, %v4056
    %v4061 = vand.u32 2147483647, %v4048
    %vm4062 = vcmp.eq.f32.partialorder %v4061, 8.507059e+37
    %v4063 = vand.u32 %v4048, 2147483648
    %v4064 = vor.u32 1.1754944e-38, %v4063
    %v4065 = vsel %vm4062, %v4064, %v4060
    %v4066 = vmul.f32 %v4043, %v4065
    %v4067 = vrcp.pop %v4051
    %v4068 = vmul.f32 %v4051, %v4067
    %v4069 = vsub.f32 1.0, %v4068
    %v4070 = vmul.f32 %v4067, %v4069
    %v4071 = vadd.f32 %v4067, %v4070
    %vm4072 = vweird.f32 %v4051
    %vm4073 = vweird.f32 %v4067
    %vm4074 = vmor %vm4072, %vm4073
    %v4075 = vsel %vm4074, %v4067, %v4071
    %v4076 = vand.u32 2147483647, %v4051
    %vm4077 = vcmp.eq.f32.partialorder %v4076, 8.507059e+37
    %v4078 = vand.u32 %v4051, 2147483648
    %v4079 = vor.u32 1.1754944e-38, %v4078
    %v4080 = vsel %vm4077, %v4079, %v4075
    %v4081 = vmul.f32 %v4045, %v4080
    %v4082 = vpack.c.bf16 %v4081, %v4066
    %4083 = vrot.lane.b32.xlu0 %v3738, 104
    %v4084 = vpop.permute.xlu0 %4083
    %v4087 = vsel %vm2298, %v4082, 0
    %4089 = vmatpush.bf16.msra.mxu0 0
    %4090 = vmatpush.bf16.msra.mxu0 0
    %4091 = vmatpush.bf16.msra.mxu0 0
    %4092 = vmatpush.bf16.msra.mxu0 0
    %4093 = vmatpush.bf16.msra.mxu0 0
    %4094 = vmatpush.bf16.msra.mxu0 0
    %4095 = vmatpush.bf16.msra.mxu0 0
    %4096 = vmatpush.bf16.msra.mxu0 %v4084
    %4097 = vmatmul.bf16.gmra.mxu0 %v4087
    %v4098 = vpop.f32.mrf.mxu0
    %v4099 = vadd.f32 0.0, %v4098
    %v4100 = vpop.f32.mrf.mxu0
    %v4101 = vadd.f32 0.0, %v4100
    %4102 = vdwg.mxu0
    %v4103 = vpack.c.bf16 %v4101, %v4099
    %v4105 = vsel %vm560, %v4103, 0
    %v4108 = vsel %vm757, %v3666, 0
    %4110 = vmatpush.bf16.msra.mxu0 0
    %4111 = vmatpush.bf16.msra.mxu0 0
    %4112 = vmatpush.bf16.msra.mxu0 0
    %4113 = vmatpush.bf16.msra.mxu0 0
    %4114 = vmatpush.bf16.msra.mxu0 0
    %4115 = vmatpush.bf16.msra.mxu0 0
    %4116 = vmatpush.bf16.msra.mxu0 0
    %4117 = vmatpush.bf16.msra.mxu0 %v4108
    %4118 = vmatmul.bf16.gmra.mxu0 %v4105
    %v4119 = vpop.f32.mrf.mxu0
    %v4120 = vadd.f32 0.0, %v4119
    %v4121 = vpop.f32.mrf.mxu0
    %v4122 = vadd.f32 0.0, %v4121
    %4123 = vdwg.mxu0
    %v4124 = vadd.f32 %v4008, %v4120
    %v4125 = vadd.f32 %v4009, %v4122
    %v4126 = vadd.f32 %v3522, %v4124
    %v4127 = vadd.f32 %v3523, %v4125
    %s4128 = scalar_lea.vmem %s67, 1
    %v4129 = vld [vmem:[%s4128] sm:$0x1]
    %v4130 = vmul.f32 %v4126, %v4126
    %v4131 = vmul.f32 %v4127, %v4127
    %v4132 = vsel %vm325, %v4130, 0.0
    %4133 = vadd.xlane.f32.xlu0 %v4132
    %v4134 = vpop.xlane.xlu0 %4133
    %v4135 = vsel %vm325, %v4131, 0.0
    %4136 = vadd.xlane.f32.xlu0 %v4135
    %v4137 = vpop.xlane.xlu0 %4136
    %v4138 = vmul.f32 %v4134, %v339
    %v4139 = vmul.f32 %v4137, %v339
    %v4140 = vadd.f32 %v4138, 1e-06
    %v4141 = vadd.f32 %v4139, 1e-06
    %v4142 = vrsqrt.pop %v4140
    %v4143 = vmul.f32 %v4142, %v4140
    %v4144 = vmul.f32 %v4143, %v4142
    %v4145 = vmul.f32 0.5, %v4144
    %v4146 = vsub.f32 1.5, %v4145
    %v4147 = vmul.f32 %v4142, %v4146
    %vm4148 = vweird.f32 %v4140
    %vm4149 = vweird.f32 %v4142
    %vm4150 = vmor %vm4148, %vm4149
    %v4151 = vsel %vm4150, %v4142, %v4147
    %v4152 = vrsqrt.pop %v4141
    %v4153 = vmul.f32 %v4152, %v4141
    %v4154 = vmul.f32 %v4153, %v4152
    %v4155 = vmul.f32 0.5, %v4154
    %v4156 = vsub.f32 1.5, %v4155
    %v4157 = vmul.f32 %v4152, %v4156
    %vm4158 = vweird.f32 %v4141
    %vm4159 = vweird.f32 %v4152
    %vm4160 = vmor %vm4158, %vm4159
    %v4161 = vsel %vm4160, %v4152, %v4157
    %v4162 = vmul.f32 %v4126, %v4151
    %v4163 = vmul.f32 %v4127, %v4161
    %v4165 = vperm.slane %v4129, 0
    %v4167 = vmul.f32 %v4162, %v4165
    %v4168 = vmul.f32 %v4163, %v4165
    %s4169 = scalar_lea.vmem %s69, 16
    %v4170 = vld [vmem:[%s4169] sm:$0xf]
    %v4171 = vld [vmem:[%s4169 + $0x4] sm:$0xf]
    %v4172 = vld [vmem:[%s4169 + $0x8] sm:$0xf]
    %v4173 = vld [vmem:[%s4169 + $0xc] sm:$0xf]
    %v4174 = vpack.c.bf16 %v4168, %v4167
    %v4179 = vunpack.c.l.b16 %v4170
    %v4180 = vunpack.c.l.b16 %v4171
    %v4181 = vunpack.c.l.b16 %v4172
    %v4182 = vunpack.c.l.b16 %v4173
    %v4183 = vpack.c.b16 %v4180, %v4179
    %v4184 = vpack.c.b16 %v4182, %v4181
    %v4188 = vsel %vm325, %v4174, 0
    %4190 = vmatpush.bf16.msra.mxu0 0
    %4191 = vmatpush.bf16.msra.mxu0 0
    %4192 = vmatpush.bf16.msra.mxu0 0
    %4193 = vmatpush.bf16.msra.mxu0 0
    %4194 = vmatpush.bf16.msra.mxu0 0
    %4195 = vmatpush.bf16.msra.mxu0 0
    %4196 = vmatpush.bf16.msra.mxu0 %v4184
    %4197 = vmatpush.bf16.msra.mxu0 %v4183
    %4198 = vmatmul.bf16.gmra.mxu0 %v4188
    %v4199 = vpop.f32.mrf.mxu0
    %v4200 = vadd.f32 0.0, %v4199
    %v4201 = vpop.f32.mrf.mxu0
    %v4202 = vadd.f32 0.0, %v4201
    %4203 = vdwg.mxu0
    %s4204 = scalar_lea.vmem %s71, 16
    %v4205 = vld [vmem:[%s4204] sm:$0xf]
    %v4206 = vld [vmem:[%s4204 + $0x4] sm:$0xf]
    %v4207 = vld [vmem:[%s4204 + $0x8] sm:$0xf]
    %v4208 = vld [vmem:[%s4204 + $0xc] sm:$0xf]
    %v4213 = vunpack.c.l.b16 %v4205
    %v4214 = vunpack.c.l.b16 %v4206
    %v4215 = vunpack.c.l.b16 %v4207
    %v4216 = vunpack.c.l.b16 %v4208
    %v4217 = vpack.c.b16 %v4214, %v4213
    %v4218 = vpack.c.b16 %v4216, %v4215
    %4221 = vmatpush.bf16.msra.mxu0 0
    %4222 = vmatpush.bf16.msra.mxu0 0
    %4223 = vmatpush.bf16.msra.mxu0 0
    %4224 = vmatpush.bf16.msra.mxu0 0
    %4225 = vmatpush.bf16.msra.mxu0 0
    %4226 = vmatpush.bf16.msra.mxu0 0
    %4227 = vmatpush.bf16.msra.mxu0 %v4218
    %4228 = vmatpush.bf16.msra.mxu0 %v4217
    %4229 = vmatmul.bf16.gmra.mxu0 %v2830
    %v4230 = vpop.f32.mrf.mxu0
    %v4231 = vadd.f32 0.0, %v4230
    %v4232 = vpop.f32.mrf.mxu0
    %4233 = vdwg.mxu0
    %s4234 = scalar_lea.vmem %s73, 16
    %v4235 = vld [vmem:[%s4234] sm:$0xf]
    %v4236 = vld [vmem:[%s4234 + $0x4] sm:$0xf]
    %v4237 = vld [vmem:[%s4234 + $0x8] sm:$0xf]
    %v4238 = vld [vmem:[%s4234 + $0xc] sm:$0xf]
    %v4243 = vunpack.c.l.b16 %v4235
    %v4244 = vunpack.c.l.b16 %v4236
    %v4245 = vunpack.c.l.b16 %v4237
    %v4246 = vunpack.c.l.b16 %v4238
    %v4247 = vpack.c.b16 %v4244, %v4243
    %v4248 = vpack.c.b16 %v4246, %v4245
    %4251 = vmatpush.bf16.msra.mxu0 0
    %4252 = vmatpush.bf16.msra.mxu0 0
    %4253 = vmatpush.bf16.msra.mxu0 0
    %4254 = vmatpush.bf16.msra.mxu0 0
    %4255 = vmatpush.bf16.msra.mxu0 0
    %4256 = vmatpush.bf16.msra.mxu0 0
    %4257 = vmatpush.bf16.msra.mxu0 %v4248
    %4258 = vmatpush.bf16.msra.mxu0 %v4247
    %4259 = vmatmul.bf16.gmra.mxu0 %v2830
    %v4260 = vpop.f32.mrf.mxu0
    %v4261 = vadd.f32 0.0, %v4260
    %v4262 = vpop.f32.mrf.mxu0
    %4263 = vdwg.mxu0
    %s4264 = scalar_lea.vmem %s75, 16
    %v4265 = vld [vmem:[%s4264] sm:$0xf]
    %v4266 = vld [vmem:[%s4264 + $0x4] sm:$0xf]
    %v4267 = vld [vmem:[%s4264 + $0x8] sm:$0xf]
    %v4268 = vld [vmem:[%s4264 + $0xc] sm:$0xf]
    %v4269 = vpack.c.bf16 %v4202, %v4200
    %v4270 = vpack.c.bf16 %v4231, %v4231
    %v4272 = vsel %vm560, %v4269, 0
    %v4275 = vsel %vm560, %v4270, 0
    %4277 = vmatpush.bf16.xpose.msra.mxu0 0
    %4278 = vmatpush.bf16.xpose.msra.mxu0 0
    %4279 = vmatpush.bf16.xpose.msra.mxu0 0
    %4280 = vmatpush.bf16.xpose.msra.mxu0 0
    %4281 = vmatpush.bf16.xpose.msra.mxu0 0
    %4282 = vmatpush.bf16.xpose.msra.mxu0 0
    %4283 = vmatpush.bf16.xpose.msra.mxu0 0
    %4284 = vmatpush.bf16.xpose.msra.mxu0 %v4275
    %4285 = vmatmul.bf16.gmra.mxu0 %v4272
    %v4286 = vpop.f32.mrf.mxu0
    %v4287 = vadd.f32 %v2136, %v4286
    %v4288 = vpop.f32.mrf.mxu0
    %v4289 = vadd.f32 %v2137, %v4288
    %4290 = vdwg.mxu0
    %v4291 = vsel %vm560, %v4287, -inf
    %4292 = vmax.xlane.f32.xlu0 %v4291
    %v4293 = vpop.xlane.xlu0 %4292
    %v4294 = vsel %vm560, %v4289, -inf
    %4295 = vmax.xlane.f32.xlu0 %v4294
    %v4296 = vpop.xlane.xlu0 %4295
    %v4297 = vsub.f32 %v4287, %v4293
    %v4298 = vsub.f32 %v4289, %v4296
    %v4299 = vmul.f32 %v4297, 1.442695
    %v4300 = vpow.pop %v4299
    %v4301 = vmul.f32 %v4298, 1.442695
    %v4302 = vpow.pop %v4301
    %v4303 = vsel %vm560, %v4300, 0.0
    %4304 = vadd.xlane.f32.xlu0 %v4303
    %v4305 = vpop.xlane.xlu0 %4304
    %v4306 = vsel %vm560, %v4302, 0.0
    %4307 = vadd.xlane.f32.xlu0 %v4306
    %v4308 = vpop.xlane.xlu0 %4307
    %v4309 = vrcp.pop %v4305
    %v4310 = vmul.f32 %v4305, %v4309
    %v4311 = vsub.f32 1.0, %v4310
    %v4312 = vmul.f32 %v4309, %v4311
    %v4313 = vadd.f32 %v4309, %v4312
    %vm4314 = vweird.f32 %v4305
    %vm4315 = vweird.f32 %v4309
    %vm4316 = vmor %vm4314, %vm4315
    %v4317 = vsel %vm4316, %v4309, %v4313
    %v4318 = vand.u32 2147483647, %v4305
    %vm4319 = vcmp.eq.f32.partialorder %v4318, 8.507059e+37
    %v4320 = vand.u32 %v4305, 2147483648
    %v4321 = vor.u32 1.1754944e-38, %v4320
    %v4322 = vsel %vm4319, %v4321, %v4317
    %v4323 = vmul.f32 %v4300, %v4322
    %v4324 = vrcp.pop %v4308
    %v4325 = vmul.f32 %v4308, %v4324
    %v4326 = vsub.f32 1.0, %v4325
    %v4327 = vmul.f32 %v4324, %v4326
    %v4328 = vadd.f32 %v4324, %v4327
    %vm4329 = vweird.f32 %v4308
    %vm4330 = vweird.f32 %v4324
    %vm4331 = vmor %vm4329, %vm4330
    %v4332 = vsel %vm4331, %v4324, %v4328
    %v4333 = vand.u32 2147483647, %v4308
    %vm4334 = vcmp.eq.f32.partialorder %v4333, 8.507059e+37
    %v4335 = vand.u32 %v4308, 2147483648
    %v4336 = vor.u32 1.1754944e-38, %v4335
    %v4337 = vsel %vm4334, %v4336, %v4332
    %v4338 = vmul.f32 %v4302, %v4337
    %v4339 = vpack.c.bf16 %v4338, %v4323
    %v4340 = vpack.c.bf16 %v4261, %v4261
    %v4342 = vsel %vm560, %v4339, 0
    %v4345 = vsel %vm757, %v4340, 0
    %4347 = vmatpush.bf16.msra.mxu0 0
    %4348 = vmatpush.bf16.msra.mxu0 0
    %4349 = vmatpush.bf16.msra.mxu0 0
    %4350 = vmatpush.bf16.msra.mxu0 0
    %4351 = vmatpush.bf16.msra.mxu0 0
    %4352 = vmatpush.bf16.msra.mxu0 0
    %4353 = vmatpush.bf16.msra.mxu0 0
    %4354 = vmatpush.bf16.msra.mxu0 %v4345
    %4355 = vmatmul.bf16.gmra.mxu0 %v4342
    %v4356 = vpop.f32.mrf.mxu0
    %v4357 = vadd.f32 0.0, %v4356
    %v4358 = vpop.f32.mrf.mxu0
    %v4359 = vadd.f32 0.0, %v4358
    %4360 = vdwg.mxu0
    %v4361 = vpack.c.bf16 %v4359, %v4357
    %4363 = vrot.lane.b32.xlu0 %v4269, 120
    %v4364 = vpop.permute.xlu0 %4363
    %4366 = vrot.lane.b32.xlu0 %v4270, 120
    %v4367 = vpop.permute.xlu0 %4366
    %v4369 = vsel %vm560, %v4364, 0
    %v4372 = vsel %vm560, %v4367, 0
    %4374 = vmatpush.bf16.xpose.msra.mxu0 0
    %4375 = vmatpush.bf16.xpose.msra.mxu0 0
    %4376 = vmatpush.bf16.xpose.msra.mxu0 0
    %4377 = vmatpush.bf16.xpose.msra.mxu0 0
    %4378 = vmatpush.bf16.xpose.msra.mxu0 0
    %4379 = vmatpush.bf16.xpose.msra.mxu0 0
    %4380 = vmatpush.bf16.xpose.msra.mxu0 0
    %4381 = vmatpush.bf16.xpose.msra.mxu0 %v4372
    %4382 = vmatmul.bf16.gmra.mxu0 %v4369
    %v4383 = vpop.f32.mrf.mxu0
    %v4384 = vadd.f32 %v2136, %v4383
    %v4385 = vpop.f32.mrf.mxu0
    %v4386 = vadd.f32 %v2137, %v4385
    %4387 = vdwg.mxu0
    %v4388 = vsel %vm560, %v4384, -inf
    %4389 = vmax.xlane.f32.xlu0 %v4388
    %v4390 = vpop.xlane.xlu0 %4389
    %v4391 = vsel %vm560, %v4386, -inf
    %4392 = vmax.xlane.f32.xlu0 %v4391
    %v4393 = vpop.xlane.xlu0 %4392
    %v4394 = vsub.f32 %v4384, %v4390
    %v4395 = vsub.f32 %v4386, %v4393
    %v4396 = vmul.f32 %v4394, 1.442695
    %v4397 = vpow.pop %v4396
    %v4398 = vmul.f32 %v4395, 1.442695
    %v4399 = vpow.pop %v4398
    %v4400 = vsel %vm560, %v4397, 0.0
    %4401 = vadd.xlane.f32.xlu0 %v4400
    %v4402 = vpop.xlane.xlu0 %4401
    %v4403 = vsel %vm560, %v4399, 0.0
    %4404 = vadd.xlane.f32.xlu0 %v4403
    %v4405 = vpop.xlane.xlu0 %4404
    %v4406 = vrcp.pop %v4402
    %v4407 = vmul.f32 %v4402, %v4406
    %v4408 = vsub.f32 1.0, %v4407
    %v4409 = vmul.f32 %v4406, %v4408
    %v4410 = vadd.f32 %v4406, %v4409
    %vm4411 = vweird.f32 %v4402
    %vm4412 = vweird.f32 %v4406
    %vm4413 = vmor %vm4411, %vm4412
    %v4414 = vsel %vm4413, %v4406, %v4410
    %v4415 = vand.u32 2147483647, %v4402
    %vm4416 = vcmp.eq.f32.partialorder %v4415, 8.507059e+37
    %v4417 = vand.u32 %v4402, 2147483648
    %v4418 = vor.u32 1.1754944e-38, %v4417
    %v4419 = vsel %vm4416, %v4418, %v4414
    %v4420 = vmul.f32 %v4397, %v4419
    %v4421 = vrcp.pop %v4405
    %v4422 = vmul.f32 %v4405, %v4421
    %v4423 = vsub.f32 1.0, %v4422
    %v4424 = vmul.f32 %v4421, %v4423
    %v4425 = vadd.f32 %v4421, %v4424
    %vm4426 = vweird.f32 %v4405
    %vm4427 = vweird.f32 %v4421
    %vm4428 = vmor %vm4426, %vm4427
    %v4429 = vsel %vm4428, %v4421, %v4425
    %v4430 = vand.u32 2147483647, %v4405
    %vm4431 = vcmp.eq.f32.partialorder %v4430, 8.507059e+37
    %v4432 = vand.u32 %v4405, 2147483648
    %v4433 = vor.u32 1.1754944e-38, %v4432
    %v4434 = vsel %vm4431, %v4433, %v4429
    %v4435 = vmul.f32 %v4399, %v4434
    %v4436 = vpack.c.bf16 %v4435, %v4420
    %4438 = vrot.lane.b32.xlu0 %v4340, 120
    %v4439 = vpop.permute.xlu0 %4438
    %v4441 = vsel %vm560, %v4436, 0
    %v4444 = vsel %vm757, %v4439, 0
    %4446 = vmatpush.bf16.msra.mxu0 0
    %4447 = vmatpush.bf16.msra.mxu0 0
    %4448 = vmatpush.bf16.msra.mxu0 0
    %4449 = vmatpush.bf16.msra.mxu0 0
    %4450 = vmatpush.bf16.msra.mxu0 0
    %4451 = vmatpush.bf16.msra.mxu0 0
    %4452 = vmatpush.bf16.msra.mxu0 0
    %4453 = vmatpush.bf16.msra.mxu0 %v4444
    %4454 = vmatmul.bf16.gmra.mxu0 %v4441
    %v4455 = vpop.f32.mrf.mxu0
    %v4456 = vadd.f32 0.0, %v4455
    %v4457 = vpop.f32.mrf.mxu0
    %v4458 = vadd.f32 0.0, %v4457
    %4459 = vdwg.mxu0
    %v4460 = vpack.c.bf16 %v4458, %v4456
    %v4462 = vsel %vm560, %v4460, 0
    %v4465 = vsel %vm757, %v4266, 0
    %4467 = vmatpush.bf16.msra.mxu0 0
    %4468 = vmatpush.bf16.msra.mxu0 0
    %4469 = vmatpush.bf16.msra.mxu0 0
    %4470 = vmatpush.bf16.msra.mxu0 0
    %4471 = vmatpush.bf16.msra.mxu0 0
    %4472 = vmatpush.bf16.msra.mxu0 0
    %4473 = vmatpush.bf16.msra.mxu0 0
    %4474 = vmatpush.bf16.msra.mxu0 %v4465
    %4475 = vmatmul.bf16.gmra.mxu0 %v4462
    %v4476 = vpop.f32.mrf.mxu0
    %v4477 = vadd.f32 0.0, %v4476
    %v4478 = vpop.f32.mrf.mxu0
    %v4479 = vadd.f32 0.0, %v4478
    %4480 = vdwg.mxu0
    %v4482 = vsel %vm560, %v4361, 0
    %v4485 = vsel %vm757, %v4265, 0
    %4487 = vmatpush.bf16.msra.mxu0 0
    %4488 = vmatpush.bf16.msra.mxu0 0
    %4489 = vmatpush.bf16.msra.mxu0 0
    %4490 = vmatpush.bf16.msra.mxu0 0
    %4491 = vmatpush.bf16.msra.mxu0 0
    %4492 = vmatpush.bf16.msra.mxu0 0
    %4493 = vmatpush.bf16.msra.mxu0 0
    %4494 = vmatpush.bf16.msra.mxu0 %v4485
    %4495 = vmatmul.bf16.gmra.mxu0 %v4482
    %v4496 = vpop.f32.mrf.mxu0
    %v4497 = vadd.f32 %v4477, %v4496
    %v4498 = vpop.f32.mrf.mxu0
    %v4499 = vadd.f32 %v4479, %v4498
    %4500 = vdwg.mxu0
    %4501 = vrot.lane.b32.xlu0 %v4269, 112
    %v4502 = vpop.permute.xlu0 %4501
    %4503 = vrot.lane.b32.xlu0 %v4270, 112
    %v4504 = vpop.permute.xlu0 %4503
    %v4506 = vsel %vm560, %v4502, 0
    %v4509 = vsel %vm560, %v4504, 0
    %4511 = vmatpush.bf16.xpose.msra.mxu0 0
    %4512 = vmatpush.bf16.xpose.msra.mxu0 0
    %4513 = vmatpush.bf16.xpose.msra.mxu0 0
    %4514 = vmatpush.bf16.xpose.msra.mxu0 0
    %4515 = vmatpush.bf16.xpose.msra.mxu0 0
    %4516 = vmatpush.bf16.xpose.msra.mxu0 0
    %4517 = vmatpush.bf16.xpose.msra.mxu0 0
    %4518 = vmatpush.bf16.xpose.msra.mxu0 %v4509
    %4519 = vmatmul.bf16.gmra.mxu0 %v4506
    %v4520 = vpop.f32.mrf.mxu0
    %v4521 = vadd.f32 %v2136, %v4520
    %v4522 = vpop.f32.mrf.mxu0
    %v4523 = vadd.f32 %v2137, %v4522
    %4524 = vdwg.mxu0
    %v4525 = vsel %vm560, %v4521, -inf
    %4526 = vmax.xlane.f32.xlu0 %v4525
    %v4527 = vpop.xlane.xlu0 %4526
    %v4528 = vsel %vm560, %v4523, -inf
    %4529 = vmax.xlane.f32.xlu0 %v4528
    %v4530 = vpop.xlane.xlu0 %4529
    %v4531 = vsub.f32 %v4521, %v4527
    %v4532 = vsub.f32 %v4523, %v4530
    %v4533 = vmul.f32 %v4531, 1.442695
    %v4534 = vpow.pop %v4533
    %v4535 = vmul.f32 %v4532, 1.442695
    %v4536 = vpow.pop %v4535
    %v4537 = vsel %vm560, %v4534, 0.0
    %4538 = vadd.xlane.f32.xlu0 %v4537
    %v4539 = vpop.xlane.xlu0 %4538
    %v4540 = vsel %vm560, %v4536, 0.0
    %4541 = vadd.xlane.f32.xlu0 %v4540
    %v4542 = vpop.xlane.xlu0 %4541
    %v4543 = vrcp.pop %v4539
    %v4544 = vmul.f32 %v4539, %v4543
    %v4545 = vsub.f32 1.0, %v4544
    %v4546 = vmul.f32 %v4543, %v4545
    %v4547 = vadd.f32 %v4543, %v4546
    %vm4548 = vweird.f32 %v4539
    %vm4549 = vweird.f32 %v4543
    %vm4550 = vmor %vm4548, %vm4549
    %v4551 = vsel %vm4550, %v4543, %v4547
    %v4552 = vand.u32 2147483647, %v4539
    %vm4553 = vcmp.eq.f32.partialorder %v4552, 8.507059e+37
    %v4554 = vand.u32 %v4539, 2147483648
    %v4555 = vor.u32 1.1754944e-38, %v4554
    %v4556 = vsel %vm4553, %v4555, %v4551
    %v4557 = vmul.f32 %v4534, %v4556
    %v4558 = vrcp.pop %v4542
    %v4559 = vmul.f32 %v4542, %v4558
    %v4560 = vsub.f32 1.0, %v4559
    %v4561 = vmul.f32 %v4558, %v4560
    %v4562 = vadd.f32 %v4558, %v4561
    %vm4563 = vweird.f32 %v4542
    %vm4564 = vweird.f32 %v4558
    %vm4565 = vmor %vm4563, %vm4564
    %v4566 = vsel %vm4565, %v4558, %v4562
    %v4567 = vand.u32 2147483647, %v4542
    %vm4568 = vcmp.eq.f32.partialorder %v4567, 8.507059e+37
    %v4569 = vand.u32 %v4542, 2147483648
    %v4570 = vor.u32 1.1754944e-38, %v4569
    %v4571 = vsel %vm4568, %v4570, %v4566
    %v4572 = vmul.f32 %v4536, %v4571
    %v4573 = vpack.c.bf16 %v4572, %v4557
    %4574 = vrot.lane.b32.xlu0 %v4340, 112
    %v4575 = vpop.permute.xlu0 %4574
    %v4577 = vsel %vm560, %v4573, 0
    %v4580 = vsel %vm757, %v4575, 0
    %4582 = vmatpush.bf16.msra.mxu0 0
    %4583 = vmatpush.bf16.msra.mxu0 0
    %4584 = vmatpush.bf16.msra.mxu0 0
    %4585 = vmatpush.bf16.msra.mxu0 0
    %4586 = vmatpush.bf16.msra.mxu0 0
    %4587 = vmatpush.bf16.msra.mxu0 0
    %4588 = vmatpush.bf16.msra.mxu0 0
    %4589 = vmatpush.bf16.msra.mxu0 %v4580
    %4590 = vmatmul.bf16.gmra.mxu0 %v4577
    %v4591 = vpop.f32.mrf.mxu0
    %v4592 = vadd.f32 0.0, %v4591
    %v4593 = vpop.f32.mrf.mxu0
    %v4594 = vadd.f32 0.0, %v4593
    %4595 = vdwg.mxu0
    %v4596 = vpack.c.bf16 %v4594, %v4592
    %v4598 = vsel %vm560, %v4596, 0
    %v4601 = vsel %vm757, %v4267, 0
    %4603 = vmatpush.bf16.msra.mxu0 0
    %4604 = vmatpush.bf16.msra.mxu0 0
    %4605 = vmatpush.bf16.msra.mxu0 0
    %4606 = vmatpush.bf16.msra.mxu0 0
    %4607 = vmatpush.bf16.msra.mxu0 0
    %4608 = vmatpush.bf16.msra.mxu0 0
    %4609 = vmatpush.bf16.msra.mxu0 0
    %4610 = vmatpush.bf16.msra.mxu0 %v4601
    %4611 = vmatmul.bf16.gmra.mxu0 %v4598
    %v4612 = vpop.f32.mrf.mxu0
    %v4613 = vadd.f32 0.0, %v4612
    %v4614 = vpop.f32.mrf.mxu0
    %v4615 = vadd.f32 0.0, %v4614
    %4616 = vdwg.mxu0
    %v4617 = vadd.f32 %v4497, %v4613
    %v4618 = vadd.f32 %v4499, %v4615
    %4619 = vrot.lane.b32.xlu0 %v4269, 104
    %v4620 = vpop.permute.xlu0 %4619
    %4621 = vrot.lane.b32.xlu0 %v4270, 104
    %v4622 = vpop.permute.xlu0 %4621
    %v4624 = vsel %vm560, %v4620, 0
    %v4627 = vsel %vm560, %v4622, 0
    %4629 = vmatpush.bf16.xpose.msra.mxu0 0
    %4630 = vmatpush.bf16.xpose.msra.mxu0 0
    %4631 = vmatpush.bf16.xpose.msra.mxu0 0
    %4632 = vmatpush.bf16.xpose.msra.mxu0 0
    %4633 = vmatpush.bf16.xpose.msra.mxu0 0
    %4634 = vmatpush.bf16.xpose.msra.mxu0 0
    %4635 = vmatpush.bf16.xpose.msra.mxu0 0
    %4636 = vmatpush.bf16.xpose.msra.mxu0 %v4627
    %4637 = vmatmul.bf16.gmra.mxu0 %v4624
    %v4638 = vpop.f32.mrf.mxu0
    %v4639 = vadd.f32 %v2136, %v4638
    %v4640 = vpop.f32.mrf.mxu0
    %v4641 = vadd.f32 %v2137, %v4640
    %4642 = vdwg.mxu0
    %v4643 = vsel %vm560, %v4639, -inf
    %4644 = vmax.xlane.f32.xlu0 %v4643
    %v4645 = vpop.xlane.xlu0 %4644
    %v4646 = vsel %vm560, %v4641, -inf
    %4647 = vmax.xlane.f32.xlu0 %v4646
    %v4648 = vpop.xlane.xlu0 %4647
    %v4649 = vsub.f32 %v4639, %v4645
    %v4650 = vsub.f32 %v4641, %v4648
    %v4651 = vmul.f32 %v4649, 1.442695
    %v4652 = vpow.pop %v4651
    %v4653 = vmul.f32 %v4650, 1.442695
    %v4654 = vpow.pop %v4653
    %v4655 = vsel %vm560, %v4652, 0.0
    %4656 = vadd.xlane.f32.xlu0 %v4655
    %v4657 = vpop.xlane.xlu0 %4656
    %v4658 = vsel %vm560, %v4654, 0.0
    %4659 = vadd.xlane.f32.xlu0 %v4658
    %v4660 = vpop.xlane.xlu0 %4659
    %v4661 = vrcp.pop %v4657
    %v4662 = vmul.f32 %v4657, %v4661
    %v4663 = vsub.f32 1.0, %v4662
    %v4664 = vmul.f32 %v4661, %v4663
    %v4665 = vadd.f32 %v4661, %v4664
    %vm4666 = vweird.f32 %v4657
    %vm4667 = vweird.f32 %v4661
    %vm4668 = vmor %vm4666, %vm4667
    %v4669 = vsel %vm4668, %v4661, %v4665
    %v4670 = vand.u32 2147483647, %v4657
    %vm4671 = vcmp.eq.f32.partialorder %v4670, 8.507059e+37
    %v4672 = vand.u32 %v4657, 2147483648
    %v4673 = vor.u32 1.1754944e-38, %v4672
    %v4674 = vsel %vm4671, %v4673, %v4669
    %v4675 = vmul.f32 %v4652, %v4674
    %v4676 = vrcp.pop %v4660
    %v4677 = vmul.f32 %v4660, %v4676
    %v4678 = vsub.f32 1.0, %v4677
    %v4679 = vmul.f32 %v4676, %v4678
    %v4680 = vadd.f32 %v4676, %v4679
    %vm4681 = vweird.f32 %v4660
    %vm4682 = vweird.f32 %v4676
    %vm4683 = vmor %vm4681, %vm4682
    %v4684 = vsel %vm4683, %v4676, %v4680
    %v4685 = vand.u32 2147483647, %v4660
    %vm4686 = vcmp.eq.f32.partialorder %v4685, 8.507059e+37
    %v4687 = vand.u32 %v4660, 2147483648
    %v4688 = vor.u32 1.1754944e-38, %v4687
    %v4689 = vsel %vm4686, %v4688, %v4684
    %v4690 = vmul.f32 %v4654, %v4689
    %v4691 = vpack.c.bf16 %v4690, %v4675
    %4692 = vrot.lane.b32.xlu0 %v4340, 104
    %v4693 = vpop.permute.xlu0 %4692
    %v4695 = vsel %vm560, %v4691, 0
    %v4698 = vsel %vm757, %v4693, 0
    %4700 = vmatpush.bf16.msra.mxu0 0
    %4701 = vmatpush.bf16.msra.mxu0 0
    %4702 = vmatpush.bf16.msra.mxu0 0
    %4703 = vmatpush.bf16.msra.mxu0 0
    %4704 = vmatpush.bf16.msra.mxu0 0
    %4705 = vmatpush.bf16.msra.mxu0 0
    %4706 = vmatpush.bf16.msra.mxu0 0
    %4707 = vmatpush.bf16.msra.mxu0 %v4698
    %4708 = vmatmul.bf16.gmra.mxu0 %v4695
    %v4709 = vpop.f32.mrf.mxu0
    %v4710 = vadd.f32 0.0, %v4709
    %v4711 = vpop.f32.mrf.mxu0
    %v4712 = vadd.f32 0.0, %v4711
    %4713 = vdwg.mxu0
    %v4714 = vpack.c.bf16 %v4712, %v4710
    %v4716 = vsel %vm560, %v4714, 0
    %v4719 = vsel %vm757, %v4268, 0
    %4721 = vmatpush.bf16.msra.mxu0 0
    %4722 = vmatpush.bf16.msra.mxu0 0
    %4723 = vmatpush.bf16.msra.mxu0 0
    %4724 = vmatpush.bf16.msra.mxu0 0
    %4725 = vmatpush.bf16.msra.mxu0 0
    %4726 = vmatpush.bf16.msra.mxu0 0
    %4727 = vmatpush.bf16.msra.mxu0 0
    %4728 = vmatpush.bf16.msra.mxu0 %v4719
    %4729 = vmatmul.bf16.gmra.mxu0 %v4716
    %v4730 = vpop.f32.mrf.mxu0
    %v4731 = vadd.f32 0.0, %v4730
    %v4732 = vpop.f32.mrf.mxu0
    %v4733 = vadd.f32 0.0, %v4732
    %4734 = vdwg.mxu0
    %v4735 = vadd.f32 %v4617, %v4731
    %v4736 = vadd.f32 %v4618, %v4733
    %v4737 = vadd.f32 %v4126, %v4735
    %v4738 = vadd.f32 %v4127, %v4736
    %s4739 = scalar_lea.vmem %s77, 1
    %v4740 = vld [vmem:[%s4739] sm:$0x1]
    %v4741 = vmul.f32 %v4737, %v4737
    %v4742 = vmul.f32 %v4738, %v4738
    %v4743 = vsel %vm325, %v4741, 0.0
    %4744 = vadd.xlane.f32.xlu0 %v4743
    %v4745 = vpop.xlane.xlu0 %4744
    %v4746 = vsel %vm325, %v4742, 0.0
    %4747 = vadd.xlane.f32.xlu0 %v4746
    %v4748 = vpop.xlane.xlu0 %4747
    %v4749 = vmul.f32 %v4745, %v339
    %v4750 = vmul.f32 %v4748, %v339
    %v4751 = vadd.f32 %v4749, 1e-06
    %v4752 = vadd.f32 %v4750, 1e-06
    %v4753 = vrsqrt.pop %v4751
    %v4754 = vmul.f32 %v4753, %v4751
    %v4755 = vmul.f32 %v4754, %v4753
    %v4756 = vmul.f32 0.5, %v4755
    %v4757 = vsub.f32 1.5, %v4756
    %v4758 = vmul.f32 %v4753, %v4757
    %vm4759 = vweird.f32 %v4751
    %vm4760 = vweird.f32 %v4753
    %vm4761 = vmor %vm4759, %vm4760
    %v4762 = vsel %vm4761, %v4753, %v4758
    %v4763 = vrsqrt.pop %v4752
    %v4764 = vmul.f32 %v4763, %v4752
    %v4765 = vmul.f32 %v4764, %v4763
    %v4766 = vmul.f32 0.5, %v4765
    %v4767 = vsub.f32 1.5, %v4766
    %v4768 = vmul.f32 %v4763, %v4767
    %vm4769 = vweird.f32 %v4752
    %vm4770 = vweird.f32 %v4763
    %vm4771 = vmor %vm4769, %vm4770
    %v4772 = vsel %vm4771, %v4763, %v4768
    %v4773 = vmul.f32 %v4737, %v4762
    %v4774 = vmul.f32 %v4738, %v4772
    %v4776 = vperm.slane %v4740, 0
    %v4778 = vmul.f32 %v4773, %v4776
    %v4779 = vmul.f32 %v4774, %v4776
    %s4780 = scalar_lea.vmem %s79, 16
    %v4781 = vld [vmem:[%s4780] sm:$0xf]
    %v4782 = vld [vmem:[%s4780 + $0x4] sm:$0xf]
    %v4783 = vld [vmem:[%s4780 + $0x8] sm:$0xf]
    %v4784 = vld [vmem:[%s4780 + $0xc] sm:$0xf]
    %v4785 = vpack.c.bf16 %v4779, %v4778
    %v4790 = vunpack.c.l.b16 %v4781
    %v4791 = vunpack.c.l.b16 %v4782
    %v4792 = vunpack.c.l.b16 %v4783
    %v4793 = vunpack.c.l.b16 %v4784
    %v4794 = vpack.c.b16 %v4791, %v4790
    %v4795 = vpack.c.b16 %v4793, %v4792
    %v4799 = vsel %vm325, %v4785, 0
    %4801 = vmatpush.bf16.msra.mxu0 0
    %4802 = vmatpush.bf16.msra.mxu0 0
    %4803 = vmatpush.bf16.msra.mxu0 0
    %4804 = vmatpush.bf16.msra.mxu0 0
    %4805 = vmatpush.bf16.msra.mxu0 0
    %4806 = vmatpush.bf16.msra.mxu0 0
    %4807 = vmatpush.bf16.msra.mxu0 %v4795
    %4808 = vmatpush.bf16.msra.mxu0 %v4794
    %4809 = vmatmul.bf16.gmra.mxu0 %v4799
    %v4810 = vpop.f32.mrf.mxu0
    %v4811 = vadd.f32 0.0, %v4810
    %v4812 = vpop.f32.mrf.mxu0
    %v4813 = vadd.f32 0.0, %v4812
    %4814 = vdwg.mxu0
    %v4815 = vmul.f32 %v4811, %v4811
    %v4816 = vmul.f32 %v4813, %v4813
    %v4817 = vmul.f32 %v4811, %v4815
    %v4818 = vmul.f32 %v4813, %v4816
    %v4819 = vmul.f32 %v4817, 0.044715
    %v4820 = vmul.f32 %v4818, 0.044715
    %v4821 = vadd.f32 %v4811, %v4819
    %v4822 = vadd.f32 %v4813, %v4820
    %v4823 = vmul.f32 %v4821, 0.7978846
    %v4824 = vmul.f32 %v4822, 0.7978846
    %v4825 = vtanh.pop %v4823
    %v4826 = vtanh.pop %v4824
    %v4827 = vadd.f32 %v4825, 1.0
    %v4828 = vadd.f32 %v4826, 1.0
    %v4829 = vmul.f32 %v4827, 0.5
    %v4830 = vmul.f32 %v4828, 0.5
    %v4831 = vmul.f32 %v4811, %v4829
    %v4832 = vmul.f32 %v4813, %v4830
    %s4833 = scalar_lea.vmem %s81, 16
    %v4834 = vld [vmem:[%s4833] sm:$0xf]
    %v4835 = vld [vmem:[%s4833 + $0x4] sm:$0xf]
    %v4836 = vld [vmem:[%s4833 + $0x8] sm:$0xf]
    %v4837 = vld [vmem:[%s4833 + $0xc] sm:$0xf]
    %v4842 = vunpack.c.l.b16 %v4834
    %v4843 = vunpack.c.l.b16 %v4835
    %v4844 = vunpack.c.l.b16 %v4836
    %v4845 = vunpack.c.l.b16 %v4837
    %v4846 = vpack.c.b16 %v4843, %v4842
    %v4847 = vpack.c.b16 %v4845, %v4844
    %4850 = vmatpush.bf16.msra.mxu0 0
    %4851 = vmatpush.bf16.msra.mxu0 0
    %4852 = vmatpush.bf16.msra.mxu0 0
    %4853 = vmatpush.bf16.msra.mxu0 0
    %4854 = vmatpush.bf16.msra.mxu0 0
    %4855 = vmatpush.bf16.msra.mxu0 0
    %4856 = vmatpush.bf16.msra.mxu0 %v4847
    %4857 = vmatpush.bf16.msra.mxu0 %v4846
    %4858 = vmatmul.bf16.gmra.mxu0 %v4799
    %v4859 = vpop.f32.mrf.mxu0
    %v4860 = vadd.f32 0.0, %v4859
    %v4861 = vpop.f32.mrf.mxu0
    %v4862 = vadd.f32 0.0, %v4861
    %4863 = vdwg.mxu0
    %v4864 = vmul.f32 %v4831, %v4860
    %v4865 = vmul.f32 %v4832, %v4862
    %s4866 = scalar_lea.vmem %s83, 32
    %v4867 = vld [vmem:[%s4866] sm:$0xf]
    %v4868 = vld [vmem:[%s4866 + $0x4] sm:$0xf]
    %v4869 = vld [vmem:[%s4866 + $0x8] sm:$0xf]
    %v4870 = vld [vmem:[%s4866 + $0xc] sm:$0xf]
    %v4871 = vld [vmem:[%s4866 + $0x10] sm:$0xf]
    %v4872 = vld [vmem:[%s4866 + $0x14] sm:$0xf]
    %v4873 = vld [vmem:[%s4866 + $0x18] sm:$0xf]
    %v4874 = vld [vmem:[%s4866 + $0x1c] sm:$0xf]
    %v4875 = vpack.c.bf16 %v4865, %v4864
    %v4884 = vunpack.c.l.b16 %v4867
    %v4885 = vunpack.c.l.b16 %v4868
    %v4886 = vunpack.c.l.b16 %v4869
    %v4887 = vunpack.c.l.b16 %v4870
    %v4888 = vunpack.c.l.b16 %v4871
    %v4889 = vunpack.c.l.b16 %v4872
    %v4890 = vunpack.c.l.b16 %v4873
    %v4891 = vunpack.c.l.b16 %v4874
    %v4892 = vpack.c.b16 %v4885, %v4884
    %v4893 = vpack.c.b16 %v4887, %v4886
    %v4894 = vpack.c.b16 %v4889, %v4888
    %v4895 = vpack.c.b16 %v4891, %v4890
    %v4901 = vsel %vm284, %v4875, 0
    %4903 = vmatpush.bf16.msra.mxu0 0
    %4904 = vmatpush.bf16.msra.mxu0 0
    %4905 = vmatpush.bf16.msra.mxu0 0
    %4906 = vmatpush.bf16.msra.mxu0 0
    %4907 = vmatpush.bf16.msra.mxu0 %v4895
    %4908 = vmatpush.bf16.msra.mxu0 %v4894
    %4909 = vmatpush.bf16.msra.mxu0 %v4893
    %4910 = vmatpush.bf16.msra.mxu0 %v4892
    %4911 = vmatmul.bf16.gmra.mxu0 %v4901
    %v4912 = vpop.f32.mrf.mxu0
    %v4913 = vadd.f32 0.0, %v4912
    %v4914 = vpop.f32.mrf.mxu0
    %v4915 = vadd.f32 0.0, %v4914
    %4916 = vdwg.mxu0
    %v4917 = vadd.f32 %v4737, %v4913
    %v4918 = vadd.f32 %v4738, %v4915
    %v4919 = vld [vmem:[%s85] sm:$0x1]
    %v4920 = vmul.f32 %v4917, %v4917
    %v4921 = vmul.f32 %v4918, %v4918
    %v4922 = vsel %vm325, %v4920, 0.0
    %4923 = vadd.xlane.f32.xlu0 %v4922
    %v4924 = vpop.xlane.xlu0 %4923
    %v4925 = vsel %vm325, %v4921, 0.0
    %4926 = vadd.xlane.f32.xlu0 %v4925
    %v4927 = vpop.xlane.xlu0 %4926
    %v4928 = vmul.f32 %v4924, %v339
    %v4929 = vmul.f32 %v4927, %v339
    %v4930 = vadd.f32 %v4928, 1e-06
    %v4931 = vadd.f32 %v4929, 1e-06
    %v4932 = vrsqrt.pop %v4930
    %v4933 = vmul.f32 %v4932, %v4930
    %v4934 = vmul.f32 %v4933, %v4932
    %v4935 = vmul.f32 0.5, %v4934
    %v4936 = vsub.f32 1.5, %v4935
    %v4937 = vmul.f32 %v4932, %v4936
    %vm4938 = vweird.f32 %v4930
    %vm4939 = vweird.f32 %v4932
    %vm4940 = vmor %vm4938, %vm4939
    %v4941 = vsel %vm4940, %v4932, %v4937
    %v4942 = vrsqrt.pop %v4931
    %v4943 = vmul.f32 %v4942, %v4931
    %v4944 = vmul.f32 %v4943, %v4942
    %v4945 = vmul.f32 0.5, %v4944
    %v4946 = vsub.f32 1.5, %v4945
    %v4947 = vmul.f32 %v4942, %v4946
    %vm4948 = vweird.f32 %v4931
    %vm4949 = vweird.f32 %v4942
    %vm4950 = vmor %vm4948, %vm4949
    %v4951 = vsel %vm4950, %v4942, %v4947
    %v4952 = vmul.f32 %v4917, %v4941
    %v4953 = vmul.f32 %v4918, %v4951
    %v4955 = vperm.slane %v4919, 0
    %v4957 = vmul.f32 %v4952, %v4955
    %v4958 = vmul.f32 %v4953, %v4955
    %v4959 = vld [vmem:[%s87] sm:$0xf]
    %v4960 = vld [vmem:[%s87 + $0x4] sm:$0xf]
    %v4961 = vld [vmem:[%s87 + $0x8] sm:$0xf]
    %v4962 = vld [vmem:[%s87 + $0xc] sm:$0xf]
    %v4963 = vpack.c.bf16 %v4958, %v4957
    %v4968 = vunpack.c.l.b16 %v4959
    %v4969 = vunpack.c.l.b16 %v4960
    %v4970 = vunpack.c.l.b16 %v4961
    %v4971 = vunpack.c.l.b16 %v4962
    %v4972 = vpack.c.b16 %v4969, %v4968
    %v4973 = vpack.c.b16 %v4971, %v4970
    %v4977 = vsel %vm325, %v4963, 0
    %4979 = vmatpush.bf16.msra.mxu0 0
    %4980 = vmatpush.bf16.msra.mxu0 0
    %4981 = vmatpush.bf16.msra.mxu0 0
    %4982 = vmatpush.bf16.msra.mxu0 0
    %4983 = vmatpush.bf16.msra.mxu0 0
    %4984 = vmatpush.bf16.msra.mxu0 0
    %4985 = vmatpush.bf16.msra.mxu0 %v4973
    %4986 = vmatpush.bf16.msra.mxu0 %v4972
    %4987 = vmatmul.bf16.gmra.mxu0 %v4977
    %v4988 = vpop.f32.mrf.mxu0
    %v4989 = vadd.f32 0.0, %v4988
    %v4990 = vpop.f32.mrf.mxu0
    %v4991 = vadd.f32 0.0, %v4990
    %4992 = vdwg.mxu0
    %v4993 = vld [vmem:[%s13] sm:$0xff]
    %v4994 = vld [vmem:[%s13 + $0x8] sm:$0xff]
    %v4995 = vsel %vm284, %v4989, -inf
    %4996 = vmax.xlane.f32.xlu0 %v4995
    %v4997 = vpop.xlane.xlu0 %4996
    %v4998 = vsel %vm284, %v4991, -inf
    %4999 = vmax.xlane.f32.xlu0 %v4998
    %v5000 = vpop.xlane.xlu0 %4999
    %v5001 = vsub.f32 %v4989, %v4997
    %v5002 = vsub.f32 %v4991, %v5000
    %v5003 = vmul.f32 %v5001, 1.442695
    %v5004 = vpow.pop %v5003
    %v5005 = vmul.f32 %v5002, 1.442695
    %v5006 = vpow.pop %v5005
    %v5007 = vsel %vm284, %v5004, 0.0
    %5008 = vadd.xlane.f32.xlu0 %v5007
    %v5009 = vpop.xlane.xlu0 %5008
    %v5010 = vsel %vm284, %v5006, 0.0
    %5011 = vadd.xlane.f32.xlu0 %v5010
    %v5012 = vpop.xlane.xlu0 %5011
    %v5013 = vlog2.pop %v5009
    %v5014 = vmul.f32 %v5013, 0.6931472
    %v5015 = vlog2.pop %v5012
    %v5016 = vmul.f32 %v5015, 0.6931472
    %v5017 = vadd.f32 %v5014, %v4997
    %v5018 = vadd.f32 %v5016, %v5000
    %v5019 = vmul.f32 %v4989, %v4993
    %v5020 = vmul.f32 %v4991, %v4994
    %v5021 = vsel %vm284, %v5019, 0.0
    %5022 = vadd.xlane.f32.xlu0 %v5021
    %v5023 = vpop.xlane.xlu0 %5022
    %v5024 = vsel %vm284, %v5020, 0.0
    %5025 = vadd.xlane.f32.xlu0 %v5024
    %v5026 = vpop.xlane.xlu0 %5025
    %v5027 = vsel %vm284, %v4993, 0.0
    %5028 = vadd.xlane.f32.xlu0 %v5027
    %v5029 = vpop.xlane.xlu0 %5028
    %v5030 = vsel %vm284, %v4994, 0.0
    %5031 = vadd.xlane.f32.xlu0 %v5030
    %v5032 = vpop.xlane.xlu0 %5031
    %v5033 = vsub.f32 %v5017, %v5023
    %v5034 = vsub.f32 %v5018, %v5026
    %v5035 = vmul.f32 %v5033, %v5029
    %v5036 = vmul.f32 %v5034, %v5032
    %v5037 = vadd.f32 %v5035, %v5036
    %v5038 = vrot.slane %v5037, 4
    %v5039 = vadd.f32 %v5037, %v5038
    %v5040 = vrot.slane %v5039, 2
    %v5041 = vadd.f32 %v5039, %v5040
    %v5042 = vrot.slane %v5041, 1
    %v5043 = vadd.f32 %v5041, %v5042
    %v5044 = vadd.f32 %v5029, %v5032
    %v5045 = vrot.slane %v5044, 4
    %v5046 = vadd.f32 %v5044, %v5045
    %v5047 = vrot.slane %v5046, 2
    %v5048 = vadd.f32 %v5046, %v5047
    %v5049 = vrot.slane %v5048, 1
    %v5050 = vadd.f32 %v5048, %v5049
    %v5051 = vmax.f32 %v5050, 1.0
    %v5052 = vrcp.pop %v5051
    %v5053 = vmul.f32 %v5051, %v5052
    %v5054 = vsub.f32 1.0, %v5053
    %v5055 = vmul.f32 %v5052, %v5054
    %v5056 = vadd.f32 %v5052, %v5055
    %vm5057 = vweird.f32 %v5051
    %vm5058 = vweird.f32 %v5052
    %vm5059 = vmor %vm5057, %vm5058
    %v5060 = vsel %vm5059, %v5052, %v5056
    %v5061 = vand.u32 2147483647, %v5051
    %vm5062 = vcmp.eq.f32.partialorder %v5061, 8.507059e+37
    %v5063 = vand.u32 %v5051, 2147483648
    %v5064 = vor.u32 1.1754944e-38, %v5063
    %v5065 = vsel %vm5062, %v5064, %v5060
    %v5066 = vmul.f32 %v5043, %v5065
    %vm5067 = vcmask 0
    %5068 = vst.msk [vmem:[#allocation2] sm:$0x1] %vm5067, %v5066
    // Predicated region
    $region178: #{forward.1} parent=1 // pred_check
      _
    $region179: #{forward.1} parent=1 // pred_check_branch
      %5070 = sbr.rel (0) target = $region181
    $region180: #{forward.1} parent=1 // pred_region
      %5072 = vsyncadd [#allocation3], 0
      %s5074 = sshll.u32 [#allocation2], 4
      %s5075 = int_to_ptr.vmem [resolvable:$true] %s5074
      %s5076 = sshll.u32 %s89, 4
      %s5077 = int_to_ptr.hbm [resolvable:$true] %s5076
      %5079 = dma.vmem_to_hbm [thread:$0]  %s5075, 16, %s5077, [#allocation3]
    $region181: #{forward.1} parent=1 // pred_fallthru
      _
    // Predicated region
    $region182: #{forward.1} parent=1 // pred_check
      _
    $region183: #{forward.1} parent=1 // pred_check_branch
      %5081 = sbr.rel (0) target = $region185
    $region184: #{forward.1} parent=1 // pred_region
      %5083 = dma.done [#allocation3], 16
    $region185: #{forward.1} parent=1 // pred_fallthru
      _
    %5084 = vsyncpa [#allocation3], 1

</llo_original>
